<compile_context>
chip_gen: v6e
topology: v6e:2x2x1
jax: 0.10.0
libtpu: 0.0.40
codegen_flags: <defaults>
</compile_context>

<pallas_src>
import math

import jax
import jax.numpy as jnp
from jax.experimental import pallas as pl
from jax.experimental.pallas import tpu as pltpu


# ---------------------------------------------------------------------------
# In-kernel building blocks (operate on values + the shared VMEM pad scratch)
# ---------------------------------------------------------------------------
def _conv3x3_acc(pad_ref, x, wmat_ref):
    """3x3 same-padding conv; returns the raw (H*W, Cout) f32 accumulator.

    x        : (H, W, Cin) f32 value
    pad_ref  : VMEM scratch, at least (H+2, W+2, Cin) f32 (halo zero-filled here)
    wmat_ref : (9*Cin, Cout) bf16 ref, rows ordered (dy, dx, cin) row-major
    """
    H, W, C = x.shape
    hp, wp = H + 2, W + 2
    # In-kernel halo padding: zero-fill the sub-block, then write the interior.
    pad_ref[0:hp, 0:wp, 0:C] = jnp.zeros((hp, wp, C), jnp.float32)
    pad_ref[1:H + 1, 1:W + 1, 0:C] = x
    # im2col: one (H*W, 9*Cin) patch tensor -> a single MXU matmul.
    cols = [pad_ref[dy:dy + H, dx:dx + W, 0:C].reshape(H * W, C)
            for dy in range(3) for dx in range(3)]
    patches = jnp.concatenate(cols, axis=-1).astype(jnp.bfloat16)
    return jnp.dot(patches, wmat_ref[...], preferred_element_type=jnp.float32)


def _conv3x3_relu(pad_ref, x, wmat_ref, b_ref):
    H, W, _ = x.shape
    acc = _conv3x3_acc(pad_ref, x, wmat_ref) + b_ref[...]   # f32 bias add
    acc = jnp.maximum(acc, 0.0)                             # f32 ReLU
    return acc.reshape(H, W, acc.shape[-1])


def _maxpool2x2(x):
    """2x2 max pool, stride 2, on an (H, W, C) value (no transposes)."""
    H, W, C = x.shape
    h2, w2 = H // 2, W // 2
    x = x.reshape(h2, 2, W, C)
    x = jnp.maximum(x[:, 0], x[:, 1])                  # pool rows   -> (h2, W, C)
    x = x.reshape(h2 * W, C).reshape(h2 * w2, 2, C)
    x = jnp.maximum(x[:, 0, :], x[:, 1, :])            # pool cols   -> (h2*w2, C)
    return x.reshape(h2, w2, C)


def _upsample2x2(x):
    """Nearest-neighbour 2x upsample of an (H, W, C) value."""
    H, W, C = x.shape
    # repeat each row twice
    x = jnp.broadcast_to(x[:, None, :, :], (H, 2, W, C)).reshape(2 * H, W, C)
    # repeat each column twice
    x = x.reshape(2 * H * W, C)
    x = jnp.broadcast_to(x[:, None, :], (2 * H * W, 2, C)).reshape(2 * H * W * 2, C)
    return x.reshape(2 * H, 2 * W, C)


# ---------------------------------------------------------------------------
# Fused U-Net kernel: one grid step == one batch element, whole forward pass.
# ---------------------------------------------------------------------------
def _make_unet_kernel(n_down):
    n_params = 5 * n_down + 4  # (w,b)*down + (w,b)bott + (wx,ws,b)*up + (w,b)head

    def kernel(x_ref, *rest):
        prm = rest[:n_params]
        o_ref = rest[n_params]
        pad_ref = rest[n_params + 1]

        x = x_ref[0]                                  # (H, W, Cin) f32
        p = 0
        skips = []

        # ---- down path: conv3x3 + ReLU -> skip ; 2x2 max-pool -> x
        for _ in range(n_down):
            wm, b = prm[p], prm[p + 1]
            p += 2
            skip = _conv3x3_relu(pad_ref, x, wm, b)
            skips.append(skip)
            x = _maxpool2x2(skip)

        # ---- bottleneck
        wm, b = prm[p], prm[p + 1]
        p += 2
        x = _conv3x3_relu(pad_ref, x, wm, b)

        # ---- up path: upsample ; conv over concat([x, skip]) done as two matmuls
        for _ in range(n_down):
            wx, ws, b = prm[p], prm[p + 1], prm[p + 2]
            p += 3
            skip = skips.pop()
            x_up = _upsample2x2(x)
            acc = (_conv3x3_acc(pad_ref, x_up, wx)
                   + _conv3x3_acc(pad_ref, skip, ws)
                   + b[...])
            acc = jnp.maximum(acc, 0.0)
            H, W, _ = skip.shape
            x = acc.reshape(H, W, acc.shape[-1])

        # ---- head: 1x1 conv fused into the epilogue, no activation
        wh, bh = prm[p], prm[p + 1]
        H, W, C = x.shape
        flat = x.reshape(H * W, C).astype(jnp.bfloat16)
        out = jnp.dot(flat, wh[...], preferred_element_type=jnp.float32) + bh[...]
        o_ref[0] = out.astype(o_ref.dtype)            # (H*W, Cout)

    return kernel


# ---------------------------------------------------------------------------
# Parameter packing: conv-form params -> kernel-ready matmul form
# ---------------------------------------------------------------------------
def _pack_params(params):
    def wmat3x3(w):                        # (3,3,cin,cout) -> (9*cin, cout) bf16
        kh, kw, cin, cout = w.shape
        return w.reshape(kh * kw * cin, cout).astype(jnp.bfloat16)

    def brow(b):
        return b.reshape(1, -1).astype(jnp.float32)

    n_down = len(params["down"])
    flat, cins = [], []
    for (w, b) in params["down"]:
        flat += [wmat3x3(w), brow(b)]
        cins.append(w.shape[2])
    w, b = params["bottleneck"]
    flat += [wmat3x3(w), brow(b)]
    cins.append(w.shape[2])
    for i, (w, b) in enumerate(params["up"]):
        # conv(concat([x, skip], ch)) == conv(x; w[:,:, :cin_x]) + conv(skip; w[:,:, cin_x:])
        skip_c = params["down"][n_down - 1 - i][0].shape[-1]
        cin_x = w.shape[2] - skip_c
        flat += [wmat3x3(w[:, :, :cin_x, :]), wmat3x3(w[:, :, cin_x:, :]), brow(b)]
        cins += [cin_x, skip_c]
    w, b = params["head"]                  # (1,1,cin,cout)
    flat += [w.reshape(w.shape[2], w.shape[3]).astype(jnp.bfloat16), brow(b)]
    return flat, max(cins)


# ---------------------------------------------------------------------------
# Forward (public interface identical to the PyTorch module: NCHW in / out)
# ---------------------------------------------------------------------------
def base_unet_forward(x_nchw, params):
    N, Cin, H, W = x_nchw.shape
    n_down = len(params["down"])
    assert H % (2 ** n_down) == 0 and W % (2 ** n_down) == 0, \
        "spatial dims must be divisible by 2**n_down"

    x = jnp.transpose(x_nchw, (0, 2, 3, 1))           # NCHW -> NHWC (tiny, once)
    flat, cmax = _pack_params(params)
    out_c = params["head"][0].shape[-1]

    kernel = _make_unet_kernel(n_down)

    in_specs = [pl.BlockSpec((1, H, W, Cin), lambda n: (n, 0, 0, 0))]
    in_specs += [pl.BlockSpec(p.shape, lambda n: (0, 0)) for p in flat]

    out = pl.pallas_call(
        kernel,
        out_shape=jax.ShapeDtypeStruct((N, H * W, out_c), jnp.float32),
        grid=(N,),
        in_specs=in_specs,
        out_specs=pl.BlockSpec((1, H * W, out_c), lambda n: (n, 0, 0)),
        scratch_shapes=[pltpu.VMEM((H + 2, W + 2, cmax), jnp.float32)],
        compiler_params=pltpu.CompilerParams(
            dimension_semantics=("parallel",)),        # batch across TCs on v7x
    )(x, *flat)

    # (N, H*W, Cout) kernel output -> NCHW (cheap wrapper-side layout op)
    return out.transpose(0, 2, 1).reshape(N, out_c, H, W)


# ---------------------------------------------------------------------------
# Parameters (kaiming_normal fan_out like the PyTorch module's __init__)
# ---------------------------------------------------------------------------
def _conv_params(key, kh, kw, cin, cout):
    kw_key, kb_key = jax.random.split(key)
    fan_out = cout * kh * kw
    std = math.sqrt(2.0 / fan_out)                    # kaiming_normal_, fan_out
    w = jax.random.normal(kw_key, (kh, kw, cin, cout), jnp.float32) * std
    fan_in = cin * kh * kw
    bound = 1.0 / math.sqrt(fan_in)                   # PyTorch default bias init
    b = jax.random.uniform(kb_key, (cout,), jnp.float32, -bound, bound)
    return w, b


def init_params(key, in_ch=4, feats=(8, 16), bott_ch=32, out_ch=3):
    keys = jax.random.split(key, 2 * len(feats) + 2)
    ki = iter(keys)
    params = {"down": [], "up": [], "bottleneck": None, "head": None}

    c = in_ch
    for f in feats:                                   # down path convs
        params["down"].append(_conv_params(next(ki), 3, 3, c, f))
        c = f
    params["bottleneck"] = _conv_params(next(ki), 3, 3, c, bott_ch)

    c_up = bott_ch
    for f_skip in reversed(feats):                    # up path convs
        params["up"].append(_conv_params(next(ki), 3, 3, c_up + f_skip, f_skip))
        c_up = f_skip
    params["head"] = _conv_params(next(ki), 1, 1, c_up, out_ch)
    return params


# ---------------------------------------------------------------------------
if __name__ == "__main__":
    key = jax.random.PRNGKey(0)
    kx, kp = jax.random.split(key)

    x = jax.random.normal(kx, (2, 4, 16, 16), jnp.float32)   # NCHW like PyTorch
    params = init_params(kp, in_ch=4, feats=(8, 16), bott_ch=32, out_ch=3)

    fwd = jax.jit(lambda xx: base_unet_forward(xx, params))
    out = fwd(x)
    jax.block_until_ready(out)

    assert out.shape == (2, 3, 16, 16), out.shape
    assert out.dtype == jnp.float32
    print("KERNEL_OK")
</pallas_src>

<mosaic_0001>
module attributes {stable_mosaic.version = 11 : i64} {
  func.func @kernel(%arg0: i32, %arg1: memref<1x16x16x4xf32, #tpu.memory_space<vmem>>, %arg2: memref<36x8xbf16, #tpu.memory_space<vmem>>, %arg3: memref<1x8xf32, #tpu.memory_space<vmem>>, %arg4: memref<72x16xbf16, #tpu.memory_space<vmem>>, %arg5: memref<1x16xf32, #tpu.memory_space<vmem>>, %arg6: memref<144x32xbf16, #tpu.memory_space<vmem>>, %arg7: memref<1x32xf32, #tpu.memory_space<vmem>>, %arg8: memref<288x16xbf16, #tpu.memory_space<vmem>>, %arg9: memref<144x16xbf16, #tpu.memory_space<vmem>>, %arg10: memref<1x16xf32, #tpu.memory_space<vmem>>, %arg11: memref<144x8xbf16, #tpu.memory_space<vmem>>, %arg12: memref<72x8xbf16, #tpu.memory_space<vmem>>, %arg13: memref<1x8xf32, #tpu.memory_space<vmem>>, %arg14: memref<8x3xbf16, #tpu.memory_space<vmem>>, %arg15: memref<1x3xf32, #tpu.memory_space<vmem>>, %arg16: memref<1x256x3xf32, #tpu.memory_space<vmem>>, %arg17: memref<18x18x32xf32, #tpu.memory_space<vmem>>) attributes {dimension_semantics = [#tpu.dimension_semantics<parallel>], iteration_bounds = array<i64: 2>, scalar_prefetch = 0 : i64, scratch_operands = 1 : i64, tpu.core_type = #tpu.core_type<tc>, window_params = [{transform_indices = @transform_0, window_bounds = array<i64: 1, 16, 16, 4>}, {pipeline_mode = #tpu.pipeline_mode<synchronous>, transform_indices = @transform_1, window_bounds = array<i64: 36, 8>}, {pipeline_mode = #tpu.pipeline_mode<synchronous>, transform_indices = @transform_2, window_bounds = array<i64: 1, 8>}, {pipeline_mode = #tpu.pipeline_mode<synchronous>, transform_indices = @transform_3, window_bounds = array<i64: 72, 16>}, {pipeline_mode = #tpu.pipeline_mode<synchronous>, transform_indices = @transform_4, window_bounds = array<i64: 1, 16>}, {pipeline_mode = #tpu.pipeline_mode<synchronous>, transform_indices = @transform_5, window_bounds = array<i64: 144, 32>}, {pipeline_mode = #tpu.pipeline_mode<synchronous>, transform_indices = @transform_6, window_bounds = array<i64: 1, 32>}, {pipeline_mode = #tpu.pipeline_mode<synchronous>, transform_indices = @transform_7, window_bounds = array<i64: 288, 16>}, {pipeline_mode = #tpu.pipeline_mode<synchronous>, transform_indices = @transform_8, window_bounds = array<i64: 144, 16>}, {pipeline_mode = #tpu.pipeline_mode<synchronous>, transform_indices = @transform_9, window_bounds = array<i64: 1, 16>}, {pipeline_mode = #tpu.pipeline_mode<synchronous>, transform_indices = @transform_10, window_bounds = array<i64: 144, 8>}, {pipeline_mode = #tpu.pipeline_mode<synchronous>, transform_indices = @transform_11, window_bounds = array<i64: 72, 8>}, {pipeline_mode = #tpu.pipeline_mode<synchronous>, transform_indices = @transform_12, window_bounds = array<i64: 1, 8>}, {pipeline_mode = #tpu.pipeline_mode<synchronous>, transform_indices = @transform_13, window_bounds = array<i64: 8, 3>}, {pipeline_mode = #tpu.pipeline_mode<synchronous>, transform_indices = @transform_14, window_bounds = array<i64: 1, 3>}, {transform_indices = @transform_15, window_bounds = array<i64: 1, 256, 3>}]} {
    %c0 = arith.constant 0 : index
    %c0_0 = arith.constant 0 : index
    %c0_1 = arith.constant 0 : index
    %c0_2 = arith.constant 0 : index
    %0 = vector.load %arg1[%c0, %c0_0, %c0_1, %c0_2] : memref<1x16x16x4xf32, #tpu.memory_space<vmem>>, vector<1x16x16x4xf32>
    %1 = vector.shape_cast %0 : vector<1x16x16x4xf32> to vector<16x16x4xf32>
    %cst = arith.constant 0.000000e+00 : f32
    %2 = vector.broadcast %cst : f32 to vector<18x18x4xf32>
    %c0_3 = arith.constant 0 : index
    %c0_4 = arith.constant 0 : index
    %c0_5 = arith.constant 0 : index
    %3 = vector.load %arg17[%c0_3, %c0_4, %c0_5] : memref<18x18x32xf32, #tpu.memory_space<vmem>>, vector<18x18x4xf32>
    tpu.vector_store %arg17[%c0_3, %c0_4, %c0_5], %2 {strides = array<i32>} : memref<18x18x32xf32, #tpu.memory_space<vmem>>, vector<18x18x4xf32>,
    %c1 = arith.constant 1 : index
    %c1_6 = arith.constant 1 : index
    %c0_7 = arith.constant 0 : index
    %4 = vector.load %arg17[%c1, %c1_6, %c0_7] : memref<18x18x32xf32, #tpu.memory_space<vmem>>, vector<16x16x4xf32>
    tpu.vector_store %arg17[%c1, %c1_6, %c0_7], %1 {strides = array<i32>} : memref<18x18x32xf32, #tpu.memory_space<vmem>>, vector<16x16x4xf32>,
    %c0_8 = arith.constant 0 : index
    %c0_9 = arith.constant 0 : index
    %c0_10 = arith.constant 0 : index
    %5 = vector.load %arg17[%c0_8, %c0_9, %c0_10] : memref<18x18x32xf32, #tpu.memory_space<vmem>>, vector<16x16x4xf32>
    %6 = vector.shape_cast %5 : vector<16x16x4xf32> to vector<256x4xf32>
    %c0_11 = arith.constant 0 : index
    %c1_12 = arith.constant 1 : index
    %c0_13 = arith.constant 0 : index
    %7 = vector.load %arg17[%c0_11, %c1_12, %c0_13] : memref<18x18x32xf32, #tpu.memory_space<vmem>>, vector<16x16x4xf32>
    %8 = vector.shape_cast %7 : vector<16x16x4xf32> to vector<256x4xf32>
    %c0_14 = arith.constant 0 : index
    %c2 = arith.constant 2 : index
    %c0_15 = arith.constant 0 : index
    %9 = vector.load %arg17[%c0_14, %c2, %c0_15] : memref<18x18x32xf32, #tpu.memory_space<vmem>>, vector<16x16x4xf32>
    %10 = vector.shape_cast %9 : vector<16x16x4xf32> to vector<256x4xf32>
    %c1_16 = arith.constant 1 : index
    %c0_17 = arith.constant 0 : index
    %c0_18 = arith.constant 0 : index
    %11 = vector.load %arg17[%c1_16, %c0_17, %c0_18] : memref<18x18x32xf32, #tpu.memory_space<vmem>>, vector<16x16x4xf32>
    %12 = vector.shape_cast %11 : vector<16x16x4xf32> to vector<256x4xf32>
    %c1_19 = arith.constant 1 : index
    %c1_20 = arith.constant 1 : index
    %c0_21 = arith.constant 0 : index
    %13 = vector.load %arg17[%c1_19, %c1_20, %c0_21] : memref<18x18x32xf32, #tpu.memory_space<vmem>>, vector<16x16x4xf32>
    %14 = vector.shape_cast %13 : vector<16x16x4xf32> to vector<256x4xf32>
    %c1_22 = arith.constant 1 : index
    %c2_23 = arith.constant 2 : index
    %c0_24 = arith.constant 0 : index
    %15 = vector.load %arg17[%c1_22, %c2_23, %c0_24] : memref<18x18x32xf32, #tpu.memory_space<vmem>>, vector<16x16x4xf32>
    %16 = vector.shape_cast %15 : vector<16x16x4xf32> to vector<256x4xf32>
    %c2_25 = arith.constant 2 : index
    %c0_26 = arith.constant 0 : index
    %c0_27 = arith.constant 0 : index
    %17 = vector.load %arg17[%c2_25, %c0_26, %c0_27] : memref<18x18x32xf32, #tpu.memory_space<vmem>>, vector<16x16x4xf32>
    %18 = vector.shape_cast %17 : vector<16x16x4xf32> to vector<256x4xf32>
    %c2_28 = arith.constant 2 : index
    %c1_29 = arith.constant 1 : index
    %c0_30 = arith.constant 0 : index
    %19 = vector.load %arg17[%c2_28, %c1_29, %c0_30] : memref<18x18x32xf32, #tpu.memory_space<vmem>>, vector<16x16x4xf32>
    %20 = vector.shape_cast %19 : vector<16x16x4xf32> to vector<256x4xf32>
    %c2_31 = arith.constant 2 : index
    %c2_32 = arith.constant 2 : index
    %c0_33 = arith.constant 0 : index
    %21 = vector.load %arg17[%c2_31, %c2_32, %c0_33] : memref<18x18x32xf32, #tpu.memory_space<vmem>>, vector<16x16x4xf32>
    %22 = vector.shape_cast %21 : vector<16x16x4xf32> to vector<256x4xf32>
    %23 = tpu.concatenate %6, %8, %10, %12, %14, %16, %18, %20, %22 in 1 : vector<256x4xf32>, vector<256x4xf32>, vector<256x4xf32>, vector<256x4xf32>, vector<256x4xf32>, vector<256x4xf32>, vector<256x4xf32>, vector<256x4xf32>, vector<256x4xf32> -> vector<256x36xf32>
    %24 = arith.truncf %23 : vector<256x36xf32> to vector<256x36xbf16>
    %c0_34 = arith.constant 0 : index
    %c0_35 = arith.constant 0 : index
    %25 = vector.load %arg2[%c0_34, %c0_35] : memref<36x8xbf16, #tpu.memory_space<vmem>>, vector<36x8xbf16>
    %cst_36 = arith.constant dense<0.000000e+00> : vector<256x8xf32>
    %26 = tpu.matmul %24, %25, %cst_36 {dimension_numbers = #tpu.dot_dimension_numbers<[1], [0], [0], [1], [0, 0, 1, 1], [], []>} : vector<256x36xbf16>, vector<36x8xbf16>, vector<256x8xf32> -> vector<256x8xf32>
    %c0_37 = arith.constant 0 : index
    %c0_38 = arith.constant 0 : index
    %27 = vector.load %arg3[%c0_37, %c0_38] : memref<1x8xf32, #tpu.memory_space<vmem>>, vector<1x8xf32>
    %28 = vector.broadcast %27 : vector<1x8xf32> to vector<256x8xf32>
    %29 = arith.addf %26, %28 : vector<256x8xf32>
    %cst_39 = arith.constant 0.000000e+00 : f32
    %30 = vector.broadcast %cst_39 : f32 to vector<256x8xf32>
    %31 = arith.maximumf %29, %30 : vector<256x8xf32>
    %32 = vector.shape_cast %31 : vector<256x8xf32> to vector<16x16x8xf32>
    %33 = vector.shape_cast %32 : vector<16x16x8xf32> to vector<8x2x16x8xf32>
    %34 = vector.extract_strided_slice %33 {offsets = [0, 0, 0, 0], sizes = [8, 1, 16, 8], strides = [1, 1, 1, 1]} : vector<8x2x16x8xf32> to vector<8x1x16x8xf32>
    %35 = vector.shape_cast %34 : vector<8x1x16x8xf32> to vector<8x16x8xf32>
    %36 = vector.extract_strided_slice %33 {offsets = [0, 1, 0, 0], sizes = [8, 1, 16, 8], strides = [1, 1, 1, 1]} : vector<8x2x16x8xf32> to vector<8x1x16x8xf32>
    %37 = vector.shape_cast %36 : vector<8x1x16x8xf32> to vector<8x16x8xf32>
    %38 = arith.maximumf %35, %37 : vector<8x16x8xf32>
    %39 = vector.shape_cast %38 : vector<8x16x8xf32> to vector<128x8xf32>
    %40 = vector.shape_cast %39 : vector<128x8xf32> to vector<64x2x8xf32>
    %41 = vector.extract_strided_slice %40 {offsets = [0, 0, 0], sizes = [64, 1, 8], strides = [1, 1, 1]} : vector<64x2x8xf32> to vector<64x1x8xf32>
    %42 = vector.shape_cast %41 : vector<64x1x8xf32> to vector<64x8xf32>
    %43 = vector.extract_strided_slice %40 {offsets = [0, 1, 0], sizes = [64, 1, 8], strides = [1, 1, 1]} : vector<64x2x8xf32> to vector<64x1x8xf32>
    %44 = vector.shape_cast %43 : vector<64x1x8xf32> to vector<64x8xf32>
    %45 = arith.maximumf %42, %44 : vector<64x8xf32>
    %46 = vector.shape_cast %45 : vector<64x8xf32> to vector<8x8x8xf32>
    %cst_40 = arith.constant 0.000000e+00 : f32
    %47 = vector.broadcast %cst_40 : f32 to vector<10x10x8xf32>
    %c0_41 = arith.constant 0 : index
    %c0_42 = arith.constant 0 : index
    %c0_43 = arith.constant 0 : index
    %48 = vector.load %arg17[%c0_41, %c0_42, %c0_43] : memref<18x18x32xf32, #tpu.memory_space<vmem>>, vector<10x10x8xf32>
    tpu.vector_store %arg17[%c0_41, %c0_42, %c0_43], %47 {strides = array<i32>} : memref<18x18x32xf32, #tpu.memory_space<vmem>>, vector<10x10x8xf32>,
    %c1_44 = arith.constant 1 : index
    %c1_45 = arith.constant 1 : index
    %c0_46 = arith.constant 0 : index
    %49 = vector.load %arg17[%c1_44, %c1_45, %c0_46] : memref<18x18x32xf32, #tpu.memory_space<vmem>>, vector<8x8x8xf32>
    tpu.vector_store %arg17[%c1_44, %c1_45, %c0_46], %46 {strides = array<i32>} : memref<18x18x32xf32, #tpu.memory_space<vmem>>, vector<8x8x8xf32>,
    %c0_47 = arith.constant 0 : index
    %c0_48 = arith.constant 0 : index
    %c0_49 = arith.constant 0 : index
    %50 = vector.load %arg17[%c0_47, %c0_48, %c0_49] : memref<18x18x32xf32, #tpu.memory_space<vmem>>, vector<8x8x8xf32>
    %51 = vector.shape_cast %50 : vector<8x8x8xf32> to vector<64x8xf32>
    %c0_50 = arith.constant 0 : index
    %c1_51 = arith.constant 1 : index
    %c0_52 = arith.constant 0 : index
    %52 = vector.load %arg17[%c0_50, %c1_51, %c0_52] : memref<18x18x32xf32, #tpu.memory_space<vmem>>, vector<8x8x8xf32>
    %53 = vector.shape_cast %52 : vector<8x8x8xf32> to vector<64x8xf32>
    %c0_53 = arith.constant 0 : index
    %c2_54 = arith.constant 2 : index
    %c0_55 = arith.constant 0 : index
    %54 = vector.load %arg17[%c0_53, %c2_54, %c0_55] : memref<18x18x32xf32, #tpu.memory_space<vmem>>, vector<8x8x8xf32>
    %55 = vector.shape_cast %54 : vector<8x8x8xf32> to vector<64x8xf32>
    %c1_56 = arith.constant 1 : index
    %c0_57 = arith.constant 0 : index
    %c0_58 = arith.constant 0 : index
    %56 = vector.load %arg17[%c1_56, %c0_57, %c0_58] : memref<18x18x32xf32, #tpu.memory_space<vmem>>, vector<8x8x8xf32>
    %57 = vector.shape_cast %56 : vector<8x8x8xf32> to vector<64x8xf32>
    %c1_59 = arith.constant 1 : index
    %c1_60 = arith.constant 1 : index
    %c0_61 = arith.constant 0 : index
    %58 = vector.load %arg17[%c1_59, %c1_60, %c0_61] : memref<18x18x32xf32, #tpu.memory_space<vmem>>, vector<8x8x8xf32>
    %59 = vector.shape_cast %58 : vector<8x8x8xf32> to vector<64x8xf32>
    %c1_62 = arith.constant 1 : index
    %c2_63 = arith.constant 2 : index
    %c0_64 = arith.constant 0 : index
    %60 = vector.load %arg17[%c1_62, %c2_63, %c0_64] : memref<18x18x32xf32, #tpu.memory_space<vmem>>, vector<8x8x8xf32>
    %61 = vector.shape_cast %60 : vector<8x8x8xf32> to vector<64x8xf32>
    %c2_65 = arith.constant 2 : index
    %c0_66 = arith.constant 0 : index
    %c0_67 = arith.constant 0 : index
    %62 = vector.load %arg17[%c2_65, %c0_66, %c0_67] : memref<18x18x32xf32, #tpu.memory_space<vmem>>, vector<8x8x8xf32>
    %63 = vector.shape_cast %62 : vector<8x8x8xf32> to vector<64x8xf32>
    %c2_68 = arith.constant 2 : index
    %c1_69 = arith.constant 1 : index
    %c0_70 = arith.constant 0 : index
    %64 = vector.load %arg17[%c2_68, %c1_69, %c0_70] : memref<18x18x32xf32, #tpu.memory_space<vmem>>, vector<8x8x8xf32>
    %65 = vector.shape_cast %64 : vector<8x8x8xf32> to vector<64x8xf32>
    %c2_71 = arith.constant 2 : index
    %c2_72 = arith.constant 2 : index
    %c0_73 = arith.constant 0 : index
    %66 = vector.load %arg17[%c2_71, %c2_72, %c0_73] : memref<18x18x32xf32, #tpu.memory_space<vmem>>, vector<8x8x8xf32>
    %67 = vector.shape_cast %66 : vector<8x8x8xf32> to vector<64x8xf32>
    %68 = tpu.concatenate %51, %53, %55, %57, %59, %61, %63, %65, %67 in 1 : vector<64x8xf32>, vector<64x8xf32>, vector<64x8xf32>, vector<64x8xf32>, vector<64x8xf32>, vector<64x8xf32>, vector<64x8xf32>, vector<64x8xf32>, vector<64x8xf32> -> vector<64x72xf32>
    %69 = arith.truncf %68 : vector<64x72xf32> to vector<64x72xbf16>
    %c0_74 = arith.constant 0 : index
    %c0_75 = arith.constant 0 : index
    %70 = vector.load %arg4[%c0_74, %c0_75] : memref<72x16xbf16, #tpu.memory_space<vmem>>, vector<72x16xbf16>
    %cst_76 = arith.constant dense<0.000000e+00> : vector<64x16xf32>
    %71 = tpu.matmul %69, %70, %cst_76 {dimension_numbers = #tpu.dot_dimension_numbers<[1], [0], [0], [1], [0, 0, 1, 1], [], []>} : vector<64x72xbf16>, vector<72x16xbf16>, vector<64x16xf32> -> vector<64x16xf32>
    %c0_77 = arith.constant 0 : index
    %c0_78 = arith.constant 0 : index
    %72 = vector.load %arg5[%c0_77, %c0_78] : memref<1x16xf32, #tpu.memory_space<vmem>>, vector<1x16xf32>
    %73 = vector.broadcast %72 : vector<1x16xf32> to vector<64x16xf32>
    %74 = arith.addf %71, %73 : vector<64x16xf32>
    %cst_79 = arith.constant 0.000000e+00 : f32
    %75 = vector.broadcast %cst_79 : f32 to vector<64x16xf32>
    %76 = arith.maximumf %74, %75 : vector<64x16xf32>
    %77 = vector.shape_cast %76 : vector<64x16xf32> to vector<8x8x16xf32>
    %78 = vector.shape_cast %77 : vector<8x8x16xf32> to vector<4x2x8x16xf32>
    %79 = vector.extract_strided_slice %78 {offsets = [0, 0, 0, 0], sizes = [4, 1, 8, 16], strides = [1, 1, 1, 1]} : vector<4x2x8x16xf32> to vector<4x1x8x16xf32>
    %80 = vector.shape_cast %79 : vector<4x1x8x16xf32> to vector<4x8x16xf32>
    %81 = vector.extract_strided_slice %78 {offsets = [0, 1, 0, 0], sizes = [4, 1, 8, 16], strides = [1, 1, 1, 1]} : vector<4x2x8x16xf32> to vector<4x1x8x16xf32>
    %82 = vector.shape_cast %81 : vector<4x1x8x16xf32> to vector<4x8x16xf32>
    %83 = arith.maximumf %80, %82 : vector<4x8x16xf32>
    %84 = vector.shape_cast %83 : vector<4x8x16xf32> to vector<32x16xf32>
    %85 = vector.shape_cast %84 : vector<32x16xf32> to vector<16x2x16xf32>
    %86 = vector.extract_strided_slice %85 {offsets = [0, 0, 0], sizes = [16, 1, 16], strides = [1, 1, 1]} : vector<16x2x16xf32> to vector<16x1x16xf32>
    %87 = vector.shape_cast %86 : vector<16x1x16xf32> to vector<16x16xf32>
    %88 = vector.extract_strided_slice %85 {offsets = [0, 1, 0], sizes = [16, 1, 16], strides = [1, 1, 1]} : vector<16x2x16xf32> to vector<16x1x16xf32>
    %89 = vector.shape_cast %88 : vector<16x1x16xf32> to vector<16x16xf32>
    %90 = arith.maximumf %87, %89 : vector<16x16xf32>
    %91 = vector.shape_cast %90 : vector<16x16xf32> to vector<4x4x16xf32>
    %cst_80 = arith.constant 0.000000e+00 : f32
    %92 = vector.broadcast %cst_80 : f32 to vector<6x6x16xf32>
    %c0_81 = arith.constant 0 : index
    %c0_82 = arith.constant 0 : index
    %c0_83 = arith.constant 0 : index
    %93 = vector.load %arg17[%c0_81, %c0_82, %c0_83] : memref<18x18x32xf32, #tpu.memory_space<vmem>>, vector<6x6x16xf32>
    tpu.vector_store %arg17[%c0_81, %c0_82, %c0_83], %92 {strides = array<i32>} : memref<18x18x32xf32, #tpu.memory_space<vmem>>, vector<6x6x16xf32>,
    %c1_84 = arith.constant 1 : index
    %c1_85 = arith.constant 1 : index
    %c0_86 = arith.constant 0 : index
    %94 = vector.load %arg17[%c1_84, %c1_85, %c0_86] : memref<18x18x32xf32, #tpu.memory_space<vmem>>, vector<4x4x16xf32>
    tpu.vector_store %arg17[%c1_84, %c1_85, %c0_86], %91 {strides = array<i32>} : memref<18x18x32xf32, #tpu.memory_space<vmem>>, vector<4x4x16xf32>,
    %c0_87 = arith.constant 0 : index
    %c0_88 = arith.constant 0 : index
    %c0_89 = arith.constant 0 : index
    %95 = vector.load %arg17[%c0_87, %c0_88, %c0_89] : memref<18x18x32xf32, #tpu.memory_space<vmem>>, vector<4x4x16xf32>
    %96 = vector.shape_cast %95 : vector<4x4x16xf32> to vector<16x16xf32>
    %c0_90 = arith.constant 0 : index
    %c1_91 = arith.constant 1 : index
    %c0_92 = arith.constant 0 : index
    %97 = vector.load %arg17[%c0_90, %c1_91, %c0_92] : memref<18x18x32xf32, #tpu.memory_space<vmem>>, vector<4x4x16xf32>
    %98 = vector.shape_cast %97 : vector<4x4x16xf32> to vector<16x16xf32>
    %c0_93 = arith.constant 0 : index
    %c2_94 = arith.constant 2 : index
    %c0_95 = arith.constant 0 : index
    %99 = vector.load %arg17[%c0_93, %c2_94, %c0_95] : memref<18x18x32xf32, #tpu.memory_space<vmem>>, vector<4x4x16xf32>
    %100 = vector.shape_cast %99 : vector<4x4x16xf32> to vector<16x16xf32>
    %c1_96 = arith.constant 1 : index
    %c0_97 = arith.constant 0 : index
    %c0_98 = arith.constant 0 : index
    %101 = vector.load %arg17[%c1_96, %c0_97, %c0_98] : memref<18x18x32xf32, #tpu.memory_space<vmem>>, vector<4x4x16xf32>
    %102 = vector.shape_cast %101 : vector<4x4x16xf32> to vector<16x16xf32>
    %c1_99 = arith.constant 1 : index
    %c1_100 = arith.constant 1 : index
    %c0_101 = arith.constant 0 : index
    %103 = vector.load %arg17[%c1_99, %c1_100, %c0_101] : memref<18x18x32xf32, #tpu.memory_space<vmem>>, vector<4x4x16xf32>
    %104 = vector.shape_cast %103 : vector<4x4x16xf32> to vector<16x16xf32>
    %c1_102 = arith.constant 1 : index
    %c2_103 = arith.constant 2 : index
    %c0_104 = arith.constant 0 : index
    %105 = vector.load %arg17[%c1_102, %c2_103, %c0_104] : memref<18x18x32xf32, #tpu.memory_space<vmem>>, vector<4x4x16xf32>
    %106 = vector.shape_cast %105 : vector<4x4x16xf32> to vector<16x16xf32>
    %c2_105 = arith.constant 2 : index
    %c0_106 = arith.constant 0 : index
    %c0_107 = arith.constant 0 : index
    %107 = vector.load %arg17[%c2_105, %c0_106, %c0_107] : memref<18x18x32xf32, #tpu.memory_space<vmem>>, vector<4x4x16xf32>
    %108 = vector.shape_cast %107 : vector<4x4x16xf32> to vector<16x16xf32>
    %c2_108 = arith.constant 2 : index
    %c1_109 = arith.constant 1 : index
    %c0_110 = arith.constant 0 : index
    %109 = vector.load %arg17[%c2_108, %c1_109, %c0_110] : memref<18x18x32xf32, #tpu.memory_space<vmem>>, vector<4x4x16xf32>
    %110 = vector.shape_cast %109 : vector<4x4x16xf32> to vector<16x16xf32>
    %c2_111 = arith.constant 2 : index
    %c2_112 = arith.constant 2 : index
    %c0_113 = arith.constant 0 : index
    %111 = vector.load %arg17[%c2_111, %c2_112, %c0_113] : memref<18x18x32xf32, #tpu.memory_space<vmem>>, vector<4x4x16xf32>
    %112 = vector.shape_cast %111 : vector<4x4x16xf32> to vector<16x16xf32>
    %113 = tpu.concatenate %96, %98, %100, %102, %104, %106, %108, %110, %112 in 1 : vector<16x16xf32>, vector<16x16xf32>, vector<16x16xf32>, vector<16x16xf32>, vector<16x16xf32>, vector<16x16xf32>, vector<16x16xf32>, vector<16x16xf32>, vector<16x16xf32> -> vector<16x144xf32>
    %114 = arith.truncf %113 : vector<16x144xf32> to vector<16x144xbf16>
    %c0_114 = arith.constant 0 : index
    %c0_115 = arith.constant 0 : index
    %115 = vector.load %arg6[%c0_114, %c0_115] : memref<144x32xbf16, #tpu.memory_space<vmem>>, vector<144x32xbf16>
    %cst_116 = arith.constant dense<0.000000e+00> : vector<16x32xf32>
    %116 = tpu.matmul %114, %115, %cst_116 {dimension_numbers = #tpu.dot_dimension_numbers<[1], [0], [0], [1], [0, 0, 1, 1], [], []>} : vector<16x144xbf16>, vector<144x32xbf16>, vector<16x32xf32> -> vector<16x32xf32>
    %c0_117 = arith.constant 0 : index
    %c0_118 = arith.constant 0 : index
    %117 = vector.load %arg7[%c0_117, %c0_118] : memref<1x32xf32, #tpu.memory_space<vmem>>, vector<1x32xf32>
    %118 = vector.broadcast %117 : vector<1x32xf32> to vector<16x32xf32>
    %119 = arith.addf %116, %118 : vector<16x32xf32>
    %cst_119 = arith.constant 0.000000e+00 : f32
    %120 = vector.broadcast %cst_119 : f32 to vector<16x32xf32>
    %121 = arith.maximumf %119, %120 : vector<16x32xf32>
    %122 = vector.shape_cast %121 : vector<16x32xf32> to vector<4x4x32xf32>
    %123 = vector.shape_cast %122 : vector<4x4x32xf32> to vector<4x1x4x32xf32>
    %124 = vector.shape_cast %123 : vector<4x1x4x32xf32> to vector<4x1x4x32xf32>
    %125 = vector.broadcast %124 : vector<4x1x4x32xf32> to vector<4x2x4x32xf32>
    %126 = vector.shape_cast %125 : vector<4x2x4x32xf32> to vector<8x4x32xf32>
    %127 = vector.shape_cast %126 : vector<8x4x32xf32> to vector<32x32xf32>
    %128 = vector.shape_cast %127 : vector<32x32xf32> to vector<32x1x32xf32>
    %129 = vector.shape_cast %128 : vector<32x1x32xf32> to vector<32x1x32xf32>
    %130 = vector.broadcast %129 : vector<32x1x32xf32> to vector<32x2x32xf32>
    %131 = vector.shape_cast %130 : vector<32x2x32xf32> to vector<64x32xf32>
    %132 = vector.shape_cast %131 : vector<64x32xf32> to vector<8x8x32xf32>
    %cst_120 = arith.constant 0.000000e+00 : f32
    %133 = vector.broadcast %cst_120 : f32 to vector<10x10x32xf32>
    %c0_121 = arith.constant 0 : index
    %c0_122 = arith.constant 0 : index
    %c0_123 = arith.constant 0 : index
    %134 = vector.load %arg17[%c0_121, %c0_122, %c0_123] : memref<18x18x32xf32, #tpu.memory_space<vmem>>, vector<10x10x32xf32>
    tpu.vector_store %arg17[%c0_121, %c0_122, %c0_123], %133 {strides = array<i32>} : memref<18x18x32xf32, #tpu.memory_space<vmem>>, vector<10x10x32xf32>,
    %c1_124 = arith.constant 1 : index
    %c1_125 = arith.constant 1 : index
    %c0_126 = arith.constant 0 : index
    %135 = vector.load %arg17[%c1_124, %c1_125, %c0_126] : memref<18x18x32xf32, #tpu.memory_space<vmem>>, vector<8x8x32xf32>
    tpu.vector_store %arg17[%c1_124, %c1_125, %c0_126], %132 {strides = array<i32>} : memref<18x18x32xf32, #tpu.memory_space<vmem>>, vector<8x8x32xf32>,
    %c0_127 = arith.constant 0 : index
    %c0_128 = arith.constant 0 : index
    %c0_129 = arith.constant 0 : index
    %136 = vector.load %arg17[%c0_127, %c0_128, %c0_129] : memref<18x18x32xf32, #tpu.memory_space<vmem>>, vector<8x8x32xf32>
    %137 = vector.shape_cast %136 : vector<8x8x32xf32> to vector<64x32xf32>
    %c0_130 = arith.constant 0 : index
    %c1_131 = arith.constant 1 : index
    %c0_132 = arith.constant 0 : index
    %138 = vector.load %arg17[%c0_130, %c1_131, %c0_132] : memref<18x18x32xf32, #tpu.memory_space<vmem>>, vector<8x8x32xf32>
    %139 = vector.shape_cast %138 : vector<8x8x32xf32> to vector<64x32xf32>
    %c0_133 = arith.constant 0 : index
    %c2_134 = arith.constant 2 : index
    %c0_135 = arith.constant 0 : index
    %140 = vector.load %arg17[%c0_133, %c2_134, %c0_135] : memref<18x18x32xf32, #tpu.memory_space<vmem>>, vector<8x8x32xf32>
    %141 = vector.shape_cast %140 : vector<8x8x32xf32> to vector<64x32xf32>
    %c1_136 = arith.constant 1 : index
    %c0_137 = arith.constant 0 : index
    %c0_138 = arith.constant 0 : index
    %142 = vector.load %arg17[%c1_136, %c0_137, %c0_138] : memref<18x18x32xf32, #tpu.memory_space<vmem>>, vector<8x8x32xf32>
    %143 = vector.shape_cast %142 : vector<8x8x32xf32> to vector<64x32xf32>
    %c1_139 = arith.constant 1 : index
    %c1_140 = arith.constant 1 : index
    %c0_141 = arith.constant 0 : index
    %144 = vector.load %arg17[%c1_139, %c1_140, %c0_141] : memref<18x18x32xf32, #tpu.memory_space<vmem>>, vector<8x8x32xf32>
    %145 = vector.shape_cast %144 : vector<8x8x32xf32> to vector<64x32xf32>
    %c1_142 = arith.constant 1 : index
    %c2_143 = arith.constant 2 : index
    %c0_144 = arith.constant 0 : index
    %146 = vector.load %arg17[%c1_142, %c2_143, %c0_144] : memref<18x18x32xf32, #tpu.memory_space<vmem>>, vector<8x8x32xf32>
    %147 = vector.shape_cast %146 : vector<8x8x32xf32> to vector<64x32xf32>
    %c2_145 = arith.constant 2 : index
    %c0_146 = arith.constant 0 : index
    %c0_147 = arith.constant 0 : index
    %148 = vector.load %arg17[%c2_145, %c0_146, %c0_147] : memref<18x18x32xf32, #tpu.memory_space<vmem>>, vector<8x8x32xf32>
    %149 = vector.shape_cast %148 : vector<8x8x32xf32> to vector<64x32xf32>
    %c2_148 = arith.constant 2 : index
    %c1_149 = arith.constant 1 : index
    %c0_150 = arith.constant 0 : index
    %150 = vector.load %arg17[%c2_148, %c1_149, %c0_150] : memref<18x18x32xf32, #tpu.memory_space<vmem>>, vector<8x8x32xf32>
    %151 = vector.shape_cast %150 : vector<8x8x32xf32> to vector<64x32xf32>
    %c2_151 = arith.constant 2 : index
    %c2_152 = arith.constant 2 : index
    %c0_153 = arith.constant 0 : index
    %152 = vector.load %arg17[%c2_151, %c2_152, %c0_153] : memref<18x18x32xf32, #tpu.memory_space<vmem>>, vector<8x8x32xf32>
    %153 = vector.shape_cast %152 : vector<8x8x32xf32> to vector<64x32xf32>
    %154 = tpu.concatenate %137, %139, %141, %143, %145, %147, %149, %151, %153 in 1 : vector<64x32xf32>, vector<64x32xf32>, vector<64x32xf32>, vector<64x32xf32>, vector<64x32xf32>, vector<64x32xf32>, vector<64x32xf32>, vector<64x32xf32>, vector<64x32xf32> -> vector<64x288xf32>
    %155 = arith.truncf %154 : vector<64x288xf32> to vector<64x288xbf16>
    %c0_154 = arith.constant 0 : index
    %c0_155 = arith.constant 0 : index
    %156 = vector.load %arg8[%c0_154, %c0_155] : memref<288x16xbf16, #tpu.memory_space<vmem>>, vector<288x16xbf16>
    %cst_156 = arith.constant dense<0.000000e+00> : vector<64x16xf32>
    %157 = tpu.matmul %155, %156, %cst_156 {dimension_numbers = #tpu.dot_dimension_numbers<[1], [0], [0], [1], [0, 0, 1, 1], [], []>} : vector<64x288xbf16>, vector<288x16xbf16>, vector<64x16xf32> -> vector<64x16xf32>
    %cst_157 = arith.constant 0.000000e+00 : f32
    %158 = vector.broadcast %cst_157 : f32 to vector<10x10x16xf32>
    %c0_158 = arith.constant 0 : index
    %c0_159 = arith.constant 0 : index
    %c0_160 = arith.constant 0 : index
    %159 = vector.load %arg17[%c0_158, %c0_159, %c0_160] : memref<18x18x32xf32, #tpu.memory_space<vmem>>, vector<10x10x16xf32>
    tpu.vector_store %arg17[%c0_158, %c0_159, %c0_160], %158 {strides = array<i32>} : memref<18x18x32xf32, #tpu.memory_space<vmem>>, vector<10x10x16xf32>,
    %c1_161 = arith.constant 1 : index
    %c1_162 = arith.constant 1 : index
    %c0_163 = arith.constant 0 : index
    %160 = vector.load %arg17[%c1_161, %c1_162, %c0_163] : memref<18x18x32xf32, #tpu.memory_space<vmem>>, vector<8x8x16xf32>
    tpu.vector_store %arg17[%c1_161, %c1_162, %c0_163], %77 {strides = array<i32>} : memref<18x18x32xf32, #tpu.memory_space<vmem>>, vector<8x8x16xf32>,
    %c0_164 = arith.constant 0 : index
    %c0_165 = arith.constant 0 : index
    %c0_166 = arith.constant 0 : index
    %161 = vector.load %arg17[%c0_164, %c0_165, %c0_166] : memref<18x18x32xf32, #tpu.memory_space<vmem>>, vector<8x8x16xf32>
    %162 = vector.shape_cast %161 : vector<8x8x16xf32> to vector<64x16xf32>
    %c0_167 = arith.constant 0 : index
    %c1_168 = arith.constant 1 : index
    %c0_169 = arith.constant 0 : index
    %163 = vector.load %arg17[%c0_167, %c1_168, %c0_169] : memref<18x18x32xf32, #tpu.memory_space<vmem>>, vector<8x8x16xf32>
    %164 = vector.shape_cast %163 : vector<8x8x16xf32> to vector<64x16xf32>
    %c0_170 = arith.constant 0 : index
    %c2_171 = arith.constant 2 : index
    %c0_172 = arith.constant 0 : index
    %165 = vector.load %arg17[%c0_170, %c2_171, %c0_172] : memref<18x18x32xf32, #tpu.memory_space<vmem>>, vector<8x8x16xf32>
    %166 = vector.shape_cast %165 : vector<8x8x16xf32> to vector<64x16xf32>
    %c1_173 = arith.constant 1 : index
    %c0_174 = arith.constant 0 : index
    %c0_175 = arith.constant 0 : index
    %167 = vector.load %arg17[%c1_173, %c0_174, %c0_175] : memref<18x18x32xf32, #tpu.memory_space<vmem>>, vector<8x8x16xf32>
    %168 = vector.shape_cast %167 : vector<8x8x16xf32> to vector<64x16xf32>
    %c1_176 = arith.constant 1 : index
    %c1_177 = arith.constant 1 : index
    %c0_178 = arith.constant 0 : index
    %169 = vector.load %arg17[%c1_176, %c1_177, %c0_178] : memref<18x18x32xf32, #tpu.memory_space<vmem>>, vector<8x8x16xf32>
    %170 = vector.shape_cast %169 : vector<8x8x16xf32> to vector<64x16xf32>
    %c1_179 = arith.constant 1 : index
    %c2_180 = arith.constant 2 : index
    %c0_181 = arith.constant 0 : index
    %171 = vector.load %arg17[%c1_179, %c2_180, %c0_181] : memref<18x18x32xf32, #tpu.memory_space<vmem>>, vector<8x8x16xf32>
    %172 = vector.shape_cast %171 : vector<8x8x16xf32> to vector<64x16xf32>
    %c2_182 = arith.constant 2 : index
    %c0_183 = arith.constant 0 : index
    %c0_184 = arith.constant 0 : index
    %173 = vector.load %arg17[%c2_182, %c0_183, %c0_184] : memref<18x18x32xf32, #tpu.memory_space<vmem>>, vector<8x8x16xf32>
    %174 = vector.shape_cast %173 : vector<8x8x16xf32> to vector<64x16xf32>
    %c2_185 = arith.constant 2 : index
    %c1_186 = arith.constant 1 : index
    %c0_187 = arith.constant 0 : index
    %175 = vector.load %arg17[%c2_185, %c1_186, %c0_187] : memref<18x18x32xf32, #tpu.memory_space<vmem>>, vector<8x8x16xf32>
    %176 = vector.shape_cast %175 : vector<8x8x16xf32> to vector<64x16xf32>
    %c2_188 = arith.constant 2 : index
    %c2_189 = arith.constant 2 : index
    %c0_190 = arith.constant 0 : index
    %177 = vector.load %arg17[%c2_188, %c2_189, %c0_190] : memref<18x18x32xf32, #tpu.memory_space<vmem>>, vector<8x8x16xf32>
    %178 = vector.shape_cast %177 : vector<8x8x16xf32> to vector<64x16xf32>
    %179 = tpu.concatenate %162, %164, %166, %168, %170, %172, %174, %176, %178 in 1 : vector<64x16xf32>, vector<64x16xf32>, vector<64x16xf32>, vector<64x16xf32>, vector<64x16xf32>, vector<64x16xf32>, vector<64x16xf32>, vector<64x16xf32>, vector<64x16xf32> -> vector<64x144xf32>
    %180 = arith.truncf %179 : vector<64x144xf32> to vector<64x144xbf16>
    %c0_191 = arith.constant 0 : index
    %c0_192 = arith.constant 0 : index
    %181 = vector.load %arg9[%c0_191, %c0_192] : memref<144x16xbf16, #tpu.memory_space<vmem>>, vector<144x16xbf16>
    %cst_193 = arith.constant dense<0.000000e+00> : vector<64x16xf32>
    %182 = tpu.matmul %180, %181, %cst_193 {dimension_numbers = #tpu.dot_dimension_numbers<[1], [0], [0], [1], [0, 0, 1, 1], [], []>} : vector<64x144xbf16>, vector<144x16xbf16>, vector<64x16xf32> -> vector<64x16xf32>
    %183 = arith.addf %157, %182 : vector<64x16xf32>
    %c0_194 = arith.constant 0 : index
    %c0_195 = arith.constant 0 : index
    %184 = vector.load %arg10[%c0_194, %c0_195] : memref<1x16xf32, #tpu.memory_space<vmem>>, vector<1x16xf32>
    %185 = vector.broadcast %184 : vector<1x16xf32> to vector<64x16xf32>
    %186 = arith.addf %183, %185 : vector<64x16xf32>
    %cst_196 = arith.constant 0.000000e+00 : f32
    %187 = vector.broadcast %cst_196 : f32 to vector<64x16xf32>
    %188 = arith.maximumf %186, %187 : vector<64x16xf32>
    %189 = vector.shape_cast %188 : vector<64x16xf32> to vector<8x8x16xf32>
    %190 = vector.shape_cast %189 : vector<8x8x16xf32> to vector<8x1x8x16xf32>
    %191 = vector.shape_cast %190 : vector<8x1x8x16xf32> to vector<8x1x8x16xf32>
    %192 = vector.broadcast %191 : vector<8x1x8x16xf32> to vector<8x2x8x16xf32>
    %193 = vector.shape_cast %192 : vector<8x2x8x16xf32> to vector<16x8x16xf32>
    %194 = vector.shape_cast %193 : vector<16x8x16xf32> to vector<128x16xf32>
    %195 = vector.shape_cast %194 : vector<128x16xf32> to vector<128x1x16xf32>
    %196 = vector.shape_cast %195 : vector<128x1x16xf32> to vector<128x1x16xf32>
    %197 = vector.broadcast %196 : vector<128x1x16xf32> to vector<128x2x16xf32>
    %198 = vector.shape_cast %197 : vector<128x2x16xf32> to vector<256x16xf32>
    %199 = vector.shape_cast %198 : vector<256x16xf32> to vector<16x16x16xf32>
    %cst_197 = arith.constant 0.000000e+00 : f32
    %200 = vector.broadcast %cst_197 : f32 to vector<18x18x16xf32>
    %c0_198 = arith.constant 0 : index
    %c0_199 = arith.constant 0 : index
    %c0_200 = arith.constant 0 : index
    %201 = vector.load %arg17[%c0_198, %c0_199, %c0_200] : memref<18x18x32xf32, #tpu.memory_space<vmem>>, vector<18x18x16xf32>
    tpu.vector_store %arg17[%c0_198, %c0_199, %c0_200], %200 {strides = array<i32>} : memref<18x18x32xf32, #tpu.memory_space<vmem>>, vector<18x18x16xf32>,
    %c1_201 = arith.constant 1 : index
    %c1_202 = arith.constant 1 : index
    %c0_203 = arith.constant 0 : index
    %202 = vector.load %arg17[%c1_201, %c1_202, %c0_203] : memref<18x18x32xf32, #tpu.memory_space<vmem>>, vector<16x16x16xf32>
    tpu.vector_store %arg17[%c1_201, %c1_202, %c0_203], %199 {strides = array<i32>} : memref<18x18x32xf32, #tpu.memory_space<vmem>>, vector<16x16x16xf32>,
    %c0_204 = arith.constant 0 : index
    %c0_205 = arith.constant 0 : index
    %c0_206 = arith.constant 0 : index
    %203 = vector.load %arg17[%c0_204, %c0_205, %c0_206] : memref<18x18x32xf32, #tpu.memory_space<vmem>>, vector<16x16x16xf32>
    %204 = vector.shape_cast %203 : vector<16x16x16xf32> to vector<256x16xf32>
    %c0_207 = arith.constant 0 : index
    %c1_208 = arith.constant 1 : index
    %c0_209 = arith.constant 0 : index
    %205 = vector.load %arg17[%c0_207, %c1_208, %c0_209] : memref<18x18x32xf32, #tpu.memory_space<vmem>>, vector<16x16x16xf32>
    %206 = vector.shape_cast %205 : vector<16x16x16xf32> to vector<256x16xf32>
    %c0_210 = arith.constant 0 : index
    %c2_211 = arith.constant 2 : index
    %c0_212 = arith.constant 0 : index
    %207 = vector.load %arg17[%c0_210, %c2_211, %c0_212] : memref<18x18x32xf32, #tpu.memory_space<vmem>>, vector<16x16x16xf32>
    %208 = vector.shape_cast %207 : vector<16x16x16xf32> to vector<256x16xf32>
    %c1_213 = arith.constant 1 : index
    %c0_214 = arith.constant 0 : index
    %c0_215 = arith.constant 0 : index
    %209 = vector.load %arg17[%c1_213, %c0_214, %c0_215] : memref<18x18x32xf32, #tpu.memory_space<vmem>>, vector<16x16x16xf32>
    %210 = vector.shape_cast %209 : vector<16x16x16xf32> to vector<256x16xf32>
    %c1_216 = arith.constant 1 : index
    %c1_217 = arith.constant 1 : index
    %c0_218 = arith.constant 0 : index
    %211 = vector.load %arg17[%c1_216, %c1_217, %c0_218] : memref<18x18x32xf32, #tpu.memory_space<vmem>>, vector<16x16x16xf32>
    %212 = vector.shape_cast %211 : vector<16x16x16xf32> to vector<256x16xf32>
    %c1_219 = arith.constant 1 : index
    %c2_220 = arith.constant 2 : index
    %c0_221 = arith.constant 0 : index
    %213 = vector.load %arg17[%c1_219, %c2_220, %c0_221] : memref<18x18x32xf32, #tpu.memory_space<vmem>>, vector<16x16x16xf32>
    %214 = vector.shape_cast %213 : vector<16x16x16xf32> to vector<256x16xf32>
    %c2_222 = arith.constant 2 : index
    %c0_223 = arith.constant 0 : index
    %c0_224 = arith.constant 0 : index
    %215 = vector.load %arg17[%c2_222, %c0_223, %c0_224] : memref<18x18x32xf32, #tpu.memory_space<vmem>>, vector<16x16x16xf32>
    %216 = vector.shape_cast %215 : vector<16x16x16xf32> to vector<256x16xf32>
    %c2_225 = arith.constant 2 : index
    %c1_226 = arith.constant 1 : index
    %c0_227 = arith.constant 0 : index
    %217 = vector.load %arg17[%c2_225, %c1_226, %c0_227] : memref<18x18x32xf32, #tpu.memory_space<vmem>>, vector<16x16x16xf32>
    %218 = vector.shape_cast %217 : vector<16x16x16xf32> to vector<256x16xf32>
    %c2_228 = arith.constant 2 : index
    %c2_229 = arith.constant 2 : index
    %c0_230 = arith.constant 0 : index
    %219 = vector.load %arg17[%c2_228, %c2_229, %c0_230] : memref<18x18x32xf32, #tpu.memory_space<vmem>>, vector<16x16x16xf32>
    %220 = vector.shape_cast %219 : vector<16x16x16xf32> to vector<256x16xf32>
    %221 = tpu.concatenate %204, %206, %208, %210, %212, %214, %216, %218, %220 in 1 : vector<256x16xf32>, vector<256x16xf32>, vector<256x16xf32>, vector<256x16xf32>, vector<256x16xf32>, vector<256x16xf32>, vector<256x16xf32>, vector<256x16xf32>, vector<256x16xf32> -> vector<256x144xf32>
    %222 = arith.truncf %221 : vector<256x144xf32> to vector<256x144xbf16>
    %c0_231 = arith.constant 0 : index
    %c0_232 = arith.constant 0 : index
    %223 = vector.load %arg11[%c0_231, %c0_232] : memref<144x8xbf16, #tpu.memory_space<vmem>>, vector<144x8xbf16>
    %cst_233 = arith.constant dense<0.000000e+00> : vector<256x8xf32>
    %224 = tpu.matmul %222, %223, %cst_233 {dimension_numbers = #tpu.dot_dimension_numbers<[1], [0], [0], [1], [0, 0, 1, 1], [], []>} : vector<256x144xbf16>, vector<144x8xbf16>, vector<256x8xf32> -> vector<256x8xf32>
    %cst_234 = arith.constant 0.000000e+00 : f32
    %225 = vector.broadcast %cst_234 : f32 to vector<18x18x8xf32>
    %c0_235 = arith.constant 0 : index
    %c0_236 = arith.constant 0 : index
    %c0_237 = arith.constant 0 : index
    %226 = vector.load %arg17[%c0_235, %c0_236, %c0_237] : memref<18x18x32xf32, #tpu.memory_space<vmem>>, vector<18x18x8xf32>
    tpu.vector_store %arg17[%c0_235, %c0_236, %c0_237], %225 {strides = array<i32>} : memref<18x18x32xf32, #tpu.memory_space<vmem>>, vector<18x18x8xf32>,
    %c1_238 = arith.constant 1 : index
    %c1_239 = arith.constant 1 : index
    %c0_240 = arith.constant 0 : index
    %227 = vector.load %arg17[%c1_238, %c1_239, %c0_240] : memref<18x18x32xf32, #tpu.memory_space<vmem>>, vector<16x16x8xf32>
    tpu.vector_store %arg17[%c1_238, %c1_239, %c0_240], %32 {strides = array<i32>} : memref<18x18x32xf32, #tpu.memory_space<vmem>>, vector<16x16x8xf32>,
    %c0_241 = arith.constant 0 : index
    %c0_242 = arith.constant 0 : index
    %c0_243 = arith.constant 0 : index
    %228 = vector.load %arg17[%c0_241, %c0_242, %c0_243] : memref<18x18x32xf32, #tpu.memory_space<vmem>>, vector<16x16x8xf32>
    %229 = vector.shape_cast %228 : vector<16x16x8xf32> to vector<256x8xf32>
    %c0_244 = arith.constant 0 : index
    %c1_245 = arith.constant 1 : index
    %c0_246 = arith.constant 0 : index
    %230 = vector.load %arg17[%c0_244, %c1_245, %c0_246] : memref<18x18x32xf32, #tpu.memory_space<vmem>>, vector<16x16x8xf32>
    %231 = vector.shape_cast %230 : vector<16x16x8xf32> to vector<256x8xf32>
    %c0_247 = arith.constant 0 : index
    %c2_248 = arith.constant 2 : index
    %c0_249 = arith.constant 0 : index
    %232 = vector.load %arg17[%c0_247, %c2_248, %c0_249] : memref<18x18x32xf32, #tpu.memory_space<vmem>>, vector<16x16x8xf32>
    %233 = vector.shape_cast %232 : vector<16x16x8xf32> to vector<256x8xf32>
    %c1_250 = arith.constant 1 : index
    %c0_251 = arith.constant 0 : index
    %c0_252 = arith.constant 0 : index
    %234 = vector.load %arg17[%c1_250, %c0_251, %c0_252] : memref<18x18x32xf32, #tpu.memory_space<vmem>>, vector<16x16x8xf32>
    %235 = vector.shape_cast %234 : vector<16x16x8xf32> to vector<256x8xf32>
    %c1_253 = arith.constant 1 : index
    %c1_254 = arith.constant 1 : index
    %c0_255 = arith.constant 0 : index
    %236 = vector.load %arg17[%c1_253, %c1_254, %c0_255] : memref<18x18x32xf32, #tpu.memory_space<vmem>>, vector<16x16x8xf32>
    %237 = vector.shape_cast %236 : vector<16x16x8xf32> to vector<256x8xf32>
    %c1_256 = arith.constant 1 : index
    %c2_257 = arith.constant 2 : index
    %c0_258 = arith.constant 0 : index
    %238 = vector.load %arg17[%c1_256, %c2_257, %c0_258] : memref<18x18x32xf32, #tpu.memory_space<vmem>>, vector<16x16x8xf32>
    %239 = vector.shape_cast %238 : vector<16x16x8xf32> to vector<256x8xf32>
    %c2_259 = arith.constant 2 : index
    %c0_260 = arith.constant 0 : index
    %c0_261 = arith.constant 0 : index
    %240 = vector.load %arg17[%c2_259, %c0_260, %c0_261] : memref<18x18x32xf32, #tpu.memory_space<vmem>>, vector<16x16x8xf32>
    %241 = vector.shape_cast %240 : vector<16x16x8xf32> to vector<256x8xf32>
    %c2_262 = arith.constant 2 : index
    %c1_263 = arith.constant 1 : index
    %c0_264 = arith.constant 0 : index
    %242 = vector.load %arg17[%c2_262, %c1_263, %c0_264] : memref<18x18x32xf32, #tpu.memory_space<vmem>>, vector<16x16x8xf32>
    %243 = vector.shape_cast %242 : vector<16x16x8xf32> to vector<256x8xf32>
    %c2_265 = arith.constant 2 : index
    %c2_266 = arith.constant 2 : index
    %c0_267 = arith.constant 0 : index
    %244 = vector.load %arg17[%c2_265, %c2_266, %c0_267] : memref<18x18x32xf32, #tpu.memory_space<vmem>>, vector<16x16x8xf32>
    %245 = vector.shape_cast %244 : vector<16x16x8xf32> to vector<256x8xf32>
    %246 = tpu.concatenate %229, %231, %233, %235, %237, %239, %241, %243, %245 in 1 : vector<256x8xf32>, vector<256x8xf32>, vector<256x8xf32>, vector<256x8xf32>, vector<256x8xf32>, vector<256x8xf32>, vector<256x8xf32>, vector<256x8xf32>, vector<256x8xf32> -> vector<256x72xf32>
    %247 = arith.truncf %246 : vector<256x72xf32> to vector<256x72xbf16>
    %c0_268 = arith.constant 0 : index
    %c0_269 = arith.constant 0 : index
    %248 = vector.load %arg12[%c0_268, %c0_269] : memref<72x8xbf16, #tpu.memory_space<vmem>>, vector<72x8xbf16>
    %cst_270 = arith.constant dense<0.000000e+00> : vector<256x8xf32>
    %249 = tpu.matmul %247, %248, %cst_270 {dimension_numbers = #tpu.dot_dimension_numbers<[1], [0], [0], [1], [0, 0, 1, 1], [], []>} : vector<256x72xbf16>, vector<72x8xbf16>, vector<256x8xf32> -> vector<256x8xf32>
    %250 = arith.addf %224, %249 : vector<256x8xf32>
    %c0_271 = arith.constant 0 : index
    %c0_272 = arith.constant 0 : index
    %251 = vector.load %arg13[%c0_271, %c0_272] : memref<1x8xf32, #tpu.memory_space<vmem>>, vector<1x8xf32>
    %252 = vector.broadcast %251 : vector<1x8xf32> to vector<256x8xf32>
    %253 = arith.addf %250, %252 : vector<256x8xf32>
    %cst_273 = arith.constant 0.000000e+00 : f32
    %254 = vector.broadcast %cst_273 : f32 to vector<256x8xf32>
    %255 = arith.maximumf %253, %254 : vector<256x8xf32>
    %256 = vector.shape_cast %255 : vector<256x8xf32> to vector<16x16x8xf32>
    %257 = vector.shape_cast %256 : vector<16x16x8xf32> to vector<256x8xf32>
    %258 = arith.truncf %257 : vector<256x8xf32> to vector<256x8xbf16>
    %c0_274 = arith.constant 0 : index
    %c0_275 = arith.constant 0 : index
    %259 = vector.load %arg14[%c0_274, %c0_275] : memref<8x3xbf16, #tpu.memory_space<vmem>>, vector<8x3xbf16>
    %cst_276 = arith.constant dense<0.000000e+00> : vector<256x3xf32>
    %260 = tpu.matmul %258, %259, %cst_276 {dimension_numbers = #tpu.dot_dimension_numbers<[1], [0], [0], [1], [0, 0, 1, 1], [], []>} : vector<256x8xbf16>, vector<8x3xbf16>, vector<256x3xf32> -> vector<256x3xf32>
    %c0_277 = arith.constant 0 : index
    %c0_278 = arith.constant 0 : index
    %261 = vector.load %arg15[%c0_277, %c0_278] : memref<1x3xf32, #tpu.memory_space<vmem>>, vector<1x3xf32>
    %262 = vector.broadcast %261 : vector<1x3xf32> to vector<256x3xf32>
    %263 = arith.addf %260, %262 : vector<256x3xf32>
    %c0_279 = arith.constant 0 : index
    %c0_280 = arith.constant 0 : index
    %c0_281 = arith.constant 0 : index
    %264 = vector.load %arg16[%c0_279, %c0_280, %c0_281] : memref<1x256x3xf32, #tpu.memory_space<vmem>>, vector<1x256x3xf32>
    %265 = vector.shape_cast %264 : vector<1x256x3xf32> to vector<256x3xf32>
    %266 = vector.shape_cast %263 : vector<256x3xf32> to vector<1x256x3xf32>
    tpu.vector_store %arg16[%c0_279, %c0_280, %c0_281], %266 {strides = array<i32>} : memref<1x256x3xf32, #tpu.memory_space<vmem>>, vector<1x256x3xf32>,
    return
  }
  func.func @transform_0(%arg0: i32) -> (i32, i32, i32, i32) {
    %c0_i32 = arith.constant 0 : i32
    %c0_i32_0 = arith.constant 0 : i32
    %c0_i32_1 = arith.constant 0 : i32
    %c0_i32_2 = arith.constant 0 : i32
    return %arg0, %c0_i32, %c0_i32_0, %c0_i32_1 : i32, i32, i32, i32
  }
  func.func @transform_1(%arg0: i32) -> (i32, i32) {
    %c0_i32 = arith.constant 0 : i32
    %c0_i32_0 = arith.constant 0 : i32
    %c0_i32_1 = arith.constant 0 : i32
    return %c0_i32, %c0_i32_0 : i32, i32
  }
  func.func @transform_2(%arg0: i32) -> (i32, i32) {
    %c0_i32 = arith.constant 0 : i32
    %c0_i32_0 = arith.constant 0 : i32
    %c0_i32_1 = arith.constant 0 : i32
    return %c0_i32, %c0_i32_0 : i32, i32
  }
  func.func @transform_3(%arg0: i32) -> (i32, i32) {
    %c0_i32 = arith.constant 0 : i32
    %c0_i32_0 = arith.constant 0 : i32
    %c0_i32_1 = arith.constant 0 : i32
    return %c0_i32, %c0_i32_0 : i32, i32
  }
  func.func @transform_4(%arg0: i32) -> (i32, i32) {
    %c0_i32 = arith.constant 0 : i32
    %c0_i32_0 = arith.constant 0 : i32
    %c0_i32_1 = arith.constant 0 : i32
    return %c0_i32, %c0_i32_0 : i32, i32
  }
  func.func @transform_5(%arg0: i32) -> (i32, i32) {
    %c0_i32 = arith.constant 0 : i32
    %c0_i32_0 = arith.constant 0 : i32
    %c0_i32_1 = arith.constant 0 : i32
    return %c0_i32, %c0_i32_0 : i32, i32
  }
  func.func @transform_6(%arg0: i32) -> (i32, i32) {
    %c0_i32 = arith.constant 0 : i32
    %c0_i32_0 = arith.constant 0 : i32
    %c0_i32_1 = arith.constant 0 : i32
    return %c0_i32, %c0_i32_0 : i32, i32
  }
  func.func @transform_7(%arg0: i32) -> (i32, i32) {
    %c0_i32 = arith.constant 0 : i32
    %c0_i32_0 = arith.constant 0 : i32
    %c0_i32_1 = arith.constant 0 : i32
    return %c0_i32, %c0_i32_0 : i32, i32
  }
  func.func @transform_8(%arg0: i32) -> (i32, i32) {
    %c0_i32 = arith.constant 0 : i32
    %c0_i32_0 = arith.constant 0 : i32
    %c0_i32_1 = arith.constant 0 : i32
    return %c0_i32, %c0_i32_0 : i32, i32
  }
  func.func @transform_9(%arg0: i32) -> (i32, i32) {
    %c0_i32 = arith.constant 0 : i32
    %c0_i32_0 = arith.constant 0 : i32
    %c0_i32_1 = arith.constant 0 : i32
    return %c0_i32, %c0_i32_0 : i32, i32
  }
  func.func @transform_10(%arg0: i32) -> (i32, i32) {
    %c0_i32 = arith.constant 0 : i32
    %c0_i32_0 = arith.constant 0 : i32
    %c0_i32_1 = arith.constant 0 : i32
    return %c0_i32, %c0_i32_0 : i32, i32
  }
  func.func @transform_11(%arg0: i32) -> (i32, i32) {
    %c0_i32 = arith.constant 0 : i32
    %c0_i32_0 = arith.constant 0 : i32
    %c0_i32_1 = arith.constant 0 : i32
    return %c0_i32, %c0_i32_0 : i32, i32
  }
  func.func @transform_12(%arg0: i32) -> (i32, i32) {
    %c0_i32 = arith.constant 0 : i32
    %c0_i32_0 = arith.constant 0 : i32
    %c0_i32_1 = arith.constant 0 : i32
    return %c0_i32, %c0_i32_0 : i32, i32
  }
  func.func @transform_13(%arg0: i32) -> (i32, i32) {
    %c0_i32 = arith.constant 0 : i32
    %c0_i32_0 = arith.constant 0 : i32
    %c0_i32_1 = arith.constant 0 : i32
    return %c0_i32, %c0_i32_0 : i32, i32
  }
  func.func @transform_14(%arg0: i32) -> (i32, i32) {
    %c0_i32 = arith.constant 0 : i32
    %c0_i32_0 = arith.constant 0 : i32
    %c0_i32_1 = arith.constant 0 : i32
    return %c0_i32, %c0_i32_0 : i32, i32
  }
  func.func @transform_15(%arg0: i32) -> (i32, i32, i32) {
    %c0_i32 = arith.constant 0 : i32
    %c0_i32_0 = arith.constant 0 : i32
    %c0_i32_1 = arith.constant 0 : i32
    return %arg0, %c0_i32, %c0_i32_0 : i32, i32, i32
  }
}

</mosaic_0001>

<llo_original>
// kernel: _lambda_.1
$region0: #{_lambda_.1}
  #allocation0 [shape = 'u32[]', space=smem, size = 0x4, offset = 0x4, fixed_abs, tag = 'smem constant byte address 0x4 - core index']
  #allocation1 [shape = 'u32[144,128]{1,0:T(1,128)}', space=vmem, size = 0x12000, scoped, tag = 'internal scratch']
  #allocation2 [shape = 'f32[18,18,32]{2,1,0:T(8,128)}', space=vmem, size = 0x36000, scoped, tag = 'scratch operand']
  %s0 = inlined_call_operand.vmem [shape: f32[2,16,16,4], index: 0, kind: input, shape index: {}]
  %s1 = inlined_call_operand.vmem [shape: bf16[36,8], index: 1, kind: input, shape index: {}]
  %s2 = inlined_call_operand.vmem [shape: f32[1,8], index: 2, kind: input, shape index: {}]
  %s3 = inlined_call_operand.vmem [shape: bf16[72,16], index: 3, kind: input, shape index: {}]
  %s4 = inlined_call_operand.vmem [shape: f32[1,16], index: 4, kind: input, shape index: {}]
  %s5 = inlined_call_operand.vmem [shape: bf16[144,32], index: 5, kind: input, shape index: {}]
  %s6 = inlined_call_operand.vmem [shape: f32[1,32], index: 6, kind: input, shape index: {}]
  %s7 = inlined_call_operand.vmem [shape: bf16[288,16], index: 7, kind: input, shape index: {}]
  %s8 = inlined_call_operand.vmem [shape: bf16[144,16], index: 8, kind: input, shape index: {}]
  %s9 = inlined_call_operand.vmem [shape: f32[1,16], index: 9, kind: input, shape index: {}]
  %s10 = inlined_call_operand.vmem [shape: bf16[144,8], index: 10, kind: input, shape index: {}]
  %s11 = inlined_call_operand.vmem [shape: bf16[72,8], index: 11, kind: input, shape index: {}]
  %s12 = inlined_call_operand.vmem [shape: f32[1,8], index: 12, kind: input, shape index: {}]
  %s13 = inlined_call_operand.vmem [shape: bf16[8,3], index: 13, kind: input, shape index: {}]
  %s14 = inlined_call_operand.vmem [shape: f32[1,3], index: 14, kind: input, shape index: {}]
  %s15 = inlined_call_operand.vmem [shape: f32[2,256,3], index: 15, kind: output, shape index: {}]
  %s16 = sld [smem:[#allocation0]]
  $region93: #{_lambda_.1} parent=0
    _
  %s18 = ssub.s32 1, %s16
  %s19 = scalar_select 0, %s18, %s16
  loop: start=0, step=1, limit=4
  $region2: #{_lambda_.1} parent=0 // loop_pre_header
    _
  $region3: #{_lambda_.1} parent=0 // loop_header
    %s21 = sphi 0, %s25
    %p22 = scmp.ge.s32.totalorder %s21, 4
    %s31 = sphi 0, %s33
    %s34 = sphi 0, %s31
    %s35 = sphi 0, %s34
    %s51 = sphi 0, %s35
    %s55 = sphi 0, %s55
    %s57 = sphi 0, %s55
    %s58 = sphi 0, %s57
    %s72 = sphi 0, %s58
    %s76 = sphi 0, %s76
    %s78 = sphi 0, %s76
    %s79 = sphi 0, %s78
    %s93 = sphi 0, %s79
    %s97 = sphi 0, %s97
    %s99 = sphi 0, %s97
    %s100 = sphi 0, %s99
    %s114 = sphi 0, %s100
    %s118 = sphi 0, %s118
    %s120 = sphi 0, %s118
    %s121 = sphi 0, %s120
    %s135 = sphi 0, %s121
    %s139 = sphi 0, %s139
    %s141 = sphi 0, %s139
    %s142 = sphi 0, %s141
    %s156 = sphi 0, %s142
    %s160 = sphi 0, %s160
    %s162 = sphi 0, %s160
    %s163 = sphi 0, %s162
    %s177 = sphi 0, %s163
    %s181 = sphi 0, %s181
    %s183 = sphi 0, %s181
    %s184 = sphi 0, %s183
    %s198 = sphi 0, %s184
    %s202 = sphi 0, %s202
    %s204 = sphi 0, %s202
    %s205 = sphi 0, %s204
    %s219 = sphi 0, %s205
    %s223 = sphi 0, %s223
    %s225 = sphi 0, %s223
    %s226 = sphi 0, %s225
    %s240 = sphi 0, %s226
    %s244 = sphi 0, %s244
    %s246 = sphi 0, %s244
    %s247 = sphi 0, %s246
    %s261 = sphi 0, %s247
    %s265 = sphi 0, %s265
    %s267 = sphi 0, %s265
    %s268 = sphi 0, %s267
    %s282 = sphi 0, %s268
    %s286 = sphi 0, %s286
    %s288 = sphi 0, %s286
    %s289 = sphi 0, %s288
    %s303 = sphi 0, %s289
    %s307 = sphi 0, %s307
    %s309 = sphi 0, %s307
    %s310 = sphi 0, %s309
    %s324 = sphi 0, %s310
    %s328 = sphi 0, %s328
    %s330 = sphi 0, %s328
    %s331 = sphi 0, %s330
    %s345 = sphi 0, %s331
    %s351 = sphi 0, %s353
    %s354 = sphi 0, %s351
    %s355 = sphi 0, %s354
    %s371 = sphi 0, %s355
  $region4: #{_lambda_.1} parent=0 // loop_header_branch
    %24 = sbr.rel (%p22) target = $region8
  $region5: #{_lambda_.1} parent=0 // loop_body
    %s26 = ssub.s32 %s21, 1
    %s27 = ssub.s32 %s21, 2
    %s28 = sadd.s32 %s21, 1
    %s29 = ssub.s32 %s21, %s28
    %p30 = scmp.eq.s32.totalorder %s29, 0
    %s32 = sadd.s32 %s31, 1
    %s33 = scalar_select %p30, %s31, %s32
    %p36 = pneg %p30
    %p37 = scmp.eq.s32.totalorder %s21, 1
    %p38 = por %p36, %p37
    %p39 = scmp.ne.s32.totalorder %s31, %s34
    %p40 = scmp.eq.s32.totalorder %s21, 0
    %p41 = por %p39, %p40
    %p42 = scmp.ne.s32.totalorder %s31, %s34
    %p43 = scmp.eq.s32.totalorder %s26, 1
    %p44 = por %p42, %p43
    %p45 = scmp.ne.s32.totalorder %s34, %s35
    %p46 = scmp.eq.s32.totalorder %s26, 0
    %p47 = por %p45, %p46
    %p48 = scmp.ne.s32.totalorder %s34, %s35
    %p49 = scmp.eq.s32.totalorder %s27, 1
    %p50 = por %p48, %p49
    %p52 = scmp.ne.s32.totalorder %s35, %s51
    %p53 = scmp.eq.s32.totalorder %s27, 0
    %p54 = por %p52, %p53
    %s56 = sadd.s32 %s55, 1
    %p59 = scmp.eq.s32.totalorder %s21, 1
    %p60 = scmp.ne.s32.totalorder %s55, %s57
    %p61 = scmp.eq.s32.totalorder %s21, 0
    %p62 = por %p60, %p61
    %p63 = scmp.ne.s32.totalorder %s55, %s57
    %p64 = scmp.eq.s32.totalorder %s26, 1
    %p65 = por %p63, %p64
    %p66 = scmp.ne.s32.totalorder %s57, %s58
    %p67 = scmp.eq.s32.totalorder %s26, 0
    %p68 = por %p66, %p67
    %p69 = scmp.ne.s32.totalorder %s57, %s58
    %p70 = scmp.eq.s32.totalorder %s27, 1
    %p71 = por %p69, %p70
    %p73 = scmp.ne.s32.totalorder %s58, %s72
    %p74 = scmp.eq.s32.totalorder %s27, 0
    %p75 = por %p73, %p74
    %s77 = sadd.s32 %s76, 1
    %p80 = scmp.eq.s32.totalorder %s21, 1
    %p81 = scmp.ne.s32.totalorder %s76, %s78
    %p82 = scmp.eq.s32.totalorder %s21, 0
    %p83 = por %p81, %p82
    %p84 = scmp.ne.s32.totalorder %s76, %s78
    %p85 = scmp.eq.s32.totalorder %s26, 1
    %p86 = por %p84, %p85
    %p87 = scmp.ne.s32.totalorder %s78, %s79
    %p88 = scmp.eq.s32.totalorder %s26, 0
    %p89 = por %p87, %p88
    %p90 = scmp.ne.s32.totalorder %s78, %s79
    %p91 = scmp.eq.s32.totalorder %s27, 1
    %p92 = por %p90, %p91
    %p94 = scmp.ne.s32.totalorder %s79, %s93
    %p95 = scmp.eq.s32.totalorder %s27, 0
    %p96 = por %p94, %p95
    %s98 = sadd.s32 %s97, 1
    %p101 = scmp.eq.s32.totalorder %s21, 1
    %p102 = scmp.ne.s32.totalorder %s97, %s99
    %p103 = scmp.eq.s32.totalorder %s21, 0
    %p104 = por %p102, %p103
    %p105 = scmp.ne.s32.totalorder %s97, %s99
    %p106 = scmp.eq.s32.totalorder %s26, 1
    %p107 = por %p105, %p106
    %p108 = scmp.ne.s32.totalorder %s99, %s100
    %p109 = scmp.eq.s32.totalorder %s26, 0
    %p110 = por %p108, %p109
    %p111 = scmp.ne.s32.totalorder %s99, %s100
    %p112 = scmp.eq.s32.totalorder %s27, 1
    %p113 = por %p111, %p112
    %p115 = scmp.ne.s32.totalorder %s100, %s114
    %p116 = scmp.eq.s32.totalorder %s27, 0
    %p117 = por %p115, %p116
    %s119 = sadd.s32 %s118, 1
    %p122 = scmp.eq.s32.totalorder %s21, 1
    %p123 = scmp.ne.s32.totalorder %s118, %s120
    %p124 = scmp.eq.s32.totalorder %s21, 0
    %p125 = por %p123, %p124
    %p126 = scmp.ne.s32.totalorder %s118, %s120
    %p127 = scmp.eq.s32.totalorder %s26, 1
    %p128 = por %p126, %p127
    %p129 = scmp.ne.s32.totalorder %s120, %s121
    %p130 = scmp.eq.s32.totalorder %s26, 0
    %p131 = por %p129, %p130
    %p132 = scmp.ne.s32.totalorder %s120, %s121
    %p133 = scmp.eq.s32.totalorder %s27, 1
    %p134 = por %p132, %p133
    %p136 = scmp.ne.s32.totalorder %s121, %s135
    %p137 = scmp.eq.s32.totalorder %s27, 0
    %p138 = por %p136, %p137
    %s140 = sadd.s32 %s139, 1
    %p143 = scmp.eq.s32.totalorder %s21, 1
    %p144 = scmp.ne.s32.totalorder %s139, %s141
    %p145 = scmp.eq.s32.totalorder %s21, 0
    %p146 = por %p144, %p145
    %p147 = scmp.ne.s32.totalorder %s139, %s141
    %p148 = scmp.eq.s32.totalorder %s26, 1
    %p149 = por %p147, %p148
    %p150 = scmp.ne.s32.totalorder %s141, %s142
    %p151 = scmp.eq.s32.totalorder %s26, 0
    %p152 = por %p150, %p151
    %p153 = scmp.ne.s32.totalorder %s141, %s142
    %p154 = scmp.eq.s32.totalorder %s27, 1
    %p155 = por %p153, %p154
    %p157 = scmp.ne.s32.totalorder %s142, %s156
    %p158 = scmp.eq.s32.totalorder %s27, 0
    %p159 = por %p157, %p158
    %s161 = sadd.s32 %s160, 1
    %p164 = scmp.eq.s32.totalorder %s21, 1
    %p165 = scmp.ne.s32.totalorder %s160, %s162
    %p166 = scmp.eq.s32.totalorder %s21, 0
    %p167 = por %p165, %p166
    %p168 = scmp.ne.s32.totalorder %s160, %s162
    %p169 = scmp.eq.s32.totalorder %s26, 1
    %p170 = por %p168, %p169
    %p171 = scmp.ne.s32.totalorder %s162, %s163
    %p172 = scmp.eq.s32.totalorder %s26, 0
    %p173 = por %p171, %p172
    %p174 = scmp.ne.s32.totalorder %s162, %s163
    %p175 = scmp.eq.s32.totalorder %s27, 1
    %p176 = por %p174, %p175
    %p178 = scmp.ne.s32.totalorder %s163, %s177
    %p179 = scmp.eq.s32.totalorder %s27, 0
    %p180 = por %p178, %p179
    %s182 = sadd.s32 %s181, 1
    %p185 = scmp.eq.s32.totalorder %s21, 1
    %p186 = scmp.ne.s32.totalorder %s181, %s183
    %p187 = scmp.eq.s32.totalorder %s21, 0
    %p188 = por %p186, %p187
    %p189 = scmp.ne.s32.totalorder %s181, %s183
    %p190 = scmp.eq.s32.totalorder %s26, 1
    %p191 = por %p189, %p190
    %p192 = scmp.ne.s32.totalorder %s183, %s184
    %p193 = scmp.eq.s32.totalorder %s26, 0
    %p194 = por %p192, %p193
    %p195 = scmp.ne.s32.totalorder %s183, %s184
    %p196 = scmp.eq.s32.totalorder %s27, 1
    %p197 = por %p195, %p196
    %p199 = scmp.ne.s32.totalorder %s184, %s198
    %p200 = scmp.eq.s32.totalorder %s27, 0
    %p201 = por %p199, %p200
    %s203 = sadd.s32 %s202, 1
    %p206 = scmp.eq.s32.totalorder %s21, 1
    %p207 = scmp.ne.s32.totalorder %s202, %s204
    %p208 = scmp.eq.s32.totalorder %s21, 0
    %p209 = por %p207, %p208
    %p210 = scmp.ne.s32.totalorder %s202, %s204
    %p211 = scmp.eq.s32.totalorder %s26, 1
    %p212 = por %p210, %p211
    %p213 = scmp.ne.s32.totalorder %s204, %s205
    %p214 = scmp.eq.s32.totalorder %s26, 0
    %p215 = por %p213, %p214
    %p216 = scmp.ne.s32.totalorder %s204, %s205
    %p217 = scmp.eq.s32.totalorder %s27, 1
    %p218 = por %p216, %p217
    %p220 = scmp.ne.s32.totalorder %s205, %s219
    %p221 = scmp.eq.s32.totalorder %s27, 0
    %p222 = por %p220, %p221
    %s224 = sadd.s32 %s223, 1
    %p227 = scmp.eq.s32.totalorder %s21, 1
    %p228 = scmp.ne.s32.totalorder %s223, %s225
    %p229 = scmp.eq.s32.totalorder %s21, 0
    %p230 = por %p228, %p229
    %p231 = scmp.ne.s32.totalorder %s223, %s225
    %p232 = scmp.eq.s32.totalorder %s26, 1
    %p233 = por %p231, %p232
    %p234 = scmp.ne.s32.totalorder %s225, %s226
    %p235 = scmp.eq.s32.totalorder %s26, 0
    %p236 = por %p234, %p235
    %p237 = scmp.ne.s32.totalorder %s225, %s226
    %p238 = scmp.eq.s32.totalorder %s27, 1
    %p239 = por %p237, %p238
    %p241 = scmp.ne.s32.totalorder %s226, %s240
    %p242 = scmp.eq.s32.totalorder %s27, 0
    %p243 = por %p241, %p242
    %s245 = sadd.s32 %s244, 1
    %p248 = scmp.eq.s32.totalorder %s21, 1
    %p249 = scmp.ne.s32.totalorder %s244, %s246
    %p250 = scmp.eq.s32.totalorder %s21, 0
    %p251 = por %p249, %p250
    %p252 = scmp.ne.s32.totalorder %s244, %s246
    %p253 = scmp.eq.s32.totalorder %s26, 1
    %p254 = por %p252, %p253
    %p255 = scmp.ne.s32.totalorder %s246, %s247
    %p256 = scmp.eq.s32.totalorder %s26, 0
    %p257 = por %p255, %p256
    %p258 = scmp.ne.s32.totalorder %s246, %s247
    %p259 = scmp.eq.s32.totalorder %s27, 1
    %p260 = por %p258, %p259
    %p262 = scmp.ne.s32.totalorder %s247, %s261
    %p263 = scmp.eq.s32.totalorder %s27, 0
    %p264 = por %p262, %p263
    %s266 = sadd.s32 %s265, 1
    %p269 = scmp.eq.s32.totalorder %s21, 1
    %p270 = scmp.ne.s32.totalorder %s265, %s267
    %p271 = scmp.eq.s32.totalorder %s21, 0
    %p272 = por %p270, %p271
    %p273 = scmp.ne.s32.totalorder %s265, %s267
    %p274 = scmp.eq.s32.totalorder %s26, 1
    %p275 = por %p273, %p274
    %p276 = scmp.ne.s32.totalorder %s267, %s268
    %p277 = scmp.eq.s32.totalorder %s26, 0
    %p278 = por %p276, %p277
    %p279 = scmp.ne.s32.totalorder %s267, %s268
    %p280 = scmp.eq.s32.totalorder %s27, 1
    %p281 = por %p279, %p280
    %p283 = scmp.ne.s32.totalorder %s268, %s282
    %p284 = scmp.eq.s32.totalorder %s27, 0
    %p285 = por %p283, %p284
    %s287 = sadd.s32 %s286, 1
    %p290 = scmp.eq.s32.totalorder %s21, 1
    %p291 = scmp.ne.s32.totalorder %s286, %s288
    %p292 = scmp.eq.s32.totalorder %s21, 0
    %p293 = por %p291, %p292
    %p294 = scmp.ne.s32.totalorder %s286, %s288
    %p295 = scmp.eq.s32.totalorder %s26, 1
    %p296 = por %p294, %p295
    %p297 = scmp.ne.s32.totalorder %s288, %s289
    %p298 = scmp.eq.s32.totalorder %s26, 0
    %p299 = por %p297, %p298
    %p300 = scmp.ne.s32.totalorder %s288, %s289
    %p301 = scmp.eq.s32.totalorder %s27, 1
    %p302 = por %p300, %p301
    %p304 = scmp.ne.s32.totalorder %s289, %s303
    %p305 = scmp.eq.s32.totalorder %s27, 0
    %p306 = por %p304, %p305
    %s308 = sadd.s32 %s307, 1
    %p311 = scmp.eq.s32.totalorder %s21, 1
    %p312 = scmp.ne.s32.totalorder %s307, %s309
    %p313 = scmp.eq.s32.totalorder %s21, 0
    %p314 = por %p312, %p313
    %p315 = scmp.ne.s32.totalorder %s307, %s309
    %p316 = scmp.eq.s32.totalorder %s26, 1
    %p317 = por %p315, %p316
    %p318 = scmp.ne.s32.totalorder %s309, %s310
    %p319 = scmp.eq.s32.totalorder %s26, 0
    %p320 = por %p318, %p319
    %p321 = scmp.ne.s32.totalorder %s309, %s310
    %p322 = scmp.eq.s32.totalorder %s27, 1
    %p323 = por %p321, %p322
    %p325 = scmp.ne.s32.totalorder %s310, %s324
    %p326 = scmp.eq.s32.totalorder %s27, 0
    %p327 = por %p325, %p326
    %s329 = sadd.s32 %s328, 1
    %p332 = scmp.eq.s32.totalorder %s21, 1
    %p333 = scmp.ne.s32.totalorder %s328, %s330
    %p334 = scmp.eq.s32.totalorder %s21, 0
    %p335 = por %p333, %p334
    %p336 = scmp.ne.s32.totalorder %s328, %s330
    %p337 = scmp.eq.s32.totalorder %s26, 1
    %p338 = por %p336, %p337
    %p339 = scmp.ne.s32.totalorder %s330, %s331
    %p340 = scmp.eq.s32.totalorder %s26, 0
    %p341 = por %p339, %p340
    %p342 = scmp.ne.s32.totalorder %s330, %s331
    %p343 = scmp.eq.s32.totalorder %s27, 1
    %p344 = por %p342, %p343
    %p346 = scmp.ne.s32.totalorder %s331, %s345
    %p347 = scmp.eq.s32.totalorder %s27, 0
    %p348 = por %p346, %p347
    %s349 = ssub.s32 %s21, %s28
    %p350 = scmp.eq.s32.totalorder %s349, 0
    %s352 = sadd.s32 %s351, 1
    %s353 = scalar_select %p350, %s351, %s352
    %p356 = pneg %p350
    %p357 = scmp.eq.s32.totalorder %s21, 1
    %p358 = por %p356, %p357
    %p359 = scmp.ne.s32.totalorder %s351, %s354
    %p360 = scmp.eq.s32.totalorder %s21, 0
    %p361 = por %p359, %p360
    %p362 = scmp.ne.s32.totalorder %s351, %s354
    %p363 = scmp.eq.s32.totalorder %s26, 1
    %p364 = por %p362, %p363
    %p365 = scmp.ne.s32.totalorder %s354, %s355
    %p366 = scmp.eq.s32.totalorder %s26, 0
    %p367 = por %p365, %p366
    %p368 = scmp.ne.s32.totalorder %s354, %s355
    %p369 = scmp.eq.s32.totalorder %s27, 1
    %p370 = por %p368, %p369
    %p372 = scmp.ne.s32.totalorder %s355, %s371
    %p373 = scmp.eq.s32.totalorder %s27, 0
    %p374 = por %p372, %p373
    %p375 = scmp.le.s32.totalorder 1, %s21
    %p376 = scmp.lt.s32.totalorder %s21, 3
    %p377 = pnand %p375, %p376
    %p378 = pneg %p377
    // Predicated region
    $region9: #{_lambda_.1} parent=5 // pred_check
      _
    $region10: #{_lambda_.1} parent=5 // pred_check_branch
      %380 = sbr.rel (%p377) target = $region12
    $region11: #{_lambda_.1} parent=5 // pred_region
      %s381 = ssub.s32 %s21, 1
      // Predicated region
      $region13: #{_lambda_.1} parent=11 // pred_check
        %p382 = pneg %p68
      $region14: #{_lambda_.1} parent=11 // pred_check_branch
        %384 = sbr.rel (%p382) target = $region16
      $region15: #{_lambda_.1} parent=11 // pred_region
        _
      $region16: #{_lambda_.1} parent=11 // pred_fallthru
        _
      // Predicated region
      $region17: #{_lambda_.1} parent=11 // pred_check
        %p385 = pneg %p89
      $region18: #{_lambda_.1} parent=11 // pred_check_branch
        %387 = sbr.rel (%p385) target = $region20
      $region19: #{_lambda_.1} parent=11 // pred_region
        _
      $region20: #{_lambda_.1} parent=11 // pred_fallthru
        _
      // Predicated region
      $region21: #{_lambda_.1} parent=11 // pred_check
        %p388 = pneg %p110
      $region22: #{_lambda_.1} parent=11 // pred_check_branch
        %390 = sbr.rel (%p388) target = $region24
      $region23: #{_lambda_.1} parent=11 // pred_region
        _
      $region24: #{_lambda_.1} parent=11 // pred_fallthru
        _
      // Predicated region
      $region25: #{_lambda_.1} parent=11 // pred_check
        %p391 = pneg %p131
      $region26: #{_lambda_.1} parent=11 // pred_check_branch
        %393 = sbr.rel (%p391) target = $region28
      $region27: #{_lambda_.1} parent=11 // pred_region
        _
      $region28: #{_lambda_.1} parent=11 // pred_fallthru
        _
      // Predicated region
      $region29: #{_lambda_.1} parent=11 // pred_check
        %p394 = pneg %p152
      $region30: #{_lambda_.1} parent=11 // pred_check_branch
        %396 = sbr.rel (%p394) target = $region32
      $region31: #{_lambda_.1} parent=11 // pred_region
        _
      $region32: #{_lambda_.1} parent=11 // pred_fallthru
        _
      // Predicated region
      $region33: #{_lambda_.1} parent=11 // pred_check
        %p397 = pneg %p173
      $region34: #{_lambda_.1} parent=11 // pred_check_branch
        %399 = sbr.rel (%p397) target = $region36
      $region35: #{_lambda_.1} parent=11 // pred_region
        _
      $region36: #{_lambda_.1} parent=11 // pred_fallthru
        _
      // Predicated region
      $region37: #{_lambda_.1} parent=11 // pred_check
        %p400 = pneg %p194
      $region38: #{_lambda_.1} parent=11 // pred_check_branch
        %402 = sbr.rel (%p400) target = $region40
      $region39: #{_lambda_.1} parent=11 // pred_region
        _
      $region40: #{_lambda_.1} parent=11 // pred_fallthru
        _
      // Predicated region
      $region41: #{_lambda_.1} parent=11 // pred_check
        %p403 = pneg %p215
      $region42: #{_lambda_.1} parent=11 // pred_check_branch
        %405 = sbr.rel (%p403) target = $region44
      $region43: #{_lambda_.1} parent=11 // pred_region
        _
      $region44: #{_lambda_.1} parent=11 // pred_fallthru
        _
      // Predicated region
      $region45: #{_lambda_.1} parent=11 // pred_check
        %p406 = pneg %p236
      $region46: #{_lambda_.1} parent=11 // pred_check_branch
        %408 = sbr.rel (%p406) target = $region48
      $region47: #{_lambda_.1} parent=11 // pred_region
        _
      $region48: #{_lambda_.1} parent=11 // pred_fallthru
        _
      // Predicated region
      $region49: #{_lambda_.1} parent=11 // pred_check
        %p409 = pneg %p257
      $region50: #{_lambda_.1} parent=11 // pred_check_branch
        %411 = sbr.rel (%p409) target = $region52
      $region51: #{_lambda_.1} parent=11 // pred_region
        _
      $region52: #{_lambda_.1} parent=11 // pred_fallthru
        _
      // Predicated region
      $region53: #{_lambda_.1} parent=11 // pred_check
        %p412 = pneg %p278
      $region54: #{_lambda_.1} parent=11 // pred_check_branch
        %414 = sbr.rel (%p412) target = $region56
      $region55: #{_lambda_.1} parent=11 // pred_region
        _
      $region56: #{_lambda_.1} parent=11 // pred_fallthru
        _
      // Predicated region
      $region57: #{_lambda_.1} parent=11 // pred_check
        %p415 = pneg %p299
      $region58: #{_lambda_.1} parent=11 // pred_check_branch
        %417 = sbr.rel (%p415) target = $region60
      $region59: #{_lambda_.1} parent=11 // pred_region
        _
      $region60: #{_lambda_.1} parent=11 // pred_fallthru
        _
      // Predicated region
      $region61: #{_lambda_.1} parent=11 // pred_check
        %p418 = pneg %p320
      $region62: #{_lambda_.1} parent=11 // pred_check_branch
        %420 = sbr.rel (%p418) target = $region64
      $region63: #{_lambda_.1} parent=11 // pred_region
        _
      $region64: #{_lambda_.1} parent=11 // pred_fallthru
        _
      // Predicated region
      $region65: #{_lambda_.1} parent=11 // pred_check
        %p421 = pneg %p341
      $region66: #{_lambda_.1} parent=11 // pred_check_branch
        %423 = sbr.rel (%p421) target = $region68
      $region67: #{_lambda_.1} parent=11 // pred_region
        _
      $region68: #{_lambda_.1} parent=11 // pred_fallthru
        _
    $region12: #{_lambda_.1} parent=5 // pred_fallthru
      _
    %p424 = scmp.lt.s32.totalorder %s21, 2
    // Predicated region
    $region69: #{_lambda_.1} parent=5 // pred_check
      %p425 = pneg %p424
    $region70: #{_lambda_.1} parent=5 // pred_check_branch
      %427 = sbr.rel (%p425) target = $region72
    $region71: #{_lambda_.1} parent=5 // pred_region
      // Predicated region
      $region73: #{_lambda_.1} parent=71 // pred_check
        %p428 = pneg %p41
      $region74: #{_lambda_.1} parent=71 // pred_check_branch
        %430 = sbr.rel (%p428) target = $region76
      $region75: #{_lambda_.1} parent=71 // pred_region
        %p431 = scmp.lt.s32.totalorder %s21, 1
        %s432 = scalar_select %p431, %s21, 1
        %s433 = smul.addr %s432, 32
        %s434 = smul.addr %s433, 8
        %s435 = scalar_lea.vmem %s0, %s434
      $region76: #{_lambda_.1} parent=71 // pred_fallthru
        _
    $region72: #{_lambda_.1} parent=5 // pred_fallthru
      _
    %p436 = scmp.le.s32.totalorder 1, %s21
    %p437 = scmp.lt.s32.totalorder %s21, 3
    %p438 = pnand %p436, %p437
    %p439 = pneg %p438
    // Predicated region
    $region77: #{_lambda_.1} parent=5 // pred_check
      _
    $region78: #{_lambda_.1} parent=5 // pred_check_branch
      %441 = sbr.rel (%p438) target = $region80
    $region79: #{_lambda_.1} parent=5 // pred_region
      %s442 = ssub.s32 %s21, 1
      %p443 = scmp.lt.s32.totalorder %s26, 1
      %s444 = scalar_select %p443, %s26, 1
      %s445 = smul.addr %s444, 32
      %s446 = smul.addr %s445, 8
      %s447 = scalar_lea.vmem %s0, %s446
      %p448 = pneg %p47
      %p449 = pneg %p44
      %p450 = pneg %p68
      %p451 = pneg %p65
      %p452 = pneg %p89
      %p453 = pneg %p86
      %p454 = pneg %p110
      %p455 = pneg %p107
      %p456 = pneg %p131
      %p457 = pneg %p128
      %p458 = pneg %p152
      %p459 = pneg %p149
      %p460 = pneg %p173
      %p461 = pneg %p170
      %p462 = pneg %p194
      %p463 = pneg %p191
      %p464 = pneg %p215
      %p465 = pneg %p212
      %p466 = pneg %p236
      %p467 = pneg %p233
      %p468 = pneg %p257
      %p469 = pneg %p254
      %p470 = pneg %p278
      %p471 = pneg %p275
      %p472 = pneg %p299
      %p473 = pneg %p296
      %p474 = pneg %p320
      %p475 = pneg %p317
      %p476 = pneg %p341
      %p477 = pneg %p338
      %p478 = pneg %p367
      %p479 = pneg %p364
      %p480 = scmp.lt.s32.totalorder %s26, 1
      %s481 = scalar_select %p480, %s26, 1
      %s482 = smul.addr %s481, 32
      %s483 = smul.addr %s482, 8
      %s484 = scalar_lea.vmem %s15, %s483
      %p485 = scmp.lt.s32.totalorder %s26, 1
      %s486 = scalar_select %p485, %s26, 1
      %s487 = smul.addr %s486, 32
      %s488 = smul.addr %s487, 8
      %s489 = scalar_lea.vmem %s0, %s488
      %p490 = scmp.lt.s32.totalorder %s26, 1
      %s491 = scalar_select %p490, %s26, 1
      %s492 = smul.addr %s491, 32
      %s493 = smul.addr %s492, 8
      %s494 = scalar_lea.vmem %s15, %s493
      %v496 = vld [vmem:[%s489] sm:$0xff]
      %v497 = vld [vmem:[%s489 + $0x8] sm:$0xff]
      %v498 = vld [vmem:[%s489 + $0x10] sm:$0xff]
      %v499 = vld [vmem:[%s489 + $0x18] sm:$0xff]
      %v500 = vld [vmem:[%s489 + $0x20] sm:$0xff]
      %v501 = vld [vmem:[%s489 + $0x28] sm:$0xff]
      %v502 = vld [vmem:[%s489 + $0x30] sm:$0xff]
      %v503 = vld [vmem:[%s489 + $0x38] sm:$0xff]
      %v504 = vld [vmem:[%s489 + $0x40] sm:$0xff]
      %v505 = vld [vmem:[%s489 + $0x48] sm:$0xff]
      %v506 = vld [vmem:[%s489 + $0x50] sm:$0xff]
      %v507 = vld [vmem:[%s489 + $0x58] sm:$0xff]
      %v508 = vld [vmem:[%s489 + $0x60] sm:$0xff]
      %v509 = vld [vmem:[%s489 + $0x68] sm:$0xff]
      %v510 = vld [vmem:[%s489 + $0x70] sm:$0xff]
      %v511 = vld [vmem:[%s489 + $0x78] sm:$0xff]
      %v512 = vld [vmem:[%s489 + $0x80] sm:$0xff]
      %v513 = vld [vmem:[%s489 + $0x88] sm:$0xff]
      %v514 = vld [vmem:[%s489 + $0x90] sm:$0xff]
      %v515 = vld [vmem:[%s489 + $0x98] sm:$0xff]
      %v516 = vld [vmem:[%s489 + $0xa0] sm:$0xff]
      %v517 = vld [vmem:[%s489 + $0xa8] sm:$0xff]
      %v518 = vld [vmem:[%s489 + $0xb0] sm:$0xff]
      %v519 = vld [vmem:[%s489 + $0xb8] sm:$0xff]
      %v520 = vld [vmem:[%s489 + $0xc0] sm:$0xff]
      %v521 = vld [vmem:[%s489 + $0xc8] sm:$0xff]
      %v522 = vld [vmem:[%s489 + $0xd0] sm:$0xff]
      %v523 = vld [vmem:[%s489 + $0xd8] sm:$0xff]
      %v524 = vld [vmem:[%s489 + $0xe0] sm:$0xff]
      %v525 = vld [vmem:[%s489 + $0xe8] sm:$0xff]
      %v526 = vld [vmem:[%s489 + $0xf0] sm:$0xff]
      %v527 = vld [vmem:[%s489 + $0xf8] sm:$0xff]
      %vm528 = vcmask 31744
      %529 = vst.msk [vmem:[#allocation2] sm:$0xff] %vm528, 0.0
      %530 = vst.msk [vmem:[#allocation2 + $0x8] sm:$0xff] %vm528, 0.0
      %vm531 = vcmask 25600
      %532 = vst.msk [vmem:[#allocation2 + $0x10] sm:$0x3] %vm531, 0.0
      %533 = vst.msk [vmem:[#allocation2 + $0x18] sm:$0xff] %vm528, 0.0
      %534 = vst.msk [vmem:[#allocation2 + $0x20] sm:$0xff] %vm528, 0.0
      %535 = vst.msk [vmem:[#allocation2 + $0x28] sm:$0x3] %vm531, 0.0
      %536 = vst.msk [vmem:[#allocation2 + $0x30] sm:$0xff] %vm528, 0.0
      %537 = vst.msk [vmem:[#allocation2 + $0x38] sm:$0xff] %vm528, 0.0
      %538 = vst.msk [vmem:[#allocation2 + $0x40] sm:$0x3] %vm531, 0.0
      %539 = vst.msk [vmem:[#allocation2 + $0x48] sm:$0xff] %vm528, 0.0
      %540 = vst.msk [vmem:[#allocation2 + $0x50] sm:$0xff] %vm528, 0.0
      %541 = vst.msk [vmem:[#allocation2 + $0x58] sm:$0x3] %vm531, 0.0
      %542 = vst.msk [vmem:[#allocation2 + $0x60] sm:$0xff] %vm528, 0.0
      %543 = vst.msk [vmem:[#allocation2 + $0x68] sm:$0xff] %vm528, 0.0
      %544 = vst.msk [vmem:[#allocation2 + $0x70] sm:$0x3] %vm531, 0.0
      %545 = vst.msk [vmem:[#allocation2 + $0x78] sm:$0xff] %vm528, 0.0
      %546 = vst.msk [vmem:[#allocation2 + $0x80] sm:$0xff] %vm528, 0.0
      %547 = vst.msk [vmem:[#allocation2 + $0x88] sm:$0x3] %vm531, 0.0
      %548 = vst.msk [vmem:[#allocation2 + $0x90] sm:$0xff] %vm528, 0.0
      %549 = vst.msk [vmem:[#allocation2 + $0x98] sm:$0xff] %vm528, 0.0
      %550 = vst.msk [vmem:[#allocation2 + $0xa0] sm:$0x3] %vm531, 0.0
      %551 = vst.msk [vmem:[#allocation2 + $0xa8] sm:$0xff] %vm528, 0.0
      %552 = vst.msk [vmem:[#allocation2 + $0xb0] sm:$0xff] %vm528, 0.0
      %553 = vst.msk [vmem:[#allocation2 + $0xb8] sm:$0x3] %vm531, 0.0
      %554 = vst.msk [vmem:[#allocation2 + $0xc0] sm:$0xff] %vm528, 0.0
      %555 = vst.msk [vmem:[#allocation2 + $0xc8] sm:$0xff] %vm528, 0.0
      %556 = vst.msk [vmem:[#allocation2 + $0xd0] sm:$0x3] %vm531, 0.0
      %557 = vst.msk [vmem:[#allocation2 + $0xd8] sm:$0xff] %vm528, 0.0
      %558 = vst.msk [vmem:[#allocation2 + $0xe0] sm:$0xff] %vm528, 0.0
      %559 = vst.msk [vmem:[#allocation2 + $0xe8] sm:$0x3] %vm531, 0.0
      %560 = vst.msk [vmem:[#allocation2 + $0xf0] sm:$0xff] %vm528, 0.0
      %561 = vst.msk [vmem:[#allocation2 + $0xf8] sm:$0xff] %vm528, 0.0
      %562 = vst.msk [vmem:[#allocation2 + $0x100] sm:$0x3] %vm531, 0.0
      %563 = vst.msk [vmem:[#allocation2 + $0x108] sm:$0xff] %vm528, 0.0
      %564 = vst.msk [vmem:[#allocation2 + $0x110] sm:$0xff] %vm528, 0.0
      %565 = vst.msk [vmem:[#allocation2 + $0x118] sm:$0x3] %vm531, 0.0
      %566 = vst.msk [vmem:[#allocation2 + $0x120] sm:$0xff] %vm528, 0.0
      %567 = vst.msk [vmem:[#allocation2 + $0x128] sm:$0xff] %vm528, 0.0
      %568 = vst.msk [vmem:[#allocation2 + $0x130] sm:$0x3] %vm531, 0.0
      %569 = vst.msk [vmem:[#allocation2 + $0x138] sm:$0xff] %vm528, 0.0
      %570 = vst.msk [vmem:[#allocation2 + $0x140] sm:$0xff] %vm528, 0.0
      %571 = vst.msk [vmem:[#allocation2 + $0x148] sm:$0x3] %vm531, 0.0
      %572 = vst.msk [vmem:[#allocation2 + $0x150] sm:$0xff] %vm528, 0.0
      %573 = vst.msk [vmem:[#allocation2 + $0x158] sm:$0xff] %vm528, 0.0
      %574 = vst.msk [vmem:[#allocation2 + $0x160] sm:$0x3] %vm531, 0.0
      %575 = vst.msk [vmem:[#allocation2 + $0x168] sm:$0xff] %vm528, 0.0
      %576 = vst.msk [vmem:[#allocation2 + $0x170] sm:$0xff] %vm528, 0.0
      %577 = vst.msk [vmem:[#allocation2 + $0x178] sm:$0x3] %vm531, 0.0
      %578 = vst.msk [vmem:[#allocation2 + $0x180] sm:$0xff] %vm528, 0.0
      %579 = vst.msk [vmem:[#allocation2 + $0x188] sm:$0xff] %vm528, 0.0
      %580 = vst.msk [vmem:[#allocation2 + $0x190] sm:$0x3] %vm531, 0.0
      %581 = vst.msk [vmem:[#allocation2 + $0x198] sm:$0xff] %vm528, 0.0
      %582 = vst.msk [vmem:[#allocation2 + $0x1a0] sm:$0xff] %vm528, 0.0
      %583 = vst.msk [vmem:[#allocation2 + $0x1a8] sm:$0x3] %vm531, 0.0
      %s584 = scalar_lea.vmem [#allocation2], 24
      %585 = vst.msk [vmem:[%s584 + $0x1] sm:$0xff] %vm528, %v496
      %586 = vst.msk [vmem:[%s584 + $0x9] sm:$0xff] %vm528, %v497
      %587 = vst.msk [vmem:[%s584 + $0x19] sm:$0xff] %vm528, %v498
      %588 = vst.msk [vmem:[%s584 + $0x21] sm:$0xff] %vm528, %v499
      %589 = vst.msk [vmem:[%s584 + $0x31] sm:$0xff] %vm528, %v500
      %590 = vst.msk [vmem:[%s584 + $0x39] sm:$0xff] %vm528, %v501
      %591 = vst.msk [vmem:[%s584 + $0x49] sm:$0xff] %vm528, %v502
      %592 = vst.msk [vmem:[%s584 + $0x51] sm:$0xff] %vm528, %v503
      %593 = vst.msk [vmem:[%s584 + $0x61] sm:$0xff] %vm528, %v504
      %594 = vst.msk [vmem:[%s584 + $0x69] sm:$0xff] %vm528, %v505
      %595 = vst.msk [vmem:[%s584 + $0x79] sm:$0xff] %vm528, %v506
      %596 = vst.msk [vmem:[%s584 + $0x81] sm:$0xff] %vm528, %v507
      %597 = vst.msk [vmem:[%s584 + $0x91] sm:$0xff] %vm528, %v508
      %598 = vst.msk [vmem:[%s584 + $0x99] sm:$0xff] %vm528, %v509
      %599 = vst.msk [vmem:[%s584 + $0xa9] sm:$0xff] %vm528, %v510
      %600 = vst.msk [vmem:[%s584 + $0xb1] sm:$0xff] %vm528, %v511
      %601 = vst.msk [vmem:[%s584 + $0xc1] sm:$0xff] %vm528, %v512
      %602 = vst.msk [vmem:[%s584 + $0xc9] sm:$0xff] %vm528, %v513
      %603 = vst.msk [vmem:[%s584 + $0xd9] sm:$0xff] %vm528, %v514
      %604 = vst.msk [vmem:[%s584 + $0xe1] sm:$0xff] %vm528, %v515
      %605 = vst.msk [vmem:[%s584 + $0xf1] sm:$0xff] %vm528, %v516
      %606 = vst.msk [vmem:[%s584 + $0xf9] sm:$0xff] %vm528, %v517
      %607 = vst.msk [vmem:[%s584 + $0x109] sm:$0xff] %vm528, %v518
      %608 = vst.msk [vmem:[%s584 + $0x111] sm:$0xff] %vm528, %v519
      %609 = vst.msk [vmem:[%s584 + $0x121] sm:$0xff] %vm528, %v520
      %610 = vst.msk [vmem:[%s584 + $0x129] sm:$0xff] %vm528, %v521
      %611 = vst.msk [vmem:[%s584 + $0x139] sm:$0xff] %vm528, %v522
      %612 = vst.msk [vmem:[%s584 + $0x141] sm:$0xff] %vm528, %v523
      %613 = vst.msk [vmem:[%s584 + $0x151] sm:$0xff] %vm528, %v524
      %614 = vst.msk [vmem:[%s584 + $0x159] sm:$0xff] %vm528, %v525
      %615 = vst.msk [vmem:[%s584 + $0x169] sm:$0xff] %vm528, %v526
      %616 = vst.msk [vmem:[%s584 + $0x171] sm:$0xff] %vm528, %v527
      %v617 = vld [vmem:[#allocation2] sm:$0xff]
      %v618 = vld [vmem:[#allocation2 + $0x8] sm:$0xff]
      %v619 = vld [vmem:[#allocation2 + $0x18] sm:$0xff]
      %v620 = vld [vmem:[#allocation2 + $0x20] sm:$0xff]
      %v621 = vld [vmem:[#allocation2 + $0x30] sm:$0xff]
      %v622 = vld [vmem:[#allocation2 + $0x38] sm:$0xff]
      %v623 = vld [vmem:[#allocation2 + $0x48] sm:$0xff]
      %v624 = vld [vmem:[#allocation2 + $0x50] sm:$0xff]
      %v625 = vld [vmem:[#allocation2 + $0x60] sm:$0xff]
      %v626 = vld [vmem:[#allocation2 + $0x68] sm:$0xff]
      %v627 = vld [vmem:[#allocation2 + $0x78] sm:$0xff]
      %v628 = vld [vmem:[#allocation2 + $0x80] sm:$0xff]
      %v629 = vld [vmem:[#allocation2 + $0x90] sm:$0xff]
      %v630 = vld [vmem:[#allocation2 + $0x98] sm:$0xff]
      %v631 = vld [vmem:[#allocation2 + $0xa8] sm:$0xff]
      %v632 = vld [vmem:[#allocation2 + $0xb0] sm:$0xff]
      %v633 = vld [vmem:[#allocation2 + $0xc0] sm:$0xff]
      %v634 = vld [vmem:[#allocation2 + $0xc8] sm:$0xff]
      %v635 = vld [vmem:[#allocation2 + $0xd8] sm:$0xff]
      %v636 = vld [vmem:[#allocation2 + $0xe0] sm:$0xff]
      %v637 = vld [vmem:[#allocation2 + $0xf0] sm:$0xff]
      %v638 = vld [vmem:[#allocation2 + $0xf8] sm:$0xff]
      %v639 = vld [vmem:[#allocation2 + $0x108] sm:$0xff]
      %v640 = vld [vmem:[#allocation2 + $0x110] sm:$0xff]
      %v641 = vld [vmem:[#allocation2 + $0x120] sm:$0xff]
      %v642 = vld [vmem:[#allocation2 + $0x128] sm:$0xff]
      %v643 = vld [vmem:[#allocation2 + $0x138] sm:$0xff]
      %v644 = vld [vmem:[#allocation2 + $0x140] sm:$0xff]
      %v645 = vld [vmem:[#allocation2 + $0x150] sm:$0xff]
      %v646 = vld [vmem:[#allocation2 + $0x158] sm:$0xff]
      %v647 = vld [vmem:[#allocation2 + $0x168] sm:$0xff]
      %v648 = vld [vmem:[#allocation2 + $0x170] sm:$0xff]
      %v649 = vld [vmem:[#allocation2 + $0x1] sm:$0xff]
      %v650 = vld [vmem:[#allocation2 + $0x9] sm:$0xff]
      %v651 = vld [vmem:[#allocation2 + $0x19] sm:$0xff]
      %v652 = vld [vmem:[#allocation2 + $0x21] sm:$0xff]
      %v653 = vld [vmem:[#allocation2 + $0x31] sm:$0xff]
      %v654 = vld [vmem:[#allocation2 + $0x39] sm:$0xff]
      %v655 = vld [vmem:[#allocation2 + $0x49] sm:$0xff]
      %v656 = vld [vmem:[#allocation2 + $0x51] sm:$0xff]
      %v657 = vld [vmem:[#allocation2 + $0x61] sm:$0xff]
      %v658 = vld [vmem:[#allocation2 + $0x69] sm:$0xff]
      %v659 = vld [vmem:[#allocation2 + $0x79] sm:$0xff]
      %v660 = vld [vmem:[#allocation2 + $0x81] sm:$0xff]
      %v661 = vld [vmem:[#allocation2 + $0x91] sm:$0xff]
      %v662 = vld [vmem:[#allocation2 + $0x99] sm:$0xff]
      %v663 = vld [vmem:[#allocation2 + $0xa9] sm:$0xff]
      %v664 = vld [vmem:[#allocation2 + $0xb1] sm:$0xff]
      %v665 = vld [vmem:[#allocation2 + $0xc1] sm:$0xff]
      %v666 = vld [vmem:[#allocation2 + $0xc9] sm:$0xff]
      %v667 = vld [vmem:[#allocation2 + $0xd9] sm:$0xff]
      %v668 = vld [vmem:[#allocation2 + $0xe1] sm:$0xff]
      %v669 = vld [vmem:[#allocation2 + $0xf1] sm:$0xff]
      %v670 = vld [vmem:[#allocation2 + $0xf9] sm:$0xff]
      %v671 = vld [vmem:[#allocation2 + $0x109] sm:$0xff]
      %v672 = vld [vmem:[#allocation2 + $0x111] sm:$0xff]
      %v673 = vld [vmem:[#allocation2 + $0x121] sm:$0xff]
      %v674 = vld [vmem:[#allocation2 + $0x129] sm:$0xff]
      %v675 = vld [vmem:[#allocation2 + $0x139] sm:$0xff]
      %v676 = vld [vmem:[#allocation2 + $0x141] sm:$0xff]
      %v677 = vld [vmem:[#allocation2 + $0x151] sm:$0xff]
      %v678 = vld [vmem:[#allocation2 + $0x159] sm:$0xff]
      %v679 = vld [vmem:[#allocation2 + $0x169] sm:$0xff]
      %v680 = vld [vmem:[#allocation2 + $0x171] sm:$0xff]
      %v681 = vld [vmem:[#allocation2 + $0x2] sm:$0xff]
      %v682 = vld [vmem:[#allocation2 + $0xa] sm:$0xff]
      %v683 = vld [vmem:[#allocation2 + $0x1a] sm:$0xff]
      %v684 = vld [vmem:[#allocation2 + $0x22] sm:$0xff]
      %v685 = vld [vmem:[#allocation2 + $0x32] sm:$0xff]
      %v686 = vld [vmem:[#allocation2 + $0x3a] sm:$0xff]
      %v687 = vld [vmem:[#allocation2 + $0x4a] sm:$0xff]
      %v688 = vld [vmem:[#allocation2 + $0x52] sm:$0xff]
      %v689 = vld [vmem:[#allocation2 + $0x62] sm:$0xff]
      %v690 = vld [vmem:[#allocation2 + $0x6a] sm:$0xff]
      %v691 = vld [vmem:[#allocation2 + $0x7a] sm:$0xff]
      %v692 = vld [vmem:[#allocation2 + $0x82] sm:$0xff]
      %v693 = vld [vmem:[#allocation2 + $0x92] sm:$0xff]
      %v694 = vld [vmem:[#allocation2 + $0x9a] sm:$0xff]
      %v695 = vld [vmem:[#allocation2 + $0xaa] sm:$0xff]
      %v696 = vld [vmem:[#allocation2 + $0xb2] sm:$0xff]
      %v697 = vld [vmem:[#allocation2 + $0xc2] sm:$0xff]
      %v698 = vld [vmem:[#allocation2 + $0xca] sm:$0xff]
      %v699 = vld [vmem:[#allocation2 + $0xda] sm:$0xff]
      %v700 = vld [vmem:[#allocation2 + $0xe2] sm:$0xff]
      %v701 = vld [vmem:[#allocation2 + $0xf2] sm:$0xff]
      %v702 = vld [vmem:[#allocation2 + $0xfa] sm:$0xff]
      %v703 = vld [vmem:[#allocation2 + $0x10a] sm:$0xff]
      %v704 = vld [vmem:[#allocation2 + $0x112] sm:$0xff]
      %v705 = vld [vmem:[#allocation2 + $0x122] sm:$0xff]
      %v706 = vld [vmem:[#allocation2 + $0x12a] sm:$0xff]
      %v707 = vld [vmem:[#allocation2 + $0x13a] sm:$0xff]
      %v708 = vld [vmem:[#allocation2 + $0x142] sm:$0xff]
      %v709 = vld [vmem:[#allocation2 + $0x152] sm:$0xff]
      %v710 = vld [vmem:[#allocation2 + $0x15a] sm:$0xff]
      %v711 = vld [vmem:[#allocation2 + $0x16a] sm:$0xff]
      %v712 = vld [vmem:[#allocation2 + $0x172] sm:$0xff]
      %v713 = vld [vmem:[%s584] sm:$0xff]
      %v714 = vld [vmem:[%s584 + $0x8] sm:$0xff]
      %v715 = vld [vmem:[%s584 + $0x18] sm:$0xff]
      %v716 = vld [vmem:[%s584 + $0x20] sm:$0xff]
      %v717 = vld [vmem:[%s584 + $0x30] sm:$0xff]
      %v718 = vld [vmem:[%s584 + $0x38] sm:$0xff]
      %v719 = vld [vmem:[%s584 + $0x48] sm:$0xff]
      %v720 = vld [vmem:[%s584 + $0x50] sm:$0xff]
      %v721 = vld [vmem:[%s584 + $0x60] sm:$0xff]
      %v722 = vld [vmem:[%s584 + $0x68] sm:$0xff]
      %v723 = vld [vmem:[%s584 + $0x78] sm:$0xff]
      %v724 = vld [vmem:[%s584 + $0x80] sm:$0xff]
      %v725 = vld [vmem:[%s584 + $0x90] sm:$0xff]
      %v726 = vld [vmem:[%s584 + $0x98] sm:$0xff]
      %v727 = vld [vmem:[%s584 + $0xa8] sm:$0xff]
      %v728 = vld [vmem:[%s584 + $0xb0] sm:$0xff]
      %v729 = vld [vmem:[%s584 + $0xc0] sm:$0xff]
      %v730 = vld [vmem:[%s584 + $0xc8] sm:$0xff]
      %v731 = vld [vmem:[%s584 + $0xd8] sm:$0xff]
      %v732 = vld [vmem:[%s584 + $0xe0] sm:$0xff]
      %v733 = vld [vmem:[%s584 + $0xf0] sm:$0xff]
      %v734 = vld [vmem:[%s584 + $0xf8] sm:$0xff]
      %v735 = vld [vmem:[%s584 + $0x108] sm:$0xff]
      %v736 = vld [vmem:[%s584 + $0x110] sm:$0xff]
      %v737 = vld [vmem:[%s584 + $0x120] sm:$0xff]
      %v738 = vld [vmem:[%s584 + $0x128] sm:$0xff]
      %v739 = vld [vmem:[%s584 + $0x138] sm:$0xff]
      %v740 = vld [vmem:[%s584 + $0x140] sm:$0xff]
      %v741 = vld [vmem:[%s584 + $0x150] sm:$0xff]
      %v742 = vld [vmem:[%s584 + $0x158] sm:$0xff]
      %v743 = vld [vmem:[%s584 + $0x168] sm:$0xff]
      %v744 = vld [vmem:[%s584 + $0x170] sm:$0xff]
      %v745 = vld [vmem:[%s584 + $0x1] sm:$0xff]
      %v746 = vld [vmem:[%s584 + $0x9] sm:$0xff]
      %v747 = vld [vmem:[%s584 + $0x19] sm:$0xff]
      %v748 = vld [vmem:[%s584 + $0x21] sm:$0xff]
      %v749 = vld [vmem:[%s584 + $0x31] sm:$0xff]
      %v750 = vld [vmem:[%s584 + $0x39] sm:$0xff]
      %v751 = vld [vmem:[%s584 + $0x49] sm:$0xff]
      %v752 = vld [vmem:[%s584 + $0x51] sm:$0xff]
      %v753 = vld [vmem:[%s584 + $0x61] sm:$0xff]
      %v754 = vld [vmem:[%s584 + $0x69] sm:$0xff]
      %v755 = vld [vmem:[%s584 + $0x79] sm:$0xff]
      %v756 = vld [vmem:[%s584 + $0x81] sm:$0xff]
      %v757 = vld [vmem:[%s584 + $0x91] sm:$0xff]
      %v758 = vld [vmem:[%s584 + $0x99] sm:$0xff]
      %v759 = vld [vmem:[%s584 + $0xa9] sm:$0xff]
      %v760 = vld [vmem:[%s584 + $0xb1] sm:$0xff]
      %v761 = vld [vmem:[%s584 + $0xc1] sm:$0xff]
      %v762 = vld [vmem:[%s584 + $0xc9] sm:$0xff]
      %v763 = vld [vmem:[%s584 + $0xd9] sm:$0xff]
      %v764 = vld [vmem:[%s584 + $0xe1] sm:$0xff]
      %v765 = vld [vmem:[%s584 + $0xf1] sm:$0xff]
      %v766 = vld [vmem:[%s584 + $0xf9] sm:$0xff]
      %v767 = vld [vmem:[%s584 + $0x109] sm:$0xff]
      %v768 = vld [vmem:[%s584 + $0x111] sm:$0xff]
      %v769 = vld [vmem:[%s584 + $0x121] sm:$0xff]
      %v770 = vld [vmem:[%s584 + $0x129] sm:$0xff]
      %v771 = vld [vmem:[%s584 + $0x139] sm:$0xff]
      %v772 = vld [vmem:[%s584 + $0x141] sm:$0xff]
      %v773 = vld [vmem:[%s584 + $0x151] sm:$0xff]
      %v774 = vld [vmem:[%s584 + $0x159] sm:$0xff]
      %v775 = vld [vmem:[%s584 + $0x169] sm:$0xff]
      %v776 = vld [vmem:[%s584 + $0x171] sm:$0xff]
      %v777 = vld [vmem:[%s584 + $0x2] sm:$0xff]
      %v778 = vld [vmem:[%s584 + $0xa] sm:$0xff]
      %v779 = vld [vmem:[%s584 + $0x1a] sm:$0xff]
      %v780 = vld [vmem:[%s584 + $0x22] sm:$0xff]
      %v781 = vld [vmem:[%s584 + $0x32] sm:$0xff]
      %v782 = vld [vmem:[%s584 + $0x3a] sm:$0xff]
      %v783 = vld [vmem:[%s584 + $0x4a] sm:$0xff]
      %v784 = vld [vmem:[%s584 + $0x52] sm:$0xff]
      %v785 = vld [vmem:[%s584 + $0x62] sm:$0xff]
      %v786 = vld [vmem:[%s584 + $0x6a] sm:$0xff]
      %v787 = vld [vmem:[%s584 + $0x7a] sm:$0xff]
      %v788 = vld [vmem:[%s584 + $0x82] sm:$0xff]
      %v789 = vld [vmem:[%s584 + $0x92] sm:$0xff]
      %v790 = vld [vmem:[%s584 + $0x9a] sm:$0xff]
      %v791 = vld [vmem:[%s584 + $0xaa] sm:$0xff]
      %v792 = vld [vmem:[%s584 + $0xb2] sm:$0xff]
      %v793 = vld [vmem:[%s584 + $0xc2] sm:$0xff]
      %v794 = vld [vmem:[%s584 + $0xca] sm:$0xff]
      %v795 = vld [vmem:[%s584 + $0xda] sm:$0xff]
      %v796 = vld [vmem:[%s584 + $0xe2] sm:$0xff]
      %v797 = vld [vmem:[%s584 + $0xf2] sm:$0xff]
      %v798 = vld [vmem:[%s584 + $0xfa] sm:$0xff]
      %v799 = vld [vmem:[%s584 + $0x10a] sm:$0xff]
      %v800 = vld [vmem:[%s584 + $0x112] sm:$0xff]
      %v801 = vld [vmem:[%s584 + $0x122] sm:$0xff]
      %v802 = vld [vmem:[%s584 + $0x12a] sm:$0xff]
      %v803 = vld [vmem:[%s584 + $0x13a] sm:$0xff]
      %v804 = vld [vmem:[%s584 + $0x142] sm:$0xff]
      %v805 = vld [vmem:[%s584 + $0x152] sm:$0xff]
      %v806 = vld [vmem:[%s584 + $0x15a] sm:$0xff]
      %v807 = vld [vmem:[%s584 + $0x16a] sm:$0xff]
      %v808 = vld [vmem:[%s584 + $0x172] sm:$0xff]
      %s809 = scalar_lea.vmem [#allocation2], 48
      %v810 = vld [vmem:[%s809] sm:$0xff]
      %v811 = vld [vmem:[%s809 + $0x8] sm:$0xff]
      %v812 = vld [vmem:[%s809 + $0x18] sm:$0xff]
      %v813 = vld [vmem:[%s809 + $0x20] sm:$0xff]
      %v814 = vld [vmem:[%s809 + $0x30] sm:$0xff]
      %v815 = vld [vmem:[%s809 + $0x38] sm:$0xff]
      %v816 = vld [vmem:[%s809 + $0x48] sm:$0xff]
      %v817 = vld [vmem:[%s809 + $0x50] sm:$0xff]
      %v818 = vld [vmem:[%s809 + $0x60] sm:$0xff]
      %v819 = vld [vmem:[%s809 + $0x68] sm:$0xff]
      %v820 = vld [vmem:[%s809 + $0x78] sm:$0xff]
      %v821 = vld [vmem:[%s809 + $0x80] sm:$0xff]
      %v822 = vld [vmem:[%s809 + $0x90] sm:$0xff]
      %v823 = vld [vmem:[%s809 + $0x98] sm:$0xff]
      %v824 = vld [vmem:[%s809 + $0xa8] sm:$0xff]
      %v825 = vld [vmem:[%s809 + $0xb0] sm:$0xff]
      %v826 = vld [vmem:[%s809 + $0xc0] sm:$0xff]
      %v827 = vld [vmem:[%s809 + $0xc8] sm:$0xff]
      %v828 = vld [vmem:[%s809 + $0xd8] sm:$0xff]
      %v829 = vld [vmem:[%s809 + $0xe0] sm:$0xff]
      %v830 = vld [vmem:[%s809 + $0xf0] sm:$0xff]
      %v831 = vld [vmem:[%s809 + $0xf8] sm:$0xff]
      %v832 = vld [vmem:[%s809 + $0x108] sm:$0xff]
      %v833 = vld [vmem:[%s809 + $0x110] sm:$0xff]
      %v834 = vld [vmem:[%s809 + $0x120] sm:$0xff]
      %v835 = vld [vmem:[%s809 + $0x128] sm:$0xff]
      %v836 = vld [vmem:[%s809 + $0x138] sm:$0xff]
      %v837 = vld [vmem:[%s809 + $0x140] sm:$0xff]
      %v838 = vld [vmem:[%s809 + $0x150] sm:$0xff]
      %v839 = vld [vmem:[%s809 + $0x158] sm:$0xff]
      %v840 = vld [vmem:[%s809 + $0x168] sm:$0xff]
      %v841 = vld [vmem:[%s809 + $0x170] sm:$0xff]
      %v842 = vld [vmem:[%s809 + $0x1] sm:$0xff]
      %v843 = vld [vmem:[%s809 + $0x9] sm:$0xff]
      %v844 = vld [vmem:[%s809 + $0x19] sm:$0xff]
      %v845 = vld [vmem:[%s809 + $0x21] sm:$0xff]
      %v846 = vld [vmem:[%s809 + $0x31] sm:$0xff]
      %v847 = vld [vmem:[%s809 + $0x39] sm:$0xff]
      %v848 = vld [vmem:[%s809 + $0x49] sm:$0xff]
      %v849 = vld [vmem:[%s809 + $0x51] sm:$0xff]
      %v850 = vld [vmem:[%s809 + $0x61] sm:$0xff]
      %v851 = vld [vmem:[%s809 + $0x69] sm:$0xff]
      %v852 = vld [vmem:[%s809 + $0x79] sm:$0xff]
      %v853 = vld [vmem:[%s809 + $0x81] sm:$0xff]
      %v854 = vld [vmem:[%s809 + $0x91] sm:$0xff]
      %v855 = vld [vmem:[%s809 + $0x99] sm:$0xff]
      %v856 = vld [vmem:[%s809 + $0xa9] sm:$0xff]
      %v857 = vld [vmem:[%s809 + $0xb1] sm:$0xff]
      %v858 = vld [vmem:[%s809 + $0xc1] sm:$0xff]
      %v859 = vld [vmem:[%s809 + $0xc9] sm:$0xff]
      %v860 = vld [vmem:[%s809 + $0xd9] sm:$0xff]
      %v861 = vld [vmem:[%s809 + $0xe1] sm:$0xff]
      %v862 = vld [vmem:[%s809 + $0xf1] sm:$0xff]
      %v863 = vld [vmem:[%s809 + $0xf9] sm:$0xff]
      %v864 = vld [vmem:[%s809 + $0x109] sm:$0xff]
      %v865 = vld [vmem:[%s809 + $0x111] sm:$0xff]
      %v866 = vld [vmem:[%s809 + $0x121] sm:$0xff]
      %v867 = vld [vmem:[%s809 + $0x129] sm:$0xff]
      %v868 = vld [vmem:[%s809 + $0x139] sm:$0xff]
      %v869 = vld [vmem:[%s809 + $0x141] sm:$0xff]
      %v870 = vld [vmem:[%s809 + $0x151] sm:$0xff]
      %v871 = vld [vmem:[%s809 + $0x159] sm:$0xff]
      %v872 = vld [vmem:[%s809 + $0x169] sm:$0xff]
      %v873 = vld [vmem:[%s809 + $0x171] sm:$0xff]
      %v874 = vld [vmem:[%s809 + $0x2] sm:$0xff]
      %v875 = vld [vmem:[%s809 + $0xa] sm:$0xff]
      %v876 = vld [vmem:[%s809 + $0x1a] sm:$0xff]
      %v877 = vld [vmem:[%s809 + $0x22] sm:$0xff]
      %v878 = vld [vmem:[%s809 + $0x32] sm:$0xff]
      %v879 = vld [vmem:[%s809 + $0x3a] sm:$0xff]
      %v880 = vld [vmem:[%s809 + $0x4a] sm:$0xff]
      %v881 = vld [vmem:[%s809 + $0x52] sm:$0xff]
      %v882 = vld [vmem:[%s809 + $0x62] sm:$0xff]
      %v883 = vld [vmem:[%s809 + $0x6a] sm:$0xff]
      %v884 = vld [vmem:[%s809 + $0x7a] sm:$0xff]
      %v885 = vld [vmem:[%s809 + $0x82] sm:$0xff]
      %v886 = vld [vmem:[%s809 + $0x92] sm:$0xff]
      %v887 = vld [vmem:[%s809 + $0x9a] sm:$0xff]
      %v888 = vld [vmem:[%s809 + $0xaa] sm:$0xff]
      %v889 = vld [vmem:[%s809 + $0xb2] sm:$0xff]
      %v890 = vld [vmem:[%s809 + $0xc2] sm:$0xff]
      %v891 = vld [vmem:[%s809 + $0xca] sm:$0xff]
      %v892 = vld [vmem:[%s809 + $0xda] sm:$0xff]
      %v893 = vld [vmem:[%s809 + $0xe2] sm:$0xff]
      %v894 = vld [vmem:[%s809 + $0xf2] sm:$0xff]
      %v895 = vld [vmem:[%s809 + $0xfa] sm:$0xff]
      %v896 = vld [vmem:[%s809 + $0x10a] sm:$0xff]
      %v897 = vld [vmem:[%s809 + $0x112] sm:$0xff]
      %v898 = vld [vmem:[%s809 + $0x122] sm:$0xff]
      %v899 = vld [vmem:[%s809 + $0x12a] sm:$0xff]
      %v900 = vld [vmem:[%s809 + $0x13a] sm:$0xff]
      %v901 = vld [vmem:[%s809 + $0x142] sm:$0xff]
      %v902 = vld [vmem:[%s809 + $0x152] sm:$0xff]
      %v903 = vld [vmem:[%s809 + $0x15a] sm:$0xff]
      %v904 = vld [vmem:[%s809 + $0x16a] sm:$0xff]
      %v905 = vld [vmem:[%s809 + $0x172] sm:$0xff]
      %938 = vrot.lane.b32.xlu0 %v649, 4
      %v939 = vpop.permute.xlu0 %938
      %940 = vrot.lane.b32.xlu0 %v650, 4
      %v941 = vpop.permute.xlu0 %940
      %942 = vrot.lane.b32.xlu0 %v651, 4
      %v943 = vpop.permute.xlu0 %942
      %944 = vrot.lane.b32.xlu0 %v652, 4
      %v945 = vpop.permute.xlu0 %944
      %946 = vrot.lane.b32.xlu0 %v653, 4
      %v947 = vpop.permute.xlu0 %946
      %948 = vrot.lane.b32.xlu0 %v654, 4
      %v949 = vpop.permute.xlu0 %948
      %950 = vrot.lane.b32.xlu0 %v655, 4
      %v951 = vpop.permute.xlu0 %950
      %952 = vrot.lane.b32.xlu0 %v656, 4
      %v953 = vpop.permute.xlu0 %952
      %954 = vrot.lane.b32.xlu0 %v657, 4
      %v955 = vpop.permute.xlu0 %954
      %956 = vrot.lane.b32.xlu0 %v658, 4
      %v957 = vpop.permute.xlu0 %956
      %958 = vrot.lane.b32.xlu0 %v659, 4
      %v959 = vpop.permute.xlu0 %958
      %960 = vrot.lane.b32.xlu0 %v660, 4
      %v961 = vpop.permute.xlu0 %960
      %962 = vrot.lane.b32.xlu0 %v661, 4
      %v963 = vpop.permute.xlu0 %962
      %964 = vrot.lane.b32.xlu0 %v662, 4
      %v965 = vpop.permute.xlu0 %964
      %966 = vrot.lane.b32.xlu0 %v663, 4
      %v967 = vpop.permute.xlu0 %966
      %968 = vrot.lane.b32.xlu0 %v664, 4
      %v969 = vpop.permute.xlu0 %968
      %970 = vrot.lane.b32.xlu0 %v665, 4
      %v971 = vpop.permute.xlu0 %970
      %972 = vrot.lane.b32.xlu0 %v666, 4
      %v973 = vpop.permute.xlu0 %972
      %974 = vrot.lane.b32.xlu0 %v667, 4
      %v975 = vpop.permute.xlu0 %974
      %976 = vrot.lane.b32.xlu0 %v668, 4
      %v977 = vpop.permute.xlu0 %976
      %978 = vrot.lane.b32.xlu0 %v669, 4
      %v979 = vpop.permute.xlu0 %978
      %980 = vrot.lane.b32.xlu0 %v670, 4
      %v981 = vpop.permute.xlu0 %980
      %982 = vrot.lane.b32.xlu0 %v671, 4
      %v983 = vpop.permute.xlu0 %982
      %984 = vrot.lane.b32.xlu0 %v672, 4
      %v985 = vpop.permute.xlu0 %984
      %986 = vrot.lane.b32.xlu0 %v673, 4
      %v987 = vpop.permute.xlu0 %986
      %988 = vrot.lane.b32.xlu0 %v674, 4
      %v989 = vpop.permute.xlu0 %988
      %990 = vrot.lane.b32.xlu0 %v675, 4
      %v991 = vpop.permute.xlu0 %990
      %992 = vrot.lane.b32.xlu0 %v676, 4
      %v993 = vpop.permute.xlu0 %992
      %994 = vrot.lane.b32.xlu0 %v677, 4
      %v995 = vpop.permute.xlu0 %994
      %996 = vrot.lane.b32.xlu0 %v678, 4
      %v997 = vpop.permute.xlu0 %996
      %998 = vrot.lane.b32.xlu0 %v679, 4
      %v999 = vpop.permute.xlu0 %998
      %1000 = vrot.lane.b32.xlu0 %v680, 4
      %v1001 = vpop.permute.xlu0 %1000
      %1066 = vrot.lane.b32.xlu0 %v681, 8
      %v1067 = vpop.permute.xlu0 %1066
      %1068 = vrot.lane.b32.xlu0 %v682, 8
      %v1069 = vpop.permute.xlu0 %1068
      %1070 = vrot.lane.b32.xlu0 %v683, 8
      %v1071 = vpop.permute.xlu0 %1070
      %1072 = vrot.lane.b32.xlu0 %v684, 8
      %v1073 = vpop.permute.xlu0 %1072
      %1074 = vrot.lane.b32.xlu0 %v685, 8
      %v1075 = vpop.permute.xlu0 %1074
      %1076 = vrot.lane.b32.xlu0 %v686, 8
      %v1077 = vpop.permute.xlu0 %1076
      %1078 = vrot.lane.b32.xlu0 %v687, 8
      %v1079 = vpop.permute.xlu0 %1078
      %1080 = vrot.lane.b32.xlu0 %v688, 8
      %v1081 = vpop.permute.xlu0 %1080
      %1082 = vrot.lane.b32.xlu0 %v689, 8
      %v1083 = vpop.permute.xlu0 %1082
      %1084 = vrot.lane.b32.xlu0 %v690, 8
      %v1085 = vpop.permute.xlu0 %1084
      %1086 = vrot.lane.b32.xlu0 %v691, 8
      %v1087 = vpop.permute.xlu0 %1086
      %1088 = vrot.lane.b32.xlu0 %v692, 8
      %v1089 = vpop.permute.xlu0 %1088
      %1090 = vrot.lane.b32.xlu0 %v693, 8
      %v1091 = vpop.permute.xlu0 %1090
      %1092 = vrot.lane.b32.xlu0 %v694, 8
      %v1093 = vpop.permute.xlu0 %1092
      %1094 = vrot.lane.b32.xlu0 %v695, 8
      %v1095 = vpop.permute.xlu0 %1094
      %1096 = vrot.lane.b32.xlu0 %v696, 8
      %v1097 = vpop.permute.xlu0 %1096
      %1098 = vrot.lane.b32.xlu0 %v697, 8
      %v1099 = vpop.permute.xlu0 %1098
      %1100 = vrot.lane.b32.xlu0 %v698, 8
      %v1101 = vpop.permute.xlu0 %1100
      %1102 = vrot.lane.b32.xlu0 %v699, 8
      %v1103 = vpop.permute.xlu0 %1102
      %1104 = vrot.lane.b32.xlu0 %v700, 8
      %v1105 = vpop.permute.xlu0 %1104
      %1106 = vrot.lane.b32.xlu0 %v701, 8
      %v1107 = vpop.permute.xlu0 %1106
      %1108 = vrot.lane.b32.xlu0 %v702, 8
      %v1109 = vpop.permute.xlu0 %1108
      %1110 = vrot.lane.b32.xlu0 %v703, 8
      %v1111 = vpop.permute.xlu0 %1110
      %1112 = vrot.lane.b32.xlu0 %v704, 8
      %v1113 = vpop.permute.xlu0 %1112
      %1114 = vrot.lane.b32.xlu0 %v705, 8
      %v1115 = vpop.permute.xlu0 %1114
      %1116 = vrot.lane.b32.xlu0 %v706, 8
      %v1117 = vpop.permute.xlu0 %1116
      %1118 = vrot.lane.b32.xlu0 %v707, 8
      %v1119 = vpop.permute.xlu0 %1118
      %1120 = vrot.lane.b32.xlu0 %v708, 8
      %v1121 = vpop.permute.xlu0 %1120
      %1122 = vrot.lane.b32.xlu0 %v709, 8
      %v1123 = vpop.permute.xlu0 %1122
      %1124 = vrot.lane.b32.xlu0 %v710, 8
      %v1125 = vpop.permute.xlu0 %1124
      %1126 = vrot.lane.b32.xlu0 %v711, 8
      %v1127 = vpop.permute.xlu0 %1126
      %1128 = vrot.lane.b32.xlu0 %v712, 8
      %v1129 = vpop.permute.xlu0 %1128
      %1194 = vrot.lane.b32.xlu0 %v713, 12
      %v1195 = vpop.permute.xlu0 %1194
      %1196 = vrot.lane.b32.xlu0 %v714, 12
      %v1197 = vpop.permute.xlu0 %1196
      %1198 = vrot.lane.b32.xlu0 %v715, 12
      %v1199 = vpop.permute.xlu0 %1198
      %1200 = vrot.lane.b32.xlu0 %v716, 12
      %v1201 = vpop.permute.xlu0 %1200
      %1202 = vrot.lane.b32.xlu0 %v717, 12
      %v1203 = vpop.permute.xlu0 %1202
      %1204 = vrot.lane.b32.xlu0 %v718, 12
      %v1205 = vpop.permute.xlu0 %1204
      %1206 = vrot.lane.b32.xlu0 %v719, 12
      %v1207 = vpop.permute.xlu0 %1206
      %1208 = vrot.lane.b32.xlu0 %v720, 12
      %v1209 = vpop.permute.xlu0 %1208
      %1210 = vrot.lane.b32.xlu0 %v721, 12
      %v1211 = vpop.permute.xlu0 %1210
      %1212 = vrot.lane.b32.xlu0 %v722, 12
      %v1213 = vpop.permute.xlu0 %1212
      %1214 = vrot.lane.b32.xlu0 %v723, 12
      %v1215 = vpop.permute.xlu0 %1214
      %1216 = vrot.lane.b32.xlu0 %v724, 12
      %v1217 = vpop.permute.xlu0 %1216
      %1218 = vrot.lane.b32.xlu0 %v725, 12
      %v1219 = vpop.permute.xlu0 %1218
      %1220 = vrot.lane.b32.xlu0 %v726, 12
      %v1221 = vpop.permute.xlu0 %1220
      %1222 = vrot.lane.b32.xlu0 %v727, 12
      %v1223 = vpop.permute.xlu0 %1222
      %1224 = vrot.lane.b32.xlu0 %v728, 12
      %v1225 = vpop.permute.xlu0 %1224
      %1226 = vrot.lane.b32.xlu0 %v729, 12
      %v1227 = vpop.permute.xlu0 %1226
      %1228 = vrot.lane.b32.xlu0 %v730, 12
      %v1229 = vpop.permute.xlu0 %1228
      %1230 = vrot.lane.b32.xlu0 %v731, 12
      %v1231 = vpop.permute.xlu0 %1230
      %1232 = vrot.lane.b32.xlu0 %v732, 12
      %v1233 = vpop.permute.xlu0 %1232
      %1234 = vrot.lane.b32.xlu0 %v733, 12
      %v1235 = vpop.permute.xlu0 %1234
      %1236 = vrot.lane.b32.xlu0 %v734, 12
      %v1237 = vpop.permute.xlu0 %1236
      %1238 = vrot.lane.b32.xlu0 %v735, 12
      %v1239 = vpop.permute.xlu0 %1238
      %1240 = vrot.lane.b32.xlu0 %v736, 12
      %v1241 = vpop.permute.xlu0 %1240
      %1242 = vrot.lane.b32.xlu0 %v737, 12
      %v1243 = vpop.permute.xlu0 %1242
      %1244 = vrot.lane.b32.xlu0 %v738, 12
      %v1245 = vpop.permute.xlu0 %1244
      %1246 = vrot.lane.b32.xlu0 %v739, 12
      %v1247 = vpop.permute.xlu0 %1246
      %1248 = vrot.lane.b32.xlu0 %v740, 12
      %v1249 = vpop.permute.xlu0 %1248
      %1250 = vrot.lane.b32.xlu0 %v741, 12
      %v1251 = vpop.permute.xlu0 %1250
      %1252 = vrot.lane.b32.xlu0 %v742, 12
      %v1253 = vpop.permute.xlu0 %1252
      %1254 = vrot.lane.b32.xlu0 %v743, 12
      %v1255 = vpop.permute.xlu0 %1254
      %1256 = vrot.lane.b32.xlu0 %v744, 12
      %v1257 = vpop.permute.xlu0 %1256
      %1322 = vrot.lane.b32.xlu0 %v745, 16
      %v1323 = vpop.permute.xlu0 %1322
      %1324 = vrot.lane.b32.xlu0 %v746, 16
      %v1325 = vpop.permute.xlu0 %1324
      %1326 = vrot.lane.b32.xlu0 %v747, 16
      %v1327 = vpop.permute.xlu0 %1326
      %1328 = vrot.lane.b32.xlu0 %v748, 16
      %v1329 = vpop.permute.xlu0 %1328
      %1330 = vrot.lane.b32.xlu0 %v749, 16
      %v1331 = vpop.permute.xlu0 %1330
      %1332 = vrot.lane.b32.xlu0 %v750, 16
      %v1333 = vpop.permute.xlu0 %1332
      %1334 = vrot.lane.b32.xlu0 %v751, 16
      %v1335 = vpop.permute.xlu0 %1334
      %1336 = vrot.lane.b32.xlu0 %v752, 16
      %v1337 = vpop.permute.xlu0 %1336
      %1338 = vrot.lane.b32.xlu0 %v753, 16
      %v1339 = vpop.permute.xlu0 %1338
      %1340 = vrot.lane.b32.xlu0 %v754, 16
      %v1341 = vpop.permute.xlu0 %1340
      %1342 = vrot.lane.b32.xlu0 %v755, 16
      %v1343 = vpop.permute.xlu0 %1342
      %1344 = vrot.lane.b32.xlu0 %v756, 16
      %v1345 = vpop.permute.xlu0 %1344
      %1346 = vrot.lane.b32.xlu0 %v757, 16
      %v1347 = vpop.permute.xlu0 %1346
      %1348 = vrot.lane.b32.xlu0 %v758, 16
      %v1349 = vpop.permute.xlu0 %1348
      %1350 = vrot.lane.b32.xlu0 %v759, 16
      %v1351 = vpop.permute.xlu0 %1350
      %1352 = vrot.lane.b32.xlu0 %v760, 16
      %v1353 = vpop.permute.xlu0 %1352
      %1354 = vrot.lane.b32.xlu0 %v761, 16
      %v1355 = vpop.permute.xlu0 %1354
      %1356 = vrot.lane.b32.xlu0 %v762, 16
      %v1357 = vpop.permute.xlu0 %1356
      %1358 = vrot.lane.b32.xlu0 %v763, 16
      %v1359 = vpop.permute.xlu0 %1358
      %1360 = vrot.lane.b32.xlu0 %v764, 16
      %v1361 = vpop.permute.xlu0 %1360
      %1362 = vrot.lane.b32.xlu0 %v765, 16
      %v1363 = vpop.permute.xlu0 %1362
      %1364 = vrot.lane.b32.xlu0 %v766, 16
      %v1365 = vpop.permute.xlu0 %1364
      %1366 = vrot.lane.b32.xlu0 %v767, 16
      %v1367 = vpop.permute.xlu0 %1366
      %1368 = vrot.lane.b32.xlu0 %v768, 16
      %v1369 = vpop.permute.xlu0 %1368
      %1370 = vrot.lane.b32.xlu0 %v769, 16
      %v1371 = vpop.permute.xlu0 %1370
      %1372 = vrot.lane.b32.xlu0 %v770, 16
      %v1373 = vpop.permute.xlu0 %1372
      %1374 = vrot.lane.b32.xlu0 %v771, 16
      %v1375 = vpop.permute.xlu0 %1374
      %1376 = vrot.lane.b32.xlu0 %v772, 16
      %v1377 = vpop.permute.xlu0 %1376
      %1378 = vrot.lane.b32.xlu0 %v773, 16
      %v1379 = vpop.permute.xlu0 %1378
      %1380 = vrot.lane.b32.xlu0 %v774, 16
      %v1381 = vpop.permute.xlu0 %1380
      %1382 = vrot.lane.b32.xlu0 %v775, 16
      %v1383 = vpop.permute.xlu0 %1382
      %1384 = vrot.lane.b32.xlu0 %v776, 16
      %v1385 = vpop.permute.xlu0 %1384
      %1450 = vrot.lane.b32.xlu0 %v777, 20
      %v1451 = vpop.permute.xlu0 %1450
      %1452 = vrot.lane.b32.xlu0 %v778, 20
      %v1453 = vpop.permute.xlu0 %1452
      %1454 = vrot.lane.b32.xlu0 %v779, 20
      %v1455 = vpop.permute.xlu0 %1454
      %1456 = vrot.lane.b32.xlu0 %v780, 20
      %v1457 = vpop.permute.xlu0 %1456
      %1458 = vrot.lane.b32.xlu0 %v781, 20
      %v1459 = vpop.permute.xlu0 %1458
      %1460 = vrot.lane.b32.xlu0 %v782, 20
      %v1461 = vpop.permute.xlu0 %1460
      %1462 = vrot.lane.b32.xlu0 %v783, 20
      %v1463 = vpop.permute.xlu0 %1462
      %1464 = vrot.lane.b32.xlu0 %v784, 20
      %v1465 = vpop.permute.xlu0 %1464
      %1466 = vrot.lane.b32.xlu0 %v785, 20
      %v1467 = vpop.permute.xlu0 %1466
      %1468 = vrot.lane.b32.xlu0 %v786, 20
      %v1469 = vpop.permute.xlu0 %1468
      %1470 = vrot.lane.b32.xlu0 %v787, 20
      %v1471 = vpop.permute.xlu0 %1470
      %1472 = vrot.lane.b32.xlu0 %v788, 20
      %v1473 = vpop.permute.xlu0 %1472
      %1474 = vrot.lane.b32.xlu0 %v789, 20
      %v1475 = vpop.permute.xlu0 %1474
      %1476 = vrot.lane.b32.xlu0 %v790, 20
      %v1477 = vpop.permute.xlu0 %1476
      %1478 = vrot.lane.b32.xlu0 %v791, 20
      %v1479 = vpop.permute.xlu0 %1478
      %1480 = vrot.lane.b32.xlu0 %v792, 20
      %v1481 = vpop.permute.xlu0 %1480
      %1482 = vrot.lane.b32.xlu0 %v793, 20
      %v1483 = vpop.permute.xlu0 %1482
      %1484 = vrot.lane.b32.xlu0 %v794, 20
      %v1485 = vpop.permute.xlu0 %1484
      %1486 = vrot.lane.b32.xlu0 %v795, 20
      %v1487 = vpop.permute.xlu0 %1486
      %1488 = vrot.lane.b32.xlu0 %v796, 20
      %v1489 = vpop.permute.xlu0 %1488
      %1490 = vrot.lane.b32.xlu0 %v797, 20
      %v1491 = vpop.permute.xlu0 %1490
      %1492 = vrot.lane.b32.xlu0 %v798, 20
      %v1493 = vpop.permute.xlu0 %1492
      %1494 = vrot.lane.b32.xlu0 %v799, 20
      %v1495 = vpop.permute.xlu0 %1494
      %1496 = vrot.lane.b32.xlu0 %v800, 20
      %v1497 = vpop.permute.xlu0 %1496
      %1498 = vrot.lane.b32.xlu0 %v801, 20
      %v1499 = vpop.permute.xlu0 %1498
      %1500 = vrot.lane.b32.xlu0 %v802, 20
      %v1501 = vpop.permute.xlu0 %1500
      %1502 = vrot.lane.b32.xlu0 %v803, 20
      %v1503 = vpop.permute.xlu0 %1502
      %1504 = vrot.lane.b32.xlu0 %v804, 20
      %v1505 = vpop.permute.xlu0 %1504
      %1506 = vrot.lane.b32.xlu0 %v805, 20
      %v1507 = vpop.permute.xlu0 %1506
      %1508 = vrot.lane.b32.xlu0 %v806, 20
      %v1509 = vpop.permute.xlu0 %1508
      %1510 = vrot.lane.b32.xlu0 %v807, 20
      %v1511 = vpop.permute.xlu0 %1510
      %1512 = vrot.lane.b32.xlu0 %v808, 20
      %v1513 = vpop.permute.xlu0 %1512
      %1578 = vrot.lane.b32.xlu0 %v810, 24
      %v1579 = vpop.permute.xlu0 %1578
      %1580 = vrot.lane.b32.xlu0 %v811, 24
      %v1581 = vpop.permute.xlu0 %1580
      %1582 = vrot.lane.b32.xlu0 %v812, 24
      %v1583 = vpop.permute.xlu0 %1582
      %1584 = vrot.lane.b32.xlu0 %v813, 24
      %v1585 = vpop.permute.xlu0 %1584
      %1586 = vrot.lane.b32.xlu0 %v814, 24
      %v1587 = vpop.permute.xlu0 %1586
      %1588 = vrot.lane.b32.xlu0 %v815, 24
      %v1589 = vpop.permute.xlu0 %1588
      %1590 = vrot.lane.b32.xlu0 %v816, 24
      %v1591 = vpop.permute.xlu0 %1590
      %1592 = vrot.lane.b32.xlu0 %v817, 24
      %v1593 = vpop.permute.xlu0 %1592
      %1594 = vrot.lane.b32.xlu0 %v818, 24
      %v1595 = vpop.permute.xlu0 %1594
      %1596 = vrot.lane.b32.xlu0 %v819, 24
      %v1597 = vpop.permute.xlu0 %1596
      %1598 = vrot.lane.b32.xlu0 %v820, 24
      %v1599 = vpop.permute.xlu0 %1598
      %1600 = vrot.lane.b32.xlu0 %v821, 24
      %v1601 = vpop.permute.xlu0 %1600
      %1602 = vrot.lane.b32.xlu0 %v822, 24
      %v1603 = vpop.permute.xlu0 %1602
      %1604 = vrot.lane.b32.xlu0 %v823, 24
      %v1605 = vpop.permute.xlu0 %1604
      %1606 = vrot.lane.b32.xlu0 %v824, 24
      %v1607 = vpop.permute.xlu0 %1606
      %1608 = vrot.lane.b32.xlu0 %v825, 24
      %v1609 = vpop.permute.xlu0 %1608
      %1610 = vrot.lane.b32.xlu0 %v826, 24
      %v1611 = vpop.permute.xlu0 %1610
      %1612 = vrot.lane.b32.xlu0 %v827, 24
      %v1613 = vpop.permute.xlu0 %1612
      %1614 = vrot.lane.b32.xlu0 %v828, 24
      %v1615 = vpop.permute.xlu0 %1614
      %1616 = vrot.lane.b32.xlu0 %v829, 24
      %v1617 = vpop.permute.xlu0 %1616
      %1618 = vrot.lane.b32.xlu0 %v830, 24
      %v1619 = vpop.permute.xlu0 %1618
      %1620 = vrot.lane.b32.xlu0 %v831, 24
      %v1621 = vpop.permute.xlu0 %1620
      %1622 = vrot.lane.b32.xlu0 %v832, 24
      %v1623 = vpop.permute.xlu0 %1622
      %1624 = vrot.lane.b32.xlu0 %v833, 24
      %v1625 = vpop.permute.xlu0 %1624
      %1626 = vrot.lane.b32.xlu0 %v834, 24
      %v1627 = vpop.permute.xlu0 %1626
      %1628 = vrot.lane.b32.xlu0 %v835, 24
      %v1629 = vpop.permute.xlu0 %1628
      %1630 = vrot.lane.b32.xlu0 %v836, 24
      %v1631 = vpop.permute.xlu0 %1630
      %1632 = vrot.lane.b32.xlu0 %v837, 24
      %v1633 = vpop.permute.xlu0 %1632
      %1634 = vrot.lane.b32.xlu0 %v838, 24
      %v1635 = vpop.permute.xlu0 %1634
      %1636 = vrot.lane.b32.xlu0 %v839, 24
      %v1637 = vpop.permute.xlu0 %1636
      %1638 = vrot.lane.b32.xlu0 %v840, 24
      %v1639 = vpop.permute.xlu0 %1638
      %1640 = vrot.lane.b32.xlu0 %v841, 24
      %v1641 = vpop.permute.xlu0 %1640
      %1706 = vrot.lane.b32.xlu0 %v842, 28
      %v1707 = vpop.permute.xlu0 %1706
      %1708 = vrot.lane.b32.xlu0 %v843, 28
      %v1709 = vpop.permute.xlu0 %1708
      %1710 = vrot.lane.b32.xlu0 %v844, 28
      %v1711 = vpop.permute.xlu0 %1710
      %1712 = vrot.lane.b32.xlu0 %v845, 28
      %v1713 = vpop.permute.xlu0 %1712
      %1714 = vrot.lane.b32.xlu0 %v846, 28
      %v1715 = vpop.permute.xlu0 %1714
      %1716 = vrot.lane.b32.xlu0 %v847, 28
      %v1717 = vpop.permute.xlu0 %1716
      %1718 = vrot.lane.b32.xlu0 %v848, 28
      %v1719 = vpop.permute.xlu0 %1718
      %1720 = vrot.lane.b32.xlu0 %v849, 28
      %v1721 = vpop.permute.xlu0 %1720
      %1722 = vrot.lane.b32.xlu0 %v850, 28
      %v1723 = vpop.permute.xlu0 %1722
      %1724 = vrot.lane.b32.xlu0 %v851, 28
      %v1725 = vpop.permute.xlu0 %1724
      %1726 = vrot.lane.b32.xlu0 %v852, 28
      %v1727 = vpop.permute.xlu0 %1726
      %1728 = vrot.lane.b32.xlu0 %v853, 28
      %v1729 = vpop.permute.xlu0 %1728
      %1730 = vrot.lane.b32.xlu0 %v854, 28
      %v1731 = vpop.permute.xlu0 %1730
      %1732 = vrot.lane.b32.xlu0 %v855, 28
      %v1733 = vpop.permute.xlu0 %1732
      %1734 = vrot.lane.b32.xlu0 %v856, 28
      %v1735 = vpop.permute.xlu0 %1734
      %1736 = vrot.lane.b32.xlu0 %v857, 28
      %v1737 = vpop.permute.xlu0 %1736
      %1738 = vrot.lane.b32.xlu0 %v858, 28
      %v1739 = vpop.permute.xlu0 %1738
      %1740 = vrot.lane.b32.xlu0 %v859, 28
      %v1741 = vpop.permute.xlu0 %1740
      %1742 = vrot.lane.b32.xlu0 %v860, 28
      %v1743 = vpop.permute.xlu0 %1742
      %1744 = vrot.lane.b32.xlu0 %v861, 28
      %v1745 = vpop.permute.xlu0 %1744
      %1746 = vrot.lane.b32.xlu0 %v862, 28
      %v1747 = vpop.permute.xlu0 %1746
      %1748 = vrot.lane.b32.xlu0 %v863, 28
      %v1749 = vpop.permute.xlu0 %1748
      %1750 = vrot.lane.b32.xlu0 %v864, 28
      %v1751 = vpop.permute.xlu0 %1750
      %1752 = vrot.lane.b32.xlu0 %v865, 28
      %v1753 = vpop.permute.xlu0 %1752
      %1754 = vrot.lane.b32.xlu0 %v866, 28
      %v1755 = vpop.permute.xlu0 %1754
      %1756 = vrot.lane.b32.xlu0 %v867, 28
      %v1757 = vpop.permute.xlu0 %1756
      %1758 = vrot.lane.b32.xlu0 %v868, 28
      %v1759 = vpop.permute.xlu0 %1758
      %1760 = vrot.lane.b32.xlu0 %v869, 28
      %v1761 = vpop.permute.xlu0 %1760
      %1762 = vrot.lane.b32.xlu0 %v870, 28
      %v1763 = vpop.permute.xlu0 %1762
      %1764 = vrot.lane.b32.xlu0 %v871, 28
      %v1765 = vpop.permute.xlu0 %1764
      %1766 = vrot.lane.b32.xlu0 %v872, 28
      %v1767 = vpop.permute.xlu0 %1766
      %1768 = vrot.lane.b32.xlu0 %v873, 28
      %v1769 = vpop.permute.xlu0 %1768
      %1834 = vrot.lane.b32.xlu0 %v874, 32
      %v1835 = vpop.permute.xlu0 %1834
      %1836 = vrot.lane.b32.xlu0 %v875, 32
      %v1837 = vpop.permute.xlu0 %1836
      %1838 = vrot.lane.b32.xlu0 %v876, 32
      %v1839 = vpop.permute.xlu0 %1838
      %1840 = vrot.lane.b32.xlu0 %v877, 32
      %v1841 = vpop.permute.xlu0 %1840
      %1842 = vrot.lane.b32.xlu0 %v878, 32
      %v1843 = vpop.permute.xlu0 %1842
      %1844 = vrot.lane.b32.xlu0 %v879, 32
      %v1845 = vpop.permute.xlu0 %1844
      %1846 = vrot.lane.b32.xlu0 %v880, 32
      %v1847 = vpop.permute.xlu0 %1846
      %1848 = vrot.lane.b32.xlu0 %v881, 32
      %v1849 = vpop.permute.xlu0 %1848
      %1850 = vrot.lane.b32.xlu0 %v882, 32
      %v1851 = vpop.permute.xlu0 %1850
      %1852 = vrot.lane.b32.xlu0 %v883, 32
      %v1853 = vpop.permute.xlu0 %1852
      %1854 = vrot.lane.b32.xlu0 %v884, 32
      %v1855 = vpop.permute.xlu0 %1854
      %1856 = vrot.lane.b32.xlu0 %v885, 32
      %v1857 = vpop.permute.xlu0 %1856
      %1858 = vrot.lane.b32.xlu0 %v886, 32
      %v1859 = vpop.permute.xlu0 %1858
      %1860 = vrot.lane.b32.xlu0 %v887, 32
      %v1861 = vpop.permute.xlu0 %1860
      %1862 = vrot.lane.b32.xlu0 %v888, 32
      %v1863 = vpop.permute.xlu0 %1862
      %1864 = vrot.lane.b32.xlu0 %v889, 32
      %v1865 = vpop.permute.xlu0 %1864
      %1866 = vrot.lane.b32.xlu0 %v890, 32
      %v1867 = vpop.permute.xlu0 %1866
      %1868 = vrot.lane.b32.xlu0 %v891, 32
      %v1869 = vpop.permute.xlu0 %1868
      %1870 = vrot.lane.b32.xlu0 %v892, 32
      %v1871 = vpop.permute.xlu0 %1870
      %1872 = vrot.lane.b32.xlu0 %v893, 32
      %v1873 = vpop.permute.xlu0 %1872
      %1874 = vrot.lane.b32.xlu0 %v894, 32
      %v1875 = vpop.permute.xlu0 %1874
      %1876 = vrot.lane.b32.xlu0 %v895, 32
      %v1877 = vpop.permute.xlu0 %1876
      %1878 = vrot.lane.b32.xlu0 %v896, 32
      %v1879 = vpop.permute.xlu0 %1878
      %1880 = vrot.lane.b32.xlu0 %v897, 32
      %v1881 = vpop.permute.xlu0 %1880
      %1882 = vrot.lane.b32.xlu0 %v898, 32
      %v1883 = vpop.permute.xlu0 %1882
      %1884 = vrot.lane.b32.xlu0 %v899, 32
      %v1885 = vpop.permute.xlu0 %1884
      %1886 = vrot.lane.b32.xlu0 %v900, 32
      %v1887 = vpop.permute.xlu0 %1886
      %1888 = vrot.lane.b32.xlu0 %v901, 32
      %v1889 = vpop.permute.xlu0 %1888
      %1890 = vrot.lane.b32.xlu0 %v902, 32
      %v1891 = vpop.permute.xlu0 %1890
      %1892 = vrot.lane.b32.xlu0 %v903, 32
      %v1893 = vpop.permute.xlu0 %1892
      %1894 = vrot.lane.b32.xlu0 %v904, 32
      %v1895 = vpop.permute.xlu0 %1894
      %1896 = vrot.lane.b32.xlu0 %v905, 32
      %v1897 = vpop.permute.xlu0 %1896
      %v1930 = vsel %vm528, %v617, %v939
      %v1931 = vsel %vm528, %v618, %v941
      %v1932 = vsel %vm528, %v619, %v943
      %v1933 = vsel %vm528, %v620, %v945
      %v1934 = vsel %vm528, %v621, %v947
      %v1935 = vsel %vm528, %v622, %v949
      %v1936 = vsel %vm528, %v623, %v951
      %v1937 = vsel %vm528, %v624, %v953
      %v1938 = vsel %vm528, %v625, %v955
      %v1939 = vsel %vm528, %v626, %v957
      %v1940 = vsel %vm528, %v627, %v959
      %v1941 = vsel %vm528, %v628, %v961
      %v1942 = vsel %vm528, %v629, %v963
      %v1943 = vsel %vm528, %v630, %v965
      %v1944 = vsel %vm528, %v631, %v967
      %v1945 = vsel %vm528, %v632, %v969
      %v1946 = vsel %vm528, %v633, %v971
      %v1947 = vsel %vm528, %v634, %v973
      %v1948 = vsel %vm528, %v635, %v975
      %v1949 = vsel %vm528, %v636, %v977
      %v1950 = vsel %vm528, %v637, %v979
      %v1951 = vsel %vm528, %v638, %v981
      %v1952 = vsel %vm528, %v639, %v983
      %v1953 = vsel %vm528, %v640, %v985
      %v1954 = vsel %vm528, %v641, %v987
      %v1955 = vsel %vm528, %v642, %v989
      %v1956 = vsel %vm528, %v643, %v991
      %v1957 = vsel %vm528, %v644, %v993
      %v1958 = vsel %vm528, %v645, %v995
      %v1959 = vsel %vm528, %v646, %v997
      %v1960 = vsel %vm528, %v647, %v999
      %v1961 = vsel %vm528, %v648, %v1001
      %vm1962 = vcmask 64512
      %v1963 = vsel %vm1962, %v1930, %v1067
      %v1964 = vsel %vm1962, %v1931, %v1069
      %v1965 = vsel %vm1962, %v1932, %v1071
      %v1966 = vsel %vm1962, %v1933, %v1073
      %v1967 = vsel %vm1962, %v1934, %v1075
      %v1968 = vsel %vm1962, %v1935, %v1077
      %v1969 = vsel %vm1962, %v1936, %v1079
      %v1970 = vsel %vm1962, %v1937, %v1081
      %v1971 = vsel %vm1962, %v1938, %v1083
      %v1972 = vsel %vm1962, %v1939, %v1085
      %v1973 = vsel %vm1962, %v1940, %v1087
      %v1974 = vsel %vm1962, %v1941, %v1089
      %v1975 = vsel %vm1962, %v1942, %v1091
      %v1976 = vsel %vm1962, %v1943, %v1093
      %v1977 = vsel %vm1962, %v1944, %v1095
      %v1978 = vsel %vm1962, %v1945, %v1097
      %v1979 = vsel %vm1962, %v1946, %v1099
      %v1980 = vsel %vm1962, %v1947, %v1101
      %v1981 = vsel %vm1962, %v1948, %v1103
      %v1982 = vsel %vm1962, %v1949, %v1105
      %v1983 = vsel %vm1962, %v1950, %v1107
      %v1984 = vsel %vm1962, %v1951, %v1109
      %v1985 = vsel %vm1962, %v1952, %v1111
      %v1986 = vsel %vm1962, %v1953, %v1113
      %v1987 = vsel %vm1962, %v1954, %v1115
      %v1988 = vsel %vm1962, %v1955, %v1117
      %v1989 = vsel %vm1962, %v1956, %v1119
      %v1990 = vsel %vm1962, %v1957, %v1121
      %v1991 = vsel %vm1962, %v1958, %v1123
      %v1992 = vsel %vm1962, %v1959, %v1125
      %v1993 = vsel %vm1962, %v1960, %v1127
      %v1994 = vsel %vm1962, %v1961, %v1129
      %vm1995 = vcmask 97280
      %v1996 = vsel %vm1995, %v1963, %v1195
      %v1997 = vsel %vm1995, %v1964, %v1197
      %v1998 = vsel %vm1995, %v1965, %v1199
      %v1999 = vsel %vm1995, %v1966, %v1201
      %v2000 = vsel %vm1995, %v1967, %v1203
      %v2001 = vsel %vm1995, %v1968, %v1205
      %v2002 = vsel %vm1995, %v1969, %v1207
      %v2003 = vsel %vm1995, %v1970, %v1209
      %v2004 = vsel %vm1995, %v1971, %v1211
      %v2005 = vsel %vm1995, %v1972, %v1213
      %v2006 = vsel %vm1995, %v1973, %v1215
      %v2007 = vsel %vm1995, %v1974, %v1217
      %v2008 = vsel %vm1995, %v1975, %v1219
      %v2009 = vsel %vm1995, %v1976, %v1221
      %v2010 = vsel %vm1995, %v1977, %v1223
      %v2011 = vsel %vm1995, %v1978, %v1225
      %v2012 = vsel %vm1995, %v1979, %v1227
      %v2013 = vsel %vm1995, %v1980, %v1229
      %v2014 = vsel %vm1995, %v1981, %v1231
      %v2015 = vsel %vm1995, %v1982, %v1233
      %v2016 = vsel %vm1995, %v1983, %v1235
      %v2017 = vsel %vm1995, %v1984, %v1237
      %v2018 = vsel %vm1995, %v1985, %v1239
      %v2019 = vsel %vm1995, %v1986, %v1241
      %v2020 = vsel %vm1995, %v1987, %v1243
      %v2021 = vsel %vm1995, %v1988, %v1245
      %v2022 = vsel %vm1995, %v1989, %v1247
      %v2023 = vsel %vm1995, %v1990, %v1249
      %v2024 = vsel %vm1995, %v1991, %v1251
      %v2025 = vsel %vm1995, %v1992, %v1253
      %v2026 = vsel %vm1995, %v1993, %v1255
      %v2027 = vsel %vm1995, %v1994, %v1257
      %vm2028 = vcmask 130048
      %v2029 = vsel %vm2028, %v1996, %v1323
      %v2030 = vsel %vm2028, %v1997, %v1325
      %v2031 = vsel %vm2028, %v1998, %v1327
      %v2032 = vsel %vm2028, %v1999, %v1329
      %v2033 = vsel %vm2028, %v2000, %v1331
      %v2034 = vsel %vm2028, %v2001, %v1333
      %v2035 = vsel %vm2028, %v2002, %v1335
      %v2036 = vsel %vm2028, %v2003, %v1337
      %v2037 = vsel %vm2028, %v2004, %v1339
      %v2038 = vsel %vm2028, %v2005, %v1341
      %v2039 = vsel %vm2028, %v2006, %v1343
      %v2040 = vsel %vm2028, %v2007, %v1345
      %v2041 = vsel %vm2028, %v2008, %v1347
      %v2042 = vsel %vm2028, %v2009, %v1349
      %v2043 = vsel %vm2028, %v2010, %v1351
      %v2044 = vsel %vm2028, %v2011, %v1353
      %v2045 = vsel %vm2028, %v2012, %v1355
      %v2046 = vsel %vm2028, %v2013, %v1357
      %v2047 = vsel %vm2028, %v2014, %v1359
      %v2048 = vsel %vm2028, %v2015, %v1361
      %v2049 = vsel %vm2028, %v2016, %v1363
      %v2050 = vsel %vm2028, %v2017, %v1365
      %v2051 = vsel %vm2028, %v2018, %v1367
      %v2052 = vsel %vm2028, %v2019, %v1369
      %v2053 = vsel %vm2028, %v2020, %v1371
      %v2054 = vsel %vm2028, %v2021, %v1373
      %v2055 = vsel %vm2028, %v2022, %v1375
      %v2056 = vsel %vm2028, %v2023, %v1377
      %v2057 = vsel %vm2028, %v2024, %v1379
      %v2058 = vsel %vm2028, %v2025, %v1381
      %v2059 = vsel %vm2028, %v2026, %v1383
      %v2060 = vsel %vm2028, %v2027, %v1385
      %vm2061 = vcmask 162816
      %v2062 = vsel %vm2061, %v2029, %v1451
      %v2063 = vsel %vm2061, %v2030, %v1453
      %v2064 = vsel %vm2061, %v2031, %v1455
      %v2065 = vsel %vm2061, %v2032, %v1457
      %v2066 = vsel %vm2061, %v2033, %v1459
      %v2067 = vsel %vm2061, %v2034, %v1461
      %v2068 = vsel %vm2061, %v2035, %v1463
      %v2069 = vsel %vm2061, %v2036, %v1465
      %v2070 = vsel %vm2061, %v2037, %v1467
      %v2071 = vsel %vm2061, %v2038, %v1469
      %v2072 = vsel %vm2061, %v2039, %v1471
      %v2073 = vsel %vm2061, %v2040, %v1473
      %v2074 = vsel %vm2061, %v2041, %v1475
      %v2075 = vsel %vm2061, %v2042, %v1477
      %v2076 = vsel %vm2061, %v2043, %v1479
      %v2077 = vsel %vm2061, %v2044, %v1481
      %v2078 = vsel %vm2061, %v2045, %v1483
      %v2079 = vsel %vm2061, %v2046, %v1485
      %v2080 = vsel %vm2061, %v2047, %v1487
      %v2081 = vsel %vm2061, %v2048, %v1489
      %v2082 = vsel %vm2061, %v2049, %v1491
      %v2083 = vsel %vm2061, %v2050, %v1493
      %v2084 = vsel %vm2061, %v2051, %v1495
      %v2085 = vsel %vm2061, %v2052, %v1497
      %v2086 = vsel %vm2061, %v2053, %v1499
      %v2087 = vsel %vm2061, %v2054, %v1501
      %v2088 = vsel %vm2061, %v2055, %v1503
      %v2089 = vsel %vm2061, %v2056, %v1505
      %v2090 = vsel %vm2061, %v2057, %v1507
      %v2091 = vsel %vm2061, %v2058, %v1509
      %v2092 = vsel %vm2061, %v2059, %v1511
      %v2093 = vsel %vm2061, %v2060, %v1513
      %vm2094 = vcmask 195584
      %v2095 = vsel %vm2094, %v2062, %v1579
      %v2096 = vsel %vm2094, %v2063, %v1581
      %v2097 = vsel %vm2094, %v2064, %v1583
      %v2098 = vsel %vm2094, %v2065, %v1585
      %v2099 = vsel %vm2094, %v2066, %v1587
      %v2100 = vsel %vm2094, %v2067, %v1589
      %v2101 = vsel %vm2094, %v2068, %v1591
      %v2102 = vsel %vm2094, %v2069, %v1593
      %v2103 = vsel %vm2094, %v2070, %v1595
      %v2104 = vsel %vm2094, %v2071, %v1597
      %v2105 = vsel %vm2094, %v2072, %v1599
      %v2106 = vsel %vm2094, %v2073, %v1601
      %v2107 = vsel %vm2094, %v2074, %v1603
      %v2108 = vsel %vm2094, %v2075, %v1605
      %v2109 = vsel %vm2094, %v2076, %v1607
      %v2110 = vsel %vm2094, %v2077, %v1609
      %v2111 = vsel %vm2094, %v2078, %v1611
      %v2112 = vsel %vm2094, %v2079, %v1613
      %v2113 = vsel %vm2094, %v2080, %v1615
      %v2114 = vsel %vm2094, %v2081, %v1617
      %v2115 = vsel %vm2094, %v2082, %v1619
      %v2116 = vsel %vm2094, %v2083, %v1621
      %v2117 = vsel %vm2094, %v2084, %v1623
      %v2118 = vsel %vm2094, %v2085, %v1625
      %v2119 = vsel %vm2094, %v2086, %v1627
      %v2120 = vsel %vm2094, %v2087, %v1629
      %v2121 = vsel %vm2094, %v2088, %v1631
      %v2122 = vsel %vm2094, %v2089, %v1633
      %v2123 = vsel %vm2094, %v2090, %v1635
      %v2124 = vsel %vm2094, %v2091, %v1637
      %v2125 = vsel %vm2094, %v2092, %v1639
      %v2126 = vsel %vm2094, %v2093, %v1641
      %vm2127 = vcmask 228352
      %v2128 = vsel %vm2127, %v2095, %v1707
      %v2129 = vsel %vm2127, %v2096, %v1709
      %v2130 = vsel %vm2127, %v2097, %v1711
      %v2131 = vsel %vm2127, %v2098, %v1713
      %v2132 = vsel %vm2127, %v2099, %v1715
      %v2133 = vsel %vm2127, %v2100, %v1717
      %v2134 = vsel %vm2127, %v2101, %v1719
      %v2135 = vsel %vm2127, %v2102, %v1721
      %v2136 = vsel %vm2127, %v2103, %v1723
      %v2137 = vsel %vm2127, %v2104, %v1725
      %v2138 = vsel %vm2127, %v2105, %v1727
      %v2139 = vsel %vm2127, %v2106, %v1729
      %v2140 = vsel %vm2127, %v2107, %v1731
      %v2141 = vsel %vm2127, %v2108, %v1733
      %v2142 = vsel %vm2127, %v2109, %v1735
      %v2143 = vsel %vm2127, %v2110, %v1737
      %v2144 = vsel %vm2127, %v2111, %v1739
      %v2145 = vsel %vm2127, %v2112, %v1741
      %v2146 = vsel %vm2127, %v2113, %v1743
      %v2147 = vsel %vm2127, %v2114, %v1745
      %v2148 = vsel %vm2127, %v2115, %v1747
      %v2149 = vsel %vm2127, %v2116, %v1749
      %v2150 = vsel %vm2127, %v2117, %v1751
      %v2151 = vsel %vm2127, %v2118, %v1753
      %v2152 = vsel %vm2127, %v2119, %v1755
      %v2153 = vsel %vm2127, %v2120, %v1757
      %v2154 = vsel %vm2127, %v2121, %v1759
      %v2155 = vsel %vm2127, %v2122, %v1761
      %v2156 = vsel %vm2127, %v2123, %v1763
      %v2157 = vsel %vm2127, %v2124, %v1765
      %v2158 = vsel %vm2127, %v2125, %v1767
      %v2159 = vsel %vm2127, %v2126, %v1769
      %vm2160 = vcmask 261120
      %v2161 = vsel %vm2160, %v2128, %v1835
      %v2162 = vsel %vm2160, %v2129, %v1837
      %v2163 = vsel %vm2160, %v2130, %v1839
      %v2164 = vsel %vm2160, %v2131, %v1841
      %v2165 = vsel %vm2160, %v2132, %v1843
      %v2166 = vsel %vm2160, %v2133, %v1845
      %v2167 = vsel %vm2160, %v2134, %v1847
      %v2168 = vsel %vm2160, %v2135, %v1849
      %v2169 = vsel %vm2160, %v2136, %v1851
      %v2170 = vsel %vm2160, %v2137, %v1853
      %v2171 = vsel %vm2160, %v2138, %v1855
      %v2172 = vsel %vm2160, %v2139, %v1857
      %v2173 = vsel %vm2160, %v2140, %v1859
      %v2174 = vsel %vm2160, %v2141, %v1861
      %v2175 = vsel %vm2160, %v2142, %v1863
      %v2176 = vsel %vm2160, %v2143, %v1865
      %v2177 = vsel %vm2160, %v2144, %v1867
      %v2178 = vsel %vm2160, %v2145, %v1869
      %v2179 = vsel %vm2160, %v2146, %v1871
      %v2180 = vsel %vm2160, %v2147, %v1873
      %v2181 = vsel %vm2160, %v2148, %v1875
      %v2182 = vsel %vm2160, %v2149, %v1877
      %v2183 = vsel %vm2160, %v2150, %v1879
      %v2184 = vsel %vm2160, %v2151, %v1881
      %v2185 = vsel %vm2160, %v2152, %v1883
      %v2186 = vsel %vm2160, %v2153, %v1885
      %v2187 = vsel %vm2160, %v2154, %v1887
      %v2188 = vsel %vm2160, %v2155, %v1889
      %v2189 = vsel %vm2160, %v2156, %v1891
      %v2190 = vsel %vm2160, %v2157, %v1893
      %v2191 = vsel %vm2160, %v2158, %v1895
      %v2192 = vsel %vm2160, %v2159, %v1897
      %v2193 = vpack.c.bf16 %v2162, %v2161
      %v2194 = vpack.c.bf16 %v2164, %v2163
      %v2195 = vpack.c.bf16 %v2166, %v2165
      %v2196 = vpack.c.bf16 %v2168, %v2167
      %v2197 = vpack.c.bf16 %v2170, %v2169
      %v2198 = vpack.c.bf16 %v2172, %v2171
      %v2199 = vpack.c.bf16 %v2174, %v2173
      %v2200 = vpack.c.bf16 %v2176, %v2175
      %v2201 = vpack.c.bf16 %v2178, %v2177
      %v2202 = vpack.c.bf16 %v2180, %v2179
      %v2203 = vpack.c.bf16 %v2182, %v2181
      %v2204 = vpack.c.bf16 %v2184, %v2183
      %v2205 = vpack.c.bf16 %v2186, %v2185
      %v2206 = vpack.c.bf16 %v2188, %v2187
      %v2207 = vpack.c.bf16 %v2190, %v2189
      %v2208 = vpack.c.bf16 %v2192, %v2191
      %v2209 = vld [vmem:[%s1] sm:$0xf]
      %v2210 = vld [vmem:[%s1 + $0x4] sm:$0xf]
      %v2211 = vld [vmem:[%s1 + $0x8] sm:$0xf]
      %v2212 = vld [vmem:[%s1 + $0xc] sm:$0xf]
      %v2213 = vld [vmem:[%s1 + $0x10] sm:$0x3]
      %v2214 = vld [vmem:[%s2] sm:$0x1]
      %v2216 = vlaneseq
      %v2217 = vshrl.u32 %v2216, 7
      %v2218 = vsub.s32 0, %v2217
      %v2219 = vrot.slane %v2214, %v2218
      %v2226 = vunpack.c.l.b16 %v2209
      %v2227 = vunpack.c.l.b16 %v2210
      %v2228 = vunpack.c.l.b16 %v2211
      %v2229 = vunpack.c.l.b16 %v2212
      %v2230 = vunpack.c.l.b16 %v2213
      %v2231 = vpack.c.b16 %v2227, %v2226
      %v2232 = vpack.c.b16 %v2229, %v2228
      %v2233 = vpack.c.b16 %v2230, %v2230
      %vm2236 = vcmask 293888
      %v2238 = vsel %vm2236, %v2193, 0
      %v2241 = vsel %vm2236, %v2194, 0
      %v2244 = vsel %vm2236, %v2195, 0
      %v2247 = vsel %vm2236, %v2196, 0
      %v2250 = vsel %vm2236, %v2197, 0
      %v2253 = vsel %vm2236, %v2198, 0
      %v2256 = vsel %vm2236, %v2199, 0
      %v2259 = vsel %vm2236, %v2200, 0
      %v2262 = vsel %vm2236, %v2201, 0
      %v2265 = vsel %vm2236, %v2202, 0
      %v2268 = vsel %vm2236, %v2203, 0
      %v2271 = vsel %vm2236, %v2204, 0
      %v2274 = vsel %vm2236, %v2205, 0
      %v2277 = vsel %vm2236, %v2206, 0
      %v2280 = vsel %vm2236, %v2207, 0
      %v2283 = vsel %vm2236, %v2208, 0
      %vm2285 = vcmask 1041408
      %v2287 = vsel %vm2285, %v2233, 0
      %2289 = vmatprep.subr.bf16.mxu0 0
      %2290 = vmatpush1.bf16.msra.mxu0 0
      %2291 = vmatprep.subr.bf16.mxu0 0
      %2292 = vmatpush1.bf16.msra.mxu0 0
      %2293 = vmatprep.subr.bf16.mxu0 0
      %2294 = vmatpush1.bf16.msra.mxu0 0
      %2295 = vmatprep.subr.bf16.mxu0 0
      %2296 = vmatpush1.bf16.msra.mxu0 0
      %2297 = vmatprep.subr.bf16.mxu0 0
      %2298 = vmatpush1.bf16.msra.mxu0 0
      %2299 = vmatprep.subr.bf16.mxu0 0
      %2300 = vmatpush1.bf16.msra.mxu0 %v2287
      %2301 = vmatprep.subr.bf16.mxu0 0
      %2302 = vmatpush1.bf16.msra.mxu0 %v2232
      %2303 = vmatprep.subr.bf16.mxu0 0
      %2304 = vmatpush1.bf16.msra.mxu0 %v2231
      %2305 = vmatprep.subr.bf16.mxu0 0
      %2306 = vmatpush2.bf16.msra.mxu0 0
      %2307 = vmatprep.subr.bf16.mxu0 0
      %2308 = vmatpush2.bf16.msra.mxu0 0
      %2309 = vmatprep.subr.bf16.mxu0 0
      %2310 = vmatpush2.bf16.msra.mxu0 0
      %2311 = vmatprep.subr.bf16.mxu0 0
      %2312 = vmatpush2.bf16.msra.mxu0 0
      %2313 = vmatprep.subr.bf16.mxu0 0
      %2314 = vmatpush2.bf16.msra.mxu0 0
      %2315 = vmatprep.subr.bf16.mxu0 0
      %2316 = vmatpush2.bf16.msra.mxu0 0
      %2317 = vmatprep.subr.bf16.mxu0 0
      %2318 = vmatpush2.bf16.msra.mxu0 0
      %2319 = vmatprep.subr.bf16.mxu0 0
      %2320 = vmatpush2.bf16.msra.mxu0 0
      %2321 = vmatprep.mubr.bf16.mxu0 0
      %2322 = vmatmul.mubr.bf16.gmra.mxu0 %v2238
      %v2323 = vpop.f32.mrf.mxu0
      %v2324 = vadd.f32 %v2219, %v2323
      %v2325 = vpop.f32.mrf.mxu0
      %v2326 = vpop.f32.mrf.mxu0
      %v2327 = vadd.f32 %v2219, %v2326
      %v2328 = vpop.f32.mrf.mxu0
      %2329 = vmatprep.mubr.bf16.mxu0 0
      %2330 = vmatmul.mubr.bf16.gmra.mxu0 %v2241
      %v2331 = vpop.f32.mrf.mxu0
      %v2332 = vadd.f32 %v2219, %v2331
      %v2333 = vpop.f32.mrf.mxu0
      %v2334 = vpop.f32.mrf.mxu0
      %v2335 = vadd.f32 %v2219, %v2334
      %v2336 = vpop.f32.mrf.mxu0
      %2337 = vmatprep.mubr.bf16.mxu0 0
      %2338 = vmatmul.mubr.bf16.gmra.mxu0 %v2244
      %v2339 = vpop.f32.mrf.mxu0
      %v2340 = vadd.f32 %v2219, %v2339
      %v2341 = vpop.f32.mrf.mxu0
      %v2342 = vpop.f32.mrf.mxu0
      %v2343 = vadd.f32 %v2219, %v2342
      %v2344 = vpop.f32.mrf.mxu0
      %2345 = vmatprep.mubr.bf16.mxu0 0
      %2346 = vmatmul.mubr.bf16.gmra.mxu0 %v2247
      %v2347 = vpop.f32.mrf.mxu0
      %v2348 = vadd.f32 %v2219, %v2347
      %v2349 = vpop.f32.mrf.mxu0
      %v2350 = vpop.f32.mrf.mxu0
      %v2351 = vadd.f32 %v2219, %v2350
      %v2352 = vpop.f32.mrf.mxu0
      %2353 = vmatprep.mubr.bf16.mxu0 0
      %2354 = vmatmul.mubr.bf16.gmra.mxu0 %v2250
      %v2355 = vpop.f32.mrf.mxu0
      %v2356 = vadd.f32 %v2219, %v2355
      %v2357 = vpop.f32.mrf.mxu0
      %v2358 = vpop.f32.mrf.mxu0
      %v2359 = vadd.f32 %v2219, %v2358
      %v2360 = vpop.f32.mrf.mxu0
      %2361 = vmatprep.mubr.bf16.mxu0 0
      %2362 = vmatmul.mubr.bf16.gmra.mxu0 %v2253
      %v2363 = vpop.f32.mrf.mxu0
      %v2364 = vadd.f32 %v2219, %v2363
      %v2365 = vpop.f32.mrf.mxu0
      %v2366 = vpop.f32.mrf.mxu0
      %v2367 = vadd.f32 %v2219, %v2366
      %v2368 = vpop.f32.mrf.mxu0
      %2369 = vmatprep.mubr.bf16.mxu0 0
      %2370 = vmatmul.mubr.bf16.gmra.mxu0 %v2256
      %v2371 = vpop.f32.mrf.mxu0
      %v2372 = vadd.f32 %v2219, %v2371
      %v2373 = vpop.f32.mrf.mxu0
      %v2374 = vpop.f32.mrf.mxu0
      %v2375 = vadd.f32 %v2219, %v2374
      %v2376 = vpop.f32.mrf.mxu0
      %2377 = vmatprep.mubr.bf16.mxu0 0
      %2378 = vmatmul.mubr.bf16.gmra.mxu0 %v2259
      %v2379 = vpop.f32.mrf.mxu0
      %v2380 = vadd.f32 %v2219, %v2379
      %v2381 = vpop.f32.mrf.mxu0
      %v2382 = vpop.f32.mrf.mxu0
      %v2383 = vadd.f32 %v2219, %v2382
      %v2384 = vpop.f32.mrf.mxu0
      %2385 = vmatprep.mubr.bf16.mxu0 0
      %2386 = vmatmul.mubr.bf16.gmra.mxu0 %v2262
      %v2387 = vpop.f32.mrf.mxu0
      %v2388 = vadd.f32 %v2219, %v2387
      %v2389 = vpop.f32.mrf.mxu0
      %v2390 = vpop.f32.mrf.mxu0
      %v2391 = vadd.f32 %v2219, %v2390
      %v2392 = vpop.f32.mrf.mxu0
      %2393 = vmatprep.mubr.bf16.mxu0 0
      %2394 = vmatmul.mubr.bf16.gmra.mxu0 %v2265
      %v2395 = vpop.f32.mrf.mxu0
      %v2396 = vadd.f32 %v2219, %v2395
      %v2397 = vpop.f32.mrf.mxu0
      %v2398 = vpop.f32.mrf.mxu0
      %v2399 = vadd.f32 %v2219, %v2398
      %v2400 = vpop.f32.mrf.mxu0
      %2401 = vmatprep.mubr.bf16.mxu0 0
      %2402 = vmatmul.mubr.bf16.gmra.mxu0 %v2268
      %v2403 = vpop.f32.mrf.mxu0
      %v2404 = vadd.f32 %v2219, %v2403
      %v2405 = vpop.f32.mrf.mxu0
      %v2406 = vpop.f32.mrf.mxu0
      %v2407 = vadd.f32 %v2219, %v2406
      %v2408 = vpop.f32.mrf.mxu0
      %2409 = vmatprep.mubr.bf16.mxu0 0
      %2410 = vmatmul.mubr.bf16.gmra.mxu0 %v2271
      %v2411 = vpop.f32.mrf.mxu0
      %v2412 = vadd.f32 %v2219, %v2411
      %v2413 = vpop.f32.mrf.mxu0
      %v2414 = vpop.f32.mrf.mxu0
      %v2415 = vadd.f32 %v2219, %v2414
      %v2416 = vpop.f32.mrf.mxu0
      %2417 = vmatprep.mubr.bf16.mxu0 0
      %2418 = vmatmul.mubr.bf16.gmra.mxu0 %v2274
      %v2419 = vpop.f32.mrf.mxu0
      %v2420 = vadd.f32 %v2219, %v2419
      %v2421 = vpop.f32.mrf.mxu0
      %v2422 = vpop.f32.mrf.mxu0
      %v2423 = vadd.f32 %v2219, %v2422
      %v2424 = vpop.f32.mrf.mxu0
      %2425 = vmatprep.mubr.bf16.mxu0 0
      %2426 = vmatmul.mubr.bf16.gmra.mxu0 %v2277
      %v2427 = vpop.f32.mrf.mxu0
      %v2428 = vadd.f32 %v2219, %v2427
      %v2429 = vpop.f32.mrf.mxu0
      %v2430 = vpop.f32.mrf.mxu0
      %v2431 = vadd.f32 %v2219, %v2430
      %v2432 = vpop.f32.mrf.mxu0
      %2433 = vmatprep.mubr.bf16.mxu0 0
      %2434 = vmatmul.mubr.bf16.gmra.mxu0 %v2280
      %v2435 = vpop.f32.mrf.mxu0
      %v2436 = vadd.f32 %v2219, %v2435
      %v2437 = vpop.f32.mrf.mxu0
      %v2438 = vpop.f32.mrf.mxu0
      %v2439 = vadd.f32 %v2219, %v2438
      %v2440 = vpop.f32.mrf.mxu0
      %2441 = vmatprep.mubr.bf16.mxu0 0
      %2442 = vmatmul.mubr.bf16.gmra.mxu0 %v2283
      %v2443 = vpop.f32.mrf.mxu0
      %v2444 = vadd.f32 %v2219, %v2443
      %v2445 = vpop.f32.mrf.mxu0
      %v2446 = vpop.f32.mrf.mxu0
      %v2447 = vadd.f32 %v2219, %v2446
      %v2448 = vpop.f32.mrf.mxu0
      %2449 = vdwg.mxu0
      %v2450 = vmax.f32 %v2324, 0.0
      %v2451 = vmax.f32 %v2327, 0.0
      %v2452 = vmax.f32 %v2332, 0.0
      %v2453 = vmax.f32 %v2335, 0.0
      %v2454 = vmax.f32 %v2340, 0.0
      %v2455 = vmax.f32 %v2343, 0.0
      %v2456 = vmax.f32 %v2348, 0.0
      %v2457 = vmax.f32 %v2351, 0.0
      %v2458 = vmax.f32 %v2356, 0.0
      %v2459 = vmax.f32 %v2359, 0.0
      %v2460 = vmax.f32 %v2364, 0.0
      %v2461 = vmax.f32 %v2367, 0.0
      %v2462 = vmax.f32 %v2372, 0.0
      %v2463 = vmax.f32 %v2375, 0.0
      %v2464 = vmax.f32 %v2380, 0.0
      %v2465 = vmax.f32 %v2383, 0.0
      %v2466 = vmax.f32 %v2388, 0.0
      %v2467 = vmax.f32 %v2391, 0.0
      %v2468 = vmax.f32 %v2396, 0.0
      %v2469 = vmax.f32 %v2399, 0.0
      %v2470 = vmax.f32 %v2404, 0.0
      %v2471 = vmax.f32 %v2407, 0.0
      %v2472 = vmax.f32 %v2412, 0.0
      %v2473 = vmax.f32 %v2415, 0.0
      %v2474 = vmax.f32 %v2420, 0.0
      %v2475 = vmax.f32 %v2423, 0.0
      %v2476 = vmax.f32 %v2428, 0.0
      %v2477 = vmax.f32 %v2431, 0.0
      %v2478 = vmax.f32 %v2436, 0.0
      %v2479 = vmax.f32 %v2439, 0.0
      %v2480 = vmax.f32 %v2444, 0.0
      %v2481 = vmax.f32 %v2447, 0.0
      %v2482 = vmax.f32 %v2450, %v2452
      %v2483 = vmax.f32 %v2451, %v2453
      %v2484 = vmax.f32 %v2454, %v2456
      %v2485 = vmax.f32 %v2455, %v2457
      %v2486 = vmax.f32 %v2458, %v2460
      %v2487 = vmax.f32 %v2459, %v2461
      %v2488 = vmax.f32 %v2462, %v2464
      %v2489 = vmax.f32 %v2463, %v2465
      %v2490 = vmax.f32 %v2466, %v2468
      %v2491 = vmax.f32 %v2467, %v2469
      %v2492 = vmax.f32 %v2470, %v2472
      %v2493 = vmax.f32 %v2471, %v2473
      %v2494 = vmax.f32 %v2474, %v2476
      %v2495 = vmax.f32 %v2475, %v2477
      %v2496 = vmax.f32 %v2478, %v2480
      %v2497 = vmax.f32 %v2479, %v2481
      %v2514 = vcombine.high %v2482, %v2482
      %v2516 = vunpack.c.l.s4 1983009808
      %v2517 = vunpack.c.0.s8 %v2516
      %v2518 = vlaneseq
      %v2519 = vshrl.u32 %v2518, 7
      %v2520 = vsub.s32 %v2517, %v2519
      %v2521 = vrot.slane %v2482, %v2520
      %v2523 = vunpack.c.l.s4 1983009808
      %v2524 = vunpack.c.0.s8 %v2523
      %v2525 = vlaneseq
      %v2526 = vshrl.u32 %v2525, 7
      %v2527 = vsub.s32 %v2524, %v2526
      %v2528 = vrot.slane %v2514, %v2527
      %v2529 = vcombine.high %v2521, %v2521
      %v2530 = vcombine.high %v2528, %v2528
      %v2531 = vcombine.high %v2483, %v2483
      %v2533 = vunpack.c.l.s4 1983009808
      %v2534 = vunpack.c.0.s8 %v2533
      %v2535 = vlaneseq
      %v2536 = vshrl.u32 %v2535, 7
      %v2537 = vsub.s32 %v2534, %v2536
      %v2538 = vrot.slane %v2483, %v2537
      %v2540 = vunpack.c.l.s4 1983009808
      %v2541 = vunpack.c.0.s8 %v2540
      %v2542 = vlaneseq
      %v2543 = vshrl.u32 %v2542, 7
      %v2544 = vsub.s32 %v2541, %v2543
      %v2545 = vrot.slane %v2531, %v2544
      %v2546 = vcombine.high %v2538, %v2538
      %v2547 = vcombine.high %v2545, %v2545
      %v2548 = vcombine.high %v2484, %v2484
      %v2550 = vunpack.c.l.s4 1983009808
      %v2551 = vunpack.c.0.s8 %v2550
      %v2552 = vlaneseq
      %v2553 = vshrl.u32 %v2552, 7
      %v2554 = vsub.s32 %v2551, %v2553
      %v2555 = vrot.slane %v2484, %v2554
      %v2557 = vunpack.c.l.s4 1983009808
      %v2558 = vunpack.c.0.s8 %v2557
      %v2559 = vlaneseq
      %v2560 = vshrl.u32 %v2559, 7
      %v2561 = vsub.s32 %v2558, %v2560
      %v2562 = vrot.slane %v2548, %v2561
      %v2563 = vcombine.high %v2555, %v2555
      %v2564 = vcombine.high %v2562, %v2562
      %v2565 = vcombine.high %v2485, %v2485
      %v2567 = vunpack.c.l.s4 1983009808
      %v2568 = vunpack.c.0.s8 %v2567
      %v2569 = vlaneseq
      %v2570 = vshrl.u32 %v2569, 7
      %v2571 = vsub.s32 %v2568, %v2570
      %v2572 = vrot.slane %v2485, %v2571
      %v2574 = vunpack.c.l.s4 1983009808
      %v2575 = vunpack.c.0.s8 %v2574
      %v2576 = vlaneseq
      %v2577 = vshrl.u32 %v2576, 7
      %v2578 = vsub.s32 %v2575, %v2577
      %v2579 = vrot.slane %v2565, %v2578
      %v2580 = vcombine.high %v2572, %v2572
      %v2581 = vcombine.high %v2579, %v2579
      %v2582 = vcombine.high %v2486, %v2486
      %v2584 = vunpack.c.l.s4 1983009808
      %v2585 = vunpack.c.0.s8 %v2584
      %v2586 = vlaneseq
      %v2587 = vshrl.u32 %v2586, 7
      %v2588 = vsub.s32 %v2585, %v2587
      %v2589 = vrot.slane %v2486, %v2588
      %v2591 = vunpack.c.l.s4 1983009808
      %v2592 = vunpack.c.0.s8 %v2591
      %v2593 = vlaneseq
      %v2594 = vshrl.u32 %v2593, 7
      %v2595 = vsub.s32 %v2592, %v2594
      %v2596 = vrot.slane %v2582, %v2595
      %v2597 = vcombine.high %v2589, %v2589
      %v2598 = vcombine.high %v2596, %v2596
      %v2599 = vcombine.high %v2487, %v2487
      %v2601 = vunpack.c.l.s4 1983009808
      %v2602 = vunpack.c.0.s8 %v2601
      %v2603 = vlaneseq
      %v2604 = vshrl.u32 %v2603, 7
      %v2605 = vsub.s32 %v2602, %v2604
      %v2606 = vrot.slane %v2487, %v2605
      %v2608 = vunpack.c.l.s4 1983009808
      %v2609 = vunpack.c.0.s8 %v2608
      %v2610 = vlaneseq
      %v2611 = vshrl.u32 %v2610, 7
      %v2612 = vsub.s32 %v2609, %v2611
      %v2613 = vrot.slane %v2599, %v2612
      %v2614 = vcombine.high %v2606, %v2606
      %v2615 = vcombine.high %v2613, %v2613
      %v2616 = vcombine.high %v2488, %v2488
      %v2618 = vunpack.c.l.s4 1983009808
      %v2619 = vunpack.c.0.s8 %v2618
      %v2620 = vlaneseq
      %v2621 = vshrl.u32 %v2620, 7
      %v2622 = vsub.s32 %v2619, %v2621
      %v2623 = vrot.slane %v2488, %v2622
      %v2625 = vunpack.c.l.s4 1983009808
      %v2626 = vunpack.c.0.s8 %v2625
      %v2627 = vlaneseq
      %v2628 = vshrl.u32 %v2627, 7
      %v2629 = vsub.s32 %v2626, %v2628
      %v2630 = vrot.slane %v2616, %v2629
      %v2631 = vcombine.high %v2623, %v2623
      %v2632 = vcombine.high %v2630, %v2630
      %v2633 = vcombine.high %v2489, %v2489
      %v2635 = vunpack.c.l.s4 1983009808
      %v2636 = vunpack.c.0.s8 %v2635
      %v2637 = vlaneseq
      %v2638 = vshrl.u32 %v2637, 7
      %v2639 = vsub.s32 %v2636, %v2638
      %v2640 = vrot.slane %v2489, %v2639
      %v2642 = vunpack.c.l.s4 1983009808
      %v2643 = vunpack.c.0.s8 %v2642
      %v2644 = vlaneseq
      %v2645 = vshrl.u32 %v2644, 7
      %v2646 = vsub.s32 %v2643, %v2645
      %v2647 = vrot.slane %v2633, %v2646
      %v2648 = vcombine.high %v2640, %v2640
      %v2649 = vcombine.high %v2647, %v2647
      %v2650 = vcombine.high %v2490, %v2490
      %v2652 = vunpack.c.l.s4 1983009808
      %v2653 = vunpack.c.0.s8 %v2652
      %v2654 = vlaneseq
      %v2655 = vshrl.u32 %v2654, 7
      %v2656 = vsub.s32 %v2653, %v2655
      %v2657 = vrot.slane %v2490, %v2656
      %v2659 = vunpack.c.l.s4 1983009808
      %v2660 = vunpack.c.0.s8 %v2659
      %v2661 = vlaneseq
      %v2662 = vshrl.u32 %v2661, 7
      %v2663 = vsub.s32 %v2660, %v2662
      %v2664 = vrot.slane %v2650, %v2663
      %v2665 = vcombine.high %v2657, %v2657
      %v2666 = vcombine.high %v2664, %v2664
      %v2667 = vcombine.high %v2491, %v2491
      %v2669 = vunpack.c.l.s4 1983009808
      %v2670 = vunpack.c.0.s8 %v2669
      %v2671 = vlaneseq
      %v2672 = vshrl.u32 %v2671, 7
      %v2673 = vsub.s32 %v2670, %v2672
      %v2674 = vrot.slane %v2491, %v2673
      %v2676 = vunpack.c.l.s4 1983009808
      %v2677 = vunpack.c.0.s8 %v2676
      %v2678 = vlaneseq
      %v2679 = vshrl.u32 %v2678, 7
      %v2680 = vsub.s32 %v2677, %v2679
      %v2681 = vrot.slane %v2667, %v2680
      %v2682 = vcombine.high %v2674, %v2674
      %v2683 = vcombine.high %v2681, %v2681
      %v2684 = vcombine.high %v2492, %v2492
      %v2686 = vunpack.c.l.s4 1983009808
      %v2687 = vunpack.c.0.s8 %v2686
      %v2688 = vlaneseq
      %v2689 = vshrl.u32 %v2688, 7
      %v2690 = vsub.s32 %v2687, %v2689
      %v2691 = vrot.slane %v2492, %v2690
      %v2693 = vunpack.c.l.s4 1983009808
      %v2694 = vunpack.c.0.s8 %v2693
      %v2695 = vlaneseq
      %v2696 = vshrl.u32 %v2695, 7
      %v2697 = vsub.s32 %v2694, %v2696
      %v2698 = vrot.slane %v2684, %v2697
      %v2699 = vcombine.high %v2691, %v2691
      %v2700 = vcombine.high %v2698, %v2698
      %v2701 = vcombine.high %v2493, %v2493
      %v2703 = vunpack.c.l.s4 1983009808
      %v2704 = vunpack.c.0.s8 %v2703
      %v2705 = vlaneseq
      %v2706 = vshrl.u32 %v2705, 7
      %v2707 = vsub.s32 %v2704, %v2706
      %v2708 = vrot.slane %v2493, %v2707
      %v2710 = vunpack.c.l.s4 1983009808
      %v2711 = vunpack.c.0.s8 %v2710
      %v2712 = vlaneseq
      %v2713 = vshrl.u32 %v2712, 7
      %v2714 = vsub.s32 %v2711, %v2713
      %v2715 = vrot.slane %v2701, %v2714
      %v2716 = vcombine.high %v2708, %v2708
      %v2717 = vcombine.high %v2715, %v2715
      %v2718 = vcombine.high %v2494, %v2494
      %v2720 = vunpack.c.l.s4 1983009808
      %v2721 = vunpack.c.0.s8 %v2720
      %v2722 = vlaneseq
      %v2723 = vshrl.u32 %v2722, 7
      %v2724 = vsub.s32 %v2721, %v2723
      %v2725 = vrot.slane %v2494, %v2724
      %v2727 = vunpack.c.l.s4 1983009808
      %v2728 = vunpack.c.0.s8 %v2727
      %v2729 = vlaneseq
      %v2730 = vshrl.u32 %v2729, 7
      %v2731 = vsub.s32 %v2728, %v2730
      %v2732 = vrot.slane %v2718, %v2731
      %v2733 = vcombine.high %v2725, %v2725
      %v2734 = vcombine.high %v2732, %v2732
      %v2735 = vcombine.high %v2495, %v2495
      %v2737 = vunpack.c.l.s4 1983009808
      %v2738 = vunpack.c.0.s8 %v2737
      %v2739 = vlaneseq
      %v2740 = vshrl.u32 %v2739, 7
      %v2741 = vsub.s32 %v2738, %v2740
      %v2742 = vrot.slane %v2495, %v2741
      %v2744 = vunpack.c.l.s4 1983009808
      %v2745 = vunpack.c.0.s8 %v2744
      %v2746 = vlaneseq
      %v2747 = vshrl.u32 %v2746, 7
      %v2748 = vsub.s32 %v2745, %v2747
      %v2749 = vrot.slane %v2735, %v2748
      %v2750 = vcombine.high %v2742, %v2742
      %v2751 = vcombine.high %v2749, %v2749
      %v2752 = vcombine.high %v2496, %v2496
      %v2754 = vunpack.c.l.s4 1983009808
      %v2755 = vunpack.c.0.s8 %v2754
      %v2756 = vlaneseq
      %v2757 = vshrl.u32 %v2756, 7
      %v2758 = vsub.s32 %v2755, %v2757
      %v2759 = vrot.slane %v2496, %v2758
      %v2761 = vunpack.c.l.s4 1983009808
      %v2762 = vunpack.c.0.s8 %v2761
      %v2763 = vlaneseq
      %v2764 = vshrl.u32 %v2763, 7
      %v2765 = vsub.s32 %v2762, %v2764
      %v2766 = vrot.slane %v2752, %v2765
      %v2767 = vcombine.high %v2759, %v2759
      %v2768 = vcombine.high %v2766, %v2766
      %v2769 = vcombine.high %v2497, %v2497
      %v2771 = vunpack.c.l.s4 1983009808
      %v2772 = vunpack.c.0.s8 %v2771
      %v2773 = vlaneseq
      %v2774 = vshrl.u32 %v2773, 7
      %v2775 = vsub.s32 %v2772, %v2774
      %v2776 = vrot.slane %v2497, %v2775
      %v2778 = vunpack.c.l.s4 1983009808
      %v2779 = vunpack.c.0.s8 %v2778
      %v2780 = vlaneseq
      %v2781 = vshrl.u32 %v2780, 7
      %v2782 = vsub.s32 %v2779, %v2781
      %v2783 = vrot.slane %v2769, %v2782
      %v2784 = vcombine.high %v2776, %v2776
      %v2785 = vcombine.high %v2783, %v2783
      %v2850 = vrot.slane %v2521, 7
      %v2851 = vrot.slane %v2850, 2
      %v2852 = vrot.slane %v2529, 7
      %v2853 = vrot.slane %v2852, 2
      %v2854 = vrot.slane %v2528, 7
      %v2855 = vrot.slane %v2854, 2
      %v2856 = vrot.slane %v2530, 7
      %v2857 = vrot.slane %v2856, 2
      %v2858 = vrot.slane %v2538, 7
      %v2859 = vrot.slane %v2858, 2
      %v2860 = vrot.slane %v2546, 7
      %v2861 = vrot.slane %v2860, 2
      %v2862 = vrot.slane %v2545, 7
      %v2863 = vrot.slane %v2862, 2
      %v2864 = vrot.slane %v2547, 7
      %v2865 = vrot.slane %v2864, 2
      %v2866 = vrot.slane %v2555, 7
      %v2867 = vrot.slane %v2866, 2
      %v2868 = vrot.slane %v2563, 7
      %v2869 = vrot.slane %v2868, 2
      %v2870 = vrot.slane %v2562, 7
      %v2871 = vrot.slane %v2870, 2
      %v2872 = vrot.slane %v2564, 7
      %v2873 = vrot.slane %v2872, 2
      %v2874 = vrot.slane %v2572, 7
      %v2875 = vrot.slane %v2874, 2
      %v2876 = vrot.slane %v2580, 7
      %v2877 = vrot.slane %v2876, 2
      %v2878 = vrot.slane %v2579, 7
      %v2879 = vrot.slane %v2878, 2
      %v2880 = vrot.slane %v2581, 7
      %v2881 = vrot.slane %v2880, 2
      %v2882 = vrot.slane %v2589, 7
      %v2883 = vrot.slane %v2882, 2
      %v2884 = vrot.slane %v2597, 7
      %v2885 = vrot.slane %v2884, 2
      %v2886 = vrot.slane %v2596, 7
      %v2887 = vrot.slane %v2886, 2
      %v2888 = vrot.slane %v2598, 7
      %v2889 = vrot.slane %v2888, 2
      %v2890 = vrot.slane %v2606, 7
      %v2891 = vrot.slane %v2890, 2
      %v2892 = vrot.slane %v2614, 7
      %v2893 = vrot.slane %v2892, 2
      %v2894 = vrot.slane %v2613, 7
      %v2895 = vrot.slane %v2894, 2
      %v2896 = vrot.slane %v2615, 7
      %v2897 = vrot.slane %v2896, 2
      %v2898 = vrot.slane %v2623, 7
      %v2899 = vrot.slane %v2898, 2
      %v2900 = vrot.slane %v2631, 7
      %v2901 = vrot.slane %v2900, 2
      %v2902 = vrot.slane %v2630, 7
      %v2903 = vrot.slane %v2902, 2
      %v2904 = vrot.slane %v2632, 7
      %v2905 = vrot.slane %v2904, 2
      %v2906 = vrot.slane %v2640, 7
      %v2907 = vrot.slane %v2906, 2
      %v2908 = vrot.slane %v2648, 7
      %v2909 = vrot.slane %v2908, 2
      %v2910 = vrot.slane %v2647, 7
      %v2911 = vrot.slane %v2910, 2
      %v2912 = vrot.slane %v2649, 7
      %v2913 = vrot.slane %v2912, 2
      %v2914 = vrot.slane %v2657, 7
      %v2915 = vrot.slane %v2914, 2
      %v2916 = vrot.slane %v2665, 7
      %v2917 = vrot.slane %v2916, 2
      %v2918 = vrot.slane %v2664, 7
      %v2919 = vrot.slane %v2918, 2
      %v2920 = vrot.slane %v2666, 7
      %v2921 = vrot.slane %v2920, 2
      %v2922 = vrot.slane %v2674, 7
      %v2923 = vrot.slane %v2922, 2
      %v2924 = vrot.slane %v2682, 7
      %v2925 = vrot.slane %v2924, 2
      %v2926 = vrot.slane %v2681, 7
      %v2927 = vrot.slane %v2926, 2
      %v2928 = vrot.slane %v2683, 7
      %v2929 = vrot.slane %v2928, 2
      %v2930 = vrot.slane %v2691, 7
      %v2931 = vrot.slane %v2930, 2
      %v2932 = vrot.slane %v2699, 7
      %v2933 = vrot.slane %v2932, 2
      %v2934 = vrot.slane %v2698, 7
      %v2935 = vrot.slane %v2934, 2
      %v2936 = vrot.slane %v2700, 7
      %v2937 = vrot.slane %v2936, 2
      %v2938 = vrot.slane %v2708, 7
      %v2939 = vrot.slane %v2938, 2
      %v2940 = vrot.slane %v2716, 7
      %v2941 = vrot.slane %v2940, 2
      %v2942 = vrot.slane %v2715, 7
      %v2943 = vrot.slane %v2942, 2
      %v2944 = vrot.slane %v2717, 7
      %v2945 = vrot.slane %v2944, 2
      %v2946 = vrot.slane %v2725, 7
      %v2947 = vrot.slane %v2946, 2
      %v2948 = vrot.slane %v2733, 7
      %v2949 = vrot.slane %v2948, 2
      %v2950 = vrot.slane %v2732, 7
      %v2951 = vrot.slane %v2950, 2
      %v2952 = vrot.slane %v2734, 7
      %v2953 = vrot.slane %v2952, 2
      %v2954 = vrot.slane %v2742, 7
      %v2955 = vrot.slane %v2954, 2
      %v2956 = vrot.slane %v2750, 7
      %v2957 = vrot.slane %v2956, 2
      %v2958 = vrot.slane %v2749, 7
      %v2959 = vrot.slane %v2958, 2
      %v2960 = vrot.slane %v2751, 7
      %v2961 = vrot.slane %v2960, 2
      %v2962 = vrot.slane %v2759, 7
      %v2963 = vrot.slane %v2962, 2
      %v2964 = vrot.slane %v2767, 7
      %v2965 = vrot.slane %v2964, 2
      %v2966 = vrot.slane %v2766, 7
      %v2967 = vrot.slane %v2966, 2
      %v2968 = vrot.slane %v2768, 7
      %v2969 = vrot.slane %v2968, 2
      %v2970 = vrot.slane %v2776, 7
      %v2971 = vrot.slane %v2970, 2
      %v2972 = vrot.slane %v2784, 7
      %v2973 = vrot.slane %v2972, 2
      %v2974 = vrot.slane %v2783, 7
      %v2975 = vrot.slane %v2974, 2
      %v2976 = vrot.slane %v2785, 7
      %v2977 = vrot.slane %v2976, 2
      %v3042 = vmax.f32 %v2521, %v2851
      %v3043 = vmax.f32 %v2529, %v2853
      %v3044 = vmax.f32 %v2528, %v2855
      %v3045 = vmax.f32 %v2530, %v2857
      %v3046 = vmax.f32 %v2538, %v2859
      %v3047 = vmax.f32 %v2546, %v2861
      %v3048 = vmax.f32 %v2545, %v2863
      %v3049 = vmax.f32 %v2547, %v2865
      %v3050 = vmax.f32 %v2555, %v2867
      %v3051 = vmax.f32 %v2563, %v2869
      %v3052 = vmax.f32 %v2562, %v2871
      %v3053 = vmax.f32 %v2564, %v2873
      %v3054 = vmax.f32 %v2572, %v2875
      %v3055 = vmax.f32 %v2580, %v2877
      %v3056 = vmax.f32 %v2579, %v2879
      %v3057 = vmax.f32 %v2581, %v2881
      %v3058 = vmax.f32 %v2589, %v2883
      %v3059 = vmax.f32 %v2597, %v2885
      %v3060 = vmax.f32 %v2596, %v2887
      %v3061 = vmax.f32 %v2598, %v2889
      %v3062 = vmax.f32 %v2606, %v2891
      %v3063 = vmax.f32 %v2614, %v2893
      %v3064 = vmax.f32 %v2613, %v2895
      %v3065 = vmax.f32 %v2615, %v2897
      %v3066 = vmax.f32 %v2623, %v2899
      %v3067 = vmax.f32 %v2631, %v2901
      %v3068 = vmax.f32 %v2630, %v2903
      %v3069 = vmax.f32 %v2632, %v2905
      %v3070 = vmax.f32 %v2640, %v2907
      %v3071 = vmax.f32 %v2648, %v2909
      %v3072 = vmax.f32 %v2647, %v2911
      %v3073 = vmax.f32 %v2649, %v2913
      %v3074 = vmax.f32 %v2657, %v2915
      %v3075 = vmax.f32 %v2665, %v2917
      %v3076 = vmax.f32 %v2664, %v2919
      %v3077 = vmax.f32 %v2666, %v2921
      %v3078 = vmax.f32 %v2674, %v2923
      %v3079 = vmax.f32 %v2682, %v2925
      %v3080 = vmax.f32 %v2681, %v2927
      %v3081 = vmax.f32 %v2683, %v2929
      %v3082 = vmax.f32 %v2691, %v2931
      %v3083 = vmax.f32 %v2699, %v2933
      %v3084 = vmax.f32 %v2698, %v2935
      %v3085 = vmax.f32 %v2700, %v2937
      %v3086 = vmax.f32 %v2708, %v2939
      %v3087 = vmax.f32 %v2716, %v2941
      %v3088 = vmax.f32 %v2715, %v2943
      %v3089 = vmax.f32 %v2717, %v2945
      %v3090 = vmax.f32 %v2725, %v2947
      %v3091 = vmax.f32 %v2733, %v2949
      %v3092 = vmax.f32 %v2732, %v2951
      %v3093 = vmax.f32 %v2734, %v2953
      %v3094 = vmax.f32 %v2742, %v2955
      %v3095 = vmax.f32 %v2750, %v2957
      %v3096 = vmax.f32 %v2749, %v2959
      %v3097 = vmax.f32 %v2751, %v2961
      %v3098 = vmax.f32 %v2759, %v2963
      %v3099 = vmax.f32 %v2767, %v2965
      %v3100 = vmax.f32 %v2766, %v2967
      %v3101 = vmax.f32 %v2768, %v2969
      %v3102 = vmax.f32 %v2776, %v2971
      %v3103 = vmax.f32 %v2784, %v2973
      %v3104 = vmax.f32 %v2783, %v2975
      %v3105 = vmax.f32 %v2785, %v2977
      %3106 = vst.msk [vmem:[#allocation2] sm:$0xff] %vm1962, 0.0
      %vm3107 = vcmask 58368
      %3108 = vst.msk [vmem:[#allocation2 + $0x8] sm:$0x3] %vm3107, 0.0
      %3109 = vst.msk [vmem:[#allocation2 + $0x18] sm:$0xff] %vm1962, 0.0
      %3110 = vst.msk [vmem:[#allocation2 + $0x20] sm:$0x3] %vm3107, 0.0
      %3111 = vst.msk [vmem:[#allocation2 + $0x30] sm:$0xff] %vm1962, 0.0
      %3112 = vst.msk [vmem:[#allocation2 + $0x38] sm:$0x3] %vm3107, 0.0
      %3113 = vst.msk [vmem:[#allocation2 + $0x48] sm:$0xff] %vm1962, 0.0
      %3114 = vst.msk [vmem:[#allocation2 + $0x50] sm:$0x3] %vm3107, 0.0
      %3115 = vst.msk [vmem:[#allocation2 + $0x60] sm:$0xff] %vm1962, 0.0
      %3116 = vst.msk [vmem:[#allocation2 + $0x68] sm:$0x3] %vm3107, 0.0
      %3117 = vst.msk [vmem:[#allocation2 + $0x78] sm:$0xff] %vm1962, 0.0
      %3118 = vst.msk [vmem:[#allocation2 + $0x80] sm:$0x3] %vm3107, 0.0
      %3119 = vst.msk [vmem:[#allocation2 + $0x90] sm:$0xff] %vm1962, 0.0
      %3120 = vst.msk [vmem:[#allocation2 + $0x98] sm:$0x3] %vm3107, 0.0
      %3121 = vst.msk [vmem:[#allocation2 + $0xa8] sm:$0xff] %vm1962, 0.0
      %3122 = vst.msk [vmem:[#allocation2 + $0xb0] sm:$0x3] %vm3107, 0.0
      %3123 = vst.msk [vmem:[#allocation2 + $0xc0] sm:$0xff] %vm1962, 0.0
      %3124 = vst.msk [vmem:[#allocation2 + $0xc8] sm:$0x3] %vm3107, 0.0
      %3125 = vst.msk [vmem:[#allocation2 + $0xd8] sm:$0xff] %vm1962, 0.0
      %3126 = vst.msk [vmem:[#allocation2 + $0xe0] sm:$0x3] %vm3107, 0.0
      %v3191 = vlaneseq
      %v3192 = vshrl.u32 %v3191, 7
      %v3193 = vsub.s32 0, %v3192
      %v3194 = vrot.slane %v3042, %v3193
      %v3195 = vlaneseq
      %v3196 = vshrl.u32 %v3195, 7
      %v3197 = vsub.s32 0, %v3196
      %v3198 = vrot.slane %v3043, %v3197
      %v3199 = vlaneseq
      %v3200 = vshrl.u32 %v3199, 7
      %v3201 = vsub.s32 0, %v3200
      %v3202 = vrot.slane %v3044, %v3201
      %v3203 = vlaneseq
      %v3204 = vshrl.u32 %v3203, 7
      %v3205 = vsub.s32 0, %v3204
      %v3206 = vrot.slane %v3045, %v3205
      %v3207 = vlaneseq
      %v3208 = vshrl.u32 %v3207, 7
      %v3209 = vsub.s32 0, %v3208
      %v3210 = vrot.slane %v3046, %v3209
      %v3211 = vlaneseq
      %v3212 = vshrl.u32 %v3211, 7
      %v3213 = vsub.s32 0, %v3212
      %v3214 = vrot.slane %v3047, %v3213
      %v3215 = vlaneseq
      %v3216 = vshrl.u32 %v3215, 7
      %v3217 = vsub.s32 0, %v3216
      %v3218 = vrot.slane %v3048, %v3217
      %v3219 = vlaneseq
      %v3220 = vshrl.u32 %v3219, 7
      %v3221 = vsub.s32 0, %v3220
      %v3222 = vrot.slane %v3049, %v3221
      %v3223 = vlaneseq
      %v3224 = vshrl.u32 %v3223, 7
      %v3225 = vsub.s32 0, %v3224
      %v3226 = vrot.slane %v3050, %v3225
      %v3227 = vlaneseq
      %v3228 = vshrl.u32 %v3227, 7
      %v3229 = vsub.s32 0, %v3228
      %v3230 = vrot.slane %v3051, %v3229
      %v3231 = vlaneseq
      %v3232 = vshrl.u32 %v3231, 7
      %v3233 = vsub.s32 0, %v3232
      %v3234 = vrot.slane %v3052, %v3233
      %v3235 = vlaneseq
      %v3236 = vshrl.u32 %v3235, 7
      %v3237 = vsub.s32 0, %v3236
      %v3238 = vrot.slane %v3053, %v3237
      %v3239 = vlaneseq
      %v3240 = vshrl.u32 %v3239, 7
      %v3241 = vsub.s32 0, %v3240
      %v3242 = vrot.slane %v3054, %v3241
      %v3243 = vlaneseq
      %v3244 = vshrl.u32 %v3243, 7
      %v3245 = vsub.s32 0, %v3244
      %v3246 = vrot.slane %v3055, %v3245
      %v3247 = vlaneseq
      %v3248 = vshrl.u32 %v3247, 7
      %v3249 = vsub.s32 0, %v3248
      %v3250 = vrot.slane %v3056, %v3249
      %v3251 = vlaneseq
      %v3252 = vshrl.u32 %v3251, 7
      %v3253 = vsub.s32 0, %v3252
      %v3254 = vrot.slane %v3057, %v3253
      %v3255 = vlaneseq
      %v3256 = vshrl.u32 %v3255, 7
      %v3257 = vsub.s32 0, %v3256
      %v3258 = vrot.slane %v3058, %v3257
      %v3259 = vlaneseq
      %v3260 = vshrl.u32 %v3259, 7
      %v3261 = vsub.s32 0, %v3260
      %v3262 = vrot.slane %v3059, %v3261
      %v3263 = vlaneseq
      %v3264 = vshrl.u32 %v3263, 7
      %v3265 = vsub.s32 0, %v3264
      %v3266 = vrot.slane %v3060, %v3265
      %v3267 = vlaneseq
      %v3268 = vshrl.u32 %v3267, 7
      %v3269 = vsub.s32 0, %v3268
      %v3270 = vrot.slane %v3061, %v3269
      %v3271 = vlaneseq
      %v3272 = vshrl.u32 %v3271, 7
      %v3273 = vsub.s32 0, %v3272
      %v3274 = vrot.slane %v3062, %v3273
      %v3275 = vlaneseq
      %v3276 = vshrl.u32 %v3275, 7
      %v3277 = vsub.s32 0, %v3276
      %v3278 = vrot.slane %v3063, %v3277
      %v3279 = vlaneseq
      %v3280 = vshrl.u32 %v3279, 7
      %v3281 = vsub.s32 0, %v3280
      %v3282 = vrot.slane %v3064, %v3281
      %v3283 = vlaneseq
      %v3284 = vshrl.u32 %v3283, 7
      %v3285 = vsub.s32 0, %v3284
      %v3286 = vrot.slane %v3065, %v3285
      %v3287 = vlaneseq
      %v3288 = vshrl.u32 %v3287, 7
      %v3289 = vsub.s32 0, %v3288
      %v3290 = vrot.slane %v3066, %v3289
      %v3291 = vlaneseq
      %v3292 = vshrl.u32 %v3291, 7
      %v3293 = vsub.s32 0, %v3292
      %v3294 = vrot.slane %v3067, %v3293
      %v3295 = vlaneseq
      %v3296 = vshrl.u32 %v3295, 7
      %v3297 = vsub.s32 0, %v3296
      %v3298 = vrot.slane %v3068, %v3297
      %v3299 = vlaneseq
      %v3300 = vshrl.u32 %v3299, 7
      %v3301 = vsub.s32 0, %v3300
      %v3302 = vrot.slane %v3069, %v3301
      %v3303 = vlaneseq
      %v3304 = vshrl.u32 %v3303, 7
      %v3305 = vsub.s32 0, %v3304
      %v3306 = vrot.slane %v3070, %v3305
      %v3307 = vlaneseq
      %v3308 = vshrl.u32 %v3307, 7
      %v3309 = vsub.s32 0, %v3308
      %v3310 = vrot.slane %v3071, %v3309
      %v3311 = vlaneseq
      %v3312 = vshrl.u32 %v3311, 7
      %v3313 = vsub.s32 0, %v3312
      %v3314 = vrot.slane %v3072, %v3313
      %v3315 = vlaneseq
      %v3316 = vshrl.u32 %v3315, 7
      %v3317 = vsub.s32 0, %v3316
      %v3318 = vrot.slane %v3073, %v3317
      %v3319 = vlaneseq
      %v3320 = vshrl.u32 %v3319, 7
      %v3321 = vsub.s32 0, %v3320
      %v3322 = vrot.slane %v3074, %v3321
      %v3323 = vlaneseq
      %v3324 = vshrl.u32 %v3323, 7
      %v3325 = vsub.s32 0, %v3324
      %v3326 = vrot.slane %v3075, %v3325
      %v3327 = vlaneseq
      %v3328 = vshrl.u32 %v3327, 7
      %v3329 = vsub.s32 0, %v3328
      %v3330 = vrot.slane %v3076, %v3329
      %v3331 = vlaneseq
      %v3332 = vshrl.u32 %v3331, 7
      %v3333 = vsub.s32 0, %v3332
      %v3334 = vrot.slane %v3077, %v3333
      %v3335 = vlaneseq
      %v3336 = vshrl.u32 %v3335, 7
      %v3337 = vsub.s32 0, %v3336
      %v3338 = vrot.slane %v3078, %v3337
      %v3339 = vlaneseq
      %v3340 = vshrl.u32 %v3339, 7
      %v3341 = vsub.s32 0, %v3340
      %v3342 = vrot.slane %v3079, %v3341
      %v3343 = vlaneseq
      %v3344 = vshrl.u32 %v3343, 7
      %v3345 = vsub.s32 0, %v3344
      %v3346 = vrot.slane %v3080, %v3345
      %v3347 = vlaneseq
      %v3348 = vshrl.u32 %v3347, 7
      %v3349 = vsub.s32 0, %v3348
      %v3350 = vrot.slane %v3081, %v3349
      %v3351 = vlaneseq
      %v3352 = vshrl.u32 %v3351, 7
      %v3353 = vsub.s32 0, %v3352
      %v3354 = vrot.slane %v3082, %v3353
      %v3355 = vlaneseq
      %v3356 = vshrl.u32 %v3355, 7
      %v3357 = vsub.s32 0, %v3356
      %v3358 = vrot.slane %v3083, %v3357
      %v3359 = vlaneseq
      %v3360 = vshrl.u32 %v3359, 7
      %v3361 = vsub.s32 0, %v3360
      %v3362 = vrot.slane %v3084, %v3361
      %v3363 = vlaneseq
      %v3364 = vshrl.u32 %v3363, 7
      %v3365 = vsub.s32 0, %v3364
      %v3366 = vrot.slane %v3085, %v3365
      %v3367 = vlaneseq
      %v3368 = vshrl.u32 %v3367, 7
      %v3369 = vsub.s32 0, %v3368
      %v3370 = vrot.slane %v3086, %v3369
      %v3371 = vlaneseq
      %v3372 = vshrl.u32 %v3371, 7
      %v3373 = vsub.s32 0, %v3372
      %v3374 = vrot.slane %v3087, %v3373
      %v3375 = vlaneseq
      %v3376 = vshrl.u32 %v3375, 7
      %v3377 = vsub.s32 0, %v3376
      %v3378 = vrot.slane %v3088, %v3377
      %v3379 = vlaneseq
      %v3380 = vshrl.u32 %v3379, 7
      %v3381 = vsub.s32 0, %v3380
      %v3382 = vrot.slane %v3089, %v3381
      %v3383 = vlaneseq
      %v3384 = vshrl.u32 %v3383, 7
      %v3385 = vsub.s32 0, %v3384
      %v3386 = vrot.slane %v3090, %v3385
      %v3387 = vlaneseq
      %v3388 = vshrl.u32 %v3387, 7
      %v3389 = vsub.s32 0, %v3388
      %v3390 = vrot.slane %v3091, %v3389
      %v3391 = vlaneseq
      %v3392 = vshrl.u32 %v3391, 7
      %v3393 = vsub.s32 0, %v3392
      %v3394 = vrot.slane %v3092, %v3393
      %v3395 = vlaneseq
      %v3396 = vshrl.u32 %v3395, 7
      %v3397 = vsub.s32 0, %v3396
      %v3398 = vrot.slane %v3093, %v3397
      %v3399 = vlaneseq
      %v3400 = vshrl.u32 %v3399, 7
      %v3401 = vsub.s32 0, %v3400
      %v3402 = vrot.slane %v3094, %v3401
      %v3403 = vlaneseq
      %v3404 = vshrl.u32 %v3403, 7
      %v3405 = vsub.s32 0, %v3404
      %v3406 = vrot.slane %v3095, %v3405
      %v3407 = vlaneseq
      %v3408 = vshrl.u32 %v3407, 7
      %v3409 = vsub.s32 0, %v3408
      %v3410 = vrot.slane %v3096, %v3409
      %v3411 = vlaneseq
      %v3412 = vshrl.u32 %v3411, 7
      %v3413 = vsub.s32 0, %v3412
      %v3414 = vrot.slane %v3097, %v3413
      %v3415 = vlaneseq
      %v3416 = vshrl.u32 %v3415, 7
      %v3417 = vsub.s32 0, %v3416
      %v3418 = vrot.slane %v3098, %v3417
      %v3419 = vlaneseq
      %v3420 = vshrl.u32 %v3419, 7
      %v3421 = vsub.s32 0, %v3420
      %v3422 = vrot.slane %v3099, %v3421
      %v3423 = vlaneseq
      %v3424 = vshrl.u32 %v3423, 7
      %v3425 = vsub.s32 0, %v3424
      %v3426 = vrot.slane %v3100, %v3425
      %v3427 = vlaneseq
      %v3428 = vshrl.u32 %v3427, 7
      %v3429 = vsub.s32 0, %v3428
      %v3430 = vrot.slane %v3101, %v3429
      %v3431 = vlaneseq
      %v3432 = vshrl.u32 %v3431, 7
      %v3433 = vsub.s32 0, %v3432
      %v3434 = vrot.slane %v3102, %v3433
      %v3435 = vlaneseq
      %v3436 = vshrl.u32 %v3435, 7
      %v3437 = vsub.s32 0, %v3436
      %v3438 = vrot.slane %v3103, %v3437
      %v3439 = vlaneseq
      %v3440 = vshrl.u32 %v3439, 7
      %v3441 = vsub.s32 0, %v3440
      %v3442 = vrot.slane %v3104, %v3441
      %v3443 = vlaneseq
      %v3444 = vshrl.u32 %v3443, 7
      %v3445 = vsub.s32 0, %v3444
      %v3446 = vrot.slane %v3105, %v3445
      %vm3447 = vcmask 1041409
      %v3448 = vsel %vm3447, %v3198, %v3194
      %vm3449 = vcmask 1042434
      %v3450 = vsel %vm3449, %v3202, %v3448
      %vm3451 = vcmask 1043459
      %v3452 = vsel %vm3451, %v3206, %v3450
      %vm3453 = vcmask 1044484
      %v3454 = vsel %vm3453, %v3210, %v3452
      %vm3455 = vcmask 1045509
      %v3456 = vsel %vm3455, %v3214, %v3454
      %vm3457 = vcmask 1046534
      %v3458 = vsel %vm3457, %v3218, %v3456
      %vm3459 = vcmask 1047559
      %v3460 = vsel %vm3459, %v3222, %v3458
      %v3461 = vsel %vm3447, %v3230, %v3226
      %v3462 = vsel %vm3449, %v3234, %v3461
      %v3463 = vsel %vm3451, %v3238, %v3462
      %v3464 = vsel %vm3453, %v3242, %v3463
      %v3465 = vsel %vm3455, %v3246, %v3464
      %v3466 = vsel %vm3457, %v3250, %v3465
      %v3467 = vsel %vm3459, %v3254, %v3466
      %v3468 = vsel %vm3447, %v3262, %v3258
      %v3469 = vsel %vm3449, %v3266, %v3468
      %v3470 = vsel %vm3451, %v3270, %v3469
      %v3471 = vsel %vm3453, %v3274, %v3470
      %v3472 = vsel %vm3455, %v3278, %v3471
      %v3473 = vsel %vm3457, %v3282, %v3472
      %v3474 = vsel %vm3459, %v3286, %v3473
      %v3475 = vsel %vm3447, %v3294, %v3290
      %v3476 = vsel %vm3449, %v3298, %v3475
      %v3477 = vsel %vm3451, %v3302, %v3476
      %v3478 = vsel %vm3453, %v3306, %v3477
      %v3479 = vsel %vm3455, %v3310, %v3478
      %v3480 = vsel %vm3457, %v3314, %v3479
      %v3481 = vsel %vm3459, %v3318, %v3480
      %v3482 = vsel %vm3447, %v3326, %v3322
      %v3483 = vsel %vm3449, %v3330, %v3482
      %v3484 = vsel %vm3451, %v3334, %v3483
      %v3485 = vsel %vm3453, %v3338, %v3484
      %v3486 = vsel %vm3455, %v3342, %v3485
      %v3487 = vsel %vm3457, %v3346, %v3486
      %v3488 = vsel %vm3459, %v3350, %v3487
      %v3489 = vsel %vm3447, %v3358, %v3354
      %v3490 = vsel %vm3449, %v3362, %v3489
      %v3491 = vsel %vm3451, %v3366, %v3490
      %v3492 = vsel %vm3453, %v3370, %v3491
      %v3493 = vsel %vm3455, %v3374, %v3492
      %v3494 = vsel %vm3457, %v3378, %v3493
      %v3495 = vsel %vm3459, %v3382, %v3494
      %v3496 = vsel %vm3447, %v3390, %v3386
      %v3497 = vsel %vm3449, %v3394, %v3496
      %v3498 = vsel %vm3451, %v3398, %v3497
      %v3499 = vsel %vm3453, %v3402, %v3498
      %v3500 = vsel %vm3455, %v3406, %v3499
      %v3501 = vsel %vm3457, %v3410, %v3500
      %v3502 = vsel %vm3459, %v3414, %v3501
      %v3503 = vsel %vm3447, %v3422, %v3418
      %v3504 = vsel %vm3449, %v3426, %v3503
      %v3505 = vsel %vm3451, %v3430, %v3504
      %v3506 = vsel %vm3453, %v3434, %v3505
      %v3507 = vsel %vm3455, %v3438, %v3506
      %v3508 = vsel %vm3457, %v3442, %v3507
      %v3509 = vsel %vm3459, %v3446, %v3508
      %3518 = vst.msk [vmem:[%s584 + $0x1] sm:$0xff] %vm1962, %v3460
      %3519 = vst.msk [vmem:[%s584 + $0x19] sm:$0xff] %vm1962, %v3467
      %3520 = vst.msk [vmem:[%s584 + $0x31] sm:$0xff] %vm1962, %v3474
      %3521 = vst.msk [vmem:[%s584 + $0x49] sm:$0xff] %vm1962, %v3481
      %3522 = vst.msk [vmem:[%s584 + $0x61] sm:$0xff] %vm1962, %v3488
      %3523 = vst.msk [vmem:[%s584 + $0x79] sm:$0xff] %vm1962, %v3495
      %3524 = vst.msk [vmem:[%s584 + $0x91] sm:$0xff] %vm1962, %v3502
      %3525 = vst.msk [vmem:[%s584 + $0xa9] sm:$0xff] %vm1962, %v3509
      %v3526 = vld [vmem:[#allocation2] sm:$0xff]
      %v3527 = vld [vmem:[#allocation2 + $0x18] sm:$0xff]
      %v3528 = vld [vmem:[#allocation2 + $0x30] sm:$0xff]
      %v3529 = vld [vmem:[#allocation2 + $0x48] sm:$0xff]
      %v3530 = vld [vmem:[#allocation2 + $0x60] sm:$0xff]
      %v3531 = vld [vmem:[#allocation2 + $0x78] sm:$0xff]
      %v3532 = vld [vmem:[#allocation2 + $0x90] sm:$0xff]
      %v3533 = vld [vmem:[#allocation2 + $0xa8] sm:$0xff]
      %v3534 = vld [vmem:[#allocation2 + $0x1] sm:$0xff]
      %v3535 = vld [vmem:[#allocation2 + $0x19] sm:$0xff]
      %v3536 = vld [vmem:[#allocation2 + $0x31] sm:$0xff]
      %v3537 = vld [vmem:[#allocation2 + $0x49] sm:$0xff]
      %v3538 = vld [vmem:[#allocation2 + $0x61] sm:$0xff]
      %v3539 = vld [vmem:[#allocation2 + $0x79] sm:$0xff]
      %v3540 = vld [vmem:[#allocation2 + $0x91] sm:$0xff]
      %v3541 = vld [vmem:[#allocation2 + $0xa9] sm:$0xff]
      %v3542 = vld [vmem:[#allocation2 + $0x2] sm:$0xff]
      %v3543 = vld [vmem:[#allocation2 + $0x1a] sm:$0xff]
      %v3544 = vld [vmem:[#allocation2 + $0x32] sm:$0xff]
      %v3545 = vld [vmem:[#allocation2 + $0x4a] sm:$0xff]
      %v3546 = vld [vmem:[#allocation2 + $0x62] sm:$0xff]
      %v3547 = vld [vmem:[#allocation2 + $0x7a] sm:$0xff]
      %v3548 = vld [vmem:[#allocation2 + $0x92] sm:$0xff]
      %v3549 = vld [vmem:[#allocation2 + $0xaa] sm:$0xff]
      %v3550 = vld [vmem:[%s584] sm:$0xff]
      %v3551 = vld [vmem:[%s584 + $0x18] sm:$0xff]
      %v3552 = vld [vmem:[%s584 + $0x30] sm:$0xff]
      %v3553 = vld [vmem:[%s584 + $0x48] sm:$0xff]
      %v3554 = vld [vmem:[%s584 + $0x60] sm:$0xff]
      %v3555 = vld [vmem:[%s584 + $0x78] sm:$0xff]
      %v3556 = vld [vmem:[%s584 + $0x90] sm:$0xff]
      %v3557 = vld [vmem:[%s584 + $0xa8] sm:$0xff]
      %v3558 = vld [vmem:[%s584 + $0x1] sm:$0xff]
      %v3559 = vld [vmem:[%s584 + $0x19] sm:$0xff]
      %v3560 = vld [vmem:[%s584 + $0x31] sm:$0xff]
      %v3561 = vld [vmem:[%s584 + $0x49] sm:$0xff]
      %v3562 = vld [vmem:[%s584 + $0x61] sm:$0xff]
      %v3563 = vld [vmem:[%s584 + $0x79] sm:$0xff]
      %v3564 = vld [vmem:[%s584 + $0x91] sm:$0xff]
      %v3565 = vld [vmem:[%s584 + $0xa9] sm:$0xff]
      %v3566 = vld [vmem:[%s584 + $0x2] sm:$0xff]
      %v3567 = vld [vmem:[%s584 + $0x1a] sm:$0xff]
      %v3568 = vld [vmem:[%s584 + $0x32] sm:$0xff]
      %v3569 = vld [vmem:[%s584 + $0x4a] sm:$0xff]
      %v3570 = vld [vmem:[%s584 + $0x62] sm:$0xff]
      %v3571 = vld [vmem:[%s584 + $0x7a] sm:$0xff]
      %v3572 = vld [vmem:[%s584 + $0x92] sm:$0xff]
      %v3573 = vld [vmem:[%s584 + $0xaa] sm:$0xff]
      %v3574 = vld [vmem:[%s809] sm:$0xff]
      %v3575 = vld [vmem:[%s809 + $0x18] sm:$0xff]
      %v3576 = vld [vmem:[%s809 + $0x30] sm:$0xff]
      %v3577 = vld [vmem:[%s809 + $0x48] sm:$0xff]
      %v3578 = vld [vmem:[%s809 + $0x60] sm:$0xff]
      %v3579 = vld [vmem:[%s809 + $0x78] sm:$0xff]
      %v3580 = vld [vmem:[%s809 + $0x90] sm:$0xff]
      %v3581 = vld [vmem:[%s809 + $0xa8] sm:$0xff]
      %v3582 = vld [vmem:[%s809 + $0x1] sm:$0xff]
      %v3583 = vld [vmem:[%s809 + $0x19] sm:$0xff]
      %v3584 = vld [vmem:[%s809 + $0x31] sm:$0xff]
      %v3585 = vld [vmem:[%s809 + $0x49] sm:$0xff]
      %v3586 = vld [vmem:[%s809 + $0x61] sm:$0xff]
      %v3587 = vld [vmem:[%s809 + $0x79] sm:$0xff]
      %v3588 = vld [vmem:[%s809 + $0x91] sm:$0xff]
      %v3589 = vld [vmem:[%s809 + $0xa9] sm:$0xff]
      %v3590 = vld [vmem:[%s809 + $0x2] sm:$0xff]
      %v3591 = vld [vmem:[%s809 + $0x1a] sm:$0xff]
      %v3592 = vld [vmem:[%s809 + $0x32] sm:$0xff]
      %v3593 = vld [vmem:[%s809 + $0x4a] sm:$0xff]
      %v3594 = vld [vmem:[%s809 + $0x62] sm:$0xff]
      %v3595 = vld [vmem:[%s809 + $0x7a] sm:$0xff]
      %v3596 = vld [vmem:[%s809 + $0x92] sm:$0xff]
      %v3597 = vld [vmem:[%s809 + $0xaa] sm:$0xff]
      %3606 = vrot.lane.b32.xlu0 %v3534, 8
      %v3607 = vpop.permute.xlu0 %3606
      %3608 = vrot.lane.b32.xlu0 %v3535, 8
      %v3609 = vpop.permute.xlu0 %3608
      %3610 = vrot.lane.b32.xlu0 %v3536, 8
      %v3611 = vpop.permute.xlu0 %3610
      %3612 = vrot.lane.b32.xlu0 %v3537, 8
      %v3613 = vpop.permute.xlu0 %3612
      %3614 = vrot.lane.b32.xlu0 %v3538, 8
      %v3615 = vpop.permute.xlu0 %3614
      %3616 = vrot.lane.b32.xlu0 %v3539, 8
      %v3617 = vpop.permute.xlu0 %3616
      %3618 = vrot.lane.b32.xlu0 %v3540, 8
      %v3619 = vpop.permute.xlu0 %3618
      %3620 = vrot.lane.b32.xlu0 %v3541, 8
      %v3621 = vpop.permute.xlu0 %3620
      %3638 = vrot.lane.b32.xlu0 %v3542, 16
      %v3639 = vpop.permute.xlu0 %3638
      %3640 = vrot.lane.b32.xlu0 %v3543, 16
      %v3641 = vpop.permute.xlu0 %3640
      %3642 = vrot.lane.b32.xlu0 %v3544, 16
      %v3643 = vpop.permute.xlu0 %3642
      %3644 = vrot.lane.b32.xlu0 %v3545, 16
      %v3645 = vpop.permute.xlu0 %3644
      %3646 = vrot.lane.b32.xlu0 %v3546, 16
      %v3647 = vpop.permute.xlu0 %3646
      %3648 = vrot.lane.b32.xlu0 %v3547, 16
      %v3649 = vpop.permute.xlu0 %3648
      %3650 = vrot.lane.b32.xlu0 %v3548, 16
      %v3651 = vpop.permute.xlu0 %3650
      %3652 = vrot.lane.b32.xlu0 %v3549, 16
      %v3653 = vpop.permute.xlu0 %3652
      %3670 = vrot.lane.b32.xlu0 %v3550, 24
      %v3671 = vpop.permute.xlu0 %3670
      %3672 = vrot.lane.b32.xlu0 %v3551, 24
      %v3673 = vpop.permute.xlu0 %3672
      %3674 = vrot.lane.b32.xlu0 %v3552, 24
      %v3675 = vpop.permute.xlu0 %3674
      %3676 = vrot.lane.b32.xlu0 %v3553, 24
      %v3677 = vpop.permute.xlu0 %3676
      %3678 = vrot.lane.b32.xlu0 %v3554, 24
      %v3679 = vpop.permute.xlu0 %3678
      %3680 = vrot.lane.b32.xlu0 %v3555, 24
      %v3681 = vpop.permute.xlu0 %3680
      %3682 = vrot.lane.b32.xlu0 %v3556, 24
      %v3683 = vpop.permute.xlu0 %3682
      %3684 = vrot.lane.b32.xlu0 %v3557, 24
      %v3685 = vpop.permute.xlu0 %3684
      %3702 = vrot.lane.b32.xlu0 %v3558, 32
      %v3703 = vpop.permute.xlu0 %3702
      %3704 = vrot.lane.b32.xlu0 %v3559, 32
      %v3705 = vpop.permute.xlu0 %3704
      %3706 = vrot.lane.b32.xlu0 %v3560, 32
      %v3707 = vpop.permute.xlu0 %3706
      %3708 = vrot.lane.b32.xlu0 %v3561, 32
      %v3709 = vpop.permute.xlu0 %3708
      %3710 = vrot.lane.b32.xlu0 %v3562, 32
      %v3711 = vpop.permute.xlu0 %3710
      %3712 = vrot.lane.b32.xlu0 %v3563, 32
      %v3713 = vpop.permute.xlu0 %3712
      %3714 = vrot.lane.b32.xlu0 %v3564, 32
      %v3715 = vpop.permute.xlu0 %3714
      %3716 = vrot.lane.b32.xlu0 %v3565, 32
      %v3717 = vpop.permute.xlu0 %3716
      %3734 = vrot.lane.b32.xlu0 %v3566, 40
      %v3735 = vpop.permute.xlu0 %3734
      %3736 = vrot.lane.b32.xlu0 %v3567, 40
      %v3737 = vpop.permute.xlu0 %3736
      %3738 = vrot.lane.b32.xlu0 %v3568, 40
      %v3739 = vpop.permute.xlu0 %3738
      %3740 = vrot.lane.b32.xlu0 %v3569, 40
      %v3741 = vpop.permute.xlu0 %3740
      %3742 = vrot.lane.b32.xlu0 %v3570, 40
      %v3743 = vpop.permute.xlu0 %3742
      %3744 = vrot.lane.b32.xlu0 %v3571, 40
      %v3745 = vpop.permute.xlu0 %3744
      %3746 = vrot.lane.b32.xlu0 %v3572, 40
      %v3747 = vpop.permute.xlu0 %3746
      %3748 = vrot.lane.b32.xlu0 %v3573, 40
      %v3749 = vpop.permute.xlu0 %3748
      %3766 = vrot.lane.b32.xlu0 %v3574, 48
      %v3767 = vpop.permute.xlu0 %3766
      %3768 = vrot.lane.b32.xlu0 %v3575, 48
      %v3769 = vpop.permute.xlu0 %3768
      %3770 = vrot.lane.b32.xlu0 %v3576, 48
      %v3771 = vpop.permute.xlu0 %3770
      %3772 = vrot.lane.b32.xlu0 %v3577, 48
      %v3773 = vpop.permute.xlu0 %3772
      %3774 = vrot.lane.b32.xlu0 %v3578, 48
      %v3775 = vpop.permute.xlu0 %3774
      %3776 = vrot.lane.b32.xlu0 %v3579, 48
      %v3777 = vpop.permute.xlu0 %3776
      %3778 = vrot.lane.b32.xlu0 %v3580, 48
      %v3779 = vpop.permute.xlu0 %3778
      %3780 = vrot.lane.b32.xlu0 %v3581, 48
      %v3781 = vpop.permute.xlu0 %3780
      %3798 = vrot.lane.b32.xlu0 %v3582, 56
      %v3799 = vpop.permute.xlu0 %3798
      %3800 = vrot.lane.b32.xlu0 %v3583, 56
      %v3801 = vpop.permute.xlu0 %3800
      %3802 = vrot.lane.b32.xlu0 %v3584, 56
      %v3803 = vpop.permute.xlu0 %3802
      %3804 = vrot.lane.b32.xlu0 %v3585, 56
      %v3805 = vpop.permute.xlu0 %3804
      %3806 = vrot.lane.b32.xlu0 %v3586, 56
      %v3807 = vpop.permute.xlu0 %3806
      %3808 = vrot.lane.b32.xlu0 %v3587, 56
      %v3809 = vpop.permute.xlu0 %3808
      %3810 = vrot.lane.b32.xlu0 %v3588, 56
      %v3811 = vpop.permute.xlu0 %3810
      %3812 = vrot.lane.b32.xlu0 %v3589, 56
      %v3813 = vpop.permute.xlu0 %3812
      %3830 = vrot.lane.b32.xlu0 %v3590, 64
      %v3831 = vpop.permute.xlu0 %3830
      %3832 = vrot.lane.b32.xlu0 %v3591, 64
      %v3833 = vpop.permute.xlu0 %3832
      %3834 = vrot.lane.b32.xlu0 %v3592, 64
      %v3835 = vpop.permute.xlu0 %3834
      %3836 = vrot.lane.b32.xlu0 %v3593, 64
      %v3837 = vpop.permute.xlu0 %3836
      %3838 = vrot.lane.b32.xlu0 %v3594, 64
      %v3839 = vpop.permute.xlu0 %3838
      %3840 = vrot.lane.b32.xlu0 %v3595, 64
      %v3841 = vpop.permute.xlu0 %3840
      %3842 = vrot.lane.b32.xlu0 %v3596, 64
      %v3843 = vpop.permute.xlu0 %3842
      %3844 = vrot.lane.b32.xlu0 %v3597, 64
      %v3845 = vpop.permute.xlu0 %3844
      %v3854 = vsel %vm1962, %v3526, %v3607
      %v3855 = vsel %vm1962, %v3527, %v3609
      %v3856 = vsel %vm1962, %v3528, %v3611
      %v3857 = vsel %vm1962, %v3529, %v3613
      %v3858 = vsel %vm1962, %v3530, %v3615
      %v3859 = vsel %vm1962, %v3531, %v3617
      %v3860 = vsel %vm1962, %v3532, %v3619
      %v3861 = vsel %vm1962, %v3533, %v3621
      %v3862 = vsel %vm2028, %v3854, %v3639
      %v3863 = vsel %vm2028, %v3855, %v3641
      %v3864 = vsel %vm2028, %v3856, %v3643
      %v3865 = vsel %vm2028, %v3857, %v3645
      %v3866 = vsel %vm2028, %v3858, %v3647
      %v3867 = vsel %vm2028, %v3859, %v3649
      %v3868 = vsel %vm2028, %v3860, %v3651
      %v3869 = vsel %vm2028, %v3861, %v3653
      %v3870 = vsel %vm2094, %v3862, %v3671
      %v3871 = vsel %vm2094, %v3863, %v3673
      %v3872 = vsel %vm2094, %v3864, %v3675
      %v3873 = vsel %vm2094, %v3865, %v3677
      %v3874 = vsel %vm2094, %v3866, %v3679
      %v3875 = vsel %vm2094, %v3867, %v3681
      %v3876 = vsel %vm2094, %v3868, %v3683
      %v3877 = vsel %vm2094, %v3869, %v3685
      %v3878 = vsel %vm2160, %v3870, %v3703
      %v3879 = vsel %vm2160, %v3871, %v3705
      %v3880 = vsel %vm2160, %v3872, %v3707
      %v3881 = vsel %vm2160, %v3873, %v3709
      %v3882 = vsel %vm2160, %v3874, %v3711
      %v3883 = vsel %vm2160, %v3875, %v3713
      %v3884 = vsel %vm2160, %v3876, %v3715
      %v3885 = vsel %vm2160, %v3877, %v3717
      %vm3886 = vcmask 326656
      %v3887 = vsel %vm3886, %v3878, %v3735
      %v3888 = vsel %vm3886, %v3879, %v3737
      %v3889 = vsel %vm3886, %v3880, %v3739
      %v3890 = vsel %vm3886, %v3881, %v3741
      %v3891 = vsel %vm3886, %v3882, %v3743
      %v3892 = vsel %vm3886, %v3883, %v3745
      %v3893 = vsel %vm3886, %v3884, %v3747
      %v3894 = vsel %vm3886, %v3885, %v3749
      %vm3895 = vcmask 392192
      %v3896 = vsel %vm3895, %v3887, %v3767
      %v3897 = vsel %vm3895, %v3888, %v3769
      %v3898 = vsel %vm3895, %v3889, %v3771
      %v3899 = vsel %vm3895, %v3890, %v3773
      %v3900 = vsel %vm3895, %v3891, %v3775
      %v3901 = vsel %vm3895, %v3892, %v3777
      %v3902 = vsel %vm3895, %v3893, %v3779
      %v3903 = vsel %vm3895, %v3894, %v3781
      %vm3904 = vcmask 457728
      %v3905 = vsel %vm3904, %v3896, %v3799
      %v3906 = vsel %vm3904, %v3897, %v3801
      %v3907 = vsel %vm3904, %v3898, %v3803
      %v3908 = vsel %vm3904, %v3899, %v3805
      %v3909 = vsel %vm3904, %v3900, %v3807
      %v3910 = vsel %vm3904, %v3901, %v3809
      %v3911 = vsel %vm3904, %v3902, %v3811
      %v3912 = vsel %vm3904, %v3903, %v3813
      %vm3913 = vcmask 523264
      %v3914 = vsel %vm3913, %v3905, %v3831
      %v3915 = vsel %vm3913, %v3906, %v3833
      %v3916 = vsel %vm3913, %v3907, %v3835
      %v3917 = vsel %vm3913, %v3908, %v3837
      %v3918 = vsel %vm3913, %v3909, %v3839
      %v3919 = vsel %vm3913, %v3910, %v3841
      %v3920 = vsel %vm3913, %v3911, %v3843
      %v3921 = vsel %vm3913, %v3912, %v3845
      %v3922 = vpack.c.bf16 %v3915, %v3914
      %v3923 = vpack.c.bf16 %v3917, %v3916
      %v3924 = vpack.c.bf16 %v3919, %v3918
      %v3925 = vpack.c.bf16 %v3921, %v3920
      %v3926 = vld [vmem:[%s3] sm:$0xf]
      %v3927 = vld [vmem:[%s3 + $0x4] sm:$0xf]
      %v3928 = vld [vmem:[%s3 + $0x8] sm:$0xf]
      %v3929 = vld [vmem:[%s3 + $0xc] sm:$0xf]
      %v3930 = vld [vmem:[%s3 + $0x10] sm:$0xf]
      %v3931 = vld [vmem:[%s3 + $0x14] sm:$0xf]
      %v3932 = vld [vmem:[%s3 + $0x18] sm:$0xf]
      %v3933 = vld [vmem:[%s3 + $0x1c] sm:$0xf]
      %v3934 = vld [vmem:[%s3 + $0x20] sm:$0xf]
      %v3935 = vld [vmem:[%s4] sm:$0x1]
      %v3937 = vlaneseq
      %v3938 = vshrl.u32 %v3937, 7
      %v3939 = vsub.s32 0, %v3938
      %v3940 = vrot.slane %v3935, %v3939
      %v3951 = vunpack.c.l.b16 %v3926
      %v3952 = vunpack.c.l.b16 %v3927
      %v3953 = vunpack.c.l.b16 %v3928
      %v3954 = vunpack.c.l.b16 %v3929
      %v3955 = vunpack.c.l.b16 %v3930
      %v3956 = vunpack.c.l.b16 %v3931
      %v3957 = vunpack.c.l.b16 %v3932
      %v3958 = vunpack.c.l.b16 %v3933
      %v3959 = vunpack.c.l.b16 %v3934
      %v3960 = vpack.c.b16 %v3952, %v3951
      %v3961 = vpack.c.b16 %v3954, %v3953
      %v3962 = vpack.c.b16 %v3956, %v3955
      %v3963 = vpack.c.b16 %v3958, %v3957
      %v3964 = vpack.c.b16 %v3959, %v3959
      %vm3969 = vcmask 588800
      %v3971 = vsel %vm3969, %v3922, 0
      %v3974 = vsel %vm3969, %v3923, 0
      %v3977 = vsel %vm3969, %v3924, 0
      %v3980 = vsel %vm3969, %v3925, 0
      %vm3982 = vcmask 1043456
      %v3984 = vsel %vm3982, %v3964, 0
      %3986 = vmatprep.subr.bf16.mxu0 0
      %3987 = vmatpush1.bf16.msra.mxu0 0
      %3988 = vmatprep.subr.bf16.mxu0 0
      %3989 = vmatpush1.bf16.msra.mxu0 0
      %3990 = vmatprep.subr.bf16.mxu0 0
      %3991 = vmatpush1.bf16.msra.mxu0 0
      %3992 = vmatprep.subr.bf16.mxu0 0
      %3993 = vmatpush1.bf16.msra.mxu0 %v3984
      %3994 = vmatprep.subr.bf16.mxu0 0
      %3995 = vmatpush1.bf16.msra.mxu0 %v3963
      %3996 = vmatprep.subr.bf16.mxu0 0
      %3997 = vmatpush1.bf16.msra.mxu0 %v3962
      %3998 = vmatprep.subr.bf16.mxu0 0
      %3999 = vmatpush1.bf16.msra.mxu0 %v3961
      %4000 = vmatprep.subr.bf16.mxu0 0
      %4001 = vmatpush1.bf16.msra.mxu0 %v3960
      %4002 = vmatprep.subr.bf16.mxu0 0
      %4003 = vmatpush2.bf16.msra.mxu0 0
      %4004 = vmatprep.subr.bf16.mxu0 0
      %4005 = vmatpush2.bf16.msra.mxu0 0
      %4006 = vmatprep.subr.bf16.mxu0 0
      %4007 = vmatpush2.bf16.msra.mxu0 0
      %4008 = vmatprep.subr.bf16.mxu0 0
      %4009 = vmatpush2.bf16.msra.mxu0 0
      %4010 = vmatprep.subr.bf16.mxu0 0
      %4011 = vmatpush2.bf16.msra.mxu0 0
      %4012 = vmatprep.subr.bf16.mxu0 0
      %4013 = vmatpush2.bf16.msra.mxu0 0
      %4014 = vmatprep.subr.bf16.mxu0 0
      %4015 = vmatpush2.bf16.msra.mxu0 0
      %4016 = vmatprep.subr.bf16.mxu0 0
      %4017 = vmatpush2.bf16.msra.mxu0 0
      %4018 = vmatprep.mubr.bf16.mxu0 0
      %4019 = vmatmul.mubr.bf16.gmra.mxu0 %v3971
      %v4020 = vpop.f32.mrf.mxu0
      %v4021 = vadd.f32 %v3940, %v4020
      %v4022 = vpop.f32.mrf.mxu0
      %v4023 = vpop.f32.mrf.mxu0
      %v4024 = vadd.f32 %v3940, %v4023
      %v4025 = vpop.f32.mrf.mxu0
      %4026 = vmatprep.mubr.bf16.mxu0 0
      %4027 = vmatmul.mubr.bf16.gmra.mxu0 %v3974
      %v4028 = vpop.f32.mrf.mxu0
      %v4029 = vadd.f32 %v3940, %v4028
      %v4030 = vpop.f32.mrf.mxu0
      %v4031 = vpop.f32.mrf.mxu0
      %v4032 = vadd.f32 %v3940, %v4031
      %v4033 = vpop.f32.mrf.mxu0
      %4034 = vmatprep.mubr.bf16.mxu0 0
      %4035 = vmatmul.mubr.bf16.gmra.mxu0 %v3977
      %v4036 = vpop.f32.mrf.mxu0
      %v4037 = vadd.f32 %v3940, %v4036
      %v4038 = vpop.f32.mrf.mxu0
      %v4039 = vpop.f32.mrf.mxu0
      %v4040 = vadd.f32 %v3940, %v4039
      %v4041 = vpop.f32.mrf.mxu0
      %4042 = vmatprep.mubr.bf16.mxu0 0
      %4043 = vmatmul.mubr.bf16.gmra.mxu0 %v3980
      %v4044 = vpop.f32.mrf.mxu0
      %v4045 = vadd.f32 %v3940, %v4044
      %v4046 = vpop.f32.mrf.mxu0
      %v4047 = vpop.f32.mrf.mxu0
      %v4048 = vadd.f32 %v3940, %v4047
      %v4049 = vpop.f32.mrf.mxu0
      %4050 = vdwg.mxu0
      %v4051 = vmax.f32 %v4021, 0.0
      %v4052 = vmax.f32 %v4024, 0.0
      %v4053 = vmax.f32 %v4029, 0.0
      %v4054 = vmax.f32 %v4032, 0.0
      %v4055 = vmax.f32 %v4037, 0.0
      %v4056 = vmax.f32 %v4040, 0.0
      %v4057 = vmax.f32 %v4045, 0.0
      %v4058 = vmax.f32 %v4048, 0.0
      %v4059 = vmax.f32 %v4051, %v4052
      %v4060 = vmax.f32 %v4053, %v4054
      %v4061 = vmax.f32 %v4055, %v4056
      %v4062 = vmax.f32 %v4057, %v4058
      %v4067 = vcombine.high %v4059, %v4059
      %v4069 = vunpack.c.l.s4 1983009808
      %v4070 = vunpack.c.0.s8 %v4069
      %v4071 = vlaneseq
      %v4072 = vshrl.u32 %v4071, 7
      %v4073 = vsub.s32 %v4070, %v4072
      %v4074 = vrot.slane %v4059, %v4073
      %v4076 = vunpack.c.l.s4 1983009808
      %v4077 = vunpack.c.0.s8 %v4076
      %v4078 = vlaneseq
      %v4079 = vshrl.u32 %v4078, 7
      %v4080 = vsub.s32 %v4077, %v4079
      %v4081 = vrot.slane %v4067, %v4080
      %v4082 = vcombine.high %v4074, %v4074
      %v4083 = vcombine.high %v4081, %v4081
      %v4084 = vcombine.high %v4060, %v4060
      %v4086 = vunpack.c.l.s4 1983009808
      %v4087 = vunpack.c.0.s8 %v4086
      %v4088 = vlaneseq
      %v4089 = vshrl.u32 %v4088, 7
      %v4090 = vsub.s32 %v4087, %v4089
      %v4091 = vrot.slane %v4060, %v4090
      %v4093 = vunpack.c.l.s4 1983009808
      %v4094 = vunpack.c.0.s8 %v4093
      %v4095 = vlaneseq
      %v4096 = vshrl.u32 %v4095, 7
      %v4097 = vsub.s32 %v4094, %v4096
      %v4098 = vrot.slane %v4084, %v4097
      %v4099 = vcombine.high %v4091, %v4091
      %v4100 = vcombine.high %v4098, %v4098
      %v4101 = vcombine.high %v4061, %v4061
      %v4103 = vunpack.c.l.s4 1983009808
      %v4104 = vunpack.c.0.s8 %v4103
      %v4105 = vlaneseq
      %v4106 = vshrl.u32 %v4105, 7
      %v4107 = vsub.s32 %v4104, %v4106
      %v4108 = vrot.slane %v4061, %v4107
      %v4110 = vunpack.c.l.s4 1983009808
      %v4111 = vunpack.c.0.s8 %v4110
      %v4112 = vlaneseq
      %v4113 = vshrl.u32 %v4112, 7
      %v4114 = vsub.s32 %v4111, %v4113
      %v4115 = vrot.slane %v4101, %v4114
      %v4116 = vcombine.high %v4108, %v4108
      %v4117 = vcombine.high %v4115, %v4115
      %v4118 = vcombine.high %v4062, %v4062
      %v4120 = vunpack.c.l.s4 1983009808
      %v4121 = vunpack.c.0.s8 %v4120
      %v4122 = vlaneseq
      %v4123 = vshrl.u32 %v4122, 7
      %v4124 = vsub.s32 %v4121, %v4123
      %v4125 = vrot.slane %v4062, %v4124
      %v4127 = vunpack.c.l.s4 1983009808
      %v4128 = vunpack.c.0.s8 %v4127
      %v4129 = vlaneseq
      %v4130 = vshrl.u32 %v4129, 7
      %v4131 = vsub.s32 %v4128, %v4130
      %v4132 = vrot.slane %v4118, %v4131
      %v4133 = vcombine.high %v4125, %v4125
      %v4134 = vcombine.high %v4132, %v4132
      %v4151 = vrot.slane %v4074, 7
      %v4152 = vrot.slane %v4151, 2
      %v4153 = vrot.slane %v4082, 7
      %v4154 = vrot.slane %v4153, 2
      %v4155 = vrot.slane %v4081, 7
      %v4156 = vrot.slane %v4155, 2
      %v4157 = vrot.slane %v4083, 7
      %v4158 = vrot.slane %v4157, 2
      %v4159 = vrot.slane %v4091, 7
      %v4160 = vrot.slane %v4159, 2
      %v4161 = vrot.slane %v4099, 7
      %v4162 = vrot.slane %v4161, 2
      %v4163 = vrot.slane %v4098, 7
      %v4164 = vrot.slane %v4163, 2
      %v4165 = vrot.slane %v4100, 7
      %v4166 = vrot.slane %v4165, 2
      %v4167 = vrot.slane %v4108, 7
      %v4168 = vrot.slane %v4167, 2
      %v4169 = vrot.slane %v4116, 7
      %v4170 = vrot.slane %v4169, 2
      %v4171 = vrot.slane %v4115, 7
      %v4172 = vrot.slane %v4171, 2
      %v4173 = vrot.slane %v4117, 7
      %v4174 = vrot.slane %v4173, 2
      %v4175 = vrot.slane %v4125, 7
      %v4176 = vrot.slane %v4175, 2
      %v4177 = vrot.slane %v4133, 7
      %v4178 = vrot.slane %v4177, 2
      %v4179 = vrot.slane %v4132, 7
      %v4180 = vrot.slane %v4179, 2
      %v4181 = vrot.slane %v4134, 7
      %v4182 = vrot.slane %v4181, 2
      %v4199 = vmax.f32 %v4074, %v4152
      %v4200 = vmax.f32 %v4082, %v4154
      %v4201 = vmax.f32 %v4081, %v4156
      %v4202 = vmax.f32 %v4083, %v4158
      %v4203 = vmax.f32 %v4091, %v4160
      %v4204 = vmax.f32 %v4099, %v4162
      %v4205 = vmax.f32 %v4098, %v4164
      %v4206 = vmax.f32 %v4100, %v4166
      %v4207 = vmax.f32 %v4108, %v4168
      %v4208 = vmax.f32 %v4116, %v4170
      %v4209 = vmax.f32 %v4115, %v4172
      %v4210 = vmax.f32 %v4117, %v4174
      %v4211 = vmax.f32 %v4125, %v4176
      %v4212 = vmax.f32 %v4133, %v4178
      %v4213 = vmax.f32 %v4132, %v4180
      %v4214 = vmax.f32 %v4134, %v4182
      %vm4215 = vcmask 128000
      %4216 = vst.msk [vmem:[#allocation2] sm:$0x3f] %vm4215, 0.0
      %4217 = vst.msk [vmem:[#allocation2 + $0x18] sm:$0x3f] %vm4215, 0.0
      %4218 = vst.msk [vmem:[#allocation2 + $0x30] sm:$0x3f] %vm4215, 0.0
      %4219 = vst.msk [vmem:[#allocation2 + $0x48] sm:$0x3f] %vm4215, 0.0
      %4220 = vst.msk [vmem:[#allocation2 + $0x60] sm:$0x3f] %vm4215, 0.0
      %4221 = vst.msk [vmem:[#allocation2 + $0x78] sm:$0x3f] %vm4215, 0.0
      %v4238 = vlaneseq
      %v4239 = vshrl.u32 %v4238, 7
      %v4240 = vsub.s32 0, %v4239
      %v4241 = vrot.slane %v4199, %v4240
      %v4242 = vlaneseq
      %v4243 = vshrl.u32 %v4242, 7
      %v4244 = vsub.s32 0, %v4243
      %v4245 = vrot.slane %v4200, %v4244
      %v4246 = vlaneseq
      %v4247 = vshrl.u32 %v4246, 7
      %v4248 = vsub.s32 0, %v4247
      %v4249 = vrot.slane %v4201, %v4248
      %v4250 = vlaneseq
      %v4251 = vshrl.u32 %v4250, 7
      %v4252 = vsub.s32 0, %v4251
      %v4253 = vrot.slane %v4202, %v4252
      %v4254 = vlaneseq
      %v4255 = vshrl.u32 %v4254, 7
      %v4256 = vsub.s32 0, %v4255
      %v4257 = vrot.slane %v4203, %v4256
      %v4258 = vlaneseq
      %v4259 = vshrl.u32 %v4258, 7
      %v4260 = vsub.s32 0, %v4259
      %v4261 = vrot.slane %v4204, %v4260
      %v4262 = vlaneseq
      %v4263 = vshrl.u32 %v4262, 7
      %v4264 = vsub.s32 0, %v4263
      %v4265 = vrot.slane %v4205, %v4264
      %v4266 = vlaneseq
      %v4267 = vshrl.u32 %v4266, 7
      %v4268 = vsub.s32 0, %v4267
      %v4269 = vrot.slane %v4206, %v4268
      %v4270 = vlaneseq
      %v4271 = vshrl.u32 %v4270, 7
      %v4272 = vsub.s32 0, %v4271
      %v4273 = vrot.slane %v4207, %v4272
      %v4274 = vlaneseq
      %v4275 = vshrl.u32 %v4274, 7
      %v4276 = vsub.s32 0, %v4275
      %v4277 = vrot.slane %v4208, %v4276
      %v4278 = vlaneseq
      %v4279 = vshrl.u32 %v4278, 7
      %v4280 = vsub.s32 0, %v4279
      %v4281 = vrot.slane %v4209, %v4280
      %v4282 = vlaneseq
      %v4283 = vshrl.u32 %v4282, 7
      %v4284 = vsub.s32 0, %v4283
      %v4285 = vrot.slane %v4210, %v4284
      %v4286 = vlaneseq
      %v4287 = vshrl.u32 %v4286, 7
      %v4288 = vsub.s32 0, %v4287
      %v4289 = vrot.slane %v4211, %v4288
      %v4290 = vlaneseq
      %v4291 = vshrl.u32 %v4290, 7
      %v4292 = vsub.s32 0, %v4291
      %v4293 = vrot.slane %v4212, %v4292
      %v4294 = vlaneseq
      %v4295 = vshrl.u32 %v4294, 7
      %v4296 = vsub.s32 0, %v4295
      %v4297 = vrot.slane %v4213, %v4296
      %v4298 = vlaneseq
      %v4299 = vshrl.u32 %v4298, 7
      %v4300 = vsub.s32 0, %v4299
      %v4301 = vrot.slane %v4214, %v4300
      %v4302 = vsel %vm3447, %v4245, %v4241
      %v4303 = vsel %vm3449, %v4249, %v4302
      %v4304 = vsel %vm3451, %v4253, %v4303
      %v4305 = vsel %vm3447, %v4261, %v4257
      %v4306 = vsel %vm3449, %v4265, %v4305
      %v4307 = vsel %vm3451, %v4269, %v4306
      %v4308 = vsel %vm3447, %v4277, %v4273
      %v4309 = vsel %vm3449, %v4281, %v4308
      %v4310 = vsel %vm3451, %v4285, %v4309
      %v4311 = vsel %vm3447, %v4293, %v4289
      %v4312 = vsel %vm3449, %v4297, %v4311
      %v4313 = vsel %vm3451, %v4301, %v4312
      %vm4318 = vcmask 125952
      %4319 = vst.msk [vmem:[%s584 + $0x1] sm:$0xf] %vm4318, %v4304
      %4320 = vst.msk [vmem:[%s584 + $0x19] sm:$0xf] %vm4318, %v4307
      %4321 = vst.msk [vmem:[%s584 + $0x31] sm:$0xf] %vm4318, %v4310
      %4322 = vst.msk [vmem:[%s584 + $0x49] sm:$0xf] %vm4318, %v4313
      %v4323 = vld [vmem:[#allocation2] sm:$0xf]
      %v4324 = vld [vmem:[#allocation2 + $0x18] sm:$0xf]
      %v4325 = vld [vmem:[#allocation2 + $0x30] sm:$0xf]
      %v4326 = vld [vmem:[#allocation2 + $0x48] sm:$0xf]
      %v4327 = vld [vmem:[#allocation2 + $0x1] sm:$0xf]
      %v4328 = vld [vmem:[#allocation2 + $0x19] sm:$0xf]
      %v4329 = vld [vmem:[#allocation2 + $0x31] sm:$0xf]
      %v4330 = vld [vmem:[#allocation2 + $0x49] sm:$0xf]
      %v4331 = vld [vmem:[#allocation2 + $0x2] sm:$0xf]
      %v4332 = vld [vmem:[#allocation2 + $0x1a] sm:$0xf]
      %v4333 = vld [vmem:[#allocation2 + $0x32] sm:$0xf]
      %v4334 = vld [vmem:[#allocation2 + $0x4a] sm:$0xf]
      %v4335 = vld [vmem:[%s584] sm:$0xf]
      %v4336 = vld [vmem:[%s584 + $0x18] sm:$0xf]
      %v4337 = vld [vmem:[%s584 + $0x30] sm:$0xf]
      %v4338 = vld [vmem:[%s584 + $0x48] sm:$0xf]
      %v4339 = vld [vmem:[%s584 + $0x1] sm:$0xf]
      %v4340 = vld [vmem:[%s584 + $0x19] sm:$0xf]
      %v4341 = vld [vmem:[%s584 + $0x31] sm:$0xf]
      %v4342 = vld [vmem:[%s584 + $0x49] sm:$0xf]
      %v4343 = vld [vmem:[%s584 + $0x2] sm:$0xf]
      %v4344 = vld [vmem:[%s584 + $0x1a] sm:$0xf]
      %v4345 = vld [vmem:[%s584 + $0x32] sm:$0xf]
      %v4346 = vld [vmem:[%s584 + $0x4a] sm:$0xf]
      %v4347 = vld [vmem:[%s809] sm:$0xf]
      %v4348 = vld [vmem:[%s809 + $0x18] sm:$0xf]
      %v4349 = vld [vmem:[%s809 + $0x30] sm:$0xf]
      %v4350 = vld [vmem:[%s809 + $0x48] sm:$0xf]
      %v4351 = vld [vmem:[%s809 + $0x1] sm:$0xf]
      %v4352 = vld [vmem:[%s809 + $0x19] sm:$0xf]
      %v4353 = vld [vmem:[%s809 + $0x31] sm:$0xf]
      %v4354 = vld [vmem:[%s809 + $0x49] sm:$0xf]
      %v4355 = vld [vmem:[%s809 + $0x2] sm:$0xf]
      %v4356 = vld [vmem:[%s809 + $0x1a] sm:$0xf]
      %v4357 = vld [vmem:[%s809 + $0x32] sm:$0xf]
      %v4358 = vld [vmem:[%s809 + $0x4a] sm:$0xf]
      %v4363 = vcombine.low %v4323, %v4324
      %v4364 = vcombine.low %v4325, %v4326
      %v4371 = vcombine.low %v4327, %v4328
      %v4372 = vcombine.low %v4329, %v4330
      %4373 = vrot.lane.b32.xlu0 %v4371, 16
      %v4374 = vpop.permute.xlu0 %4373
      %4375 = vrot.lane.b32.xlu0 %v4372, 16
      %v4376 = vpop.permute.xlu0 %4375
      %v4383 = vcombine.low %v4331, %v4332
      %v4384 = vcombine.low %v4333, %v4334
      %4385 = vrot.lane.b32.xlu0 %v4383, 32
      %v4386 = vpop.permute.xlu0 %4385
      %4387 = vrot.lane.b32.xlu0 %v4384, 32
      %v4388 = vpop.permute.xlu0 %4387
      %v4395 = vcombine.low %v4335, %v4336
      %v4396 = vcombine.low %v4337, %v4338
      %4397 = vrot.lane.b32.xlu0 %v4395, 48
      %v4398 = vpop.permute.xlu0 %4397
      %4399 = vrot.lane.b32.xlu0 %v4396, 48
      %v4400 = vpop.permute.xlu0 %4399
      %v4407 = vcombine.low %v4339, %v4340
      %v4408 = vcombine.low %v4341, %v4342
      %4409 = vrot.lane.b32.xlu0 %v4407, 64
      %v4410 = vpop.permute.xlu0 %4409
      %4411 = vrot.lane.b32.xlu0 %v4408, 64
      %v4412 = vpop.permute.xlu0 %4411
      %v4419 = vcombine.low %v4343, %v4344
      %v4420 = vcombine.low %v4345, %v4346
      %4421 = vrot.lane.b32.xlu0 %v4419, 80
      %v4422 = vpop.permute.xlu0 %4421
      %4423 = vrot.lane.b32.xlu0 %v4420, 80
      %v4424 = vpop.permute.xlu0 %4423
      %v4431 = vcombine.low %v4347, %v4348
      %v4432 = vcombine.low %v4349, %v4350
      %4433 = vrot.lane.b32.xlu0 %v4431, 96
      %v4434 = vpop.permute.xlu0 %4433
      %4435 = vrot.lane.b32.xlu0 %v4432, 96
      %v4436 = vpop.permute.xlu0 %4435
      %v4443 = vcombine.low %v4351, %v4352
      %v4444 = vcombine.low %v4353, %v4354
      %4445 = vrot.lane.b32.xlu0 %v4443, 112
      %v4446 = vpop.permute.xlu0 %4445
      %4447 = vrot.lane.b32.xlu0 %v4444, 112
      %v4448 = vpop.permute.xlu0 %4447
      %v4455 = vcombine.low %v4355, %v4356
      %v4456 = vcombine.low %v4357, %v4358
      %v4459 = vsel %vm2028, %v4363, %v4374
      %v4460 = vsel %vm2028, %v4364, %v4376
      %v4461 = vsel %vm2160, %v4459, %v4386
      %v4462 = vsel %vm2160, %v4460, %v4388
      %v4463 = vsel %vm3895, %v4461, %v4398
      %v4464 = vsel %vm3895, %v4462, %v4400
      %v4465 = vsel %vm3913, %v4463, %v4410
      %v4466 = vsel %vm3913, %v4464, %v4412
      %vm4467 = vcmask 654336
      %v4468 = vsel %vm4467, %v4465, %v4422
      %v4469 = vsel %vm4467, %v4466, %v4424
      %vm4470 = vcmask 785408
      %v4471 = vsel %vm4470, %v4468, %v4434
      %v4472 = vsel %vm4470, %v4469, %v4436
      %vm4473 = vcmask 916480
      %v4474 = vsel %vm4473, %v4471, %v4446
      %v4475 = vsel %vm4473, %v4472, %v4448
      %v4476 = vpack.c.bf16 %v4475, %v4474
      %v4477 = vpack.c.bf16 %v4456, %v4455
      %v4478 = vld [vmem:[%s5] sm:$0xf]
      %v4479 = vld [vmem:[%s5 + $0x4] sm:$0xf]
      %v4480 = vld [vmem:[%s5 + $0x8] sm:$0xf]
      %v4481 = vld [vmem:[%s5 + $0xc] sm:$0xf]
      %v4482 = vld [vmem:[%s5 + $0x10] sm:$0xf]
      %v4483 = vld [vmem:[%s5 + $0x14] sm:$0xf]
      %v4484 = vld [vmem:[%s5 + $0x18] sm:$0xf]
      %v4485 = vld [vmem:[%s5 + $0x1c] sm:$0xf]
      %v4486 = vld [vmem:[%s5 + $0x20] sm:$0xf]
      %v4487 = vld [vmem:[%s5 + $0x24] sm:$0xf]
      %v4488 = vld [vmem:[%s5 + $0x28] sm:$0xf]
      %v4489 = vld [vmem:[%s5 + $0x2c] sm:$0xf]
      %v4490 = vld [vmem:[%s5 + $0x30] sm:$0xf]
      %v4491 = vld [vmem:[%s5 + $0x34] sm:$0xf]
      %v4492 = vld [vmem:[%s5 + $0x38] sm:$0xf]
      %v4493 = vld [vmem:[%s5 + $0x3c] sm:$0xf]
      %v4494 = vld [vmem:[%s5 + $0x40] sm:$0xf]
      %v4495 = vld [vmem:[%s5 + $0x44] sm:$0xf]
      %v4496 = vld [vmem:[%s6] sm:$0x1]
      %v4498 = vlaneseq
      %v4499 = vshrl.u32 %v4498, 7
      %v4500 = vsub.s32 0, %v4499
      %v4501 = vrot.slane %v4496, %v4500
      %v4521 = vunpack.c.l.b16 %v4478
      %v4522 = vunpack.c.l.b16 %v4479
      %v4523 = vunpack.c.l.b16 %v4480
      %v4524 = vunpack.c.l.b16 %v4481
      %v4525 = vunpack.c.l.b16 %v4482
      %v4526 = vunpack.c.l.b16 %v4483
      %v4527 = vunpack.c.l.b16 %v4484
      %v4528 = vunpack.c.l.b16 %v4485
      %v4529 = vunpack.c.l.b16 %v4486
      %v4530 = vunpack.c.l.b16 %v4487
      %v4531 = vunpack.c.l.b16 %v4488
      %v4532 = vunpack.c.l.b16 %v4489
      %v4533 = vunpack.c.l.b16 %v4490
      %v4534 = vunpack.c.l.b16 %v4491
      %v4535 = vunpack.c.l.b16 %v4492
      %v4536 = vunpack.c.l.b16 %v4493
      %v4537 = vunpack.c.l.b16 %v4494
      %v4538 = vunpack.c.l.b16 %v4495
      %v4539 = vpack.c.b16 %v4522, %v4521
      %v4540 = vpack.c.b16 %v4524, %v4523
      %v4541 = vpack.c.b16 %v4526, %v4525
      %v4542 = vpack.c.b16 %v4528, %v4527
      %v4543 = vpack.c.b16 %v4530, %v4529
      %v4544 = vpack.c.b16 %v4532, %v4531
      %v4545 = vpack.c.b16 %v4534, %v4533
      %v4546 = vpack.c.b16 %v4536, %v4535
      %v4547 = vpack.c.b16 %v4538, %v4537
      %v4558 = vsel %vm2028, %v4477, 0
      %4560 = vmatprep.subr.bf16.mxu0 0
      %4561 = vmatpush1.bf16.msra.mxu0 %v4546
      %4562 = vmatprep.subr.bf16.mxu0 0
      %4563 = vmatpush1.bf16.msra.mxu0 %v4545
      %4564 = vmatprep.subr.bf16.mxu0 0
      %4565 = vmatpush1.bf16.msra.mxu0 %v4544
      %4566 = vmatprep.subr.bf16.mxu0 0
      %4567 = vmatpush1.bf16.msra.mxu0 %v4543
      %4568 = vmatprep.subr.bf16.mxu0 0
      %4569 = vmatpush1.bf16.msra.mxu0 %v4542
      %4570 = vmatprep.subr.bf16.mxu0 0
      %4571 = vmatpush1.bf16.msra.mxu0 %v4541
      %4572 = vmatprep.subr.bf16.mxu0 0
      %4573 = vmatpush1.bf16.msra.mxu0 %v4540
      %4574 = vmatprep.subr.bf16.mxu0 0
      %4575 = vmatpush1.bf16.msra.mxu0 %v4539
      %4576 = vmatprep.subr.bf16.mxu0 0
      %4577 = vmatpush2.bf16.msra.mxu0 0
      %4578 = vmatprep.subr.bf16.mxu0 0
      %4579 = vmatpush2.bf16.msra.mxu0 0
      %4580 = vmatprep.subr.bf16.mxu0 0
      %4581 = vmatpush2.bf16.msra.mxu0 0
      %4582 = vmatprep.subr.bf16.mxu0 0
      %4583 = vmatpush2.bf16.msra.mxu0 0
      %4584 = vmatprep.subr.bf16.mxu0 0
      %4585 = vmatpush2.bf16.msra.mxu0 0
      %4586 = vmatprep.subr.bf16.mxu0 0
      %4587 = vmatpush2.bf16.msra.mxu0 0
      %4588 = vmatprep.subr.bf16.mxu0 0
      %4589 = vmatpush2.bf16.msra.mxu0 0
      %4590 = vmatprep.subr.bf16.mxu0 0
      %4591 = vmatpush2.bf16.msra.mxu0 %v4547
      %4592 = vmatprep.mubr.bf16.mxu0 %v4558
      %4593 = vmatmul.mubr.bf16.gmra.mxu0 %v4476
      %v4594 = vpop.f32.mrf.mxu0
      %v4595 = vadd.f32 %v4501, %v4594
      %v4596 = vpop.f32.mrf.mxu0
      %v4597 = vpop.f32.mrf.mxu0
      %v4598 = vadd.f32 %v4501, %v4597
      %v4599 = vpop.f32.mrf.mxu0
      %4600 = vdwg.mxu0
      %v4601 = vmax.f32 %v4595, 0.0
      %v4602 = vmax.f32 %v4598, 0.0
      %v4605 = vcombine.high %v4601, %v4601
      %v4606 = vcombine.high %v4602, %v4602
      %v4608 = vunpack.c.l.s4 1966171168
      %v4609 = vunpack.c.0.s8 %v4608
      %v4610 = vlaneseq
      %v4611 = vshrl.u32 %v4610, 7
      %v4612 = vsub.s32 %v4609, %v4611
      %v4613 = vrot.slane %v4601, %v4612
      %v4614 = vcombine.high %v4613, %v4613
      %v4616 = vunpack.c.l.s4 1966171168
      %v4617 = vunpack.c.0.s8 %v4616
      %v4618 = vlaneseq
      %v4619 = vshrl.u32 %v4618, 7
      %v4620 = vsub.s32 %v4617, %v4619
      %v4621 = vrot.slane %v4613, %v4620
      %v4623 = vunpack.c.l.s4 1966171168
      %v4624 = vunpack.c.0.s8 %v4623
      %v4625 = vlaneseq
      %v4626 = vshrl.u32 %v4625, 7
      %v4627 = vsub.s32 %v4624, %v4626
      %v4628 = vrot.slane %v4614, %v4627
      %v4629 = vcombine.high %v4621, %v4621
      %v4630 = vcombine.high %v4628, %v4628
      %v4632 = vunpack.c.l.s4 1966171168
      %v4633 = vunpack.c.0.s8 %v4632
      %v4634 = vlaneseq
      %v4635 = vshrl.u32 %v4634, 7
      %v4636 = vsub.s32 %v4633, %v4635
      %v4637 = vrot.slane %v4605, %v4636
      %v4638 = vcombine.high %v4637, %v4637
      %v4640 = vunpack.c.l.s4 1966171168
      %v4641 = vunpack.c.0.s8 %v4640
      %v4642 = vlaneseq
      %v4643 = vshrl.u32 %v4642, 7
      %v4644 = vsub.s32 %v4641, %v4643
      %v4645 = vrot.slane %v4637, %v4644
      %v4647 = vunpack.c.l.s4 1966171168
      %v4648 = vunpack.c.0.s8 %v4647
      %v4649 = vlaneseq
      %v4650 = vshrl.u32 %v4649, 7
      %v4651 = vsub.s32 %v4648, %v4650
      %v4652 = vrot.slane %v4638, %v4651
      %v4653 = vcombine.high %v4645, %v4645
      %v4654 = vcombine.high %v4652, %v4652
      %v4656 = vunpack.c.l.s4 1966171168
      %v4657 = vunpack.c.0.s8 %v4656
      %v4658 = vlaneseq
      %v4659 = vshrl.u32 %v4658, 7
      %v4660 = vsub.s32 %v4657, %v4659
      %v4661 = vrot.slane %v4602, %v4660
      %v4662 = vcombine.high %v4661, %v4661
      %v4664 = vunpack.c.l.s4 1966171168
      %v4665 = vunpack.c.0.s8 %v4664
      %v4666 = vlaneseq
      %v4667 = vshrl.u32 %v4666, 7
      %v4668 = vsub.s32 %v4665, %v4667
      %v4669 = vrot.slane %v4661, %v4668
      %v4671 = vunpack.c.l.s4 1966171168
      %v4672 = vunpack.c.0.s8 %v4671
      %v4673 = vlaneseq
      %v4674 = vshrl.u32 %v4673, 7
      %v4675 = vsub.s32 %v4672, %v4674
      %v4676 = vrot.slane %v4662, %v4675
      %v4677 = vcombine.high %v4669, %v4669
      %v4678 = vcombine.high %v4676, %v4676
      %v4680 = vunpack.c.l.s4 1966171168
      %v4681 = vunpack.c.0.s8 %v4680
      %v4682 = vlaneseq
      %v4683 = vshrl.u32 %v4682, 7
      %v4684 = vsub.s32 %v4681, %v4683
      %v4685 = vrot.slane %v4606, %v4684
      %v4686 = vcombine.high %v4685, %v4685
      %v4688 = vunpack.c.l.s4 1966171168
      %v4689 = vunpack.c.0.s8 %v4688
      %v4690 = vlaneseq
      %v4691 = vshrl.u32 %v4690, 7
      %v4692 = vsub.s32 %v4689, %v4691
      %v4693 = vrot.slane %v4685, %v4692
      %v4695 = vunpack.c.l.s4 1966171168
      %v4696 = vunpack.c.0.s8 %v4695
      %v4697 = vlaneseq
      %v4698 = vshrl.u32 %v4697, 7
      %v4699 = vsub.s32 %v4696, %v4698
      %v4700 = vrot.slane %v4686, %v4699
      %v4701 = vcombine.high %v4693, %v4693
      %v4702 = vcombine.high %v4700, %v4700
      %v4703 = vlaneseq
      %v4704 = vshrl.u32 %v4703, 7
      %v4705 = vsub.s32 0, %v4704
      %v4706 = vrot.slane %v4621, %v4705
      %v4707 = vlaneseq
      %v4708 = vshrl.u32 %v4707, 7
      %v4709 = vsub.s32 0, %v4708
      %v4710 = vrot.slane %v4628, %v4709
      %v4711 = vlaneseq
      %v4712 = vshrl.u32 %v4711, 7
      %v4713 = vsub.s32 0, %v4712
      %v4714 = vrot.slane %v4629, %v4713
      %v4715 = vlaneseq
      %v4716 = vshrl.u32 %v4715, 7
      %v4717 = vsub.s32 0, %v4716
      %v4718 = vrot.slane %v4630, %v4717
      %v4719 = vlaneseq
      %v4720 = vshrl.u32 %v4719, 7
      %v4721 = vsub.s32 0, %v4720
      %v4722 = vrot.slane %v4645, %v4721
      %v4723 = vlaneseq
      %v4724 = vshrl.u32 %v4723, 7
      %v4725 = vsub.s32 0, %v4724
      %v4726 = vrot.slane %v4652, %v4725
      %v4727 = vlaneseq
      %v4728 = vshrl.u32 %v4727, 7
      %v4729 = vsub.s32 0, %v4728
      %v4730 = vrot.slane %v4653, %v4729
      %v4731 = vlaneseq
      %v4732 = vshrl.u32 %v4731, 7
      %v4733 = vsub.s32 0, %v4732
      %v4734 = vrot.slane %v4654, %v4733
      %v4735 = vlaneseq
      %v4736 = vshrl.u32 %v4735, 7
      %v4737 = vsub.s32 0, %v4736
      %v4738 = vrot.slane %v4669, %v4737
      %v4739 = vlaneseq
      %v4740 = vshrl.u32 %v4739, 7
      %v4741 = vsub.s32 0, %v4740
      %v4742 = vrot.slane %v4676, %v4741
      %v4743 = vlaneseq
      %v4744 = vshrl.u32 %v4743, 7
      %v4745 = vsub.s32 0, %v4744
      %v4746 = vrot.slane %v4677, %v4745
      %v4747 = vlaneseq
      %v4748 = vshrl.u32 %v4747, 7
      %v4749 = vsub.s32 0, %v4748
      %v4750 = vrot.slane %v4678, %v4749
      %v4751 = vlaneseq
      %v4752 = vshrl.u32 %v4751, 7
      %v4753 = vsub.s32 0, %v4752
      %v4754 = vrot.slane %v4693, %v4753
      %v4755 = vlaneseq
      %v4756 = vshrl.u32 %v4755, 7
      %v4757 = vsub.s32 0, %v4756
      %v4758 = vrot.slane %v4700, %v4757
      %v4759 = vlaneseq
      %v4760 = vshrl.u32 %v4759, 7
      %v4761 = vsub.s32 0, %v4760
      %v4762 = vrot.slane %v4701, %v4761
      %v4763 = vlaneseq
      %v4764 = vshrl.u32 %v4763, 7
      %v4765 = vsub.s32 0, %v4764
      %v4766 = vrot.slane %v4702, %v4765
      %4767 = vst.msk [vmem:[#allocation2] sm:$0xff] %vm2160, 0.0
      %vm4768 = vcmask 254976
      %4769 = vst.msk [vmem:[#allocation2 + $0x8] sm:$0x3] %vm4768, 0.0
      %4770 = vst.msk [vmem:[#allocation2 + $0x18] sm:$0xff] %vm2160, 0.0
      %4771 = vst.msk [vmem:[#allocation2 + $0x20] sm:$0x3] %vm4768, 0.0
      %4772 = vst.msk [vmem:[#allocation2 + $0x30] sm:$0xff] %vm2160, 0.0
      %4773 = vst.msk [vmem:[#allocation2 + $0x38] sm:$0x3] %vm4768, 0.0
      %4774 = vst.msk [vmem:[#allocation2 + $0x48] sm:$0xff] %vm2160, 0.0
      %4775 = vst.msk [vmem:[#allocation2 + $0x50] sm:$0x3] %vm4768, 0.0
      %4776 = vst.msk [vmem:[#allocation2 + $0x60] sm:$0xff] %vm2160, 0.0
      %4777 = vst.msk [vmem:[#allocation2 + $0x68] sm:$0x3] %vm4768, 0.0
      %4778 = vst.msk [vmem:[#allocation2 + $0x78] sm:$0xff] %vm2160, 0.0
      %4779 = vst.msk [vmem:[#allocation2 + $0x80] sm:$0x3] %vm4768, 0.0
      %4780 = vst.msk [vmem:[#allocation2 + $0x90] sm:$0xff] %vm2160, 0.0
      %4781 = vst.msk [vmem:[#allocation2 + $0x98] sm:$0x3] %vm4768, 0.0
      %4782 = vst.msk [vmem:[#allocation2 + $0xa8] sm:$0xff] %vm2160, 0.0
      %4783 = vst.msk [vmem:[#allocation2 + $0xb0] sm:$0x3] %vm4768, 0.0
      %4784 = vst.msk [vmem:[#allocation2 + $0xc0] sm:$0xff] %vm2160, 0.0
      %4785 = vst.msk [vmem:[#allocation2 + $0xc8] sm:$0x3] %vm4768, 0.0
      %4786 = vst.msk [vmem:[#allocation2 + $0xd8] sm:$0xff] %vm2160, 0.0
      %4787 = vst.msk [vmem:[#allocation2 + $0xe0] sm:$0x3] %vm4768, 0.0
      %v4788 = vcombine.low %v4706, %v4710
      %v4789 = vcombine.low %v4714, %v4718
      %v4791 = vunpack.c.l.s4 1983009808
      %v4792 = vunpack.c.0.s8 %v4791
      %v4793 = vlaneseq
      %v4794 = vshrl.u32 %v4793, 7
      %v4795 = vsub.s32 %v4792, %v4794
      %v4796 = vrot.slane %v4788, %v4795
      %v4798 = vunpack.c.l.s4 1983009808
      %v4799 = vunpack.c.0.s8 %v4798
      %v4800 = vlaneseq
      %v4801 = vshrl.u32 %v4800, 7
      %v4802 = vsub.s32 %v4799, %v4801
      %v4803 = vrot.slane %v4789, %v4802
      %v4804 = vcombine.low %v4796, %v4803
      %v4805 = vcombine.low %v4722, %v4726
      %v4806 = vcombine.low %v4730, %v4734
      %v4808 = vunpack.c.l.s4 1983009808
      %v4809 = vunpack.c.0.s8 %v4808
      %v4810 = vlaneseq
      %v4811 = vshrl.u32 %v4810, 7
      %v4812 = vsub.s32 %v4809, %v4811
      %v4813 = vrot.slane %v4805, %v4812
      %v4815 = vunpack.c.l.s4 1983009808
      %v4816 = vunpack.c.0.s8 %v4815
      %v4817 = vlaneseq
      %v4818 = vshrl.u32 %v4817, 7
      %v4819 = vsub.s32 %v4816, %v4818
      %v4820 = vrot.slane %v4806, %v4819
      %v4821 = vcombine.low %v4813, %v4820
      %v4822 = vcombine.low %v4738, %v4742
      %v4823 = vcombine.low %v4746, %v4750
      %v4825 = vunpack.c.l.s4 1983009808
      %v4826 = vunpack.c.0.s8 %v4825
      %v4827 = vlaneseq
      %v4828 = vshrl.u32 %v4827, 7
      %v4829 = vsub.s32 %v4826, %v4828
      %v4830 = vrot.slane %v4822, %v4829
      %v4832 = vunpack.c.l.s4 1983009808
      %v4833 = vunpack.c.0.s8 %v4832
      %v4834 = vlaneseq
      %v4835 = vshrl.u32 %v4834, 7
      %v4836 = vsub.s32 %v4833, %v4835
      %v4837 = vrot.slane %v4823, %v4836
      %v4838 = vcombine.low %v4830, %v4837
      %v4839 = vcombine.low %v4754, %v4758
      %v4840 = vcombine.low %v4762, %v4766
      %v4842 = vunpack.c.l.s4 1983009808
      %v4843 = vunpack.c.0.s8 %v4842
      %v4844 = vlaneseq
      %v4845 = vshrl.u32 %v4844, 7
      %v4846 = vsub.s32 %v4843, %v4845
      %v4847 = vrot.slane %v4839, %v4846
      %v4849 = vunpack.c.l.s4 1983009808
      %v4850 = vunpack.c.0.s8 %v4849
      %v4851 = vlaneseq
      %v4852 = vshrl.u32 %v4851, 7
      %v4853 = vsub.s32 %v4850, %v4852
      %v4854 = vrot.slane %v4840, %v4853
      %v4855 = vcombine.low %v4847, %v4854
      %4860 = vst.msk [vmem:[%s584 + $0x1] sm:$0xff] %vm2160, %v4804
      %4861 = vst.msk [vmem:[%s584 + $0x19] sm:$0xff] %vm2160, %v4804
      %4862 = vst.msk [vmem:[%s584 + $0x31] sm:$0xff] %vm2160, %v4821
      %4863 = vst.msk [vmem:[%s584 + $0x49] sm:$0xff] %vm2160, %v4821
      %4864 = vst.msk [vmem:[%s584 + $0x61] sm:$0xff] %vm2160, %v4838
      %4865 = vst.msk [vmem:[%s584 + $0x79] sm:$0xff] %vm2160, %v4838
      %4866 = vst.msk [vmem:[%s584 + $0x91] sm:$0xff] %vm2160, %v4855
      %4867 = vst.msk [vmem:[%s584 + $0xa9] sm:$0xff] %vm2160, %v4855
      %v4868 = vld [vmem:[#allocation2] sm:$0xff]
      %v4869 = vld [vmem:[#allocation2 + $0x18] sm:$0xff]
      %v4870 = vld [vmem:[#allocation2 + $0x30] sm:$0xff]
      %v4871 = vld [vmem:[#allocation2 + $0x48] sm:$0xff]
      %v4872 = vld [vmem:[#allocation2 + $0x60] sm:$0xff]
      %v4873 = vld [vmem:[#allocation2 + $0x78] sm:$0xff]
      %v4874 = vld [vmem:[#allocation2 + $0x90] sm:$0xff]
      %v4875 = vld [vmem:[#allocation2 + $0xa8] sm:$0xff]
      %v4876 = vld [vmem:[#allocation2 + $0x1] sm:$0xff]
      %v4877 = vld [vmem:[#allocation2 + $0x19] sm:$0xff]
      %v4878 = vld [vmem:[#allocation2 + $0x31] sm:$0xff]
      %v4879 = vld [vmem:[#allocation2 + $0x49] sm:$0xff]
      %v4880 = vld [vmem:[#allocation2 + $0x61] sm:$0xff]
      %v4881 = vld [vmem:[#allocation2 + $0x79] sm:$0xff]
      %v4882 = vld [vmem:[#allocation2 + $0x91] sm:$0xff]
      %v4883 = vld [vmem:[#allocation2 + $0xa9] sm:$0xff]
      %v4884 = vld [vmem:[#allocation2 + $0x2] sm:$0xff]
      %v4885 = vld [vmem:[#allocation2 + $0x1a] sm:$0xff]
      %v4886 = vld [vmem:[#allocation2 + $0x32] sm:$0xff]
      %v4887 = vld [vmem:[#allocation2 + $0x4a] sm:$0xff]
      %v4888 = vld [vmem:[#allocation2 + $0x62] sm:$0xff]
      %v4889 = vld [vmem:[#allocation2 + $0x7a] sm:$0xff]
      %v4890 = vld [vmem:[#allocation2 + $0x92] sm:$0xff]
      %v4891 = vld [vmem:[#allocation2 + $0xaa] sm:$0xff]
      %v4892 = vld [vmem:[%s584] sm:$0xff]
      %v4893 = vld [vmem:[%s584 + $0x18] sm:$0xff]
      %v4894 = vld [vmem:[%s584 + $0x30] sm:$0xff]
      %v4895 = vld [vmem:[%s584 + $0x48] sm:$0xff]
      %v4896 = vld [vmem:[%s584 + $0x60] sm:$0xff]
      %v4897 = vld [vmem:[%s584 + $0x78] sm:$0xff]
      %v4898 = vld [vmem:[%s584 + $0x90] sm:$0xff]
      %v4899 = vld [vmem:[%s584 + $0xa8] sm:$0xff]
      %v4900 = vld [vmem:[%s584 + $0x1] sm:$0xff]
      %v4901 = vld [vmem:[%s584 + $0x19] sm:$0xff]
      %v4902 = vld [vmem:[%s584 + $0x31] sm:$0xff]
      %v4903 = vld [vmem:[%s584 + $0x49] sm:$0xff]
      %v4904 = vld [vmem:[%s584 + $0x61] sm:$0xff]
      %v4905 = vld [vmem:[%s584 + $0x79] sm:$0xff]
      %v4906 = vld [vmem:[%s584 + $0x91] sm:$0xff]
      %v4907 = vld [vmem:[%s584 + $0xa9] sm:$0xff]
      %v4908 = vld [vmem:[%s584 + $0x2] sm:$0xff]
      %v4909 = vld [vmem:[%s584 + $0x1a] sm:$0xff]
      %v4910 = vld [vmem:[%s584 + $0x32] sm:$0xff]
      %v4911 = vld [vmem:[%s584 + $0x4a] sm:$0xff]
      %v4912 = vld [vmem:[%s584 + $0x62] sm:$0xff]
      %v4913 = vld [vmem:[%s584 + $0x7a] sm:$0xff]
      %v4914 = vld [vmem:[%s584 + $0x92] sm:$0xff]
      %v4915 = vld [vmem:[%s584 + $0xaa] sm:$0xff]
      %v4916 = vld [vmem:[%s809] sm:$0xff]
      %v4917 = vld [vmem:[%s809 + $0x18] sm:$0xff]
      %v4918 = vld [vmem:[%s809 + $0x30] sm:$0xff]
      %v4919 = vld [vmem:[%s809 + $0x48] sm:$0xff]
      %v4920 = vld [vmem:[%s809 + $0x60] sm:$0xff]
      %v4921 = vld [vmem:[%s809 + $0x78] sm:$0xff]
      %v4922 = vld [vmem:[%s809 + $0x90] sm:$0xff]
      %v4923 = vld [vmem:[%s809 + $0xa8] sm:$0xff]
      %v4924 = vld [vmem:[%s809 + $0x1] sm:$0xff]
      %v4925 = vld [vmem:[%s809 + $0x19] sm:$0xff]
      %v4926 = vld [vmem:[%s809 + $0x31] sm:$0xff]
      %v4927 = vld [vmem:[%s809 + $0x49] sm:$0xff]
      %v4928 = vld [vmem:[%s809 + $0x61] sm:$0xff]
      %v4929 = vld [vmem:[%s809 + $0x79] sm:$0xff]
      %v4930 = vld [vmem:[%s809 + $0x91] sm:$0xff]
      %v4931 = vld [vmem:[%s809 + $0xa9] sm:$0xff]
      %v4932 = vld [vmem:[%s809 + $0x2] sm:$0xff]
      %v4933 = vld [vmem:[%s809 + $0x1a] sm:$0xff]
      %v4934 = vld [vmem:[%s809 + $0x32] sm:$0xff]
      %v4935 = vld [vmem:[%s809 + $0x4a] sm:$0xff]
      %v4936 = vld [vmem:[%s809 + $0x62] sm:$0xff]
      %v4937 = vld [vmem:[%s809 + $0x7a] sm:$0xff]
      %v4938 = vld [vmem:[%s809 + $0x92] sm:$0xff]
      %v4939 = vld [vmem:[%s809 + $0xaa] sm:$0xff]
      %4948 = vrot.lane.b32.xlu0 %v4876, 32
      %v4949 = vpop.permute.xlu0 %4948
      %4950 = vrot.lane.b32.xlu0 %v4877, 32
      %v4951 = vpop.permute.xlu0 %4950
      %4952 = vrot.lane.b32.xlu0 %v4878, 32
      %v4953 = vpop.permute.xlu0 %4952
      %4954 = vrot.lane.b32.xlu0 %v4879, 32
      %v4955 = vpop.permute.xlu0 %4954
      %4956 = vrot.lane.b32.xlu0 %v4880, 32
      %v4957 = vpop.permute.xlu0 %4956
      %4958 = vrot.lane.b32.xlu0 %v4881, 32
      %v4959 = vpop.permute.xlu0 %4958
      %4960 = vrot.lane.b32.xlu0 %v4882, 32
      %v4961 = vpop.permute.xlu0 %4960
      %4962 = vrot.lane.b32.xlu0 %v4883, 32
      %v4963 = vpop.permute.xlu0 %4962
      %4980 = vrot.lane.b32.xlu0 %v4884, 64
      %v4981 = vpop.permute.xlu0 %4980
      %4982 = vrot.lane.b32.xlu0 %v4885, 64
      %v4983 = vpop.permute.xlu0 %4982
      %4984 = vrot.lane.b32.xlu0 %v4886, 64
      %v4985 = vpop.permute.xlu0 %4984
      %4986 = vrot.lane.b32.xlu0 %v4887, 64
      %v4987 = vpop.permute.xlu0 %4986
      %4988 = vrot.lane.b32.xlu0 %v4888, 64
      %v4989 = vpop.permute.xlu0 %4988
      %4990 = vrot.lane.b32.xlu0 %v4889, 64
      %v4991 = vpop.permute.xlu0 %4990
      %4992 = vrot.lane.b32.xlu0 %v4890, 64
      %v4993 = vpop.permute.xlu0 %4992
      %4994 = vrot.lane.b32.xlu0 %v4891, 64
      %v4995 = vpop.permute.xlu0 %4994
      %5012 = vrot.lane.b32.xlu0 %v4892, 96
      %v5013 = vpop.permute.xlu0 %5012
      %5014 = vrot.lane.b32.xlu0 %v4893, 96
      %v5015 = vpop.permute.xlu0 %5014
      %5016 = vrot.lane.b32.xlu0 %v4894, 96
      %v5017 = vpop.permute.xlu0 %5016
      %5018 = vrot.lane.b32.xlu0 %v4895, 96
      %v5019 = vpop.permute.xlu0 %5018
      %5020 = vrot.lane.b32.xlu0 %v4896, 96
      %v5021 = vpop.permute.xlu0 %5020
      %5022 = vrot.lane.b32.xlu0 %v4897, 96
      %v5023 = vpop.permute.xlu0 %5022
      %5024 = vrot.lane.b32.xlu0 %v4898, 96
      %v5025 = vpop.permute.xlu0 %5024
      %5026 = vrot.lane.b32.xlu0 %v4899, 96
      %v5027 = vpop.permute.xlu0 %5026
      %5044 = vrot.lane.b32.xlu0 %v4908, 32
      %v5045 = vpop.permute.xlu0 %5044
      %5046 = vrot.lane.b32.xlu0 %v4909, 32
      %v5047 = vpop.permute.xlu0 %5046
      %5048 = vrot.lane.b32.xlu0 %v4910, 32
      %v5049 = vpop.permute.xlu0 %5048
      %5050 = vrot.lane.b32.xlu0 %v4911, 32
      %v5051 = vpop.permute.xlu0 %5050
      %5052 = vrot.lane.b32.xlu0 %v4912, 32
      %v5053 = vpop.permute.xlu0 %5052
      %5054 = vrot.lane.b32.xlu0 %v4913, 32
      %v5055 = vpop.permute.xlu0 %5054
      %5056 = vrot.lane.b32.xlu0 %v4914, 32
      %v5057 = vpop.permute.xlu0 %5056
      %5058 = vrot.lane.b32.xlu0 %v4915, 32
      %v5059 = vpop.permute.xlu0 %5058
      %5076 = vrot.lane.b32.xlu0 %v4916, 64
      %v5077 = vpop.permute.xlu0 %5076
      %5078 = vrot.lane.b32.xlu0 %v4917, 64
      %v5079 = vpop.permute.xlu0 %5078
      %5080 = vrot.lane.b32.xlu0 %v4918, 64
      %v5081 = vpop.permute.xlu0 %5080
      %5082 = vrot.lane.b32.xlu0 %v4919, 64
      %v5083 = vpop.permute.xlu0 %5082
      %5084 = vrot.lane.b32.xlu0 %v4920, 64
      %v5085 = vpop.permute.xlu0 %5084
      %5086 = vrot.lane.b32.xlu0 %v4921, 64
      %v5087 = vpop.permute.xlu0 %5086
      %5088 = vrot.lane.b32.xlu0 %v4922, 64
      %v5089 = vpop.permute.xlu0 %5088
      %5090 = vrot.lane.b32.xlu0 %v4923, 64
      %v5091 = vpop.permute.xlu0 %5090
      %5108 = vrot.lane.b32.xlu0 %v4924, 96
      %v5109 = vpop.permute.xlu0 %5108
      %5110 = vrot.lane.b32.xlu0 %v4925, 96
      %v5111 = vpop.permute.xlu0 %5110
      %5112 = vrot.lane.b32.xlu0 %v4926, 96
      %v5113 = vpop.permute.xlu0 %5112
      %5114 = vrot.lane.b32.xlu0 %v4927, 96
      %v5115 = vpop.permute.xlu0 %5114
      %5116 = vrot.lane.b32.xlu0 %v4928, 96
      %v5117 = vpop.permute.xlu0 %5116
      %5118 = vrot.lane.b32.xlu0 %v4929, 96
      %v5119 = vpop.permute.xlu0 %5118
      %5120 = vrot.lane.b32.xlu0 %v4930, 96
      %v5121 = vpop.permute.xlu0 %5120
      %5122 = vrot.lane.b32.xlu0 %v4931, 96
      %v5123 = vpop.permute.xlu0 %5122
      %v5132 = vsel %vm2160, %v4868, %v4949
      %v5133 = vsel %vm2160, %v4869, %v4951
      %v5134 = vsel %vm2160, %v4870, %v4953
      %v5135 = vsel %vm2160, %v4871, %v4955
      %v5136 = vsel %vm2160, %v4872, %v4957
      %v5137 = vsel %vm2160, %v4873, %v4959
      %v5138 = vsel %vm2160, %v4874, %v4961
      %v5139 = vsel %vm2160, %v4875, %v4963
      %v5140 = vsel %vm3913, %v5132, %v4981
      %v5141 = vsel %vm3913, %v5133, %v4983
      %v5142 = vsel %vm3913, %v5134, %v4985
      %v5143 = vsel %vm3913, %v5135, %v4987
      %v5144 = vsel %vm3913, %v5136, %v4989
      %v5145 = vsel %vm3913, %v5137, %v4991
      %v5146 = vsel %vm3913, %v5138, %v4993
      %v5147 = vsel %vm3913, %v5139, %v4995
      %v5148 = vsel %vm4470, %v5140, %v5013
      %v5149 = vsel %vm4470, %v5141, %v5015
      %v5150 = vsel %vm4470, %v5142, %v5017
      %v5151 = vsel %vm4470, %v5143, %v5019
      %v5152 = vsel %vm4470, %v5144, %v5021
      %v5153 = vsel %vm4470, %v5145, %v5023
      %v5154 = vsel %vm4470, %v5146, %v5025
      %v5155 = vsel %vm4470, %v5147, %v5027
      %v5156 = vsel %vm2160, %v4900, %v5045
      %v5157 = vsel %vm2160, %v4901, %v5047
      %v5158 = vsel %vm2160, %v4902, %v5049
      %v5159 = vsel %vm2160, %v4903, %v5051
      %v5160 = vsel %vm2160, %v4904, %v5053
      %v5161 = vsel %vm2160, %v4905, %v5055
      %v5162 = vsel %vm2160, %v4906, %v5057
      %v5163 = vsel %vm2160, %v4907, %v5059
      %v5164 = vsel %vm3913, %v5156, %v5077
      %v5165 = vsel %vm3913, %v5157, %v5079
      %v5166 = vsel %vm3913, %v5158, %v5081
      %v5167 = vsel %vm3913, %v5159, %v5083
      %v5168 = vsel %vm3913, %v5160, %v5085
      %v5169 = vsel %vm3913, %v5161, %v5087
      %v5170 = vsel %vm3913, %v5162, %v5089
      %v5171 = vsel %vm3913, %v5163, %v5091
      %v5172 = vsel %vm4470, %v5164, %v5109
      %v5173 = vsel %vm4470, %v5165, %v5111
      %v5174 = vsel %vm4470, %v5166, %v5113
      %v5175 = vsel %vm4470, %v5167, %v5115
      %v5176 = vsel %vm4470, %v5168, %v5117
      %v5177 = vsel %vm4470, %v5169, %v5119
      %v5178 = vsel %vm4470, %v5170, %v5121
      %v5179 = vsel %vm4470, %v5171, %v5123
      %v5180 = vpack.c.bf16 %v5149, %v5148
      %v5181 = vpack.c.bf16 %v5173, %v5172
      %v5182 = vpack.c.bf16 %v4933, %v4932
      %v5183 = vpack.c.bf16 %v5151, %v5150
      %v5184 = vpack.c.bf16 %v5175, %v5174
      %v5185 = vpack.c.bf16 %v4935, %v4934
      %v5186 = vpack.c.bf16 %v5153, %v5152
      %v5187 = vpack.c.bf16 %v5177, %v5176
      %v5188 = vpack.c.bf16 %v4937, %v4936
      %v5189 = vpack.c.bf16 %v5155, %v5154
      %v5190 = vpack.c.bf16 %v5179, %v5178
      %v5191 = vpack.c.bf16 %v4939, %v4938
      %v5192 = vld [vmem:[%s7] sm:$0xf]
      %v5193 = vld [vmem:[%s7 + $0x4] sm:$0xf]
      %v5194 = vld [vmem:[%s7 + $0x8] sm:$0xf]
      %v5195 = vld [vmem:[%s7 + $0xc] sm:$0xf]
      %v5196 = vld [vmem:[%s7 + $0x10] sm:$0xf]
      %v5197 = vld [vmem:[%s7 + $0x14] sm:$0xf]
      %v5198 = vld [vmem:[%s7 + $0x18] sm:$0xf]
      %v5199 = vld [vmem:[%s7 + $0x1c] sm:$0xf]
      %v5200 = vld [vmem:[%s7 + $0x20] sm:$0xf]
      %v5201 = vld [vmem:[%s7 + $0x24] sm:$0xf]
      %v5202 = vld [vmem:[%s7 + $0x28] sm:$0xf]
      %v5203 = vld [vmem:[%s7 + $0x2c] sm:$0xf]
      %v5204 = vld [vmem:[%s7 + $0x30] sm:$0xf]
      %v5205 = vld [vmem:[%s7 + $0x34] sm:$0xf]
      %v5206 = vld [vmem:[%s7 + $0x38] sm:$0xf]
      %v5207 = vld [vmem:[%s7 + $0x3c] sm:$0xf]
      %v5208 = vld [vmem:[%s7 + $0x40] sm:$0xf]
      %v5209 = vld [vmem:[%s7 + $0x44] sm:$0xf]
      %v5210 = vld [vmem:[%s7 + $0x48] sm:$0xf]
      %v5211 = vld [vmem:[%s7 + $0x4c] sm:$0xf]
      %v5212 = vld [vmem:[%s7 + $0x50] sm:$0xf]
      %v5213 = vld [vmem:[%s7 + $0x54] sm:$0xf]
      %v5214 = vld [vmem:[%s7 + $0x58] sm:$0xf]
      %v5215 = vld [vmem:[%s7 + $0x5c] sm:$0xf]
      %v5216 = vld [vmem:[%s7 + $0x60] sm:$0xf]
      %v5217 = vld [vmem:[%s7 + $0x64] sm:$0xf]
      %v5218 = vld [vmem:[%s7 + $0x68] sm:$0xf]
      %v5219 = vld [vmem:[%s7 + $0x6c] sm:$0xf]
      %v5220 = vld [vmem:[%s7 + $0x70] sm:$0xf]
      %v5221 = vld [vmem:[%s7 + $0x74] sm:$0xf]
      %v5222 = vld [vmem:[%s7 + $0x78] sm:$0xf]
      %v5223 = vld [vmem:[%s7 + $0x7c] sm:$0xf]
      %v5224 = vld [vmem:[%s7 + $0x80] sm:$0xf]
      %v5225 = vld [vmem:[%s7 + $0x84] sm:$0xf]
      %v5226 = vld [vmem:[%s7 + $0x88] sm:$0xf]
      %v5227 = vld [vmem:[%s7 + $0x8c] sm:$0xf]
      %5228 = vst.msk [vmem:[#allocation2] sm:$0xff] %vm2028, 0.0
      %vm5229 = vcmask 123904
      %5230 = vst.msk [vmem:[#allocation2 + $0x8] sm:$0x3] %vm5229, 0.0
      %5231 = vst.msk [vmem:[#allocation2 + $0x18] sm:$0xff] %vm2028, 0.0
      %5232 = vst.msk [vmem:[#allocation2 + $0x20] sm:$0x3] %vm5229, 0.0
      %5233 = vst.msk [vmem:[#allocation2 + $0x30] sm:$0xff] %vm2028, 0.0
      %5234 = vst.msk [vmem:[#allocation2 + $0x38] sm:$0x3] %vm5229, 0.0
      %5235 = vst.msk [vmem:[#allocation2 + $0x48] sm:$0xff] %vm2028, 0.0
      %5236 = vst.msk [vmem:[#allocation2 + $0x50] sm:$0x3] %vm5229, 0.0
      %5237 = vst.msk [vmem:[#allocation2 + $0x60] sm:$0xff] %vm2028, 0.0
      %5238 = vst.msk [vmem:[#allocation2 + $0x68] sm:$0x3] %vm5229, 0.0
      %5239 = vst.msk [vmem:[#allocation2 + $0x78] sm:$0xff] %vm2028, 0.0
      %5240 = vst.msk [vmem:[#allocation2 + $0x80] sm:$0x3] %vm5229, 0.0
      %5241 = vst.msk [vmem:[#allocation2 + $0x90] sm:$0xff] %vm2028, 0.0
      %5242 = vst.msk [vmem:[#allocation2 + $0x98] sm:$0x3] %vm5229, 0.0
      %5243 = vst.msk [vmem:[#allocation2 + $0xa8] sm:$0xff] %vm2028, 0.0
      %5244 = vst.msk [vmem:[#allocation2 + $0xb0] sm:$0x3] %vm5229, 0.0
      %5245 = vst.msk [vmem:[#allocation2 + $0xc0] sm:$0xff] %vm2028, 0.0
      %5246 = vst.msk [vmem:[#allocation2 + $0xc8] sm:$0x3] %vm5229, 0.0
      %5247 = vst.msk [vmem:[#allocation2 + $0xd8] sm:$0xff] %vm2028, 0.0
      %5248 = vst.msk [vmem:[#allocation2 + $0xe0] sm:$0x3] %vm5229, 0.0
      %5249 = vst.msk [vmem:[%s584 + $0x1] sm:$0xff] %vm2028, %v4051
      %5250 = vst.msk [vmem:[%s584 + $0x19] sm:$0xff] %vm2028, %v4052
      %5251 = vst.msk [vmem:[%s584 + $0x31] sm:$0xff] %vm2028, %v4053
      %5252 = vst.msk [vmem:[%s584 + $0x49] sm:$0xff] %vm2028, %v4054
      %5253 = vst.msk [vmem:[%s584 + $0x61] sm:$0xff] %vm2028, %v4055
      %5254 = vst.msk [vmem:[%s584 + $0x79] sm:$0xff] %vm2028, %v4056
      %5255 = vst.msk [vmem:[%s584 + $0x91] sm:$0xff] %vm2028, %v4057
      %5256 = vst.msk [vmem:[%s584 + $0xa9] sm:$0xff] %vm2028, %v4058
      %v5257 = vld [vmem:[#allocation2] sm:$0xff]
      %v5258 = vld [vmem:[#allocation2 + $0x18] sm:$0xff]
      %v5259 = vld [vmem:[#allocation2 + $0x30] sm:$0xff]
      %v5260 = vld [vmem:[#allocation2 + $0x48] sm:$0xff]
      %v5261 = vld [vmem:[#allocation2 + $0x60] sm:$0xff]
      %v5262 = vld [vmem:[#allocation2 + $0x78] sm:$0xff]
      %v5263 = vld [vmem:[#allocation2 + $0x90] sm:$0xff]
      %v5264 = vld [vmem:[#allocation2 + $0xa8] sm:$0xff]
      %v5265 = vld [vmem:[#allocation2 + $0x1] sm:$0xff]
      %v5266 = vld [vmem:[#allocation2 + $0x19] sm:$0xff]
      %v5267 = vld [vmem:[#allocation2 + $0x31] sm:$0xff]
      %v5268 = vld [vmem:[#allocation2 + $0x49] sm:$0xff]
      %v5269 = vld [vmem:[#allocation2 + $0x61] sm:$0xff]
      %v5270 = vld [vmem:[#allocation2 + $0x79] sm:$0xff]
      %v5271 = vld [vmem:[#allocation2 + $0x91] sm:$0xff]
      %v5272 = vld [vmem:[#allocation2 + $0xa9] sm:$0xff]
      %v5273 = vld [vmem:[#allocation2 + $0x2] sm:$0xff]
      %v5274 = vld [vmem:[#allocation2 + $0x1a] sm:$0xff]
      %v5275 = vld [vmem:[#allocation2 + $0x32] sm:$0xff]
      %v5276 = vld [vmem:[#allocation2 + $0x4a] sm:$0xff]
      %v5277 = vld [vmem:[#allocation2 + $0x62] sm:$0xff]
      %v5278 = vld [vmem:[#allocation2 + $0x7a] sm:$0xff]
      %v5279 = vld [vmem:[#allocation2 + $0x92] sm:$0xff]
      %v5280 = vld [vmem:[#allocation2 + $0xaa] sm:$0xff]
      %v5281 = vld [vmem:[%s584] sm:$0xff]
      %v5282 = vld [vmem:[%s584 + $0x18] sm:$0xff]
      %v5283 = vld [vmem:[%s584 + $0x30] sm:$0xff]
      %v5284 = vld [vmem:[%s584 + $0x48] sm:$0xff]
      %v5285 = vld [vmem:[%s584 + $0x60] sm:$0xff]
      %v5286 = vld [vmem:[%s584 + $0x78] sm:$0xff]
      %v5287 = vld [vmem:[%s584 + $0x90] sm:$0xff]
      %v5288 = vld [vmem:[%s584 + $0xa8] sm:$0xff]
      %v5289 = vld [vmem:[%s584 + $0x1] sm:$0xff]
      %v5290 = vld [vmem:[%s584 + $0x19] sm:$0xff]
      %v5291 = vld [vmem:[%s584 + $0x31] sm:$0xff]
      %v5292 = vld [vmem:[%s584 + $0x49] sm:$0xff]
      %v5293 = vld [vmem:[%s584 + $0x61] sm:$0xff]
      %v5294 = vld [vmem:[%s584 + $0x79] sm:$0xff]
      %v5295 = vld [vmem:[%s584 + $0x91] sm:$0xff]
      %v5296 = vld [vmem:[%s584 + $0xa9] sm:$0xff]
      %v5297 = vld [vmem:[%s584 + $0x2] sm:$0xff]
      %v5298 = vld [vmem:[%s584 + $0x1a] sm:$0xff]
      %v5299 = vld [vmem:[%s584 + $0x32] sm:$0xff]
      %v5300 = vld [vmem:[%s584 + $0x4a] sm:$0xff]
      %v5301 = vld [vmem:[%s584 + $0x62] sm:$0xff]
      %v5302 = vld [vmem:[%s584 + $0x7a] sm:$0xff]
      %v5303 = vld [vmem:[%s584 + $0x92] sm:$0xff]
      %v5304 = vld [vmem:[%s584 + $0xaa] sm:$0xff]
      %v5305 = vld [vmem:[%s809] sm:$0xff]
      %v5306 = vld [vmem:[%s809 + $0x18] sm:$0xff]
      %v5307 = vld [vmem:[%s809 + $0x30] sm:$0xff]
      %v5308 = vld [vmem:[%s809 + $0x48] sm:$0xff]
      %v5309 = vld [vmem:[%s809 + $0x60] sm:$0xff]
      %v5310 = vld [vmem:[%s809 + $0x78] sm:$0xff]
      %v5311 = vld [vmem:[%s809 + $0x90] sm:$0xff]
      %v5312 = vld [vmem:[%s809 + $0xa8] sm:$0xff]
      %v5313 = vld [vmem:[%s809 + $0x1] sm:$0xff]
      %v5314 = vld [vmem:[%s809 + $0x19] sm:$0xff]
      %v5315 = vld [vmem:[%s809 + $0x31] sm:$0xff]
      %v5316 = vld [vmem:[%s809 + $0x49] sm:$0xff]
      %v5317 = vld [vmem:[%s809 + $0x61] sm:$0xff]
      %v5318 = vld [vmem:[%s809 + $0x79] sm:$0xff]
      %v5319 = vld [vmem:[%s809 + $0x91] sm:$0xff]
      %v5320 = vld [vmem:[%s809 + $0xa9] sm:$0xff]
      %v5321 = vld [vmem:[%s809 + $0x2] sm:$0xff]
      %v5322 = vld [vmem:[%s809 + $0x1a] sm:$0xff]
      %v5323 = vld [vmem:[%s809 + $0x32] sm:$0xff]
      %v5324 = vld [vmem:[%s809 + $0x4a] sm:$0xff]
      %v5325 = vld [vmem:[%s809 + $0x62] sm:$0xff]
      %v5326 = vld [vmem:[%s809 + $0x7a] sm:$0xff]
      %v5327 = vld [vmem:[%s809 + $0x92] sm:$0xff]
      %v5328 = vld [vmem:[%s809 + $0xaa] sm:$0xff]
      %5337 = vrot.lane.b32.xlu0 %v5265, 16
      %v5338 = vpop.permute.xlu0 %5337
      %5339 = vrot.lane.b32.xlu0 %v5266, 16
      %v5340 = vpop.permute.xlu0 %5339
      %5341 = vrot.lane.b32.xlu0 %v5267, 16
      %v5342 = vpop.permute.xlu0 %5341
      %5343 = vrot.lane.b32.xlu0 %v5268, 16
      %v5344 = vpop.permute.xlu0 %5343
      %5345 = vrot.lane.b32.xlu0 %v5269, 16
      %v5346 = vpop.permute.xlu0 %5345
      %5347 = vrot.lane.b32.xlu0 %v5270, 16
      %v5348 = vpop.permute.xlu0 %5347
      %5349 = vrot.lane.b32.xlu0 %v5271, 16
      %v5350 = vpop.permute.xlu0 %5349
      %5351 = vrot.lane.b32.xlu0 %v5272, 16
      %v5352 = vpop.permute.xlu0 %5351
      %5369 = vrot.lane.b32.xlu0 %v5273, 32
      %v5370 = vpop.permute.xlu0 %5369
      %5371 = vrot.lane.b32.xlu0 %v5274, 32
      %v5372 = vpop.permute.xlu0 %5371
      %5373 = vrot.lane.b32.xlu0 %v5275, 32
      %v5374 = vpop.permute.xlu0 %5373
      %5375 = vrot.lane.b32.xlu0 %v5276, 32
      %v5376 = vpop.permute.xlu0 %5375
      %5377 = vrot.lane.b32.xlu0 %v5277, 32
      %v5378 = vpop.permute.xlu0 %5377
      %5379 = vrot.lane.b32.xlu0 %v5278, 32
      %v5380 = vpop.permute.xlu0 %5379
      %5381 = vrot.lane.b32.xlu0 %v5279, 32
      %v5382 = vpop.permute.xlu0 %5381
      %5383 = vrot.lane.b32.xlu0 %v5280, 32
      %v5384 = vpop.permute.xlu0 %5383
      %5401 = vrot.lane.b32.xlu0 %v5281, 48
      %v5402 = vpop.permute.xlu0 %5401
      %5403 = vrot.lane.b32.xlu0 %v5282, 48
      %v5404 = vpop.permute.xlu0 %5403
      %5405 = vrot.lane.b32.xlu0 %v5283, 48
      %v5406 = vpop.permute.xlu0 %5405
      %5407 = vrot.lane.b32.xlu0 %v5284, 48
      %v5408 = vpop.permute.xlu0 %5407
      %5409 = vrot.lane.b32.xlu0 %v5285, 48
      %v5410 = vpop.permute.xlu0 %5409
      %5411 = vrot.lane.b32.xlu0 %v5286, 48
      %v5412 = vpop.permute.xlu0 %5411
      %5413 = vrot.lane.b32.xlu0 %v5287, 48
      %v5414 = vpop.permute.xlu0 %5413
      %5415 = vrot.lane.b32.xlu0 %v5288, 48
      %v5416 = vpop.permute.xlu0 %5415
      %5433 = vrot.lane.b32.xlu0 %v5289, 64
      %v5434 = vpop.permute.xlu0 %5433
      %5435 = vrot.lane.b32.xlu0 %v5290, 64
      %v5436 = vpop.permute.xlu0 %5435
      %5437 = vrot.lane.b32.xlu0 %v5291, 64
      %v5438 = vpop.permute.xlu0 %5437
      %5439 = vrot.lane.b32.xlu0 %v5292, 64
      %v5440 = vpop.permute.xlu0 %5439
      %5441 = vrot.lane.b32.xlu0 %v5293, 64
      %v5442 = vpop.permute.xlu0 %5441
      %5443 = vrot.lane.b32.xlu0 %v5294, 64
      %v5444 = vpop.permute.xlu0 %5443
      %5445 = vrot.lane.b32.xlu0 %v5295, 64
      %v5446 = vpop.permute.xlu0 %5445
      %5447 = vrot.lane.b32.xlu0 %v5296, 64
      %v5448 = vpop.permute.xlu0 %5447
      %5465 = vrot.lane.b32.xlu0 %v5297, 80
      %v5466 = vpop.permute.xlu0 %5465
      %5467 = vrot.lane.b32.xlu0 %v5298, 80
      %v5468 = vpop.permute.xlu0 %5467
      %5469 = vrot.lane.b32.xlu0 %v5299, 80
      %v5470 = vpop.permute.xlu0 %5469
      %5471 = vrot.lane.b32.xlu0 %v5300, 80
      %v5472 = vpop.permute.xlu0 %5471
      %5473 = vrot.lane.b32.xlu0 %v5301, 80
      %v5474 = vpop.permute.xlu0 %5473
      %5475 = vrot.lane.b32.xlu0 %v5302, 80
      %v5476 = vpop.permute.xlu0 %5475
      %5477 = vrot.lane.b32.xlu0 %v5303, 80
      %v5478 = vpop.permute.xlu0 %5477
      %5479 = vrot.lane.b32.xlu0 %v5304, 80
      %v5480 = vpop.permute.xlu0 %5479
      %5497 = vrot.lane.b32.xlu0 %v5305, 96
      %v5498 = vpop.permute.xlu0 %5497
      %5499 = vrot.lane.b32.xlu0 %v5306, 96
      %v5500 = vpop.permute.xlu0 %5499
      %5501 = vrot.lane.b32.xlu0 %v5307, 96
      %v5502 = vpop.permute.xlu0 %5501
      %5503 = vrot.lane.b32.xlu0 %v5308, 96
      %v5504 = vpop.permute.xlu0 %5503
      %5505 = vrot.lane.b32.xlu0 %v5309, 96
      %v5506 = vpop.permute.xlu0 %5505
      %5507 = vrot.lane.b32.xlu0 %v5310, 96
      %v5508 = vpop.permute.xlu0 %5507
      %5509 = vrot.lane.b32.xlu0 %v5311, 96
      %v5510 = vpop.permute.xlu0 %5509
      %5511 = vrot.lane.b32.xlu0 %v5312, 96
      %v5512 = vpop.permute.xlu0 %5511
      %5529 = vrot.lane.b32.xlu0 %v5313, 112
      %v5530 = vpop.permute.xlu0 %5529
      %5531 = vrot.lane.b32.xlu0 %v5314, 112
      %v5532 = vpop.permute.xlu0 %5531
      %5533 = vrot.lane.b32.xlu0 %v5315, 112
      %v5534 = vpop.permute.xlu0 %5533
      %5535 = vrot.lane.b32.xlu0 %v5316, 112
      %v5536 = vpop.permute.xlu0 %5535
      %5537 = vrot.lane.b32.xlu0 %v5317, 112
      %v5538 = vpop.permute.xlu0 %5537
      %5539 = vrot.lane.b32.xlu0 %v5318, 112
      %v5540 = vpop.permute.xlu0 %5539
      %5541 = vrot.lane.b32.xlu0 %v5319, 112
      %v5542 = vpop.permute.xlu0 %5541
      %5543 = vrot.lane.b32.xlu0 %v5320, 112
      %v5544 = vpop.permute.xlu0 %5543
      %v5553 = vsel %vm2028, %v5257, %v5338
      %v5554 = vsel %vm2028, %v5258, %v5340
      %v5555 = vsel %vm2028, %v5259, %v5342
      %v5556 = vsel %vm2028, %v5260, %v5344
      %v5557 = vsel %vm2028, %v5261, %v5346
      %v5558 = vsel %vm2028, %v5262, %v5348
      %v5559 = vsel %vm2028, %v5263, %v5350
      %v5560 = vsel %vm2028, %v5264, %v5352
      %v5561 = vsel %vm2160, %v5553, %v5370
      %v5562 = vsel %vm2160, %v5554, %v5372
      %v5563 = vsel %vm2160, %v5555, %v5374
      %v5564 = vsel %vm2160, %v5556, %v5376
      %v5565 = vsel %vm2160, %v5557, %v5378
      %v5566 = vsel %vm2160, %v5558, %v5380
      %v5567 = vsel %vm2160, %v5559, %v5382
      %v5568 = vsel %vm2160, %v5560, %v5384
      %v5569 = vsel %vm3895, %v5561, %v5402
      %v5570 = vsel %vm3895, %v5562, %v5404
      %v5571 = vsel %vm3895, %v5563, %v5406
      %v5572 = vsel %vm3895, %v5564, %v5408
      %v5573 = vsel %vm3895, %v5565, %v5410
      %v5574 = vsel %vm3895, %v5566, %v5412
      %v5575 = vsel %vm3895, %v5567, %v5414
      %v5576 = vsel %vm3895, %v5568, %v5416
      %v5577 = vsel %vm3913, %v5569, %v5434
      %v5578 = vsel %vm3913, %v5570, %v5436
      %v5579 = vsel %vm3913, %v5571, %v5438
      %v5580 = vsel %vm3913, %v5572, %v5440
      %v5581 = vsel %vm3913, %v5573, %v5442
      %v5582 = vsel %vm3913, %v5574, %v5444
      %v5583 = vsel %vm3913, %v5575, %v5446
      %v5584 = vsel %vm3913, %v5576, %v5448
      %v5585 = vsel %vm4467, %v5577, %v5466
      %v5586 = vsel %vm4467, %v5578, %v5468
      %v5587 = vsel %vm4467, %v5579, %v5470
      %v5588 = vsel %vm4467, %v5580, %v5472
      %v5589 = vsel %vm4467, %v5581, %v5474
      %v5590 = vsel %vm4467, %v5582, %v5476
      %v5591 = vsel %vm4467, %v5583, %v5478
      %v5592 = vsel %vm4467, %v5584, %v5480
      %v5593 = vsel %vm4470, %v5585, %v5498
      %v5594 = vsel %vm4470, %v5586, %v5500
      %v5595 = vsel %vm4470, %v5587, %v5502
      %v5596 = vsel %vm4470, %v5588, %v5504
      %v5597 = vsel %vm4470, %v5589, %v5506
      %v5598 = vsel %vm4470, %v5590, %v5508
      %v5599 = vsel %vm4470, %v5591, %v5510
      %v5600 = vsel %vm4470, %v5592, %v5512
      %v5601 = vsel %vm4473, %v5593, %v5530
      %v5602 = vsel %vm4473, %v5594, %v5532
      %v5603 = vsel %vm4473, %v5595, %v5534
      %v5604 = vsel %vm4473, %v5596, %v5536
      %v5605 = vsel %vm4473, %v5597, %v5538
      %v5606 = vsel %vm4473, %v5598, %v5540
      %v5607 = vsel %vm4473, %v5599, %v5542
      %v5608 = vsel %vm4473, %v5600, %v5544
      %v5609 = vpack.c.bf16 %v5602, %v5601
      %v5610 = vpack.c.bf16 %v5322, %v5321
      %v5611 = vpack.c.bf16 %v5604, %v5603
      %v5612 = vpack.c.bf16 %v5324, %v5323
      %v5613 = vpack.c.bf16 %v5606, %v5605
      %v5614 = vpack.c.bf16 %v5326, %v5325
      %v5615 = vpack.c.bf16 %v5608, %v5607
      %v5616 = vpack.c.bf16 %v5328, %v5327
      %v5617 = vld [vmem:[%s8] sm:$0xf]
      %v5618 = vld [vmem:[%s8 + $0x4] sm:$0xf]
      %v5619 = vld [vmem:[%s8 + $0x8] sm:$0xf]
      %v5620 = vld [vmem:[%s8 + $0xc] sm:$0xf]
      %v5621 = vld [vmem:[%s8 + $0x10] sm:$0xf]
      %v5622 = vld [vmem:[%s8 + $0x14] sm:$0xf]
      %v5623 = vld [vmem:[%s8 + $0x18] sm:$0xf]
      %v5624 = vld [vmem:[%s8 + $0x1c] sm:$0xf]
      %v5625 = vld [vmem:[%s8 + $0x20] sm:$0xf]
      %v5626 = vld [vmem:[%s8 + $0x24] sm:$0xf]
      %v5627 = vld [vmem:[%s8 + $0x28] sm:$0xf]
      %v5628 = vld [vmem:[%s8 + $0x2c] sm:$0xf]
      %v5629 = vld [vmem:[%s8 + $0x30] sm:$0xf]
      %v5630 = vld [vmem:[%s8 + $0x34] sm:$0xf]
      %v5631 = vld [vmem:[%s8 + $0x38] sm:$0xf]
      %v5632 = vld [vmem:[%s8 + $0x3c] sm:$0xf]
      %v5633 = vld [vmem:[%s8 + $0x40] sm:$0xf]
      %v5634 = vld [vmem:[%s8 + $0x44] sm:$0xf]
      %v5653 = vunpack.c.l.b16 %v5617
      %v5654 = vunpack.c.l.b16 %v5618
      %v5655 = vunpack.c.l.b16 %v5619
      %v5656 = vunpack.c.l.b16 %v5620
      %v5657 = vunpack.c.l.b16 %v5621
      %v5658 = vunpack.c.l.b16 %v5622
      %v5659 = vunpack.c.l.b16 %v5623
      %v5660 = vunpack.c.l.b16 %v5624
      %v5661 = vunpack.c.l.b16 %v5625
      %v5662 = vunpack.c.l.b16 %v5626
      %v5663 = vunpack.c.l.b16 %v5627
      %v5664 = vunpack.c.l.b16 %v5628
      %v5665 = vunpack.c.l.b16 %v5629
      %v5666 = vunpack.c.l.b16 %v5630
      %v5667 = vunpack.c.l.b16 %v5631
      %v5668 = vunpack.c.l.b16 %v5632
      %v5669 = vunpack.c.l.b16 %v5633
      %v5670 = vunpack.c.l.b16 %v5634
      %v5671 = vpack.c.b16 %v5654, %v5653
      %v5672 = vpack.c.b16 %v5656, %v5655
      %v5673 = vpack.c.b16 %v5658, %v5657
      %v5674 = vpack.c.b16 %v5660, %v5659
      %v5675 = vpack.c.b16 %v5662, %v5661
      %v5676 = vpack.c.b16 %v5664, %v5663
      %v5677 = vpack.c.b16 %v5666, %v5665
      %v5678 = vpack.c.b16 %v5668, %v5667
      %v5679 = vpack.c.b16 %v5670, %v5669
      %v5690 = vsel %vm2028, %v5610, 0
      %v5693 = vsel %vm2028, %v5612, 0
      %v5696 = vsel %vm2028, %v5614, 0
      %v5699 = vsel %vm2028, %v5616, 0
      %5701 = vmatprep.subr.bf16.mxu0 0
      %5702 = vmatpush1.bf16.msra.mxu0 %v5678
      %5703 = vmatprep.subr.bf16.mxu0 0
      %5704 = vmatpush1.bf16.msra.mxu0 %v5677
      %5705 = vmatprep.subr.bf16.mxu0 0
      %5706 = vmatpush1.bf16.msra.mxu0 %v5676
      %5707 = vmatprep.subr.bf16.mxu0 0
      %5708 = vmatpush1.bf16.msra.mxu0 %v5675
      %5709 = vmatprep.subr.bf16.mxu0 0
      %5710 = vmatpush1.bf16.msra.mxu0 %v5674
      %5711 = vmatprep.subr.bf16.mxu0 0
      %5712 = vmatpush1.bf16.msra.mxu0 %v5673
      %5713 = vmatprep.subr.bf16.mxu0 0
      %5714 = vmatpush1.bf16.msra.mxu0 %v5672
      %5715 = vmatprep.subr.bf16.mxu0 0
      %5716 = vmatpush1.bf16.msra.mxu0 %v5671
      %5717 = vmatprep.subr.bf16.mxu0 0
      %5718 = vmatpush2.bf16.msra.mxu0 0
      %5719 = vmatprep.subr.bf16.mxu0 0
      %5720 = vmatpush2.bf16.msra.mxu0 0
      %5721 = vmatprep.subr.bf16.mxu0 0
      %5722 = vmatpush2.bf16.msra.mxu0 0
      %5723 = vmatprep.subr.bf16.mxu0 0
      %5724 = vmatpush2.bf16.msra.mxu0 0
      %5725 = vmatprep.subr.bf16.mxu0 0
      %5726 = vmatpush2.bf16.msra.mxu0 0
      %5727 = vmatprep.subr.bf16.mxu0 0
      %5728 = vmatpush2.bf16.msra.mxu0 0
      %5729 = vmatprep.subr.bf16.mxu0 0
      %5730 = vmatpush2.bf16.msra.mxu0 0
      %5731 = vmatprep.subr.bf16.mxu0 0
      %5732 = vmatpush2.bf16.msra.mxu0 %v5679
      %5733 = vmatprep.mubr.bf16.mxu0 %v5690
      %5734 = vmatmul.mubr.bf16.gmra.mxu0 %v5609
      %v5735 = vpop.f32.mrf.mxu0
      %v5736 = vadd.f32 0.0, %v5735
      %v5737 = vpop.f32.mrf.mxu0
      %v5738 = vpop.f32.mrf.mxu0
      %v5739 = vadd.f32 0.0, %v5738
      %v5740 = vpop.f32.mrf.mxu0
      %5741 = vmatprep.mubr.bf16.mxu0 %v5693
      %5742 = vmatmul.mubr.bf16.gmra.mxu0 %v5611
      %v5743 = vpop.f32.mrf.mxu0
      %v5744 = vadd.f32 0.0, %v5743
      %v5745 = vpop.f32.mrf.mxu0
      %v5746 = vpop.f32.mrf.mxu0
      %v5747 = vadd.f32 0.0, %v5746
      %v5748 = vpop.f32.mrf.mxu0
      %5749 = vmatprep.mubr.bf16.mxu0 %v5696
      %5750 = vmatmul.mubr.bf16.gmra.mxu0 %v5613
      %v5751 = vpop.f32.mrf.mxu0
      %v5752 = vadd.f32 0.0, %v5751
      %v5753 = vpop.f32.mrf.mxu0
      %v5754 = vpop.f32.mrf.mxu0
      %v5755 = vadd.f32 0.0, %v5754
      %v5756 = vpop.f32.mrf.mxu0
      %5757 = vmatprep.mubr.bf16.mxu0 %v5699
      %5758 = vmatmul.mubr.bf16.gmra.mxu0 %v5615
      %v5759 = vpop.f32.mrf.mxu0
      %v5760 = vadd.f32 0.0, %v5759
      %v5761 = vpop.f32.mrf.mxu0
      %v5762 = vpop.f32.mrf.mxu0
      %v5763 = vadd.f32 0.0, %v5762
      %v5764 = vpop.f32.mrf.mxu0
      %5765 = vdwg.mxu0
      %v5802 = vunpack.c.l.b16 %v5192
      %v5803 = vunpack.c.l.b16 %v5193
      %v5804 = vunpack.c.l.b16 %v5194
      %v5805 = vunpack.c.l.b16 %v5195
      %v5806 = vunpack.c.l.b16 %v5196
      %v5807 = vunpack.c.l.b16 %v5197
      %v5808 = vunpack.c.l.b16 %v5198
      %v5809 = vunpack.c.l.b16 %v5199
      %v5810 = vunpack.c.l.b16 %v5200
      %v5811 = vunpack.c.l.b16 %v5201
      %v5812 = vunpack.c.l.b16 %v5202
      %v5813 = vunpack.c.l.b16 %v5203
      %v5814 = vunpack.c.l.b16 %v5204
      %v5815 = vunpack.c.l.b16 %v5205
      %v5816 = vunpack.c.l.b16 %v5206
      %v5817 = vunpack.c.l.b16 %v5207
      %v5818 = vunpack.c.l.b16 %v5208
      %v5819 = vunpack.c.l.b16 %v5209
      %v5820 = vunpack.c.l.b16 %v5210
      %v5821 = vunpack.c.l.b16 %v5211
      %v5822 = vunpack.c.l.b16 %v5212
      %v5823 = vunpack.c.l.b16 %v5213
      %v5824 = vunpack.c.l.b16 %v5214
      %v5825 = vunpack.c.l.b16 %v5215
      %v5826 = vunpack.c.l.b16 %v5216
      %v5827 = vunpack.c.l.b16 %v5217
      %v5828 = vunpack.c.l.b16 %v5218
      %v5829 = vunpack.c.l.b16 %v5219
      %v5830 = vunpack.c.l.b16 %v5220
      %v5831 = vunpack.c.l.b16 %v5221
      %v5832 = vunpack.c.l.b16 %v5222
      %v5833 = vunpack.c.l.b16 %v5223
      %v5834 = vunpack.c.l.b16 %v5224
      %v5835 = vunpack.c.l.b16 %v5225
      %v5836 = vunpack.c.l.b16 %v5226
      %v5837 = vunpack.c.l.b16 %v5227
      %v5838 = vpack.c.b16 %v5803, %v5802
      %v5839 = vpack.c.b16 %v5805, %v5804
      %v5840 = vpack.c.b16 %v5807, %v5806
      %v5841 = vpack.c.b16 %v5809, %v5808
      %v5842 = vpack.c.b16 %v5811, %v5810
      %v5843 = vpack.c.b16 %v5813, %v5812
      %v5844 = vpack.c.b16 %v5815, %v5814
      %v5845 = vpack.c.b16 %v5817, %v5816
      %v5846 = vpack.c.b16 %v5819, %v5818
      %v5847 = vpack.c.b16 %v5821, %v5820
      %v5848 = vpack.c.b16 %v5823, %v5822
      %v5849 = vpack.c.b16 %v5825, %v5824
      %v5850 = vpack.c.b16 %v5827, %v5826
      %v5851 = vpack.c.b16 %v5829, %v5828
      %v5852 = vpack.c.b16 %v5831, %v5830
      %v5853 = vpack.c.b16 %v5833, %v5832
      %v5854 = vpack.c.b16 %v5835, %v5834
      %v5855 = vpack.c.b16 %v5837, %v5836
      %v5875 = vsel %vm2160, %v5182, 0
      %v5878 = vsel %vm2160, %v5185, 0
      %v5881 = vsel %vm2160, %v5188, 0
      %v5884 = vsel %vm2160, %v5191, 0
      %5886 = vmatprep.subr.bf16.mxu0 0
      %5887 = vmatpush1.bf16.msra.mxu0 %v5845
      %5888 = vmatprep.subr.bf16.mxu0 0
      %5889 = vmatpush1.bf16.msra.mxu0 %v5844
      %5890 = vmatprep.subr.bf16.mxu0 0
      %5891 = vmatpush1.bf16.msra.mxu0 %v5843
      %5892 = vmatprep.subr.bf16.mxu0 0
      %5893 = vmatpush1.bf16.msra.mxu0 %v5842
      %5894 = vmatprep.subr.bf16.mxu0 0
      %5895 = vmatpush1.bf16.msra.mxu0 %v5841
      %5896 = vmatprep.subr.bf16.mxu0 0
      %5897 = vmatpush1.bf16.msra.mxu0 %v5840
      %5898 = vmatprep.subr.bf16.mxu0 0
      %5899 = vmatpush1.bf16.msra.mxu0 %v5839
      %5900 = vmatprep.subr.bf16.mxu0 0
      %5901 = vmatpush1.bf16.msra.mxu0 %v5838
      %5902 = vmatprep.subr.bf16.mxu0 0
      %5903 = vmatpush2.bf16.msra.mxu0 %v5853
      %5904 = vmatprep.subr.bf16.mxu0 0
      %5905 = vmatpush2.bf16.msra.mxu0 %v5852
      %5906 = vmatprep.subr.bf16.mxu0 0
      %5907 = vmatpush2.bf16.msra.mxu0 %v5851
      %5908 = vmatprep.subr.bf16.mxu0 0
      %5909 = vmatpush2.bf16.msra.mxu0 %v5850
      %5910 = vmatprep.subr.bf16.mxu0 0
      %5911 = vmatpush2.bf16.msra.mxu0 %v5849
      %5912 = vmatprep.subr.bf16.mxu0 0
      %5913 = vmatpush2.bf16.msra.mxu0 %v5848
      %5914 = vmatprep.subr.bf16.mxu0 0
      %5915 = vmatpush2.bf16.msra.mxu0 %v5847
      %5916 = vmatprep.subr.bf16.mxu0 0
      %5917 = vmatpush2.bf16.msra.mxu0 %v5846
      %5918 = vmatprep.mubr.bf16.mxu0 %v5181
      %5919 = vmatmul.mubr.bf16.gmra.mxu0 %v5180
      %v5920 = vpop.f32.mrf.mxu0
      %v5921 = vadd.f32 %v5736, %v5920
      %v5922 = vpop.f32.mrf.mxu0
      %v5923 = vpop.f32.mrf.mxu0
      %v5924 = vadd.f32 %v5739, %v5923
      %v5925 = vpop.f32.mrf.mxu0
      %5926 = vmatprep.mubr.bf16.mxu0 %v5184
      %5927 = vmatmul.mubr.bf16.gmra.mxu0 %v5183
      %v5928 = vpop.f32.mrf.mxu0
      %v5929 = vadd.f32 %v5744, %v5928
      %v5930 = vpop.f32.mrf.mxu0
      %v5931 = vpop.f32.mrf.mxu0
      %v5932 = vadd.f32 %v5747, %v5931
      %v5933 = vpop.f32.mrf.mxu0
      %5934 = vmatprep.mubr.bf16.mxu0 %v5187
      %5935 = vmatmul.mubr.bf16.gmra.mxu0 %v5186
      %v5936 = vpop.f32.mrf.mxu0
      %v5937 = vadd.f32 %v5752, %v5936
      %v5938 = vpop.f32.mrf.mxu0
      %v5939 = vpop.f32.mrf.mxu0
      %v5940 = vadd.f32 %v5755, %v5939
      %v5941 = vpop.f32.mrf.mxu0
      %5942 = vmatprep.mubr.bf16.mxu0 %v5190
      %5943 = vmatmul.mubr.bf16.gmra.mxu0 %v5189
      %v5944 = vpop.f32.mrf.mxu0
      %v5945 = vadd.f32 %v5760, %v5944
      %v5946 = vpop.f32.mrf.mxu0
      %v5947 = vpop.f32.mrf.mxu0
      %v5948 = vadd.f32 %v5763, %v5947
      %v5949 = vpop.f32.mrf.mxu0
      %5950 = vdwg.mxu0
      %5951 = vmatprep.subr.bf16.mxu0 0
      %5952 = vmatpush1.bf16.msra.mxu0 0
      %5953 = vmatprep.subr.bf16.mxu0 0
      %5954 = vmatpush1.bf16.msra.mxu0 0
      %5955 = vmatprep.subr.bf16.mxu0 0
      %5956 = vmatpush1.bf16.msra.mxu0 0
      %5957 = vmatprep.subr.bf16.mxu0 0
      %5958 = vmatpush1.bf16.msra.mxu0 0
      %5959 = vmatprep.subr.bf16.mxu0 0
      %5960 = vmatpush1.bf16.msra.mxu0 0
      %5961 = vmatprep.subr.bf16.mxu0 0
      %5962 = vmatpush1.bf16.msra.mxu0 0
      %5963 = vmatprep.subr.bf16.mxu0 0
      %5964 = vmatpush1.bf16.msra.mxu0 %v5855
      %5965 = vmatprep.subr.bf16.mxu0 0
      %5966 = vmatpush1.bf16.msra.mxu0 %v5854
      %5967 = vmatprep.subr.bf16.mxu0 0
      %5968 = vmatpush2.bf16.msra.mxu0 0
      %5969 = vmatprep.subr.bf16.mxu0 0
      %5970 = vmatpush2.bf16.msra.mxu0 0
      %5971 = vmatprep.subr.bf16.mxu0 0
      %5972 = vmatpush2.bf16.msra.mxu0 0
      %5973 = vmatprep.subr.bf16.mxu0 0
      %5974 = vmatpush2.bf16.msra.mxu0 0
      %5975 = vmatprep.subr.bf16.mxu0 0
      %5976 = vmatpush2.bf16.msra.mxu0 0
      %5977 = vmatprep.subr.bf16.mxu0 0
      %5978 = vmatpush2.bf16.msra.mxu0 0
      %5979 = vmatprep.subr.bf16.mxu0 0
      %5980 = vmatpush2.bf16.msra.mxu0 0
      %5981 = vmatprep.subr.bf16.mxu0 0
      %5982 = vmatpush2.bf16.msra.mxu0 0
      %5983 = vmatprep.mubr.bf16.mxu0 0
      %5984 = vmatmul.mubr.bf16.gmra.mxu0 %v5875
      %v5985 = vpop.f32.mrf.mxu0
      %v5986 = vadd.f32 %v5921, %v5985
      %v5987 = vpop.f32.mrf.mxu0
      %v5988 = vpop.f32.mrf.mxu0
      %v5989 = vadd.f32 %v5924, %v5988
      %v5990 = vpop.f32.mrf.mxu0
      %5991 = vmatprep.mubr.bf16.mxu0 0
      %5992 = vmatmul.mubr.bf16.gmra.mxu0 %v5878
      %v5993 = vpop.f32.mrf.mxu0
      %v5994 = vadd.f32 %v5929, %v5993
      %v5995 = vpop.f32.mrf.mxu0
      %v5996 = vpop.f32.mrf.mxu0
      %v5997 = vadd.f32 %v5932, %v5996
      %v5998 = vpop.f32.mrf.mxu0
      %5999 = vmatprep.mubr.bf16.mxu0 0
      %6000 = vmatmul.mubr.bf16.gmra.mxu0 %v5881
      %v6001 = vpop.f32.mrf.mxu0
      %v6002 = vadd.f32 %v5937, %v6001
      %v6003 = vpop.f32.mrf.mxu0
      %v6004 = vpop.f32.mrf.mxu0
      %v6005 = vadd.f32 %v5940, %v6004
      %v6006 = vpop.f32.mrf.mxu0
      %6007 = vmatprep.mubr.bf16.mxu0 0
      %6008 = vmatmul.mubr.bf16.gmra.mxu0 %v5884
      %v6009 = vpop.f32.mrf.mxu0
      %v6010 = vadd.f32 %v5945, %v6009
      %v6011 = vpop.f32.mrf.mxu0
      %v6012 = vpop.f32.mrf.mxu0
      %v6013 = vadd.f32 %v5948, %v6012
      %v6014 = vpop.f32.mrf.mxu0
      %6015 = vdwg.mxu0
      %v6016 = vld [vmem:[%s9] sm:$0x1]
      %v6018 = vlaneseq
      %v6019 = vshrl.u32 %v6018, 7
      %v6020 = vsub.s32 0, %v6019
      %v6021 = vrot.slane %v6016, %v6020
      %v6023 = vadd.f32 %v5986, %v6021
      %v6024 = vadd.f32 %v5989, %v6021
      %v6025 = vadd.f32 %v5994, %v6021
      %v6026 = vadd.f32 %v5997, %v6021
      %v6027 = vadd.f32 %v6002, %v6021
      %v6028 = vadd.f32 %v6005, %v6021
      %v6029 = vadd.f32 %v6010, %v6021
      %v6030 = vadd.f32 %v6013, %v6021
      %v6031 = vmax.f32 %v6023, 0.0
      %v6032 = vmax.f32 %v6024, 0.0
      %v6033 = vmax.f32 %v6025, 0.0
      %v6034 = vmax.f32 %v6026, 0.0
      %v6035 = vmax.f32 %v6027, 0.0
      %v6036 = vmax.f32 %v6028, 0.0
      %v6037 = vmax.f32 %v6029, 0.0
      %v6038 = vmax.f32 %v6030, 0.0
      %v6047 = vcombine.high %v6031, %v6031
      %v6049 = vunpack.c.l.s4 1966171168
      %v6050 = vunpack.c.0.s8 %v6049
      %v6051 = vlaneseq
      %v6052 = vshrl.u32 %v6051, 7
      %v6053 = vsub.s32 %v6050, %v6052
      %v6054 = vrot.slane %v6031, %v6053
      %v6056 = vunpack.c.l.s4 1966171168
      %v6057 = vunpack.c.0.s8 %v6056
      %v6058 = vlaneseq
      %v6059 = vshrl.u32 %v6058, 7
      %v6060 = vsub.s32 %v6057, %v6059
      %v6061 = vrot.slane %v6047, %v6060
      %v6062 = vcombine.high %v6054, %v6054
      %v6063 = vcombine.high %v6061, %v6061
      %v6065 = vunpack.c.l.s4 1966171168
      %v6066 = vunpack.c.0.s8 %v6065
      %v6067 = vlaneseq
      %v6068 = vshrl.u32 %v6067, 7
      %v6069 = vsub.s32 %v6066, %v6068
      %v6070 = vrot.slane %v6054, %v6069
      %v6072 = vunpack.c.l.s4 1966171168
      %v6073 = vunpack.c.0.s8 %v6072
      %v6074 = vlaneseq
      %v6075 = vshrl.u32 %v6074, 7
      %v6076 = vsub.s32 %v6073, %v6075
      %v6077 = vrot.slane %v6061, %v6076
      %v6079 = vunpack.c.l.s4 1966171168
      %v6080 = vunpack.c.0.s8 %v6079
      %v6081 = vlaneseq
      %v6082 = vshrl.u32 %v6081, 7
      %v6083 = vsub.s32 %v6080, %v6082
      %v6084 = vrot.slane %v6062, %v6083
      %v6086 = vunpack.c.l.s4 1966171168
      %v6087 = vunpack.c.0.s8 %v6086
      %v6088 = vlaneseq
      %v6089 = vshrl.u32 %v6088, 7
      %v6090 = vsub.s32 %v6087, %v6089
      %v6091 = vrot.slane %v6063, %v6090
      %v6092 = vcombine.high %v6070, %v6070
      %v6093 = vcombine.high %v6077, %v6077
      %v6094 = vcombine.high %v6084, %v6084
      %v6095 = vcombine.high %v6091, %v6091
      %v6096 = vcombine.high %v6032, %v6032
      %v6098 = vunpack.c.l.s4 1966171168
      %v6099 = vunpack.c.0.s8 %v6098
      %v6100 = vlaneseq
      %v6101 = vshrl.u32 %v6100, 7
      %v6102 = vsub.s32 %v6099, %v6101
      %v6103 = vrot.slane %v6032, %v6102
      %v6105 = vunpack.c.l.s4 1966171168
      %v6106 = vunpack.c.0.s8 %v6105
      %v6107 = vlaneseq
      %v6108 = vshrl.u32 %v6107, 7
      %v6109 = vsub.s32 %v6106, %v6108
      %v6110 = vrot.slane %v6096, %v6109
      %v6111 = vcombine.high %v6103, %v6103
      %v6112 = vcombine.high %v6110, %v6110
      %v6114 = vunpack.c.l.s4 1966171168
      %v6115 = vunpack.c.0.s8 %v6114
      %v6116 = vlaneseq
      %v6117 = vshrl.u32 %v6116, 7
      %v6118 = vsub.s32 %v6115, %v6117
      %v6119 = vrot.slane %v6103, %v6118
      %v6121 = vunpack.c.l.s4 1966171168
      %v6122 = vunpack.c.0.s8 %v6121
      %v6123 = vlaneseq
      %v6124 = vshrl.u32 %v6123, 7
      %v6125 = vsub.s32 %v6122, %v6124
      %v6126 = vrot.slane %v6110, %v6125
      %v6128 = vunpack.c.l.s4 1966171168
      %v6129 = vunpack.c.0.s8 %v6128
      %v6130 = vlaneseq
      %v6131 = vshrl.u32 %v6130, 7
      %v6132 = vsub.s32 %v6129, %v6131
      %v6133 = vrot.slane %v6111, %v6132
      %v6135 = vunpack.c.l.s4 1966171168
      %v6136 = vunpack.c.0.s8 %v6135
      %v6137 = vlaneseq
      %v6138 = vshrl.u32 %v6137, 7
      %v6139 = vsub.s32 %v6136, %v6138
      %v6140 = vrot.slane %v6112, %v6139
      %v6141 = vcombine.high %v6119, %v6119
      %v6142 = vcombine.high %v6126, %v6126
      %v6143 = vcombine.high %v6133, %v6133
      %v6144 = vcombine.high %v6140, %v6140
      %v6145 = vcombine.high %v6033, %v6033
      %v6147 = vunpack.c.l.s4 1966171168
      %v6148 = vunpack.c.0.s8 %v6147
      %v6149 = vlaneseq
      %v6150 = vshrl.u32 %v6149, 7
      %v6151 = vsub.s32 %v6148, %v6150
      %v6152 = vrot.slane %v6033, %v6151
      %v6154 = vunpack.c.l.s4 1966171168
      %v6155 = vunpack.c.0.s8 %v6154
      %v6156 = vlaneseq
      %v6157 = vshrl.u32 %v6156, 7
      %v6158 = vsub.s32 %v6155, %v6157
      %v6159 = vrot.slane %v6145, %v6158
      %v6160 = vcombine.high %v6152, %v6152
      %v6161 = vcombine.high %v6159, %v6159
      %v6163 = vunpack.c.l.s4 1966171168
      %v6164 = vunpack.c.0.s8 %v6163
      %v6165 = vlaneseq
      %v6166 = vshrl.u32 %v6165, 7
      %v6167 = vsub.s32 %v6164, %v6166
      %v6168 = vrot.slane %v6152, %v6167
      %v6170 = vunpack.c.l.s4 1966171168
      %v6171 = vunpack.c.0.s8 %v6170
      %v6172 = vlaneseq
      %v6173 = vshrl.u32 %v6172, 7
      %v6174 = vsub.s32 %v6171, %v6173
      %v6175 = vrot.slane %v6159, %v6174
      %v6177 = vunpack.c.l.s4 1966171168
      %v6178 = vunpack.c.0.s8 %v6177
      %v6179 = vlaneseq
      %v6180 = vshrl.u32 %v6179, 7
      %v6181 = vsub.s32 %v6178, %v6180
      %v6182 = vrot.slane %v6160, %v6181
      %v6184 = vunpack.c.l.s4 1966171168
      %v6185 = vunpack.c.0.s8 %v6184
      %v6186 = vlaneseq
      %v6187 = vshrl.u32 %v6186, 7
      %v6188 = vsub.s32 %v6185, %v6187
      %v6189 = vrot.slane %v6161, %v6188
      %v6190 = vcombine.high %v6168, %v6168
      %v6191 = vcombine.high %v6175, %v6175
      %v6192 = vcombine.high %v6182, %v6182
      %v6193 = vcombine.high %v6189, %v6189
      %v6194 = vcombine.high %v6034, %v6034
      %v6196 = vunpack.c.l.s4 1966171168
      %v6197 = vunpack.c.0.s8 %v6196
      %v6198 = vlaneseq
      %v6199 = vshrl.u32 %v6198, 7
      %v6200 = vsub.s32 %v6197, %v6199
      %v6201 = vrot.slane %v6034, %v6200
      %v6203 = vunpack.c.l.s4 1966171168
      %v6204 = vunpack.c.0.s8 %v6203
      %v6205 = vlaneseq
      %v6206 = vshrl.u32 %v6205, 7
      %v6207 = vsub.s32 %v6204, %v6206
      %v6208 = vrot.slane %v6194, %v6207
      %v6209 = vcombine.high %v6201, %v6201
      %v6210 = vcombine.high %v6208, %v6208
      %v6212 = vunpack.c.l.s4 1966171168
      %v6213 = vunpack.c.0.s8 %v6212
      %v6214 = vlaneseq
      %v6215 = vshrl.u32 %v6214, 7
      %v6216 = vsub.s32 %v6213, %v6215
      %v6217 = vrot.slane %v6201, %v6216
      %v6219 = vunpack.c.l.s4 1966171168
      %v6220 = vunpack.c.0.s8 %v6219
      %v6221 = vlaneseq
      %v6222 = vshrl.u32 %v6221, 7
      %v6223 = vsub.s32 %v6220, %v6222
      %v6224 = vrot.slane %v6208, %v6223
      %v6226 = vunpack.c.l.s4 1966171168
      %v6227 = vunpack.c.0.s8 %v6226
      %v6228 = vlaneseq
      %v6229 = vshrl.u32 %v6228, 7
      %v6230 = vsub.s32 %v6227, %v6229
      %v6231 = vrot.slane %v6209, %v6230
      %v6233 = vunpack.c.l.s4 1966171168
      %v6234 = vunpack.c.0.s8 %v6233
      %v6235 = vlaneseq
      %v6236 = vshrl.u32 %v6235, 7
      %v6237 = vsub.s32 %v6234, %v6236
      %v6238 = vrot.slane %v6210, %v6237
      %v6239 = vcombine.high %v6217, %v6217
      %v6240 = vcombine.high %v6224, %v6224
      %v6241 = vcombine.high %v6231, %v6231
      %v6242 = vcombine.high %v6238, %v6238
      %v6243 = vcombine.high %v6035, %v6035
      %v6245 = vunpack.c.l.s4 1966171168
      %v6246 = vunpack.c.0.s8 %v6245
      %v6247 = vlaneseq
      %v6248 = vshrl.u32 %v6247, 7
      %v6249 = vsub.s32 %v6246, %v6248
      %v6250 = vrot.slane %v6035, %v6249
      %v6252 = vunpack.c.l.s4 1966171168
      %v6253 = vunpack.c.0.s8 %v6252
      %v6254 = vlaneseq
      %v6255 = vshrl.u32 %v6254, 7
      %v6256 = vsub.s32 %v6253, %v6255
      %v6257 = vrot.slane %v6243, %v6256
      %v6258 = vcombine.high %v6250, %v6250
      %v6259 = vcombine.high %v6257, %v6257
      %v6261 = vunpack.c.l.s4 1966171168
      %v6262 = vunpack.c.0.s8 %v6261
      %v6263 = vlaneseq
      %v6264 = vshrl.u32 %v6263, 7
      %v6265 = vsub.s32 %v6262, %v6264
      %v6266 = vrot.slane %v6250, %v6265
      %v6268 = vunpack.c.l.s4 1966171168
      %v6269 = vunpack.c.0.s8 %v6268
      %v6270 = vlaneseq
      %v6271 = vshrl.u32 %v6270, 7
      %v6272 = vsub.s32 %v6269, %v6271
      %v6273 = vrot.slane %v6257, %v6272
      %v6275 = vunpack.c.l.s4 1966171168
      %v6276 = vunpack.c.0.s8 %v6275
      %v6277 = vlaneseq
      %v6278 = vshrl.u32 %v6277, 7
      %v6279 = vsub.s32 %v6276, %v6278
      %v6280 = vrot.slane %v6258, %v6279
      %v6282 = vunpack.c.l.s4 1966171168
      %v6283 = vunpack.c.0.s8 %v6282
      %v6284 = vlaneseq
      %v6285 = vshrl.u32 %v6284, 7
      %v6286 = vsub.s32 %v6283, %v6285
      %v6287 = vrot.slane %v6259, %v6286
      %v6288 = vcombine.high %v6266, %v6266
      %v6289 = vcombine.high %v6273, %v6273
      %v6290 = vcombine.high %v6280, %v6280
      %v6291 = vcombine.high %v6287, %v6287
      %v6292 = vcombine.high %v6036, %v6036
      %v6294 = vunpack.c.l.s4 1966171168
      %v6295 = vunpack.c.0.s8 %v6294
      %v6296 = vlaneseq
      %v6297 = vshrl.u32 %v6296, 7
      %v6298 = vsub.s32 %v6295, %v6297
      %v6299 = vrot.slane %v6036, %v6298
      %v6301 = vunpack.c.l.s4 1966171168
      %v6302 = vunpack.c.0.s8 %v6301
      %v6303 = vlaneseq
      %v6304 = vshrl.u32 %v6303, 7
      %v6305 = vsub.s32 %v6302, %v6304
      %v6306 = vrot.slane %v6292, %v6305
      %v6307 = vcombine.high %v6299, %v6299
      %v6308 = vcombine.high %v6306, %v6306
      %v6310 = vunpack.c.l.s4 1966171168
      %v6311 = vunpack.c.0.s8 %v6310
      %v6312 = vlaneseq
      %v6313 = vshrl.u32 %v6312, 7
      %v6314 = vsub.s32 %v6311, %v6313
      %v6315 = vrot.slane %v6299, %v6314
      %v6317 = vunpack.c.l.s4 1966171168
      %v6318 = vunpack.c.0.s8 %v6317
      %v6319 = vlaneseq
      %v6320 = vshrl.u32 %v6319, 7
      %v6321 = vsub.s32 %v6318, %v6320
      %v6322 = vrot.slane %v6306, %v6321
      %v6324 = vunpack.c.l.s4 1966171168
      %v6325 = vunpack.c.0.s8 %v6324
      %v6326 = vlaneseq
      %v6327 = vshrl.u32 %v6326, 7
      %v6328 = vsub.s32 %v6325, %v6327
      %v6329 = vrot.slane %v6307, %v6328
      %v6331 = vunpack.c.l.s4 1966171168
      %v6332 = vunpack.c.0.s8 %v6331
      %v6333 = vlaneseq
      %v6334 = vshrl.u32 %v6333, 7
      %v6335 = vsub.s32 %v6332, %v6334
      %v6336 = vrot.slane %v6308, %v6335
      %v6337 = vcombine.high %v6315, %v6315
      %v6338 = vcombine.high %v6322, %v6322
      %v6339 = vcombine.high %v6329, %v6329
      %v6340 = vcombine.high %v6336, %v6336
      %v6341 = vcombine.high %v6037, %v6037
      %v6343 = vunpack.c.l.s4 1966171168
      %v6344 = vunpack.c.0.s8 %v6343
      %v6345 = vlaneseq
      %v6346 = vshrl.u32 %v6345, 7
      %v6347 = vsub.s32 %v6344, %v6346
      %v6348 = vrot.slane %v6037, %v6347
      %v6350 = vunpack.c.l.s4 1966171168
      %v6351 = vunpack.c.0.s8 %v6350
      %v6352 = vlaneseq
      %v6353 = vshrl.u32 %v6352, 7
      %v6354 = vsub.s32 %v6351, %v6353
      %v6355 = vrot.slane %v6341, %v6354
      %v6356 = vcombine.high %v6348, %v6348
      %v6357 = vcombine.high %v6355, %v6355
      %v6359 = vunpack.c.l.s4 1966171168
      %v6360 = vunpack.c.0.s8 %v6359
      %v6361 = vlaneseq
      %v6362 = vshrl.u32 %v6361, 7
      %v6363 = vsub.s32 %v6360, %v6362
      %v6364 = vrot.slane %v6348, %v6363
      %v6366 = vunpack.c.l.s4 1966171168
      %v6367 = vunpack.c.0.s8 %v6366
      %v6368 = vlaneseq
      %v6369 = vshrl.u32 %v6368, 7
      %v6370 = vsub.s32 %v6367, %v6369
      %v6371 = vrot.slane %v6355, %v6370
      %v6373 = vunpack.c.l.s4 1966171168
      %v6374 = vunpack.c.0.s8 %v6373
      %v6375 = vlaneseq
      %v6376 = vshrl.u32 %v6375, 7
      %v6377 = vsub.s32 %v6374, %v6376
      %v6378 = vrot.slane %v6356, %v6377
      %v6380 = vunpack.c.l.s4 1966171168
      %v6381 = vunpack.c.0.s8 %v6380
      %v6382 = vlaneseq
      %v6383 = vshrl.u32 %v6382, 7
      %v6384 = vsub.s32 %v6381, %v6383
      %v6385 = vrot.slane %v6357, %v6384
      %v6386 = vcombine.high %v6364, %v6364
      %v6387 = vcombine.high %v6371, %v6371
      %v6388 = vcombine.high %v6378, %v6378
      %v6389 = vcombine.high %v6385, %v6385
      %v6390 = vcombine.high %v6038, %v6038
      %v6392 = vunpack.c.l.s4 1966171168
      %v6393 = vunpack.c.0.s8 %v6392
      %v6394 = vlaneseq
      %v6395 = vshrl.u32 %v6394, 7
      %v6396 = vsub.s32 %v6393, %v6395
      %v6397 = vrot.slane %v6038, %v6396
      %v6399 = vunpack.c.l.s4 1966171168
      %v6400 = vunpack.c.0.s8 %v6399
      %v6401 = vlaneseq
      %v6402 = vshrl.u32 %v6401, 7
      %v6403 = vsub.s32 %v6400, %v6402
      %v6404 = vrot.slane %v6390, %v6403
      %v6405 = vcombine.high %v6397, %v6397
      %v6406 = vcombine.high %v6404, %v6404
      %v6408 = vunpack.c.l.s4 1966171168
      %v6409 = vunpack.c.0.s8 %v6408
      %v6410 = vlaneseq
      %v6411 = vshrl.u32 %v6410, 7
      %v6412 = vsub.s32 %v6409, %v6411
      %v6413 = vrot.slane %v6397, %v6412
      %v6415 = vunpack.c.l.s4 1966171168
      %v6416 = vunpack.c.0.s8 %v6415
      %v6417 = vlaneseq
      %v6418 = vshrl.u32 %v6417, 7
      %v6419 = vsub.s32 %v6416, %v6418
      %v6420 = vrot.slane %v6404, %v6419
      %v6422 = vunpack.c.l.s4 1966171168
      %v6423 = vunpack.c.0.s8 %v6422
      %v6424 = vlaneseq
      %v6425 = vshrl.u32 %v6424, 7
      %v6426 = vsub.s32 %v6423, %v6425
      %v6427 = vrot.slane %v6405, %v6426
      %v6429 = vunpack.c.l.s4 1966171168
      %v6430 = vunpack.c.0.s8 %v6429
      %v6431 = vlaneseq
      %v6432 = vshrl.u32 %v6431, 7
      %v6433 = vsub.s32 %v6430, %v6432
      %v6434 = vrot.slane %v6406, %v6433
      %v6435 = vcombine.high %v6413, %v6413
      %v6436 = vcombine.high %v6420, %v6420
      %v6437 = vcombine.high %v6427, %v6427
      %v6438 = vcombine.high %v6434, %v6434
      %v6439 = vlaneseq
      %v6440 = vshrl.u32 %v6439, 7
      %v6441 = vsub.s32 0, %v6440
      %v6442 = vrot.slane %v6070, %v6441
      %v6443 = vlaneseq
      %v6444 = vshrl.u32 %v6443, 7
      %v6445 = vsub.s32 0, %v6444
      %v6446 = vrot.slane %v6084, %v6445
      %v6447 = vlaneseq
      %v6448 = vshrl.u32 %v6447, 7
      %v6449 = vsub.s32 0, %v6448
      %v6450 = vrot.slane %v6092, %v6449
      %v6451 = vlaneseq
      %v6452 = vshrl.u32 %v6451, 7
      %v6453 = vsub.s32 0, %v6452
      %v6454 = vrot.slane %v6094, %v6453
      %v6455 = vlaneseq
      %v6456 = vshrl.u32 %v6455, 7
      %v6457 = vsub.s32 0, %v6456
      %v6458 = vrot.slane %v6077, %v6457
      %v6459 = vlaneseq
      %v6460 = vshrl.u32 %v6459, 7
      %v6461 = vsub.s32 0, %v6460
      %v6462 = vrot.slane %v6091, %v6461
      %v6463 = vlaneseq
      %v6464 = vshrl.u32 %v6463, 7
      %v6465 = vsub.s32 0, %v6464
      %v6466 = vrot.slane %v6093, %v6465
      %v6467 = vlaneseq
      %v6468 = vshrl.u32 %v6467, 7
      %v6469 = vsub.s32 0, %v6468
      %v6470 = vrot.slane %v6095, %v6469
      %v6471 = vlaneseq
      %v6472 = vshrl.u32 %v6471, 7
      %v6473 = vsub.s32 0, %v6472
      %v6474 = vrot.slane %v6119, %v6473
      %v6475 = vlaneseq
      %v6476 = vshrl.u32 %v6475, 7
      %v6477 = vsub.s32 0, %v6476
      %v6478 = vrot.slane %v6133, %v6477
      %v6479 = vlaneseq
      %v6480 = vshrl.u32 %v6479, 7
      %v6481 = vsub.s32 0, %v6480
      %v6482 = vrot.slane %v6141, %v6481
      %v6483 = vlaneseq
      %v6484 = vshrl.u32 %v6483, 7
      %v6485 = vsub.s32 0, %v6484
      %v6486 = vrot.slane %v6143, %v6485
      %v6487 = vlaneseq
      %v6488 = vshrl.u32 %v6487, 7
      %v6489 = vsub.s32 0, %v6488
      %v6490 = vrot.slane %v6126, %v6489
      %v6491 = vlaneseq
      %v6492 = vshrl.u32 %v6491, 7
      %v6493 = vsub.s32 0, %v6492
      %v6494 = vrot.slane %v6140, %v6493
      %v6495 = vlaneseq
      %v6496 = vshrl.u32 %v6495, 7
      %v6497 = vsub.s32 0, %v6496
      %v6498 = vrot.slane %v6142, %v6497
      %v6499 = vlaneseq
      %v6500 = vshrl.u32 %v6499, 7
      %v6501 = vsub.s32 0, %v6500
      %v6502 = vrot.slane %v6144, %v6501
      %v6503 = vlaneseq
      %v6504 = vshrl.u32 %v6503, 7
      %v6505 = vsub.s32 0, %v6504
      %v6506 = vrot.slane %v6168, %v6505
      %v6507 = vlaneseq
      %v6508 = vshrl.u32 %v6507, 7
      %v6509 = vsub.s32 0, %v6508
      %v6510 = vrot.slane %v6182, %v6509
      %v6511 = vlaneseq
      %v6512 = vshrl.u32 %v6511, 7
      %v6513 = vsub.s32 0, %v6512
      %v6514 = vrot.slane %v6190, %v6513
      %v6515 = vlaneseq
      %v6516 = vshrl.u32 %v6515, 7
      %v6517 = vsub.s32 0, %v6516
      %v6518 = vrot.slane %v6192, %v6517
      %v6519 = vlaneseq
      %v6520 = vshrl.u32 %v6519, 7
      %v6521 = vsub.s32 0, %v6520
      %v6522 = vrot.slane %v6175, %v6521
      %v6523 = vlaneseq
      %v6524 = vshrl.u32 %v6523, 7
      %v6525 = vsub.s32 0, %v6524
      %v6526 = vrot.slane %v6189, %v6525
      %v6527 = vlaneseq
      %v6528 = vshrl.u32 %v6527, 7
      %v6529 = vsub.s32 0, %v6528
      %v6530 = vrot.slane %v6191, %v6529
      %v6531 = vlaneseq
      %v6532 = vshrl.u32 %v6531, 7
      %v6533 = vsub.s32 0, %v6532
      %v6534 = vrot.slane %v6193, %v6533
      %v6535 = vlaneseq
      %v6536 = vshrl.u32 %v6535, 7
      %v6537 = vsub.s32 0, %v6536
      %v6538 = vrot.slane %v6217, %v6537
      %v6539 = vlaneseq
      %v6540 = vshrl.u32 %v6539, 7
      %v6541 = vsub.s32 0, %v6540
      %v6542 = vrot.slane %v6231, %v6541
      %v6543 = vlaneseq
      %v6544 = vshrl.u32 %v6543, 7
      %v6545 = vsub.s32 0, %v6544
      %v6546 = vrot.slane %v6239, %v6545
      %v6547 = vlaneseq
      %v6548 = vshrl.u32 %v6547, 7
      %v6549 = vsub.s32 0, %v6548
      %v6550 = vrot.slane %v6241, %v6549
      %v6551 = vlaneseq
      %v6552 = vshrl.u32 %v6551, 7
      %v6553 = vsub.s32 0, %v6552
      %v6554 = vrot.slane %v6224, %v6553
      %v6555 = vlaneseq
      %v6556 = vshrl.u32 %v6555, 7
      %v6557 = vsub.s32 0, %v6556
      %v6558 = vrot.slane %v6238, %v6557
      %v6559 = vlaneseq
      %v6560 = vshrl.u32 %v6559, 7
      %v6561 = vsub.s32 0, %v6560
      %v6562 = vrot.slane %v6240, %v6561
      %v6563 = vlaneseq
      %v6564 = vshrl.u32 %v6563, 7
      %v6565 = vsub.s32 0, %v6564
      %v6566 = vrot.slane %v6242, %v6565
      %v6567 = vlaneseq
      %v6568 = vshrl.u32 %v6567, 7
      %v6569 = vsub.s32 0, %v6568
      %v6570 = vrot.slane %v6266, %v6569
      %v6571 = vlaneseq
      %v6572 = vshrl.u32 %v6571, 7
      %v6573 = vsub.s32 0, %v6572
      %v6574 = vrot.slane %v6280, %v6573
      %v6575 = vlaneseq
      %v6576 = vshrl.u32 %v6575, 7
      %v6577 = vsub.s32 0, %v6576
      %v6578 = vrot.slane %v6288, %v6577
      %v6579 = vlaneseq
      %v6580 = vshrl.u32 %v6579, 7
      %v6581 = vsub.s32 0, %v6580
      %v6582 = vrot.slane %v6290, %v6581
      %v6583 = vlaneseq
      %v6584 = vshrl.u32 %v6583, 7
      %v6585 = vsub.s32 0, %v6584
      %v6586 = vrot.slane %v6273, %v6585
      %v6587 = vlaneseq
      %v6588 = vshrl.u32 %v6587, 7
      %v6589 = vsub.s32 0, %v6588
      %v6590 = vrot.slane %v6287, %v6589
      %v6591 = vlaneseq
      %v6592 = vshrl.u32 %v6591, 7
      %v6593 = vsub.s32 0, %v6592
      %v6594 = vrot.slane %v6289, %v6593
      %v6595 = vlaneseq
      %v6596 = vshrl.u32 %v6595, 7
      %v6597 = vsub.s32 0, %v6596
      %v6598 = vrot.slane %v6291, %v6597
      %v6599 = vlaneseq
      %v6600 = vshrl.u32 %v6599, 7
      %v6601 = vsub.s32 0, %v6600
      %v6602 = vrot.slane %v6315, %v6601
      %v6603 = vlaneseq
      %v6604 = vshrl.u32 %v6603, 7
      %v6605 = vsub.s32 0, %v6604
      %v6606 = vrot.slane %v6329, %v6605
      %v6607 = vlaneseq
      %v6608 = vshrl.u32 %v6607, 7
      %v6609 = vsub.s32 0, %v6608
      %v6610 = vrot.slane %v6337, %v6609
      %v6611 = vlaneseq
      %v6612 = vshrl.u32 %v6611, 7
      %v6613 = vsub.s32 0, %v6612
      %v6614 = vrot.slane %v6339, %v6613
      %v6615 = vlaneseq
      %v6616 = vshrl.u32 %v6615, 7
      %v6617 = vsub.s32 0, %v6616
      %v6618 = vrot.slane %v6322, %v6617
      %v6619 = vlaneseq
      %v6620 = vshrl.u32 %v6619, 7
      %v6621 = vsub.s32 0, %v6620
      %v6622 = vrot.slane %v6336, %v6621
      %v6623 = vlaneseq
      %v6624 = vshrl.u32 %v6623, 7
      %v6625 = vsub.s32 0, %v6624
      %v6626 = vrot.slane %v6338, %v6625
      %v6627 = vlaneseq
      %v6628 = vshrl.u32 %v6627, 7
      %v6629 = vsub.s32 0, %v6628
      %v6630 = vrot.slane %v6340, %v6629
      %v6631 = vlaneseq
      %v6632 = vshrl.u32 %v6631, 7
      %v6633 = vsub.s32 0, %v6632
      %v6634 = vrot.slane %v6364, %v6633
      %v6635 = vlaneseq
      %v6636 = vshrl.u32 %v6635, 7
      %v6637 = vsub.s32 0, %v6636
      %v6638 = vrot.slane %v6378, %v6637
      %v6639 = vlaneseq
      %v6640 = vshrl.u32 %v6639, 7
      %v6641 = vsub.s32 0, %v6640
      %v6642 = vrot.slane %v6386, %v6641
      %v6643 = vlaneseq
      %v6644 = vshrl.u32 %v6643, 7
      %v6645 = vsub.s32 0, %v6644
      %v6646 = vrot.slane %v6388, %v6645
      %v6647 = vlaneseq
      %v6648 = vshrl.u32 %v6647, 7
      %v6649 = vsub.s32 0, %v6648
      %v6650 = vrot.slane %v6371, %v6649
      %v6651 = vlaneseq
      %v6652 = vshrl.u32 %v6651, 7
      %v6653 = vsub.s32 0, %v6652
      %v6654 = vrot.slane %v6385, %v6653
      %v6655 = vlaneseq
      %v6656 = vshrl.u32 %v6655, 7
      %v6657 = vsub.s32 0, %v6656
      %v6658 = vrot.slane %v6387, %v6657
      %v6659 = vlaneseq
      %v6660 = vshrl.u32 %v6659, 7
      %v6661 = vsub.s32 0, %v6660
      %v6662 = vrot.slane %v6389, %v6661
      %v6663 = vlaneseq
      %v6664 = vshrl.u32 %v6663, 7
      %v6665 = vsub.s32 0, %v6664
      %v6666 = vrot.slane %v6413, %v6665
      %v6667 = vlaneseq
      %v6668 = vshrl.u32 %v6667, 7
      %v6669 = vsub.s32 0, %v6668
      %v6670 = vrot.slane %v6427, %v6669
      %v6671 = vlaneseq
      %v6672 = vshrl.u32 %v6671, 7
      %v6673 = vsub.s32 0, %v6672
      %v6674 = vrot.slane %v6435, %v6673
      %v6675 = vlaneseq
      %v6676 = vshrl.u32 %v6675, 7
      %v6677 = vsub.s32 0, %v6676
      %v6678 = vrot.slane %v6437, %v6677
      %v6679 = vlaneseq
      %v6680 = vshrl.u32 %v6679, 7
      %v6681 = vsub.s32 0, %v6680
      %v6682 = vrot.slane %v6420, %v6681
      %v6683 = vlaneseq
      %v6684 = vshrl.u32 %v6683, 7
      %v6685 = vsub.s32 0, %v6684
      %v6686 = vrot.slane %v6434, %v6685
      %v6687 = vlaneseq
      %v6688 = vshrl.u32 %v6687, 7
      %v6689 = vsub.s32 0, %v6688
      %v6690 = vrot.slane %v6436, %v6689
      %v6691 = vlaneseq
      %v6692 = vshrl.u32 %v6691, 7
      %v6693 = vsub.s32 0, %v6692
      %v6694 = vrot.slane %v6438, %v6693
      %6695 = vst.msk [vmem:[#allocation2] sm:$0xff] %vm2028, 0.0
      %6696 = vst.msk [vmem:[#allocation2 + $0x8] sm:$0xff] %vm2028, 0.0
      %6697 = vst.msk [vmem:[#allocation2 + $0x10] sm:$0x3] %vm5229, 0.0
      %6698 = vst.msk [vmem:[#allocation2 + $0x18] sm:$0xff] %vm2028, 0.0
      %6699 = vst.msk [vmem:[#allocation2 + $0x20] sm:$0xff] %vm2028, 0.0
      %6700 = vst.msk [vmem:[#allocation2 + $0x28] sm:$0x3] %vm5229, 0.0
      %6701 = vst.msk [vmem:[#allocation2 + $0x30] sm:$0xff] %vm2028, 0.0
      %6702 = vst.msk [vmem:[#allocation2 + $0x38] sm:$0xff] %vm2028, 0.0
      %6703 = vst.msk [vmem:[#allocation2 + $0x40] sm:$0x3] %vm5229, 0.0
      %6704 = vst.msk [vmem:[#allocation2 + $0x48] sm:$0xff] %vm2028, 0.0
      %6705 = vst.msk [vmem:[#allocation2 + $0x50] sm:$0xff] %vm2028, 0.0
      %6706 = vst.msk [vmem:[#allocation2 + $0x58] sm:$0x3] %vm5229, 0.0
      %6707 = vst.msk [vmem:[#allocation2 + $0x60] sm:$0xff] %vm2028, 0.0
      %6708 = vst.msk [vmem:[#allocation2 + $0x68] sm:$0xff] %vm2028, 0.0
      %6709 = vst.msk [vmem:[#allocation2 + $0x70] sm:$0x3] %vm5229, 0.0
      %6710 = vst.msk [vmem:[#allocation2 + $0x78] sm:$0xff] %vm2028, 0.0
      %6711 = vst.msk [vmem:[#allocation2 + $0x80] sm:$0xff] %vm2028, 0.0
      %6712 = vst.msk [vmem:[#allocation2 + $0x88] sm:$0x3] %vm5229, 0.0
      %6713 = vst.msk [vmem:[#allocation2 + $0x90] sm:$0xff] %vm2028, 0.0
      %6714 = vst.msk [vmem:[#allocation2 + $0x98] sm:$0xff] %vm2028, 0.0
      %6715 = vst.msk [vmem:[#allocation2 + $0xa0] sm:$0x3] %vm5229, 0.0
      %6716 = vst.msk [vmem:[#allocation2 + $0xa8] sm:$0xff] %vm2028, 0.0
      %6717 = vst.msk [vmem:[#allocation2 + $0xb0] sm:$0xff] %vm2028, 0.0
      %6718 = vst.msk [vmem:[#allocation2 + $0xb8] sm:$0x3] %vm5229, 0.0
      %6719 = vst.msk [vmem:[#allocation2 + $0xc0] sm:$0xff] %vm2028, 0.0
      %6720 = vst.msk [vmem:[#allocation2 + $0xc8] sm:$0xff] %vm2028, 0.0
      %6721 = vst.msk [vmem:[#allocation2 + $0xd0] sm:$0x3] %vm5229, 0.0
      %6722 = vst.msk [vmem:[#allocation2 + $0xd8] sm:$0xff] %vm2028, 0.0
      %6723 = vst.msk [vmem:[#allocation2 + $0xe0] sm:$0xff] %vm2028, 0.0
      %6724 = vst.msk [vmem:[#allocation2 + $0xe8] sm:$0x3] %vm5229, 0.0
      %6725 = vst.msk [vmem:[#allocation2 + $0xf0] sm:$0xff] %vm2028, 0.0
      %6726 = vst.msk [vmem:[#allocation2 + $0xf8] sm:$0xff] %vm2028, 0.0
      %6727 = vst.msk [vmem:[#allocation2 + $0x100] sm:$0x3] %vm5229, 0.0
      %6728 = vst.msk [vmem:[#allocation2 + $0x108] sm:$0xff] %vm2028, 0.0
      %6729 = vst.msk [vmem:[#allocation2 + $0x110] sm:$0xff] %vm2028, 0.0
      %6730 = vst.msk [vmem:[#allocation2 + $0x118] sm:$0x3] %vm5229, 0.0
      %6731 = vst.msk [vmem:[#allocation2 + $0x120] sm:$0xff] %vm2028, 0.0
      %6732 = vst.msk [vmem:[#allocation2 + $0x128] sm:$0xff] %vm2028, 0.0
      %6733 = vst.msk [vmem:[#allocation2 + $0x130] sm:$0x3] %vm5229, 0.0
      %6734 = vst.msk [vmem:[#allocation2 + $0x138] sm:$0xff] %vm2028, 0.0
      %6735 = vst.msk [vmem:[#allocation2 + $0x140] sm:$0xff] %vm2028, 0.0
      %6736 = vst.msk [vmem:[#allocation2 + $0x148] sm:$0x3] %vm5229, 0.0
      %6737 = vst.msk [vmem:[#allocation2 + $0x150] sm:$0xff] %vm2028, 0.0
      %6738 = vst.msk [vmem:[#allocation2 + $0x158] sm:$0xff] %vm2028, 0.0
      %6739 = vst.msk [vmem:[#allocation2 + $0x160] sm:$0x3] %vm5229, 0.0
      %6740 = vst.msk [vmem:[#allocation2 + $0x168] sm:$0xff] %vm2028, 0.0
      %6741 = vst.msk [vmem:[#allocation2 + $0x170] sm:$0xff] %vm2028, 0.0
      %6742 = vst.msk [vmem:[#allocation2 + $0x178] sm:$0x3] %vm5229, 0.0
      %6743 = vst.msk [vmem:[#allocation2 + $0x180] sm:$0xff] %vm2028, 0.0
      %6744 = vst.msk [vmem:[#allocation2 + $0x188] sm:$0xff] %vm2028, 0.0
      %6745 = vst.msk [vmem:[#allocation2 + $0x190] sm:$0x3] %vm5229, 0.0
      %6746 = vst.msk [vmem:[#allocation2 + $0x198] sm:$0xff] %vm2028, 0.0
      %6747 = vst.msk [vmem:[#allocation2 + $0x1a0] sm:$0xff] %vm2028, 0.0
      %6748 = vst.msk [vmem:[#allocation2 + $0x1a8] sm:$0x3] %vm5229, 0.0
      %v6749 = vcombine.low %v6442, %v6446
      %v6750 = vcombine.low %v6450, %v6454
      %v6752 = vunpack.c.l.s4 1983009808
      %v6753 = vunpack.c.0.s8 %v6752
      %v6754 = vlaneseq
      %v6755 = vshrl.u32 %v6754, 7
      %v6756 = vsub.s32 %v6753, %v6755
      %v6757 = vrot.slane %v6749, %v6756
      %v6759 = vunpack.c.l.s4 1983009808
      %v6760 = vunpack.c.0.s8 %v6759
      %v6761 = vlaneseq
      %v6762 = vshrl.u32 %v6761, 7
      %v6763 = vsub.s32 %v6760, %v6762
      %v6764 = vrot.slane %v6750, %v6763
      %v6765 = vcombine.low %v6757, %v6764
      %v6766 = vcombine.low %v6458, %v6462
      %v6767 = vcombine.low %v6466, %v6470
      %v6769 = vunpack.c.l.s4 1983009808
      %v6770 = vunpack.c.0.s8 %v6769
      %v6771 = vlaneseq
      %v6772 = vshrl.u32 %v6771, 7
      %v6773 = vsub.s32 %v6770, %v6772
      %v6774 = vrot.slane %v6766, %v6773
      %v6776 = vunpack.c.l.s4 1983009808
      %v6777 = vunpack.c.0.s8 %v6776
      %v6778 = vlaneseq
      %v6779 = vshrl.u32 %v6778, 7
      %v6780 = vsub.s32 %v6777, %v6779
      %v6781 = vrot.slane %v6767, %v6780
      %v6782 = vcombine.low %v6774, %v6781
      %v6783 = vcombine.low %v6474, %v6478
      %v6784 = vcombine.low %v6482, %v6486
      %v6786 = vunpack.c.l.s4 1983009808
      %v6787 = vunpack.c.0.s8 %v6786
      %v6788 = vlaneseq
      %v6789 = vshrl.u32 %v6788, 7
      %v6790 = vsub.s32 %v6787, %v6789
      %v6791 = vrot.slane %v6783, %v6790
      %v6793 = vunpack.c.l.s4 1983009808
      %v6794 = vunpack.c.0.s8 %v6793
      %v6795 = vlaneseq
      %v6796 = vshrl.u32 %v6795, 7
      %v6797 = vsub.s32 %v6794, %v6796
      %v6798 = vrot.slane %v6784, %v6797
      %v6799 = vcombine.low %v6791, %v6798
      %v6800 = vcombine.low %v6490, %v6494
      %v6801 = vcombine.low %v6498, %v6502
      %v6803 = vunpack.c.l.s4 1983009808
      %v6804 = vunpack.c.0.s8 %v6803
      %v6805 = vlaneseq
      %v6806 = vshrl.u32 %v6805, 7
      %v6807 = vsub.s32 %v6804, %v6806
      %v6808 = vrot.slane %v6800, %v6807
      %v6810 = vunpack.c.l.s4 1983009808
      %v6811 = vunpack.c.0.s8 %v6810
      %v6812 = vlaneseq
      %v6813 = vshrl.u32 %v6812, 7
      %v6814 = vsub.s32 %v6811, %v6813
      %v6815 = vrot.slane %v6801, %v6814
      %v6816 = vcombine.low %v6808, %v6815
      %v6817 = vcombine.low %v6506, %v6510
      %v6818 = vcombine.low %v6514, %v6518
      %v6820 = vunpack.c.l.s4 1983009808
      %v6821 = vunpack.c.0.s8 %v6820
      %v6822 = vlaneseq
      %v6823 = vshrl.u32 %v6822, 7
      %v6824 = vsub.s32 %v6821, %v6823
      %v6825 = vrot.slane %v6817, %v6824
      %v6827 = vunpack.c.l.s4 1983009808
      %v6828 = vunpack.c.0.s8 %v6827
      %v6829 = vlaneseq
      %v6830 = vshrl.u32 %v6829, 7
      %v6831 = vsub.s32 %v6828, %v6830
      %v6832 = vrot.slane %v6818, %v6831
      %v6833 = vcombine.low %v6825, %v6832
      %v6834 = vcombine.low %v6522, %v6526
      %v6835 = vcombine.low %v6530, %v6534
      %v6837 = vunpack.c.l.s4 1983009808
      %v6838 = vunpack.c.0.s8 %v6837
      %v6839 = vlaneseq
      %v6840 = vshrl.u32 %v6839, 7
      %v6841 = vsub.s32 %v6838, %v6840
      %v6842 = vrot.slane %v6834, %v6841
      %v6844 = vunpack.c.l.s4 1983009808
      %v6845 = vunpack.c.0.s8 %v6844
      %v6846 = vlaneseq
      %v6847 = vshrl.u32 %v6846, 7
      %v6848 = vsub.s32 %v6845, %v6847
      %v6849 = vrot.slane %v6835, %v6848
      %v6850 = vcombine.low %v6842, %v6849
      %v6851 = vcombine.low %v6538, %v6542
      %v6852 = vcombine.low %v6546, %v6550
      %v6854 = vunpack.c.l.s4 1983009808
      %v6855 = vunpack.c.0.s8 %v6854
      %v6856 = vlaneseq
      %v6857 = vshrl.u32 %v6856, 7
      %v6858 = vsub.s32 %v6855, %v6857
      %v6859 = vrot.slane %v6851, %v6858
      %v6861 = vunpack.c.l.s4 1983009808
      %v6862 = vunpack.c.0.s8 %v6861
      %v6863 = vlaneseq
      %v6864 = vshrl.u32 %v6863, 7
      %v6865 = vsub.s32 %v6862, %v6864
      %v6866 = vrot.slane %v6852, %v6865
      %v6867 = vcombine.low %v6859, %v6866
      %v6868 = vcombine.low %v6554, %v6558
      %v6869 = vcombine.low %v6562, %v6566
      %v6871 = vunpack.c.l.s4 1983009808
      %v6872 = vunpack.c.0.s8 %v6871
      %v6873 = vlaneseq
      %v6874 = vshrl.u32 %v6873, 7
      %v6875 = vsub.s32 %v6872, %v6874
      %v6876 = vrot.slane %v6868, %v6875
      %v6878 = vunpack.c.l.s4 1983009808
      %v6879 = vunpack.c.0.s8 %v6878
      %v6880 = vlaneseq
      %v6881 = vshrl.u32 %v6880, 7
      %v6882 = vsub.s32 %v6879, %v6881
      %v6883 = vrot.slane %v6869, %v6882
      %v6884 = vcombine.low %v6876, %v6883
      %v6885 = vcombine.low %v6570, %v6574
      %v6886 = vcombine.low %v6578, %v6582
      %v6888 = vunpack.c.l.s4 1983009808
      %v6889 = vunpack.c.0.s8 %v6888
      %v6890 = vlaneseq
      %v6891 = vshrl.u32 %v6890, 7
      %v6892 = vsub.s32 %v6889, %v6891
      %v6893 = vrot.slane %v6885, %v6892
      %v6895 = vunpack.c.l.s4 1983009808
      %v6896 = vunpack.c.0.s8 %v6895
      %v6897 = vlaneseq
      %v6898 = vshrl.u32 %v6897, 7
      %v6899 = vsub.s32 %v6896, %v6898
      %v6900 = vrot.slane %v6886, %v6899
      %v6901 = vcombine.low %v6893, %v6900
      %v6902 = vcombine.low %v6586, %v6590
      %v6903 = vcombine.low %v6594, %v6598
      %v6905 = vunpack.c.l.s4 1983009808
      %v6906 = vunpack.c.0.s8 %v6905
      %v6907 = vlaneseq
      %v6908 = vshrl.u32 %v6907, 7
      %v6909 = vsub.s32 %v6906, %v6908
      %v6910 = vrot.slane %v6902, %v6909
      %v6912 = vunpack.c.l.s4 1983009808
      %v6913 = vunpack.c.0.s8 %v6912
      %v6914 = vlaneseq
      %v6915 = vshrl.u32 %v6914, 7
      %v6916 = vsub.s32 %v6913, %v6915
      %v6917 = vrot.slane %v6903, %v6916
      %v6918 = vcombine.low %v6910, %v6917
      %v6919 = vcombine.low %v6602, %v6606
      %v6920 = vcombine.low %v6610, %v6614
      %v6922 = vunpack.c.l.s4 1983009808
      %v6923 = vunpack.c.0.s8 %v6922
      %v6924 = vlaneseq
      %v6925 = vshrl.u32 %v6924, 7
      %v6926 = vsub.s32 %v6923, %v6925
      %v6927 = vrot.slane %v6919, %v6926
      %v6929 = vunpack.c.l.s4 1983009808
      %v6930 = vunpack.c.0.s8 %v6929
      %v6931 = vlaneseq
      %v6932 = vshrl.u32 %v6931, 7
      %v6933 = vsub.s32 %v6930, %v6932
      %v6934 = vrot.slane %v6920, %v6933
      %v6935 = vcombine.low %v6927, %v6934
      %v6936 = vcombine.low %v6618, %v6622
      %v6937 = vcombine.low %v6626, %v6630
      %v6939 = vunpack.c.l.s4 1983009808
      %v6940 = vunpack.c.0.s8 %v6939
      %v6941 = vlaneseq
      %v6942 = vshrl.u32 %v6941, 7
      %v6943 = vsub.s32 %v6940, %v6942
      %v6944 = vrot.slane %v6936, %v6943
      %v6946 = vunpack.c.l.s4 1983009808
      %v6947 = vunpack.c.0.s8 %v6946
      %v6948 = vlaneseq
      %v6949 = vshrl.u32 %v6948, 7
      %v6950 = vsub.s32 %v6947, %v6949
      %v6951 = vrot.slane %v6937, %v6950
      %v6952 = vcombine.low %v6944, %v6951
      %v6953 = vcombine.low %v6634, %v6638
      %v6954 = vcombine.low %v6642, %v6646
      %v6956 = vunpack.c.l.s4 1983009808
      %v6957 = vunpack.c.0.s8 %v6956
      %v6958 = vlaneseq
      %v6959 = vshrl.u32 %v6958, 7
      %v6960 = vsub.s32 %v6957, %v6959
      %v6961 = vrot.slane %v6953, %v6960
      %v6963 = vunpack.c.l.s4 1983009808
      %v6964 = vunpack.c.0.s8 %v6963
      %v6965 = vlaneseq
      %v6966 = vshrl.u32 %v6965, 7
      %v6967 = vsub.s32 %v6964, %v6966
      %v6968 = vrot.slane %v6954, %v6967
      %v6969 = vcombine.low %v6961, %v6968
      %v6970 = vcombine.low %v6650, %v6654
      %v6971 = vcombine.low %v6658, %v6662
      %v6973 = vunpack.c.l.s4 1983009808
      %v6974 = vunpack.c.0.s8 %v6973
      %v6975 = vlaneseq
      %v6976 = vshrl.u32 %v6975, 7
      %v6977 = vsub.s32 %v6974, %v6976
      %v6978 = vrot.slane %v6970, %v6977
      %v6980 = vunpack.c.l.s4 1983009808
      %v6981 = vunpack.c.0.s8 %v6980
      %v6982 = vlaneseq
      %v6983 = vshrl.u32 %v6982, 7
      %v6984 = vsub.s32 %v6981, %v6983
      %v6985 = vrot.slane %v6971, %v6984
      %v6986 = vcombine.low %v6978, %v6985
      %v6987 = vcombine.low %v6666, %v6670
      %v6988 = vcombine.low %v6674, %v6678
      %v6990 = vunpack.c.l.s4 1983009808
      %v6991 = vunpack.c.0.s8 %v6990
      %v6992 = vlaneseq
      %v6993 = vshrl.u32 %v6992, 7
      %v6994 = vsub.s32 %v6991, %v6993
      %v6995 = vrot.slane %v6987, %v6994
      %v6997 = vunpack.c.l.s4 1983009808
      %v6998 = vunpack.c.0.s8 %v6997
      %v6999 = vlaneseq
      %v7000 = vshrl.u32 %v6999, 7
      %v7001 = vsub.s32 %v6998, %v7000
      %v7002 = vrot.slane %v6988, %v7001
      %v7003 = vcombine.low %v6995, %v7002
      %v7004 = vcombine.low %v6682, %v6686
      %v7005 = vcombine.low %v6690, %v6694
      %v7007 = vunpack.c.l.s4 1983009808
      %v7008 = vunpack.c.0.s8 %v7007
      %v7009 = vlaneseq
      %v7010 = vshrl.u32 %v7009, 7
      %v7011 = vsub.s32 %v7008, %v7010
      %v7012 = vrot.slane %v7004, %v7011
      %v7014 = vunpack.c.l.s4 1983009808
      %v7015 = vunpack.c.0.s8 %v7014
      %v7016 = vlaneseq
      %v7017 = vshrl.u32 %v7016, 7
      %v7018 = vsub.s32 %v7015, %v7017
      %v7019 = vrot.slane %v7005, %v7018
      %v7020 = vcombine.low %v7012, %v7019
      %7037 = vst.msk [vmem:[%s584 + $0x1] sm:$0xff] %vm2028, %v6765
      %7038 = vst.msk [vmem:[%s584 + $0x9] sm:$0xff] %vm2028, %v6782
      %7039 = vst.msk [vmem:[%s584 + $0x19] sm:$0xff] %vm2028, %v6765
      %7040 = vst.msk [vmem:[%s584 + $0x21] sm:$0xff] %vm2028, %v6782
      %7041 = vst.msk [vmem:[%s584 + $0x31] sm:$0xff] %vm2028, %v6799
      %7042 = vst.msk [vmem:[%s584 + $0x39] sm:$0xff] %vm2028, %v6816
      %7043 = vst.msk [vmem:[%s584 + $0x49] sm:$0xff] %vm2028, %v6799
      %7044 = vst.msk [vmem:[%s584 + $0x51] sm:$0xff] %vm2028, %v6816
      %7045 = vst.msk [vmem:[%s584 + $0x61] sm:$0xff] %vm2028, %v6833
      %7046 = vst.msk [vmem:[%s584 + $0x69] sm:$0xff] %vm2028, %v6850
      %7047 = vst.msk [vmem:[%s584 + $0x79] sm:$0xff] %vm2028, %v6833
      %7048 = vst.msk [vmem:[%s584 + $0x81] sm:$0xff] %vm2028, %v6850
      %7049 = vst.msk [vmem:[%s584 + $0x91] sm:$0xff] %vm2028, %v6867
      %7050 = vst.msk [vmem:[%s584 + $0x99] sm:$0xff] %vm2028, %v6884
      %7051 = vst.msk [vmem:[%s584 + $0xa9] sm:$0xff] %vm2028, %v6867
      %7052 = vst.msk [vmem:[%s584 + $0xb1] sm:$0xff] %vm2028, %v6884
      %7053 = vst.msk [vmem:[%s584 + $0xc1] sm:$0xff] %vm2028, %v6901
      %7054 = vst.msk [vmem:[%s584 + $0xc9] sm:$0xff] %vm2028, %v6918
      %7055 = vst.msk [vmem:[%s584 + $0xd9] sm:$0xff] %vm2028, %v6901
      %7056 = vst.msk [vmem:[%s584 + $0xe1] sm:$0xff] %vm2028, %v6918
      %7057 = vst.msk [vmem:[%s584 + $0xf1] sm:$0xff] %vm2028, %v6935
      %7058 = vst.msk [vmem:[%s584 + $0xf9] sm:$0xff] %vm2028, %v6952
      %7059 = vst.msk [vmem:[%s584 + $0x109] sm:$0xff] %vm2028, %v6935
      %7060 = vst.msk [vmem:[%s584 + $0x111] sm:$0xff] %vm2028, %v6952
      %7061 = vst.msk [vmem:[%s584 + $0x121] sm:$0xff] %vm2028, %v6969
      %7062 = vst.msk [vmem:[%s584 + $0x129] sm:$0xff] %vm2028, %v6986
      %7063 = vst.msk [vmem:[%s584 + $0x139] sm:$0xff] %vm2028, %v6969
      %7064 = vst.msk [vmem:[%s584 + $0x141] sm:$0xff] %vm2028, %v6986
      %7065 = vst.msk [vmem:[%s584 + $0x151] sm:$0xff] %vm2028, %v7003
      %7066 = vst.msk [vmem:[%s584 + $0x159] sm:$0xff] %vm2028, %v7020
      %7067 = vst.msk [vmem:[%s584 + $0x169] sm:$0xff] %vm2028, %v7003
      %7068 = vst.msk [vmem:[%s584 + $0x171] sm:$0xff] %vm2028, %v7020
      %v7069 = vld [vmem:[#allocation2] sm:$0xff]
      %v7070 = vld [vmem:[#allocation2 + $0x8] sm:$0xff]
      %v7071 = vld [vmem:[#allocation2 + $0x18] sm:$0xff]
      %v7072 = vld [vmem:[#allocation2 + $0x20] sm:$0xff]
      %v7073 = vld [vmem:[#allocation2 + $0x30] sm:$0xff]
      %v7074 = vld [vmem:[#allocation2 + $0x38] sm:$0xff]
      %v7075 = vld [vmem:[#allocation2 + $0x48] sm:$0xff]
      %v7076 = vld [vmem:[#allocation2 + $0x50] sm:$0xff]
      %v7077 = vld [vmem:[#allocation2 + $0x60] sm:$0xff]
      %v7078 = vld [vmem:[#allocation2 + $0x68] sm:$0xff]
      %v7079 = vld [vmem:[#allocation2 + $0x78] sm:$0xff]
      %v7080 = vld [vmem:[#allocation2 + $0x80] sm:$0xff]
      %v7081 = vld [vmem:[#allocation2 + $0x90] sm:$0xff]
      %v7082 = vld [vmem:[#allocation2 + $0x98] sm:$0xff]
      %v7083 = vld [vmem:[#allocation2 + $0xa8] sm:$0xff]
      %v7084 = vld [vmem:[#allocation2 + $0xb0] sm:$0xff]
      %v7085 = vld [vmem:[#allocation2 + $0xc0] sm:$0xff]
      %v7086 = vld [vmem:[#allocation2 + $0xc8] sm:$0xff]
      %v7087 = vld [vmem:[#allocation2 + $0xd8] sm:$0xff]
      %v7088 = vld [vmem:[#allocation2 + $0xe0] sm:$0xff]
      %v7089 = vld [vmem:[#allocation2 + $0xf0] sm:$0xff]
      %v7090 = vld [vmem:[#allocation2 + $0xf8] sm:$0xff]
      %v7091 = vld [vmem:[#allocation2 + $0x108] sm:$0xff]
      %v7092 = vld [vmem:[#allocation2 + $0x110] sm:$0xff]
      %v7093 = vld [vmem:[#allocation2 + $0x120] sm:$0xff]
      %v7094 = vld [vmem:[#allocation2 + $0x128] sm:$0xff]
      %v7095 = vld [vmem:[#allocation2 + $0x138] sm:$0xff]
      %v7096 = vld [vmem:[#allocation2 + $0x140] sm:$0xff]
      %v7097 = vld [vmem:[#allocation2 + $0x150] sm:$0xff]
      %v7098 = vld [vmem:[#allocation2 + $0x158] sm:$0xff]
      %v7099 = vld [vmem:[#allocation2 + $0x168] sm:$0xff]
      %v7100 = vld [vmem:[#allocation2 + $0x170] sm:$0xff]
      %v7101 = vld [vmem:[#allocation2 + $0x1] sm:$0xff]
      %v7102 = vld [vmem:[#allocation2 + $0x9] sm:$0xff]
      %v7103 = vld [vmem:[#allocation2 + $0x19] sm:$0xff]
      %v7104 = vld [vmem:[#allocation2 + $0x21] sm:$0xff]
      %v7105 = vld [vmem:[#allocation2 + $0x31] sm:$0xff]
      %v7106 = vld [vmem:[#allocation2 + $0x39] sm:$0xff]
      %v7107 = vld [vmem:[#allocation2 + $0x49] sm:$0xff]
      %v7108 = vld [vmem:[#allocation2 + $0x51] sm:$0xff]
      %v7109 = vld [vmem:[#allocation2 + $0x61] sm:$0xff]
      %v7110 = vld [vmem:[#allocation2 + $0x69] sm:$0xff]
      %v7111 = vld [vmem:[#allocation2 + $0x79] sm:$0xff]
      %v7112 = vld [vmem:[#allocation2 + $0x81] sm:$0xff]
      %v7113 = vld [vmem:[#allocation2 + $0x91] sm:$0xff]
      %v7114 = vld [vmem:[#allocation2 + $0x99] sm:$0xff]
      %v7115 = vld [vmem:[#allocation2 + $0xa9] sm:$0xff]
      %v7116 = vld [vmem:[#allocation2 + $0xb1] sm:$0xff]
      %v7117 = vld [vmem:[#allocation2 + $0xc1] sm:$0xff]
      %v7118 = vld [vmem:[#allocation2 + $0xc9] sm:$0xff]
      %v7119 = vld [vmem:[#allocation2 + $0xd9] sm:$0xff]
      %v7120 = vld [vmem:[#allocation2 + $0xe1] sm:$0xff]
      %v7121 = vld [vmem:[#allocation2 + $0xf1] sm:$0xff]
      %v7122 = vld [vmem:[#allocation2 + $0xf9] sm:$0xff]
      %v7123 = vld [vmem:[#allocation2 + $0x109] sm:$0xff]
      %v7124 = vld [vmem:[#allocation2 + $0x111] sm:$0xff]
      %v7125 = vld [vmem:[#allocation2 + $0x121] sm:$0xff]
      %v7126 = vld [vmem:[#allocation2 + $0x129] sm:$0xff]
      %v7127 = vld [vmem:[#allocation2 + $0x139] sm:$0xff]
      %v7128 = vld [vmem:[#allocation2 + $0x141] sm:$0xff]
      %v7129 = vld [vmem:[#allocation2 + $0x151] sm:$0xff]
      %v7130 = vld [vmem:[#allocation2 + $0x159] sm:$0xff]
      %v7131 = vld [vmem:[#allocation2 + $0x169] sm:$0xff]
      %v7132 = vld [vmem:[#allocation2 + $0x171] sm:$0xff]
      %v7133 = vld [vmem:[#allocation2 + $0x2] sm:$0xff]
      %v7134 = vld [vmem:[#allocation2 + $0xa] sm:$0xff]
      %v7135 = vld [vmem:[#allocation2 + $0x1a] sm:$0xff]
      %v7136 = vld [vmem:[#allocation2 + $0x22] sm:$0xff]
      %v7137 = vld [vmem:[#allocation2 + $0x32] sm:$0xff]
      %v7138 = vld [vmem:[#allocation2 + $0x3a] sm:$0xff]
      %v7139 = vld [vmem:[#allocation2 + $0x4a] sm:$0xff]
      %v7140 = vld [vmem:[#allocation2 + $0x52] sm:$0xff]
      %v7141 = vld [vmem:[#allocation2 + $0x62] sm:$0xff]
      %v7142 = vld [vmem:[#allocation2 + $0x6a] sm:$0xff]
      %v7143 = vld [vmem:[#allocation2 + $0x7a] sm:$0xff]
      %v7144 = vld [vmem:[#allocation2 + $0x82] sm:$0xff]
      %v7145 = vld [vmem:[#allocation2 + $0x92] sm:$0xff]
      %v7146 = vld [vmem:[#allocation2 + $0x9a] sm:$0xff]
      %v7147 = vld [vmem:[#allocation2 + $0xaa] sm:$0xff]
      %v7148 = vld [vmem:[#allocation2 + $0xb2] sm:$0xff]
      %v7149 = vld [vmem:[#allocation2 + $0xc2] sm:$0xff]
      %v7150 = vld [vmem:[#allocation2 + $0xca] sm:$0xff]
      %v7151 = vld [vmem:[#allocation2 + $0xda] sm:$0xff]
      %v7152 = vld [vmem:[#allocation2 + $0xe2] sm:$0xff]
      %v7153 = vld [vmem:[#allocation2 + $0xf2] sm:$0xff]
      %v7154 = vld [vmem:[#allocation2 + $0xfa] sm:$0xff]
      %v7155 = vld [vmem:[#allocation2 + $0x10a] sm:$0xff]
      %v7156 = vld [vmem:[#allocation2 + $0x112] sm:$0xff]
      %v7157 = vld [vmem:[#allocation2 + $0x122] sm:$0xff]
      %v7158 = vld [vmem:[#allocation2 + $0x12a] sm:$0xff]
      %v7159 = vld [vmem:[#allocation2 + $0x13a] sm:$0xff]
      %v7160 = vld [vmem:[#allocation2 + $0x142] sm:$0xff]
      %v7161 = vld [vmem:[#allocation2 + $0x152] sm:$0xff]
      %v7162 = vld [vmem:[#allocation2 + $0x15a] sm:$0xff]
      %v7163 = vld [vmem:[#allocation2 + $0x16a] sm:$0xff]
      %v7164 = vld [vmem:[#allocation2 + $0x172] sm:$0xff]
      %v7165 = vld [vmem:[%s584] sm:$0xff]
      %v7166 = vld [vmem:[%s584 + $0x8] sm:$0xff]
      %v7167 = vld [vmem:[%s584 + $0x18] sm:$0xff]
      %v7168 = vld [vmem:[%s584 + $0x20] sm:$0xff]
      %v7169 = vld [vmem:[%s584 + $0x30] sm:$0xff]
      %v7170 = vld [vmem:[%s584 + $0x38] sm:$0xff]
      %v7171 = vld [vmem:[%s584 + $0x48] sm:$0xff]
      %v7172 = vld [vmem:[%s584 + $0x50] sm:$0xff]
      %v7173 = vld [vmem:[%s584 + $0x60] sm:$0xff]
      %v7174 = vld [vmem:[%s584 + $0x68] sm:$0xff]
      %v7175 = vld [vmem:[%s584 + $0x78] sm:$0xff]
      %v7176 = vld [vmem:[%s584 + $0x80] sm:$0xff]
      %v7177 = vld [vmem:[%s584 + $0x90] sm:$0xff]
      %v7178 = vld [vmem:[%s584 + $0x98] sm:$0xff]
      %v7179 = vld [vmem:[%s584 + $0xa8] sm:$0xff]
      %v7180 = vld [vmem:[%s584 + $0xb0] sm:$0xff]
      %v7181 = vld [vmem:[%s584 + $0xc0] sm:$0xff]
      %v7182 = vld [vmem:[%s584 + $0xc8] sm:$0xff]
      %v7183 = vld [vmem:[%s584 + $0xd8] sm:$0xff]
      %v7184 = vld [vmem:[%s584 + $0xe0] sm:$0xff]
      %v7185 = vld [vmem:[%s584 + $0xf0] sm:$0xff]
      %v7186 = vld [vmem:[%s584 + $0xf8] sm:$0xff]
      %v7187 = vld [vmem:[%s584 + $0x108] sm:$0xff]
      %v7188 = vld [vmem:[%s584 + $0x110] sm:$0xff]
      %v7189 = vld [vmem:[%s584 + $0x120] sm:$0xff]
      %v7190 = vld [vmem:[%s584 + $0x128] sm:$0xff]
      %v7191 = vld [vmem:[%s584 + $0x138] sm:$0xff]
      %v7192 = vld [vmem:[%s584 + $0x140] sm:$0xff]
      %v7193 = vld [vmem:[%s584 + $0x150] sm:$0xff]
      %v7194 = vld [vmem:[%s584 + $0x158] sm:$0xff]
      %v7195 = vld [vmem:[%s584 + $0x168] sm:$0xff]
      %v7196 = vld [vmem:[%s584 + $0x170] sm:$0xff]
      %v7197 = vld [vmem:[%s584 + $0x1] sm:$0xff]
      %v7198 = vld [vmem:[%s584 + $0x9] sm:$0xff]
      %v7199 = vld [vmem:[%s584 + $0x19] sm:$0xff]
      %v7200 = vld [vmem:[%s584 + $0x21] sm:$0xff]
      %v7201 = vld [vmem:[%s584 + $0x31] sm:$0xff]
      %v7202 = vld [vmem:[%s584 + $0x39] sm:$0xff]
      %v7203 = vld [vmem:[%s584 + $0x49] sm:$0xff]
      %v7204 = vld [vmem:[%s584 + $0x51] sm:$0xff]
      %v7205 = vld [vmem:[%s584 + $0x61] sm:$0xff]
      %v7206 = vld [vmem:[%s584 + $0x69] sm:$0xff]
      %v7207 = vld [vmem:[%s584 + $0x79] sm:$0xff]
      %v7208 = vld [vmem:[%s584 + $0x81] sm:$0xff]
      %v7209 = vld [vmem:[%s584 + $0x91] sm:$0xff]
      %v7210 = vld [vmem:[%s584 + $0x99] sm:$0xff]
      %v7211 = vld [vmem:[%s584 + $0xa9] sm:$0xff]
      %v7212 = vld [vmem:[%s584 + $0xb1] sm:$0xff]
      %v7213 = vld [vmem:[%s584 + $0xc1] sm:$0xff]
      %v7214 = vld [vmem:[%s584 + $0xc9] sm:$0xff]
      %v7215 = vld [vmem:[%s584 + $0xd9] sm:$0xff]
      %v7216 = vld [vmem:[%s584 + $0xe1] sm:$0xff]
      %v7217 = vld [vmem:[%s584 + $0xf1] sm:$0xff]
      %v7218 = vld [vmem:[%s584 + $0xf9] sm:$0xff]
      %v7219 = vld [vmem:[%s584 + $0x109] sm:$0xff]
      %v7220 = vld [vmem:[%s584 + $0x111] sm:$0xff]
      %v7221 = vld [vmem:[%s584 + $0x121] sm:$0xff]
      %v7222 = vld [vmem:[%s584 + $0x129] sm:$0xff]
      %v7223 = vld [vmem:[%s584 + $0x139] sm:$0xff]
      %v7224 = vld [vmem:[%s584 + $0x141] sm:$0xff]
      %v7225 = vld [vmem:[%s584 + $0x151] sm:$0xff]
      %v7226 = vld [vmem:[%s584 + $0x159] sm:$0xff]
      %v7227 = vld [vmem:[%s584 + $0x169] sm:$0xff]
      %v7228 = vld [vmem:[%s584 + $0x171] sm:$0xff]
      %v7229 = vld [vmem:[%s584 + $0x2] sm:$0xff]
      %v7230 = vld [vmem:[%s584 + $0xa] sm:$0xff]
      %v7231 = vld [vmem:[%s584 + $0x1a] sm:$0xff]
      %v7232 = vld [vmem:[%s584 + $0x22] sm:$0xff]
      %v7233 = vld [vmem:[%s584 + $0x32] sm:$0xff]
      %v7234 = vld [vmem:[%s584 + $0x3a] sm:$0xff]
      %v7235 = vld [vmem:[%s584 + $0x4a] sm:$0xff]
      %v7236 = vld [vmem:[%s584 + $0x52] sm:$0xff]
      %v7237 = vld [vmem:[%s584 + $0x62] sm:$0xff]
      %v7238 = vld [vmem:[%s584 + $0x6a] sm:$0xff]
      %v7239 = vld [vmem:[%s584 + $0x7a] sm:$0xff]
      %v7240 = vld [vmem:[%s584 + $0x82] sm:$0xff]
      %v7241 = vld [vmem:[%s584 + $0x92] sm:$0xff]
      %v7242 = vld [vmem:[%s584 + $0x9a] sm:$0xff]
      %v7243 = vld [vmem:[%s584 + $0xaa] sm:$0xff]
      %v7244 = vld [vmem:[%s584 + $0xb2] sm:$0xff]
      %v7245 = vld [vmem:[%s584 + $0xc2] sm:$0xff]
      %v7246 = vld [vmem:[%s584 + $0xca] sm:$0xff]
      %v7247 = vld [vmem:[%s584 + $0xda] sm:$0xff]
      %v7248 = vld [vmem:[%s584 + $0xe2] sm:$0xff]
      %v7249 = vld [vmem:[%s584 + $0xf2] sm:$0xff]
      %v7250 = vld [vmem:[%s584 + $0xfa] sm:$0xff]
      %v7251 = vld [vmem:[%s584 + $0x10a] sm:$0xff]
      %v7252 = vld [vmem:[%s584 + $0x112] sm:$0xff]
      %v7253 = vld [vmem:[%s584 + $0x122] sm:$0xff]
      %v7254 = vld [vmem:[%s584 + $0x12a] sm:$0xff]
      %v7255 = vld [vmem:[%s584 + $0x13a] sm:$0xff]
      %v7256 = vld [vmem:[%s584 + $0x142] sm:$0xff]
      %v7257 = vld [vmem:[%s584 + $0x152] sm:$0xff]
      %v7258 = vld [vmem:[%s584 + $0x15a] sm:$0xff]
      %v7259 = vld [vmem:[%s584 + $0x16a] sm:$0xff]
      %v7260 = vld [vmem:[%s584 + $0x172] sm:$0xff]
      %v7261 = vld [vmem:[%s809] sm:$0xff]
      %v7262 = vld [vmem:[%s809 + $0x8] sm:$0xff]
      %v7263 = vld [vmem:[%s809 + $0x18] sm:$0xff]
      %v7264 = vld [vmem:[%s809 + $0x20] sm:$0xff]
      %v7265 = vld [vmem:[%s809 + $0x30] sm:$0xff]
      %v7266 = vld [vmem:[%s809 + $0x38] sm:$0xff]
      %v7267 = vld [vmem:[%s809 + $0x48] sm:$0xff]
      %v7268 = vld [vmem:[%s809 + $0x50] sm:$0xff]
      %v7269 = vld [vmem:[%s809 + $0x60] sm:$0xff]
      %v7270 = vld [vmem:[%s809 + $0x68] sm:$0xff]
      %v7271 = vld [vmem:[%s809 + $0x78] sm:$0xff]
      %v7272 = vld [vmem:[%s809 + $0x80] sm:$0xff]
      %v7273 = vld [vmem:[%s809 + $0x90] sm:$0xff]
      %v7274 = vld [vmem:[%s809 + $0x98] sm:$0xff]
      %v7275 = vld [vmem:[%s809 + $0xa8] sm:$0xff]
      %v7276 = vld [vmem:[%s809 + $0xb0] sm:$0xff]
      %v7277 = vld [vmem:[%s809 + $0xc0] sm:$0xff]
      %v7278 = vld [vmem:[%s809 + $0xc8] sm:$0xff]
      %v7279 = vld [vmem:[%s809 + $0xd8] sm:$0xff]
      %v7280 = vld [vmem:[%s809 + $0xe0] sm:$0xff]
      %v7281 = vld [vmem:[%s809 + $0xf0] sm:$0xff]
      %v7282 = vld [vmem:[%s809 + $0xf8] sm:$0xff]
      %v7283 = vld [vmem:[%s809 + $0x108] sm:$0xff]
      %v7284 = vld [vmem:[%s809 + $0x110] sm:$0xff]
      %v7285 = vld [vmem:[%s809 + $0x120] sm:$0xff]
      %v7286 = vld [vmem:[%s809 + $0x128] sm:$0xff]
      %v7287 = vld [vmem:[%s809 + $0x138] sm:$0xff]
      %v7288 = vld [vmem:[%s809 + $0x140] sm:$0xff]
      %v7289 = vld [vmem:[%s809 + $0x150] sm:$0xff]
      %v7290 = vld [vmem:[%s809 + $0x158] sm:$0xff]
      %v7291 = vld [vmem:[%s809 + $0x168] sm:$0xff]
      %v7292 = vld [vmem:[%s809 + $0x170] sm:$0xff]
      %v7293 = vld [vmem:[%s809 + $0x1] sm:$0xff]
      %v7294 = vld [vmem:[%s809 + $0x9] sm:$0xff]
      %v7295 = vld [vmem:[%s809 + $0x19] sm:$0xff]
      %v7296 = vld [vmem:[%s809 + $0x21] sm:$0xff]
      %v7297 = vld [vmem:[%s809 + $0x31] sm:$0xff]
      %v7298 = vld [vmem:[%s809 + $0x39] sm:$0xff]
      %v7299 = vld [vmem:[%s809 + $0x49] sm:$0xff]
      %v7300 = vld [vmem:[%s809 + $0x51] sm:$0xff]
      %v7301 = vld [vmem:[%s809 + $0x61] sm:$0xff]
      %v7302 = vld [vmem:[%s809 + $0x69] sm:$0xff]
      %v7303 = vld [vmem:[%s809 + $0x79] sm:$0xff]
      %v7304 = vld [vmem:[%s809 + $0x81] sm:$0xff]
      %v7305 = vld [vmem:[%s809 + $0x91] sm:$0xff]
      %v7306 = vld [vmem:[%s809 + $0x99] sm:$0xff]
      %v7307 = vld [vmem:[%s809 + $0xa9] sm:$0xff]
      %v7308 = vld [vmem:[%s809 + $0xb1] sm:$0xff]
      %v7309 = vld [vmem:[%s809 + $0xc1] sm:$0xff]
      %v7310 = vld [vmem:[%s809 + $0xc9] sm:$0xff]
      %v7311 = vld [vmem:[%s809 + $0xd9] sm:$0xff]
      %v7312 = vld [vmem:[%s809 + $0xe1] sm:$0xff]
      %v7313 = vld [vmem:[%s809 + $0xf1] sm:$0xff]
      %v7314 = vld [vmem:[%s809 + $0xf9] sm:$0xff]
      %v7315 = vld [vmem:[%s809 + $0x109] sm:$0xff]
      %v7316 = vld [vmem:[%s809 + $0x111] sm:$0xff]
      %v7317 = vld [vmem:[%s809 + $0x121] sm:$0xff]
      %v7318 = vld [vmem:[%s809 + $0x129] sm:$0xff]
      %v7319 = vld [vmem:[%s809 + $0x139] sm:$0xff]
      %v7320 = vld [vmem:[%s809 + $0x141] sm:$0xff]
      %v7321 = vld [vmem:[%s809 + $0x151] sm:$0xff]
      %v7322 = vld [vmem:[%s809 + $0x159] sm:$0xff]
      %v7323 = vld [vmem:[%s809 + $0x169] sm:$0xff]
      %v7324 = vld [vmem:[%s809 + $0x171] sm:$0xff]
      %v7325 = vld [vmem:[%s809 + $0x2] sm:$0xff]
      %v7326 = vld [vmem:[%s809 + $0xa] sm:$0xff]
      %v7327 = vld [vmem:[%s809 + $0x1a] sm:$0xff]
      %v7328 = vld [vmem:[%s809 + $0x22] sm:$0xff]
      %v7329 = vld [vmem:[%s809 + $0x32] sm:$0xff]
      %v7330 = vld [vmem:[%s809 + $0x3a] sm:$0xff]
      %v7331 = vld [vmem:[%s809 + $0x4a] sm:$0xff]
      %v7332 = vld [vmem:[%s809 + $0x52] sm:$0xff]
      %v7333 = vld [vmem:[%s809 + $0x62] sm:$0xff]
      %v7334 = vld [vmem:[%s809 + $0x6a] sm:$0xff]
      %v7335 = vld [vmem:[%s809 + $0x7a] sm:$0xff]
      %v7336 = vld [vmem:[%s809 + $0x82] sm:$0xff]
      %v7337 = vld [vmem:[%s809 + $0x92] sm:$0xff]
      %v7338 = vld [vmem:[%s809 + $0x9a] sm:$0xff]
      %v7339 = vld [vmem:[%s809 + $0xaa] sm:$0xff]
      %v7340 = vld [vmem:[%s809 + $0xb2] sm:$0xff]
      %v7341 = vld [vmem:[%s809 + $0xc2] sm:$0xff]
      %v7342 = vld [vmem:[%s809 + $0xca] sm:$0xff]
      %v7343 = vld [vmem:[%s809 + $0xda] sm:$0xff]
      %v7344 = vld [vmem:[%s809 + $0xe2] sm:$0xff]
      %v7345 = vld [vmem:[%s809 + $0xf2] sm:$0xff]
      %v7346 = vld [vmem:[%s809 + $0xfa] sm:$0xff]
      %v7347 = vld [vmem:[%s809 + $0x10a] sm:$0xff]
      %v7348 = vld [vmem:[%s809 + $0x112] sm:$0xff]
      %v7349 = vld [vmem:[%s809 + $0x122] sm:$0xff]
      %v7350 = vld [vmem:[%s809 + $0x12a] sm:$0xff]
      %v7351 = vld [vmem:[%s809 + $0x13a] sm:$0xff]
      %v7352 = vld [vmem:[%s809 + $0x142] sm:$0xff]
      %v7353 = vld [vmem:[%s809 + $0x152] sm:$0xff]
      %v7354 = vld [vmem:[%s809 + $0x15a] sm:$0xff]
      %v7355 = vld [vmem:[%s809 + $0x16a] sm:$0xff]
      %v7356 = vld [vmem:[%s809 + $0x172] sm:$0xff]
      %7389 = vrot.lane.b32.xlu0 %v7101, 16
      %v7390 = vpop.permute.xlu0 %7389
      %7391 = vrot.lane.b32.xlu0 %v7102, 16
      %v7392 = vpop.permute.xlu0 %7391
      %7393 = vrot.lane.b32.xlu0 %v7103, 16
      %v7394 = vpop.permute.xlu0 %7393
      %7395 = vrot.lane.b32.xlu0 %v7104, 16
      %v7396 = vpop.permute.xlu0 %7395
      %7397 = vrot.lane.b32.xlu0 %v7105, 16
      %v7398 = vpop.permute.xlu0 %7397
      %7399 = vrot.lane.b32.xlu0 %v7106, 16
      %v7400 = vpop.permute.xlu0 %7399
      %7401 = vrot.lane.b32.xlu0 %v7107, 16
      %v7402 = vpop.permute.xlu0 %7401
      %7403 = vrot.lane.b32.xlu0 %v7108, 16
      %v7404 = vpop.permute.xlu0 %7403
      %7405 = vrot.lane.b32.xlu0 %v7109, 16
      %v7406 = vpop.permute.xlu0 %7405
      %7407 = vrot.lane.b32.xlu0 %v7110, 16
      %v7408 = vpop.permute.xlu0 %7407
      %7409 = vrot.lane.b32.xlu0 %v7111, 16
      %v7410 = vpop.permute.xlu0 %7409
      %7411 = vrot.lane.b32.xlu0 %v7112, 16
      %v7412 = vpop.permute.xlu0 %7411
      %7413 = vrot.lane.b32.xlu0 %v7113, 16
      %v7414 = vpop.permute.xlu0 %7413
      %7415 = vrot.lane.b32.xlu0 %v7114, 16
      %v7416 = vpop.permute.xlu0 %7415
      %7417 = vrot.lane.b32.xlu0 %v7115, 16
      %v7418 = vpop.permute.xlu0 %7417
      %7419 = vrot.lane.b32.xlu0 %v7116, 16
      %v7420 = vpop.permute.xlu0 %7419
      %7421 = vrot.lane.b32.xlu0 %v7117, 16
      %v7422 = vpop.permute.xlu0 %7421
      %7423 = vrot.lane.b32.xlu0 %v7118, 16
      %v7424 = vpop.permute.xlu0 %7423
      %7425 = vrot.lane.b32.xlu0 %v7119, 16
      %v7426 = vpop.permute.xlu0 %7425
      %7427 = vrot.lane.b32.xlu0 %v7120, 16
      %v7428 = vpop.permute.xlu0 %7427
      %7429 = vrot.lane.b32.xlu0 %v7121, 16
      %v7430 = vpop.permute.xlu0 %7429
      %7431 = vrot.lane.b32.xlu0 %v7122, 16
      %v7432 = vpop.permute.xlu0 %7431
      %7433 = vrot.lane.b32.xlu0 %v7123, 16
      %v7434 = vpop.permute.xlu0 %7433
      %7435 = vrot.lane.b32.xlu0 %v7124, 16
      %v7436 = vpop.permute.xlu0 %7435
      %7437 = vrot.lane.b32.xlu0 %v7125, 16
      %v7438 = vpop.permute.xlu0 %7437
      %7439 = vrot.lane.b32.xlu0 %v7126, 16
      %v7440 = vpop.permute.xlu0 %7439
      %7441 = vrot.lane.b32.xlu0 %v7127, 16
      %v7442 = vpop.permute.xlu0 %7441
      %7443 = vrot.lane.b32.xlu0 %v7128, 16
      %v7444 = vpop.permute.xlu0 %7443
      %7445 = vrot.lane.b32.xlu0 %v7129, 16
      %v7446 = vpop.permute.xlu0 %7445
      %7447 = vrot.lane.b32.xlu0 %v7130, 16
      %v7448 = vpop.permute.xlu0 %7447
      %7449 = vrot.lane.b32.xlu0 %v7131, 16
      %v7450 = vpop.permute.xlu0 %7449
      %7451 = vrot.lane.b32.xlu0 %v7132, 16
      %v7452 = vpop.permute.xlu0 %7451
      %7517 = vrot.lane.b32.xlu0 %v7133, 32
      %v7518 = vpop.permute.xlu0 %7517
      %7519 = vrot.lane.b32.xlu0 %v7134, 32
      %v7520 = vpop.permute.xlu0 %7519
      %7521 = vrot.lane.b32.xlu0 %v7135, 32
      %v7522 = vpop.permute.xlu0 %7521
      %7523 = vrot.lane.b32.xlu0 %v7136, 32
      %v7524 = vpop.permute.xlu0 %7523
      %7525 = vrot.lane.b32.xlu0 %v7137, 32
      %v7526 = vpop.permute.xlu0 %7525
      %7527 = vrot.lane.b32.xlu0 %v7138, 32
      %v7528 = vpop.permute.xlu0 %7527
      %7529 = vrot.lane.b32.xlu0 %v7139, 32
      %v7530 = vpop.permute.xlu0 %7529
      %7531 = vrot.lane.b32.xlu0 %v7140, 32
      %v7532 = vpop.permute.xlu0 %7531
      %7533 = vrot.lane.b32.xlu0 %v7141, 32
      %v7534 = vpop.permute.xlu0 %7533
      %7535 = vrot.lane.b32.xlu0 %v7142, 32
      %v7536 = vpop.permute.xlu0 %7535
      %7537 = vrot.lane.b32.xlu0 %v7143, 32
      %v7538 = vpop.permute.xlu0 %7537
      %7539 = vrot.lane.b32.xlu0 %v7144, 32
      %v7540 = vpop.permute.xlu0 %7539
      %7541 = vrot.lane.b32.xlu0 %v7145, 32
      %v7542 = vpop.permute.xlu0 %7541
      %7543 = vrot.lane.b32.xlu0 %v7146, 32
      %v7544 = vpop.permute.xlu0 %7543
      %7545 = vrot.lane.b32.xlu0 %v7147, 32
      %v7546 = vpop.permute.xlu0 %7545
      %7547 = vrot.lane.b32.xlu0 %v7148, 32
      %v7548 = vpop.permute.xlu0 %7547
      %7549 = vrot.lane.b32.xlu0 %v7149, 32
      %v7550 = vpop.permute.xlu0 %7549
      %7551 = vrot.lane.b32.xlu0 %v7150, 32
      %v7552 = vpop.permute.xlu0 %7551
      %7553 = vrot.lane.b32.xlu0 %v7151, 32
      %v7554 = vpop.permute.xlu0 %7553
      %7555 = vrot.lane.b32.xlu0 %v7152, 32
      %v7556 = vpop.permute.xlu0 %7555
      %7557 = vrot.lane.b32.xlu0 %v7153, 32
      %v7558 = vpop.permute.xlu0 %7557
      %7559 = vrot.lane.b32.xlu0 %v7154, 32
      %v7560 = vpop.permute.xlu0 %7559
      %7561 = vrot.lane.b32.xlu0 %v7155, 32
      %v7562 = vpop.permute.xlu0 %7561
      %7563 = vrot.lane.b32.xlu0 %v7156, 32
      %v7564 = vpop.permute.xlu0 %7563
      %7565 = vrot.lane.b32.xlu0 %v7157, 32
      %v7566 = vpop.permute.xlu0 %7565
      %7567 = vrot.lane.b32.xlu0 %v7158, 32
      %v7568 = vpop.permute.xlu0 %7567
      %7569 = vrot.lane.b32.xlu0 %v7159, 32
      %v7570 = vpop.permute.xlu0 %7569
      %7571 = vrot.lane.b32.xlu0 %v7160, 32
      %v7572 = vpop.permute.xlu0 %7571
      %7573 = vrot.lane.b32.xlu0 %v7161, 32
      %v7574 = vpop.permute.xlu0 %7573
      %7575 = vrot.lane.b32.xlu0 %v7162, 32
      %v7576 = vpop.permute.xlu0 %7575
      %7577 = vrot.lane.b32.xlu0 %v7163, 32
      %v7578 = vpop.permute.xlu0 %7577
      %7579 = vrot.lane.b32.xlu0 %v7164, 32
      %v7580 = vpop.permute.xlu0 %7579
      %7645 = vrot.lane.b32.xlu0 %v7165, 48
      %v7646 = vpop.permute.xlu0 %7645
      %7647 = vrot.lane.b32.xlu0 %v7166, 48
      %v7648 = vpop.permute.xlu0 %7647
      %7649 = vrot.lane.b32.xlu0 %v7167, 48
      %v7650 = vpop.permute.xlu0 %7649
      %7651 = vrot.lane.b32.xlu0 %v7168, 48
      %v7652 = vpop.permute.xlu0 %7651
      %7653 = vrot.lane.b32.xlu0 %v7169, 48
      %v7654 = vpop.permute.xlu0 %7653
      %7655 = vrot.lane.b32.xlu0 %v7170, 48
      %v7656 = vpop.permute.xlu0 %7655
      %7657 = vrot.lane.b32.xlu0 %v7171, 48
      %v7658 = vpop.permute.xlu0 %7657
      %7659 = vrot.lane.b32.xlu0 %v7172, 48
      %v7660 = vpop.permute.xlu0 %7659
      %7661 = vrot.lane.b32.xlu0 %v7173, 48
      %v7662 = vpop.permute.xlu0 %7661
      %7663 = vrot.lane.b32.xlu0 %v7174, 48
      %v7664 = vpop.permute.xlu0 %7663
      %7665 = vrot.lane.b32.xlu0 %v7175, 48
      %v7666 = vpop.permute.xlu0 %7665
      %7667 = vrot.lane.b32.xlu0 %v7176, 48
      %v7668 = vpop.permute.xlu0 %7667
      %7669 = vrot.lane.b32.xlu0 %v7177, 48
      %v7670 = vpop.permute.xlu0 %7669
      %7671 = vrot.lane.b32.xlu0 %v7178, 48
      %v7672 = vpop.permute.xlu0 %7671
      %7673 = vrot.lane.b32.xlu0 %v7179, 48
      %v7674 = vpop.permute.xlu0 %7673
      %7675 = vrot.lane.b32.xlu0 %v7180, 48
      %v7676 = vpop.permute.xlu0 %7675
      %7677 = vrot.lane.b32.xlu0 %v7181, 48
      %v7678 = vpop.permute.xlu0 %7677
      %7679 = vrot.lane.b32.xlu0 %v7182, 48
      %v7680 = vpop.permute.xlu0 %7679
      %7681 = vrot.lane.b32.xlu0 %v7183, 48
      %v7682 = vpop.permute.xlu0 %7681
      %7683 = vrot.lane.b32.xlu0 %v7184, 48
      %v7684 = vpop.permute.xlu0 %7683
      %7685 = vrot.lane.b32.xlu0 %v7185, 48
      %v7686 = vpop.permute.xlu0 %7685
      %7687 = vrot.lane.b32.xlu0 %v7186, 48
      %v7688 = vpop.permute.xlu0 %7687
      %7689 = vrot.lane.b32.xlu0 %v7187, 48
      %v7690 = vpop.permute.xlu0 %7689
      %7691 = vrot.lane.b32.xlu0 %v7188, 48
      %v7692 = vpop.permute.xlu0 %7691
      %7693 = vrot.lane.b32.xlu0 %v7189, 48
      %v7694 = vpop.permute.xlu0 %7693
      %7695 = vrot.lane.b32.xlu0 %v7190, 48
      %v7696 = vpop.permute.xlu0 %7695
      %7697 = vrot.lane.b32.xlu0 %v7191, 48
      %v7698 = vpop.permute.xlu0 %7697
      %7699 = vrot.lane.b32.xlu0 %v7192, 48
      %v7700 = vpop.permute.xlu0 %7699
      %7701 = vrot.lane.b32.xlu0 %v7193, 48
      %v7702 = vpop.permute.xlu0 %7701
      %7703 = vrot.lane.b32.xlu0 %v7194, 48
      %v7704 = vpop.permute.xlu0 %7703
      %7705 = vrot.lane.b32.xlu0 %v7195, 48
      %v7706 = vpop.permute.xlu0 %7705
      %7707 = vrot.lane.b32.xlu0 %v7196, 48
      %v7708 = vpop.permute.xlu0 %7707
      %7773 = vrot.lane.b32.xlu0 %v7197, 64
      %v7774 = vpop.permute.xlu0 %7773
      %7775 = vrot.lane.b32.xlu0 %v7198, 64
      %v7776 = vpop.permute.xlu0 %7775
      %7777 = vrot.lane.b32.xlu0 %v7199, 64
      %v7778 = vpop.permute.xlu0 %7777
      %7779 = vrot.lane.b32.xlu0 %v7200, 64
      %v7780 = vpop.permute.xlu0 %7779
      %7781 = vrot.lane.b32.xlu0 %v7201, 64
      %v7782 = vpop.permute.xlu0 %7781
      %7783 = vrot.lane.b32.xlu0 %v7202, 64
      %v7784 = vpop.permute.xlu0 %7783
      %7785 = vrot.lane.b32.xlu0 %v7203, 64
      %v7786 = vpop.permute.xlu0 %7785
      %7787 = vrot.lane.b32.xlu0 %v7204, 64
      %v7788 = vpop.permute.xlu0 %7787
      %7789 = vrot.lane.b32.xlu0 %v7205, 64
      %v7790 = vpop.permute.xlu0 %7789
      %7791 = vrot.lane.b32.xlu0 %v7206, 64
      %v7792 = vpop.permute.xlu0 %7791
      %7793 = vrot.lane.b32.xlu0 %v7207, 64
      %v7794 = vpop.permute.xlu0 %7793
      %7795 = vrot.lane.b32.xlu0 %v7208, 64
      %v7796 = vpop.permute.xlu0 %7795
      %7797 = vrot.lane.b32.xlu0 %v7209, 64
      %v7798 = vpop.permute.xlu0 %7797
      %7799 = vrot.lane.b32.xlu0 %v7210, 64
      %v7800 = vpop.permute.xlu0 %7799
      %7801 = vrot.lane.b32.xlu0 %v7211, 64
      %v7802 = vpop.permute.xlu0 %7801
      %7803 = vrot.lane.b32.xlu0 %v7212, 64
      %v7804 = vpop.permute.xlu0 %7803
      %7805 = vrot.lane.b32.xlu0 %v7213, 64
      %v7806 = vpop.permute.xlu0 %7805
      %7807 = vrot.lane.b32.xlu0 %v7214, 64
      %v7808 = vpop.permute.xlu0 %7807
      %7809 = vrot.lane.b32.xlu0 %v7215, 64
      %v7810 = vpop.permute.xlu0 %7809
      %7811 = vrot.lane.b32.xlu0 %v7216, 64
      %v7812 = vpop.permute.xlu0 %7811
      %7813 = vrot.lane.b32.xlu0 %v7217, 64
      %v7814 = vpop.permute.xlu0 %7813
      %7815 = vrot.lane.b32.xlu0 %v7218, 64
      %v7816 = vpop.permute.xlu0 %7815
      %7817 = vrot.lane.b32.xlu0 %v7219, 64
      %v7818 = vpop.permute.xlu0 %7817
      %7819 = vrot.lane.b32.xlu0 %v7220, 64
      %v7820 = vpop.permute.xlu0 %7819
      %7821 = vrot.lane.b32.xlu0 %v7221, 64
      %v7822 = vpop.permute.xlu0 %7821
      %7823 = vrot.lane.b32.xlu0 %v7222, 64
      %v7824 = vpop.permute.xlu0 %7823
      %7825 = vrot.lane.b32.xlu0 %v7223, 64
      %v7826 = vpop.permute.xlu0 %7825
      %7827 = vrot.lane.b32.xlu0 %v7224, 64
      %v7828 = vpop.permute.xlu0 %7827
      %7829 = vrot.lane.b32.xlu0 %v7225, 64
      %v7830 = vpop.permute.xlu0 %7829
      %7831 = vrot.lane.b32.xlu0 %v7226, 64
      %v7832 = vpop.permute.xlu0 %7831
      %7833 = vrot.lane.b32.xlu0 %v7227, 64
      %v7834 = vpop.permute.xlu0 %7833
      %7835 = vrot.lane.b32.xlu0 %v7228, 64
      %v7836 = vpop.permute.xlu0 %7835
      %7901 = vrot.lane.b32.xlu0 %v7229, 80
      %v7902 = vpop.permute.xlu0 %7901
      %7903 = vrot.lane.b32.xlu0 %v7230, 80
      %v7904 = vpop.permute.xlu0 %7903
      %7905 = vrot.lane.b32.xlu0 %v7231, 80
      %v7906 = vpop.permute.xlu0 %7905
      %7907 = vrot.lane.b32.xlu0 %v7232, 80
      %v7908 = vpop.permute.xlu0 %7907
      %7909 = vrot.lane.b32.xlu0 %v7233, 80
      %v7910 = vpop.permute.xlu0 %7909
      %7911 = vrot.lane.b32.xlu0 %v7234, 80
      %v7912 = vpop.permute.xlu0 %7911
      %7913 = vrot.lane.b32.xlu0 %v7235, 80
      %v7914 = vpop.permute.xlu0 %7913
      %7915 = vrot.lane.b32.xlu0 %v7236, 80
      %v7916 = vpop.permute.xlu0 %7915
      %7917 = vrot.lane.b32.xlu0 %v7237, 80
      %v7918 = vpop.permute.xlu0 %7917
      %7919 = vrot.lane.b32.xlu0 %v7238, 80
      %v7920 = vpop.permute.xlu0 %7919
      %7921 = vrot.lane.b32.xlu0 %v7239, 80
      %v7922 = vpop.permute.xlu0 %7921
      %7923 = vrot.lane.b32.xlu0 %v7240, 80
      %v7924 = vpop.permute.xlu0 %7923
      %7925 = vrot.lane.b32.xlu0 %v7241, 80
      %v7926 = vpop.permute.xlu0 %7925
      %7927 = vrot.lane.b32.xlu0 %v7242, 80
      %v7928 = vpop.permute.xlu0 %7927
      %7929 = vrot.lane.b32.xlu0 %v7243, 80
      %v7930 = vpop.permute.xlu0 %7929
      %7931 = vrot.lane.b32.xlu0 %v7244, 80
      %v7932 = vpop.permute.xlu0 %7931
      %7933 = vrot.lane.b32.xlu0 %v7245, 80
      %v7934 = vpop.permute.xlu0 %7933
      %7935 = vrot.lane.b32.xlu0 %v7246, 80
      %v7936 = vpop.permute.xlu0 %7935
      %7937 = vrot.lane.b32.xlu0 %v7247, 80
      %v7938 = vpop.permute.xlu0 %7937
      %7939 = vrot.lane.b32.xlu0 %v7248, 80
      %v7940 = vpop.permute.xlu0 %7939
      %7941 = vrot.lane.b32.xlu0 %v7249, 80
      %v7942 = vpop.permute.xlu0 %7941
      %7943 = vrot.lane.b32.xlu0 %v7250, 80
      %v7944 = vpop.permute.xlu0 %7943
      %7945 = vrot.lane.b32.xlu0 %v7251, 80
      %v7946 = vpop.permute.xlu0 %7945
      %7947 = vrot.lane.b32.xlu0 %v7252, 80
      %v7948 = vpop.permute.xlu0 %7947
      %7949 = vrot.lane.b32.xlu0 %v7253, 80
      %v7950 = vpop.permute.xlu0 %7949
      %7951 = vrot.lane.b32.xlu0 %v7254, 80
      %v7952 = vpop.permute.xlu0 %7951
      %7953 = vrot.lane.b32.xlu0 %v7255, 80
      %v7954 = vpop.permute.xlu0 %7953
      %7955 = vrot.lane.b32.xlu0 %v7256, 80
      %v7956 = vpop.permute.xlu0 %7955
      %7957 = vrot.lane.b32.xlu0 %v7257, 80
      %v7958 = vpop.permute.xlu0 %7957
      %7959 = vrot.lane.b32.xlu0 %v7258, 80
      %v7960 = vpop.permute.xlu0 %7959
      %7961 = vrot.lane.b32.xlu0 %v7259, 80
      %v7962 = vpop.permute.xlu0 %7961
      %7963 = vrot.lane.b32.xlu0 %v7260, 80
      %v7964 = vpop.permute.xlu0 %7963
      %8029 = vrot.lane.b32.xlu0 %v7261, 96
      %v8030 = vpop.permute.xlu0 %8029
      %8031 = vrot.lane.b32.xlu0 %v7262, 96
      %v8032 = vpop.permute.xlu0 %8031
      %8033 = vrot.lane.b32.xlu0 %v7263, 96
      %v8034 = vpop.permute.xlu0 %8033
      %8035 = vrot.lane.b32.xlu0 %v7264, 96
      %v8036 = vpop.permute.xlu0 %8035
      %8037 = vrot.lane.b32.xlu0 %v7265, 96
      %v8038 = vpop.permute.xlu0 %8037
      %8039 = vrot.lane.b32.xlu0 %v7266, 96
      %v8040 = vpop.permute.xlu0 %8039
      %8041 = vrot.lane.b32.xlu0 %v7267, 96
      %v8042 = vpop.permute.xlu0 %8041
      %8043 = vrot.lane.b32.xlu0 %v7268, 96
      %v8044 = vpop.permute.xlu0 %8043
      %8045 = vrot.lane.b32.xlu0 %v7269, 96
      %v8046 = vpop.permute.xlu0 %8045
      %8047 = vrot.lane.b32.xlu0 %v7270, 96
      %v8048 = vpop.permute.xlu0 %8047
      %8049 = vrot.lane.b32.xlu0 %v7271, 96
      %v8050 = vpop.permute.xlu0 %8049
      %8051 = vrot.lane.b32.xlu0 %v7272, 96
      %v8052 = vpop.permute.xlu0 %8051
      %8053 = vrot.lane.b32.xlu0 %v7273, 96
      %v8054 = vpop.permute.xlu0 %8053
      %8055 = vrot.lane.b32.xlu0 %v7274, 96
      %v8056 = vpop.permute.xlu0 %8055
      %8057 = vrot.lane.b32.xlu0 %v7275, 96
      %v8058 = vpop.permute.xlu0 %8057
      %8059 = vrot.lane.b32.xlu0 %v7276, 96
      %v8060 = vpop.permute.xlu0 %8059
      %8061 = vrot.lane.b32.xlu0 %v7277, 96
      %v8062 = vpop.permute.xlu0 %8061
      %8063 = vrot.lane.b32.xlu0 %v7278, 96
      %v8064 = vpop.permute.xlu0 %8063
      %8065 = vrot.lane.b32.xlu0 %v7279, 96
      %v8066 = vpop.permute.xlu0 %8065
      %8067 = vrot.lane.b32.xlu0 %v7280, 96
      %v8068 = vpop.permute.xlu0 %8067
      %8069 = vrot.lane.b32.xlu0 %v7281, 96
      %v8070 = vpop.permute.xlu0 %8069
      %8071 = vrot.lane.b32.xlu0 %v7282, 96
      %v8072 = vpop.permute.xlu0 %8071
      %8073 = vrot.lane.b32.xlu0 %v7283, 96
      %v8074 = vpop.permute.xlu0 %8073
      %8075 = vrot.lane.b32.xlu0 %v7284, 96
      %v8076 = vpop.permute.xlu0 %8075
      %8077 = vrot.lane.b32.xlu0 %v7285, 96
      %v8078 = vpop.permute.xlu0 %8077
      %8079 = vrot.lane.b32.xlu0 %v7286, 96
      %v8080 = vpop.permute.xlu0 %8079
      %8081 = vrot.lane.b32.xlu0 %v7287, 96
      %v8082 = vpop.permute.xlu0 %8081
      %8083 = vrot.lane.b32.xlu0 %v7288, 96
      %v8084 = vpop.permute.xlu0 %8083
      %8085 = vrot.lane.b32.xlu0 %v7289, 96
      %v8086 = vpop.permute.xlu0 %8085
      %8087 = vrot.lane.b32.xlu0 %v7290, 96
      %v8088 = vpop.permute.xlu0 %8087
      %8089 = vrot.lane.b32.xlu0 %v7291, 96
      %v8090 = vpop.permute.xlu0 %8089
      %8091 = vrot.lane.b32.xlu0 %v7292, 96
      %v8092 = vpop.permute.xlu0 %8091
      %8157 = vrot.lane.b32.xlu0 %v7293, 112
      %v8158 = vpop.permute.xlu0 %8157
      %8159 = vrot.lane.b32.xlu0 %v7294, 112
      %v8160 = vpop.permute.xlu0 %8159
      %8161 = vrot.lane.b32.xlu0 %v7295, 112
      %v8162 = vpop.permute.xlu0 %8161
      %8163 = vrot.lane.b32.xlu0 %v7296, 112
      %v8164 = vpop.permute.xlu0 %8163
      %8165 = vrot.lane.b32.xlu0 %v7297, 112
      %v8166 = vpop.permute.xlu0 %8165
      %8167 = vrot.lane.b32.xlu0 %v7298, 112
      %v8168 = vpop.permute.xlu0 %8167
      %8169 = vrot.lane.b32.xlu0 %v7299, 112
      %v8170 = vpop.permute.xlu0 %8169
      %8171 = vrot.lane.b32.xlu0 %v7300, 112
      %v8172 = vpop.permute.xlu0 %8171
      %8173 = vrot.lane.b32.xlu0 %v7301, 112
      %v8174 = vpop.permute.xlu0 %8173
      %8175 = vrot.lane.b32.xlu0 %v7302, 112
      %v8176 = vpop.permute.xlu0 %8175
      %8177 = vrot.lane.b32.xlu0 %v7303, 112
      %v8178 = vpop.permute.xlu0 %8177
      %8179 = vrot.lane.b32.xlu0 %v7304, 112
      %v8180 = vpop.permute.xlu0 %8179
      %8181 = vrot.lane.b32.xlu0 %v7305, 112
      %v8182 = vpop.permute.xlu0 %8181
      %8183 = vrot.lane.b32.xlu0 %v7306, 112
      %v8184 = vpop.permute.xlu0 %8183
      %8185 = vrot.lane.b32.xlu0 %v7307, 112
      %v8186 = vpop.permute.xlu0 %8185
      %8187 = vrot.lane.b32.xlu0 %v7308, 112
      %v8188 = vpop.permute.xlu0 %8187
      %8189 = vrot.lane.b32.xlu0 %v7309, 112
      %v8190 = vpop.permute.xlu0 %8189
      %8191 = vrot.lane.b32.xlu0 %v7310, 112
      %v8192 = vpop.permute.xlu0 %8191
      %8193 = vrot.lane.b32.xlu0 %v7311, 112
      %v8194 = vpop.permute.xlu0 %8193
      %8195 = vrot.lane.b32.xlu0 %v7312, 112
      %v8196 = vpop.permute.xlu0 %8195
      %8197 = vrot.lane.b32.xlu0 %v7313, 112
      %v8198 = vpop.permute.xlu0 %8197
      %8199 = vrot.lane.b32.xlu0 %v7314, 112
      %v8200 = vpop.permute.xlu0 %8199
      %8201 = vrot.lane.b32.xlu0 %v7315, 112
      %v8202 = vpop.permute.xlu0 %8201
      %8203 = vrot.lane.b32.xlu0 %v7316, 112
      %v8204 = vpop.permute.xlu0 %8203
      %8205 = vrot.lane.b32.xlu0 %v7317, 112
      %v8206 = vpop.permute.xlu0 %8205
      %8207 = vrot.lane.b32.xlu0 %v7318, 112
      %v8208 = vpop.permute.xlu0 %8207
      %8209 = vrot.lane.b32.xlu0 %v7319, 112
      %v8210 = vpop.permute.xlu0 %8209
      %8211 = vrot.lane.b32.xlu0 %v7320, 112
      %v8212 = vpop.permute.xlu0 %8211
      %8213 = vrot.lane.b32.xlu0 %v7321, 112
      %v8214 = vpop.permute.xlu0 %8213
      %8215 = vrot.lane.b32.xlu0 %v7322, 112
      %v8216 = vpop.permute.xlu0 %8215
      %8217 = vrot.lane.b32.xlu0 %v7323, 112
      %v8218 = vpop.permute.xlu0 %8217
      %8219 = vrot.lane.b32.xlu0 %v7324, 112
      %v8220 = vpop.permute.xlu0 %8219
      %v8253 = vsel %vm2028, %v7069, %v7390
      %v8254 = vsel %vm2028, %v7070, %v7392
      %v8255 = vsel %vm2028, %v7071, %v7394
      %v8256 = vsel %vm2028, %v7072, %v7396
      %v8257 = vsel %vm2028, %v7073, %v7398
      %v8258 = vsel %vm2028, %v7074, %v7400
      %v8259 = vsel %vm2028, %v7075, %v7402
      %v8260 = vsel %vm2028, %v7076, %v7404
      %v8261 = vsel %vm2028, %v7077, %v7406
      %v8262 = vsel %vm2028, %v7078, %v7408
      %v8263 = vsel %vm2028, %v7079, %v7410
      %v8264 = vsel %vm2028, %v7080, %v7412
      %v8265 = vsel %vm2028, %v7081, %v7414
      %v8266 = vsel %vm2028, %v7082, %v7416
      %v8267 = vsel %vm2028, %v7083, %v7418
      %v8268 = vsel %vm2028, %v7084, %v7420
      %v8269 = vsel %vm2028, %v7085, %v7422
      %v8270 = vsel %vm2028, %v7086, %v7424
      %v8271 = vsel %vm2028, %v7087, %v7426
      %v8272 = vsel %vm2028, %v7088, %v7428
      %v8273 = vsel %vm2028, %v7089, %v7430
      %v8274 = vsel %vm2028, %v7090, %v7432
      %v8275 = vsel %vm2028, %v7091, %v7434
      %v8276 = vsel %vm2028, %v7092, %v7436
      %v8277 = vsel %vm2028, %v7093, %v7438
      %v8278 = vsel %vm2028, %v7094, %v7440
      %v8279 = vsel %vm2028, %v7095, %v7442
      %v8280 = vsel %vm2028, %v7096, %v7444
      %v8281 = vsel %vm2028, %v7097, %v7446
      %v8282 = vsel %vm2028, %v7098, %v7448
      %v8283 = vsel %vm2028, %v7099, %v7450
      %v8284 = vsel %vm2028, %v7100, %v7452
      %v8285 = vsel %vm2160, %v8253, %v7518
      %v8286 = vsel %vm2160, %v8254, %v7520
      %v8287 = vsel %vm2160, %v8255, %v7522
      %v8288 = vsel %vm2160, %v8256, %v7524
      %v8289 = vsel %vm2160, %v8257, %v7526
      %v8290 = vsel %vm2160, %v8258, %v7528
      %v8291 = vsel %vm2160, %v8259, %v7530
      %v8292 = vsel %vm2160, %v8260, %v7532
      %v8293 = vsel %vm2160, %v8261, %v7534
      %v8294 = vsel %vm2160, %v8262, %v7536
      %v8295 = vsel %vm2160, %v8263, %v7538
      %v8296 = vsel %vm2160, %v8264, %v7540
      %v8297 = vsel %vm2160, %v8265, %v7542
      %v8298 = vsel %vm2160, %v8266, %v7544
      %v8299 = vsel %vm2160, %v8267, %v7546
      %v8300 = vsel %vm2160, %v8268, %v7548
      %v8301 = vsel %vm2160, %v8269, %v7550
      %v8302 = vsel %vm2160, %v8270, %v7552
      %v8303 = vsel %vm2160, %v8271, %v7554
      %v8304 = vsel %vm2160, %v8272, %v7556
      %v8305 = vsel %vm2160, %v8273, %v7558
      %v8306 = vsel %vm2160, %v8274, %v7560
      %v8307 = vsel %vm2160, %v8275, %v7562
      %v8308 = vsel %vm2160, %v8276, %v7564
      %v8309 = vsel %vm2160, %v8277, %v7566
      %v8310 = vsel %vm2160, %v8278, %v7568
      %v8311 = vsel %vm2160, %v8279, %v7570
      %v8312 = vsel %vm2160, %v8280, %v7572
      %v8313 = vsel %vm2160, %v8281, %v7574
      %v8314 = vsel %vm2160, %v8282, %v7576
      %v8315 = vsel %vm2160, %v8283, %v7578
      %v8316 = vsel %vm2160, %v8284, %v7580
      %v8317 = vsel %vm3895, %v8285, %v7646
      %v8318 = vsel %vm3895, %v8286, %v7648
      %v8319 = vsel %vm3895, %v8287, %v7650
      %v8320 = vsel %vm3895, %v8288, %v7652
      %v8321 = vsel %vm3895, %v8289, %v7654
      %v8322 = vsel %vm3895, %v8290, %v7656
      %v8323 = vsel %vm3895, %v8291, %v7658
      %v8324 = vsel %vm3895, %v8292, %v7660
      %v8325 = vsel %vm3895, %v8293, %v7662
      %v8326 = vsel %vm3895, %v8294, %v7664
      %v8327 = vsel %vm3895, %v8295, %v7666
      %v8328 = vsel %vm3895, %v8296, %v7668
      %v8329 = vsel %vm3895, %v8297, %v7670
      %v8330 = vsel %vm3895, %v8298, %v7672
      %v8331 = vsel %vm3895, %v8299, %v7674
      %v8332 = vsel %vm3895, %v8300, %v7676
      %v8333 = vsel %vm3895, %v8301, %v7678
      %v8334 = vsel %vm3895, %v8302, %v7680
      %v8335 = vsel %vm3895, %v8303, %v7682
      %v8336 = vsel %vm3895, %v8304, %v7684
      %v8337 = vsel %vm3895, %v8305, %v7686
      %v8338 = vsel %vm3895, %v8306, %v7688
      %v8339 = vsel %vm3895, %v8307, %v7690
      %v8340 = vsel %vm3895, %v8308, %v7692
      %v8341 = vsel %vm3895, %v8309, %v7694
      %v8342 = vsel %vm3895, %v8310, %v7696
      %v8343 = vsel %vm3895, %v8311, %v7698
      %v8344 = vsel %vm3895, %v8312, %v7700
      %v8345 = vsel %vm3895, %v8313, %v7702
      %v8346 = vsel %vm3895, %v8314, %v7704
      %v8347 = vsel %vm3895, %v8315, %v7706
      %v8348 = vsel %vm3895, %v8316, %v7708
      %v8349 = vsel %vm3913, %v8317, %v7774
      %v8350 = vsel %vm3913, %v8318, %v7776
      %v8351 = vsel %vm3913, %v8319, %v7778
      %v8352 = vsel %vm3913, %v8320, %v7780
      %v8353 = vsel %vm3913, %v8321, %v7782
      %v8354 = vsel %vm3913, %v8322, %v7784
      %v8355 = vsel %vm3913, %v8323, %v7786
      %v8356 = vsel %vm3913, %v8324, %v7788
      %v8357 = vsel %vm3913, %v8325, %v7790
      %v8358 = vsel %vm3913, %v8326, %v7792
      %v8359 = vsel %vm3913, %v8327, %v7794
      %v8360 = vsel %vm3913, %v8328, %v7796
      %v8361 = vsel %vm3913, %v8329, %v7798
      %v8362 = vsel %vm3913, %v8330, %v7800
      %v8363 = vsel %vm3913, %v8331, %v7802
      %v8364 = vsel %vm3913, %v8332, %v7804
      %v8365 = vsel %vm3913, %v8333, %v7806
      %v8366 = vsel %vm3913, %v8334, %v7808
      %v8367 = vsel %vm3913, %v8335, %v7810
      %v8368 = vsel %vm3913, %v8336, %v7812
      %v8369 = vsel %vm3913, %v8337, %v7814
      %v8370 = vsel %vm3913, %v8338, %v7816
      %v8371 = vsel %vm3913, %v8339, %v7818
      %v8372 = vsel %vm3913, %v8340, %v7820
      %v8373 = vsel %vm3913, %v8341, %v7822
      %v8374 = vsel %vm3913, %v8342, %v7824
      %v8375 = vsel %vm3913, %v8343, %v7826
      %v8376 = vsel %vm3913, %v8344, %v7828
      %v8377 = vsel %vm3913, %v8345, %v7830
      %v8378 = vsel %vm3913, %v8346, %v7832
      %v8379 = vsel %vm3913, %v8347, %v7834
      %v8380 = vsel %vm3913, %v8348, %v7836
      %v8381 = vsel %vm4467, %v8349, %v7902
      %v8382 = vsel %vm4467, %v8350, %v7904
      %v8383 = vsel %vm4467, %v8351, %v7906
      %v8384 = vsel %vm4467, %v8352, %v7908
      %v8385 = vsel %vm4467, %v8353, %v7910
      %v8386 = vsel %vm4467, %v8354, %v7912
      %v8387 = vsel %vm4467, %v8355, %v7914
      %v8388 = vsel %vm4467, %v8356, %v7916
      %v8389 = vsel %vm4467, %v8357, %v7918
      %v8390 = vsel %vm4467, %v8358, %v7920
      %v8391 = vsel %vm4467, %v8359, %v7922
      %v8392 = vsel %vm4467, %v8360, %v7924
      %v8393 = vsel %vm4467, %v8361, %v7926
      %v8394 = vsel %vm4467, %v8362, %v7928
      %v8395 = vsel %vm4467, %v8363, %v7930
      %v8396 = vsel %vm4467, %v8364, %v7932
      %v8397 = vsel %vm4467, %v8365, %v7934
      %v8398 = vsel %vm4467, %v8366, %v7936
      %v8399 = vsel %vm4467, %v8367, %v7938
      %v8400 = vsel %vm4467, %v8368, %v7940
      %v8401 = vsel %vm4467, %v8369, %v7942
      %v8402 = vsel %vm4467, %v8370, %v7944
      %v8403 = vsel %vm4467, %v8371, %v7946
      %v8404 = vsel %vm4467, %v8372, %v7948
      %v8405 = vsel %vm4467, %v8373, %v7950
      %v8406 = vsel %vm4467, %v8374, %v7952
      %v8407 = vsel %vm4467, %v8375, %v7954
      %v8408 = vsel %vm4467, %v8376, %v7956
      %v8409 = vsel %vm4467, %v8377, %v7958
      %v8410 = vsel %vm4467, %v8378, %v7960
      %v8411 = vsel %vm4467, %v8379, %v7962
      %v8412 = vsel %vm4467, %v8380, %v7964
      %v8413 = vsel %vm4470, %v8381, %v8030
      %v8414 = vsel %vm4470, %v8382, %v8032
      %v8415 = vsel %vm4470, %v8383, %v8034
      %v8416 = vsel %vm4470, %v8384, %v8036
      %v8417 = vsel %vm4470, %v8385, %v8038
      %v8418 = vsel %vm4470, %v8386, %v8040
      %v8419 = vsel %vm4470, %v8387, %v8042
      %v8420 = vsel %vm4470, %v8388, %v8044
      %v8421 = vsel %vm4470, %v8389, %v8046
      %v8422 = vsel %vm4470, %v8390, %v8048
      %v8423 = vsel %vm4470, %v8391, %v8050
      %v8424 = vsel %vm4470, %v8392, %v8052
      %v8425 = vsel %vm4470, %v8393, %v8054
      %v8426 = vsel %vm4470, %v8394, %v8056
      %v8427 = vsel %vm4470, %v8395, %v8058
      %v8428 = vsel %vm4470, %v8396, %v8060
      %v8429 = vsel %vm4470, %v8397, %v8062
      %v8430 = vsel %vm4470, %v8398, %v8064
      %v8431 = vsel %vm4470, %v8399, %v8066
      %v8432 = vsel %vm4470, %v8400, %v8068
      %v8433 = vsel %vm4470, %v8401, %v8070
      %v8434 = vsel %vm4470, %v8402, %v8072
      %v8435 = vsel %vm4470, %v8403, %v8074
      %v8436 = vsel %vm4470, %v8404, %v8076
      %v8437 = vsel %vm4470, %v8405, %v8078
      %v8438 = vsel %vm4470, %v8406, %v8080
      %v8439 = vsel %vm4470, %v8407, %v8082
      %v8440 = vsel %vm4470, %v8408, %v8084
      %v8441 = vsel %vm4470, %v8409, %v8086
      %v8442 = vsel %vm4470, %v8410, %v8088
      %v8443 = vsel %vm4470, %v8411, %v8090
      %v8444 = vsel %vm4470, %v8412, %v8092
      %v8445 = vsel %vm4473, %v8413, %v8158
      %v8446 = vsel %vm4473, %v8414, %v8160
      %v8447 = vsel %vm4473, %v8415, %v8162
      %v8448 = vsel %vm4473, %v8416, %v8164
      %v8449 = vsel %vm4473, %v8417, %v8166
      %v8450 = vsel %vm4473, %v8418, %v8168
      %v8451 = vsel %vm4473, %v8419, %v8170
      %v8452 = vsel %vm4473, %v8420, %v8172
      %v8453 = vsel %vm4473, %v8421, %v8174
      %v8454 = vsel %vm4473, %v8422, %v8176
      %v8455 = vsel %vm4473, %v8423, %v8178
      %v8456 = vsel %vm4473, %v8424, %v8180
      %v8457 = vsel %vm4473, %v8425, %v8182
      %v8458 = vsel %vm4473, %v8426, %v8184
      %v8459 = vsel %vm4473, %v8427, %v8186
      %v8460 = vsel %vm4473, %v8428, %v8188
      %v8461 = vsel %vm4473, %v8429, %v8190
      %v8462 = vsel %vm4473, %v8430, %v8192
      %v8463 = vsel %vm4473, %v8431, %v8194
      %v8464 = vsel %vm4473, %v8432, %v8196
      %v8465 = vsel %vm4473, %v8433, %v8198
      %v8466 = vsel %vm4473, %v8434, %v8200
      %v8467 = vsel %vm4473, %v8435, %v8202
      %v8468 = vsel %vm4473, %v8436, %v8204
      %v8469 = vsel %vm4473, %v8437, %v8206
      %v8470 = vsel %vm4473, %v8438, %v8208
      %v8471 = vsel %vm4473, %v8439, %v8210
      %v8472 = vsel %vm4473, %v8440, %v8212
      %v8473 = vsel %vm4473, %v8441, %v8214
      %v8474 = vsel %vm4473, %v8442, %v8216
      %v8475 = vsel %vm4473, %v8443, %v8218
      %v8476 = vsel %vm4473, %v8444, %v8220
      %v8477 = vpack.c.bf16 %v8446, %v8445
      %v8478 = vpack.c.bf16 %v7326, %v7325
      %v8479 = vpack.c.bf16 %v8448, %v8447
      %v8480 = vpack.c.bf16 %v7328, %v7327
      %v8481 = vpack.c.bf16 %v8450, %v8449
      %v8482 = vpack.c.bf16 %v7330, %v7329
      %v8483 = vpack.c.bf16 %v8452, %v8451
      %v8484 = vpack.c.bf16 %v7332, %v7331
      %v8485 = vpack.c.bf16 %v8454, %v8453
      %v8486 = vpack.c.bf16 %v7334, %v7333
      %v8487 = vpack.c.bf16 %v8456, %v8455
      %v8488 = vpack.c.bf16 %v7336, %v7335
      %v8489 = vpack.c.bf16 %v8458, %v8457
      %v8490 = vpack.c.bf16 %v7338, %v7337
      %v8491 = vpack.c.bf16 %v8460, %v8459
      %v8492 = vpack.c.bf16 %v7340, %v7339
      %v8493 = vpack.c.bf16 %v8462, %v8461
      %v8494 = vpack.c.bf16 %v7342, %v7341
      %v8495 = vpack.c.bf16 %v8464, %v8463
      %v8496 = vpack.c.bf16 %v7344, %v7343
      %v8497 = vpack.c.bf16 %v8466, %v8465
      %v8498 = vpack.c.bf16 %v7346, %v7345
      %v8499 = vpack.c.bf16 %v8468, %v8467
      %v8500 = vpack.c.bf16 %v7348, %v7347
      %v8501 = vpack.c.bf16 %v8470, %v8469
      %v8502 = vpack.c.bf16 %v7350, %v7349
      %v8503 = vpack.c.bf16 %v8472, %v8471
      %v8504 = vpack.c.bf16 %v7352, %v7351
      %v8505 = vpack.c.bf16 %v8474, %v8473
      %v8506 = vpack.c.bf16 %v7354, %v7353
      %v8507 = vpack.c.bf16 %v8476, %v8475
      %v8508 = vpack.c.bf16 %v7356, %v7355
      %v8509 = vld [vmem:[%s10] sm:$0xf]
      %v8510 = vld [vmem:[%s10 + $0x4] sm:$0xf]
      %v8511 = vld [vmem:[%s10 + $0x8] sm:$0xf]
      %v8512 = vld [vmem:[%s10 + $0xc] sm:$0xf]
      %v8513 = vld [vmem:[%s10 + $0x10] sm:$0xf]
      %v8514 = vld [vmem:[%s10 + $0x14] sm:$0xf]
      %v8515 = vld [vmem:[%s10 + $0x18] sm:$0xf]
      %v8516 = vld [vmem:[%s10 + $0x1c] sm:$0xf]
      %v8517 = vld [vmem:[%s10 + $0x20] sm:$0xf]
      %v8518 = vld [vmem:[%s10 + $0x24] sm:$0xf]
      %v8519 = vld [vmem:[%s10 + $0x28] sm:$0xf]
      %v8520 = vld [vmem:[%s10 + $0x2c] sm:$0xf]
      %v8521 = vld [vmem:[%s10 + $0x30] sm:$0xf]
      %v8522 = vld [vmem:[%s10 + $0x34] sm:$0xf]
      %v8523 = vld [vmem:[%s10 + $0x38] sm:$0xf]
      %v8524 = vld [vmem:[%s10 + $0x3c] sm:$0xf]
      %v8525 = vld [vmem:[%s10 + $0x40] sm:$0xf]
      %v8526 = vld [vmem:[%s10 + $0x44] sm:$0xf]
      %8527 = vst.msk [vmem:[#allocation2] sm:$0xff] %vm1962, 0.0
      %8528 = vst.msk [vmem:[#allocation2 + $0x8] sm:$0xff] %vm1962, 0.0
      %8529 = vst.msk [vmem:[#allocation2 + $0x10] sm:$0x3] %vm3107, 0.0
      %8530 = vst.msk [vmem:[#allocation2 + $0x18] sm:$0xff] %vm1962, 0.0
      %8531 = vst.msk [vmem:[#allocation2 + $0x20] sm:$0xff] %vm1962, 0.0
      %8532 = vst.msk [vmem:[#allocation2 + $0x28] sm:$0x3] %vm3107, 0.0
      %8533 = vst.msk [vmem:[#allocation2 + $0x30] sm:$0xff] %vm1962, 0.0
      %8534 = vst.msk [vmem:[#allocation2 + $0x38] sm:$0xff] %vm1962, 0.0
      %8535 = vst.msk [vmem:[#allocation2 + $0x40] sm:$0x3] %vm3107, 0.0
      %8536 = vst.msk [vmem:[#allocation2 + $0x48] sm:$0xff] %vm1962, 0.0
      %8537 = vst.msk [vmem:[#allocation2 + $0x50] sm:$0xff] %vm1962, 0.0
      %8538 = vst.msk [vmem:[#allocation2 + $0x58] sm:$0x3] %vm3107, 0.0
      %8539 = vst.msk [vmem:[#allocation2 + $0x60] sm:$0xff] %vm1962, 0.0
      %8540 = vst.msk [vmem:[#allocation2 + $0x68] sm:$0xff] %vm1962, 0.0
      %8541 = vst.msk [vmem:[#allocation2 + $0x70] sm:$0x3] %vm3107, 0.0
      %8542 = vst.msk [vmem:[#allocation2 + $0x78] sm:$0xff] %vm1962, 0.0
      %8543 = vst.msk [vmem:[#allocation2 + $0x80] sm:$0xff] %vm1962, 0.0
      %8544 = vst.msk [vmem:[#allocation2 + $0x88] sm:$0x3] %vm3107, 0.0
      %8545 = vst.msk [vmem:[#allocation2 + $0x90] sm:$0xff] %vm1962, 0.0
      %8546 = vst.msk [vmem:[#allocation2 + $0x98] sm:$0xff] %vm1962, 0.0
      %8547 = vst.msk [vmem:[#allocation2 + $0xa0] sm:$0x3] %vm3107, 0.0
      %8548 = vst.msk [vmem:[#allocation2 + $0xa8] sm:$0xff] %vm1962, 0.0
      %8549 = vst.msk [vmem:[#allocation2 + $0xb0] sm:$0xff] %vm1962, 0.0
      %8550 = vst.msk [vmem:[#allocation2 + $0xb8] sm:$0x3] %vm3107, 0.0
      %8551 = vst.msk [vmem:[#allocation2 + $0xc0] sm:$0xff] %vm1962, 0.0
      %8552 = vst.msk [vmem:[#allocation2 + $0xc8] sm:$0xff] %vm1962, 0.0
      %8553 = vst.msk [vmem:[#allocation2 + $0xd0] sm:$0x3] %vm3107, 0.0
      %8554 = vst.msk [vmem:[#allocation2 + $0xd8] sm:$0xff] %vm1962, 0.0
      %8555 = vst.msk [vmem:[#allocation2 + $0xe0] sm:$0xff] %vm1962, 0.0
      %8556 = vst.msk [vmem:[#allocation2 + $0xe8] sm:$0x3] %vm3107, 0.0
      %8557 = vst.msk [vmem:[#allocation2 + $0xf0] sm:$0xff] %vm1962, 0.0
      %8558 = vst.msk [vmem:[#allocation2 + $0xf8] sm:$0xff] %vm1962, 0.0
      %8559 = vst.msk [vmem:[#allocation2 + $0x100] sm:$0x3] %vm3107, 0.0
      %8560 = vst.msk [vmem:[#allocation2 + $0x108] sm:$0xff] %vm1962, 0.0
      %8561 = vst.msk [vmem:[#allocation2 + $0x110] sm:$0xff] %vm1962, 0.0
      %8562 = vst.msk [vmem:[#allocation2 + $0x118] sm:$0x3] %vm3107, 0.0
      %8563 = vst.msk [vmem:[#allocation2 + $0x120] sm:$0xff] %vm1962, 0.0
      %8564 = vst.msk [vmem:[#allocation2 + $0x128] sm:$0xff] %vm1962, 0.0
      %8565 = vst.msk [vmem:[#allocation2 + $0x130] sm:$0x3] %vm3107, 0.0
      %8566 = vst.msk [vmem:[#allocation2 + $0x138] sm:$0xff] %vm1962, 0.0
      %8567 = vst.msk [vmem:[#allocation2 + $0x140] sm:$0xff] %vm1962, 0.0
      %8568 = vst.msk [vmem:[#allocation2 + $0x148] sm:$0x3] %vm3107, 0.0
      %8569 = vst.msk [vmem:[#allocation2 + $0x150] sm:$0xff] %vm1962, 0.0
      %8570 = vst.msk [vmem:[#allocation2 + $0x158] sm:$0xff] %vm1962, 0.0
      %8571 = vst.msk [vmem:[#allocation2 + $0x160] sm:$0x3] %vm3107, 0.0
      %8572 = vst.msk [vmem:[#allocation2 + $0x168] sm:$0xff] %vm1962, 0.0
      %8573 = vst.msk [vmem:[#allocation2 + $0x170] sm:$0xff] %vm1962, 0.0
      %8574 = vst.msk [vmem:[#allocation2 + $0x178] sm:$0x3] %vm3107, 0.0
      %8575 = vst.msk [vmem:[#allocation2 + $0x180] sm:$0xff] %vm1962, 0.0
      %8576 = vst.msk [vmem:[#allocation2 + $0x188] sm:$0xff] %vm1962, 0.0
      %8577 = vst.msk [vmem:[#allocation2 + $0x190] sm:$0x3] %vm3107, 0.0
      %8578 = vst.msk [vmem:[#allocation2 + $0x198] sm:$0xff] %vm1962, 0.0
      %8579 = vst.msk [vmem:[#allocation2 + $0x1a0] sm:$0xff] %vm1962, 0.0
      %8580 = vst.msk [vmem:[#allocation2 + $0x1a8] sm:$0x3] %vm3107, 0.0
      %8581 = vst.msk [vmem:[%s584 + $0x1] sm:$0xff] %vm1962, %v2450
      %8582 = vst.msk [vmem:[%s584 + $0x9] sm:$0xff] %vm1962, %v2451
      %8583 = vst.msk [vmem:[%s584 + $0x19] sm:$0xff] %vm1962, %v2452
      %8584 = vst.msk [vmem:[%s584 + $0x21] sm:$0xff] %vm1962, %v2453
      %8585 = vst.msk [vmem:[%s584 + $0x31] sm:$0xff] %vm1962, %v2454
      %8586 = vst.msk [vmem:[%s584 + $0x39] sm:$0xff] %vm1962, %v2455
      %8587 = vst.msk [vmem:[%s584 + $0x49] sm:$0xff] %vm1962, %v2456
      %8588 = vst.msk [vmem:[%s584 + $0x51] sm:$0xff] %vm1962, %v2457
      %8589 = vst.msk [vmem:[%s584 + $0x61] sm:$0xff] %vm1962, %v2458
      %8590 = vst.msk [vmem:[%s584 + $0x69] sm:$0xff] %vm1962, %v2459
      %8591 = vst.msk [vmem:[%s584 + $0x79] sm:$0xff] %vm1962, %v2460
      %8592 = vst.msk [vmem:[%s584 + $0x81] sm:$0xff] %vm1962, %v2461
      %8593 = vst.msk [vmem:[%s584 + $0x91] sm:$0xff] %vm1962, %v2462
      %8594 = vst.msk [vmem:[%s584 + $0x99] sm:$0xff] %vm1962, %v2463
      %8595 = vst.msk [vmem:[%s584 + $0xa9] sm:$0xff] %vm1962, %v2464
      %8596 = vst.msk [vmem:[%s584 + $0xb1] sm:$0xff] %vm1962, %v2465
      %8597 = vst.msk [vmem:[%s584 + $0xc1] sm:$0xff] %vm1962, %v2466
      %8598 = vst.msk [vmem:[%s584 + $0xc9] sm:$0xff] %vm1962, %v2467
      %8599 = vst.msk [vmem:[%s584 + $0xd9] sm:$0xff] %vm1962, %v2468
      %8600 = vst.msk [vmem:[%s584 + $0xe1] sm:$0xff] %vm1962, %v2469
      %8601 = vst.msk [vmem:[%s584 + $0xf1] sm:$0xff] %vm1962, %v2470
      %8602 = vst.msk [vmem:[%s584 + $0xf9] sm:$0xff] %vm1962, %v2471
      %8603 = vst.msk [vmem:[%s584 + $0x109] sm:$0xff] %vm1962, %v2472
      %8604 = vst.msk [vmem:[%s584 + $0x111] sm:$0xff] %vm1962, %v2473
      %8605 = vst.msk [vmem:[%s584 + $0x121] sm:$0xff] %vm1962, %v2474
      %8606 = vst.msk [vmem:[%s584 + $0x129] sm:$0xff] %vm1962, %v2475
      %8607 = vst.msk [vmem:[%s584 + $0x139] sm:$0xff] %vm1962, %v2476
      %8608 = vst.msk [vmem:[%s584 + $0x141] sm:$0xff] %vm1962, %v2477
      %8609 = vst.msk [vmem:[%s584 + $0x151] sm:$0xff] %vm1962, %v2478
      %8610 = vst.msk [vmem:[%s584 + $0x159] sm:$0xff] %vm1962, %v2479
      %8611 = vst.msk [vmem:[%s584 + $0x169] sm:$0xff] %vm1962, %v2480
      %8612 = vst.msk [vmem:[%s584 + $0x171] sm:$0xff] %vm1962, %v2481
      %v8613 = vld [vmem:[#allocation2] sm:$0xff]
      %v8614 = vld [vmem:[#allocation2 + $0x8] sm:$0xff]
      %v8615 = vld [vmem:[#allocation2 + $0x18] sm:$0xff]
      %v8616 = vld [vmem:[#allocation2 + $0x20] sm:$0xff]
      %v8617 = vld [vmem:[#allocation2 + $0x30] sm:$0xff]
      %v8618 = vld [vmem:[#allocation2 + $0x38] sm:$0xff]
      %v8619 = vld [vmem:[#allocation2 + $0x48] sm:$0xff]
      %v8620 = vld [vmem:[#allocation2 + $0x50] sm:$0xff]
      %v8621 = vld [vmem:[#allocation2 + $0x60] sm:$0xff]
      %v8622 = vld [vmem:[#allocation2 + $0x68] sm:$0xff]
      %v8623 = vld [vmem:[#allocation2 + $0x78] sm:$0xff]
      %v8624 = vld [vmem:[#allocation2 + $0x80] sm:$0xff]
      %v8625 = vld [vmem:[#allocation2 + $0x90] sm:$0xff]
      %v8626 = vld [vmem:[#allocation2 + $0x98] sm:$0xff]
      %v8627 = vld [vmem:[#allocation2 + $0xa8] sm:$0xff]
      %v8628 = vld [vmem:[#allocation2 + $0xb0] sm:$0xff]
      %v8629 = vld [vmem:[#allocation2 + $0xc0] sm:$0xff]
      %v8630 = vld [vmem:[#allocation2 + $0xc8] sm:$0xff]
      %v8631 = vld [vmem:[#allocation2 + $0xd8] sm:$0xff]
      %v8632 = vld [vmem:[#allocation2 + $0xe0] sm:$0xff]
      %v8633 = vld [vmem:[#allocation2 + $0xf0] sm:$0xff]
      %v8634 = vld [vmem:[#allocation2 + $0xf8] sm:$0xff]
      %v8635 = vld [vmem:[#allocation2 + $0x108] sm:$0xff]
      %v8636 = vld [vmem:[#allocation2 + $0x110] sm:$0xff]
      %v8637 = vld [vmem:[#allocation2 + $0x120] sm:$0xff]
      %v8638 = vld [vmem:[#allocation2 + $0x128] sm:$0xff]
      %v8639 = vld [vmem:[#allocation2 + $0x138] sm:$0xff]
      %v8640 = vld [vmem:[#allocation2 + $0x140] sm:$0xff]
      %v8641 = vld [vmem:[#allocation2 + $0x150] sm:$0xff]
      %v8642 = vld [vmem:[#allocation2 + $0x158] sm:$0xff]
      %v8643 = vld [vmem:[#allocation2 + $0x168] sm:$0xff]
      %v8644 = vld [vmem:[#allocation2 + $0x170] sm:$0xff]
      %v8645 = vld [vmem:[#allocation2 + $0x1] sm:$0xff]
      %v8646 = vld [vmem:[#allocation2 + $0x9] sm:$0xff]
      %v8647 = vld [vmem:[#allocation2 + $0x19] sm:$0xff]
      %v8648 = vld [vmem:[#allocation2 + $0x21] sm:$0xff]
      %v8649 = vld [vmem:[#allocation2 + $0x31] sm:$0xff]
      %v8650 = vld [vmem:[#allocation2 + $0x39] sm:$0xff]
      %v8651 = vld [vmem:[#allocation2 + $0x49] sm:$0xff]
      %v8652 = vld [vmem:[#allocation2 + $0x51] sm:$0xff]
      %v8653 = vld [vmem:[#allocation2 + $0x61] sm:$0xff]
      %v8654 = vld [vmem:[#allocation2 + $0x69] sm:$0xff]
      %v8655 = vld [vmem:[#allocation2 + $0x79] sm:$0xff]
      %v8656 = vld [vmem:[#allocation2 + $0x81] sm:$0xff]
      %v8657 = vld [vmem:[#allocation2 + $0x91] sm:$0xff]
      %v8658 = vld [vmem:[#allocation2 + $0x99] sm:$0xff]
      %v8659 = vld [vmem:[#allocation2 + $0xa9] sm:$0xff]
      %v8660 = vld [vmem:[#allocation2 + $0xb1] sm:$0xff]
      %v8661 = vld [vmem:[#allocation2 + $0xc1] sm:$0xff]
      %v8662 = vld [vmem:[#allocation2 + $0xc9] sm:$0xff]
      %v8663 = vld [vmem:[#allocation2 + $0xd9] sm:$0xff]
      %v8664 = vld [vmem:[#allocation2 + $0xe1] sm:$0xff]
      %v8665 = vld [vmem:[#allocation2 + $0xf1] sm:$0xff]
      %v8666 = vld [vmem:[#allocation2 + $0xf9] sm:$0xff]
      %v8667 = vld [vmem:[#allocation2 + $0x109] sm:$0xff]
      %v8668 = vld [vmem:[#allocation2 + $0x111] sm:$0xff]
      %v8669 = vld [vmem:[#allocation2 + $0x121] sm:$0xff]
      %v8670 = vld [vmem:[#allocation2 + $0x129] sm:$0xff]
      %v8671 = vld [vmem:[#allocation2 + $0x139] sm:$0xff]
      %v8672 = vld [vmem:[#allocation2 + $0x141] sm:$0xff]
      %v8673 = vld [vmem:[#allocation2 + $0x151] sm:$0xff]
      %v8674 = vld [vmem:[#allocation2 + $0x159] sm:$0xff]
      %v8675 = vld [vmem:[#allocation2 + $0x169] sm:$0xff]
      %v8676 = vld [vmem:[#allocation2 + $0x171] sm:$0xff]
      %v8677 = vld [vmem:[#allocation2 + $0x2] sm:$0xff]
      %v8678 = vld [vmem:[#allocation2 + $0xa] sm:$0xff]
      %v8679 = vld [vmem:[#allocation2 + $0x1a] sm:$0xff]
      %v8680 = vld [vmem:[#allocation2 + $0x22] sm:$0xff]
      %v8681 = vld [vmem:[#allocation2 + $0x32] sm:$0xff]
      %v8682 = vld [vmem:[#allocation2 + $0x3a] sm:$0xff]
      %v8683 = vld [vmem:[#allocation2 + $0x4a] sm:$0xff]
      %v8684 = vld [vmem:[#allocation2 + $0x52] sm:$0xff]
      %v8685 = vld [vmem:[#allocation2 + $0x62] sm:$0xff]
      %v8686 = vld [vmem:[#allocation2 + $0x6a] sm:$0xff]
      %v8687 = vld [vmem:[#allocation2 + $0x7a] sm:$0xff]
      %v8688 = vld [vmem:[#allocation2 + $0x82] sm:$0xff]
      %v8689 = vld [vmem:[#allocation2 + $0x92] sm:$0xff]
      %v8690 = vld [vmem:[#allocation2 + $0x9a] sm:$0xff]
      %v8691 = vld [vmem:[#allocation2 + $0xaa] sm:$0xff]
      %v8692 = vld [vmem:[#allocation2 + $0xb2] sm:$0xff]
      %v8693 = vld [vmem:[#allocation2 + $0xc2] sm:$0xff]
      %v8694 = vld [vmem:[#allocation2 + $0xca] sm:$0xff]
      %v8695 = vld [vmem:[#allocation2 + $0xda] sm:$0xff]
      %v8696 = vld [vmem:[#allocation2 + $0xe2] sm:$0xff]
      %v8697 = vld [vmem:[#allocation2 + $0xf2] sm:$0xff]
      %v8698 = vld [vmem:[#allocation2 + $0xfa] sm:$0xff]
      %v8699 = vld [vmem:[#allocation2 + $0x10a] sm:$0xff]
      %v8700 = vld [vmem:[#allocation2 + $0x112] sm:$0xff]
      %v8701 = vld [vmem:[#allocation2 + $0x122] sm:$0xff]
      %v8702 = vld [vmem:[#allocation2 + $0x12a] sm:$0xff]
      %v8703 = vld [vmem:[#allocation2 + $0x13a] sm:$0xff]
      %v8704 = vld [vmem:[#allocation2 + $0x142] sm:$0xff]
      %v8705 = vld [vmem:[#allocation2 + $0x152] sm:$0xff]
      %v8706 = vld [vmem:[#allocation2 + $0x15a] sm:$0xff]
      %v8707 = vld [vmem:[#allocation2 + $0x16a] sm:$0xff]
      %v8708 = vld [vmem:[#allocation2 + $0x172] sm:$0xff]
      %v8709 = vld [vmem:[%s584] sm:$0xff]
      %v8710 = vld [vmem:[%s584 + $0x8] sm:$0xff]
      %v8711 = vld [vmem:[%s584 + $0x18] sm:$0xff]
      %v8712 = vld [vmem:[%s584 + $0x20] sm:$0xff]
      %v8713 = vld [vmem:[%s584 + $0x30] sm:$0xff]
      %v8714 = vld [vmem:[%s584 + $0x38] sm:$0xff]
      %v8715 = vld [vmem:[%s584 + $0x48] sm:$0xff]
      %v8716 = vld [vmem:[%s584 + $0x50] sm:$0xff]
      %v8717 = vld [vmem:[%s584 + $0x60] sm:$0xff]
      %v8718 = vld [vmem:[%s584 + $0x68] sm:$0xff]
      %v8719 = vld [vmem:[%s584 + $0x78] sm:$0xff]
      %v8720 = vld [vmem:[%s584 + $0x80] sm:$0xff]
      %v8721 = vld [vmem:[%s584 + $0x90] sm:$0xff]
      %v8722 = vld [vmem:[%s584 + $0x98] sm:$0xff]
      %v8723 = vld [vmem:[%s584 + $0xa8] sm:$0xff]
      %v8724 = vld [vmem:[%s584 + $0xb0] sm:$0xff]
      %v8725 = vld [vmem:[%s584 + $0xc0] sm:$0xff]
      %v8726 = vld [vmem:[%s584 + $0xc8] sm:$0xff]
      %v8727 = vld [vmem:[%s584 + $0xd8] sm:$0xff]
      %v8728 = vld [vmem:[%s584 + $0xe0] sm:$0xff]
      %v8729 = vld [vmem:[%s584 + $0xf0] sm:$0xff]
      %v8730 = vld [vmem:[%s584 + $0xf8] sm:$0xff]
      %v8731 = vld [vmem:[%s584 + $0x108] sm:$0xff]
      %v8732 = vld [vmem:[%s584 + $0x110] sm:$0xff]
      %v8733 = vld [vmem:[%s584 + $0x120] sm:$0xff]
      %v8734 = vld [vmem:[%s584 + $0x128] sm:$0xff]
      %v8735 = vld [vmem:[%s584 + $0x138] sm:$0xff]
      %v8736 = vld [vmem:[%s584 + $0x140] sm:$0xff]
      %v8737 = vld [vmem:[%s584 + $0x150] sm:$0xff]
      %v8738 = vld [vmem:[%s584 + $0x158] sm:$0xff]
      %v8739 = vld [vmem:[%s584 + $0x168] sm:$0xff]
      %v8740 = vld [vmem:[%s584 + $0x170] sm:$0xff]
      %v8741 = vld [vmem:[%s584 + $0x1] sm:$0xff]
      %v8742 = vld [vmem:[%s584 + $0x9] sm:$0xff]
      %v8743 = vld [vmem:[%s584 + $0x19] sm:$0xff]
      %v8744 = vld [vmem:[%s584 + $0x21] sm:$0xff]
      %v8745 = vld [vmem:[%s584 + $0x31] sm:$0xff]
      %v8746 = vld [vmem:[%s584 + $0x39] sm:$0xff]
      %v8747 = vld [vmem:[%s584 + $0x49] sm:$0xff]
      %v8748 = vld [vmem:[%s584 + $0x51] sm:$0xff]
      %v8749 = vld [vmem:[%s584 + $0x61] sm:$0xff]
      %v8750 = vld [vmem:[%s584 + $0x69] sm:$0xff]
      %v8751 = vld [vmem:[%s584 + $0x79] sm:$0xff]
      %v8752 = vld [vmem:[%s584 + $0x81] sm:$0xff]
      %v8753 = vld [vmem:[%s584 + $0x91] sm:$0xff]
      %v8754 = vld [vmem:[%s584 + $0x99] sm:$0xff]
      %v8755 = vld [vmem:[%s584 + $0xa9] sm:$0xff]
      %v8756 = vld [vmem:[%s584 + $0xb1] sm:$0xff]
      %v8757 = vld [vmem:[%s584 + $0xc1] sm:$0xff]
      %v8758 = vld [vmem:[%s584 + $0xc9] sm:$0xff]
      %v8759 = vld [vmem:[%s584 + $0xd9] sm:$0xff]
      %v8760 = vld [vmem:[%s584 + $0xe1] sm:$0xff]
      %v8761 = vld [vmem:[%s584 + $0xf1] sm:$0xff]
      %v8762 = vld [vmem:[%s584 + $0xf9] sm:$0xff]
      %v8763 = vld [vmem:[%s584 + $0x109] sm:$0xff]
      %v8764 = vld [vmem:[%s584 + $0x111] sm:$0xff]
      %v8765 = vld [vmem:[%s584 + $0x121] sm:$0xff]
      %v8766 = vld [vmem:[%s584 + $0x129] sm:$0xff]
      %v8767 = vld [vmem:[%s584 + $0x139] sm:$0xff]
      %v8768 = vld [vmem:[%s584 + $0x141] sm:$0xff]
      %v8769 = vld [vmem:[%s584 + $0x151] sm:$0xff]
      %v8770 = vld [vmem:[%s584 + $0x159] sm:$0xff]
      %v8771 = vld [vmem:[%s584 + $0x169] sm:$0xff]
      %v8772 = vld [vmem:[%s584 + $0x171] sm:$0xff]
      %v8773 = vld [vmem:[%s584 + $0x2] sm:$0xff]
      %v8774 = vld [vmem:[%s584 + $0xa] sm:$0xff]
      %v8775 = vld [vmem:[%s584 + $0x1a] sm:$0xff]
      %v8776 = vld [vmem:[%s584 + $0x22] sm:$0xff]
      %v8777 = vld [vmem:[%s584 + $0x32] sm:$0xff]
      %v8778 = vld [vmem:[%s584 + $0x3a] sm:$0xff]
      %v8779 = vld [vmem:[%s584 + $0x4a] sm:$0xff]
      %v8780 = vld [vmem:[%s584 + $0x52] sm:$0xff]
      %v8781 = vld [vmem:[%s584 + $0x62] sm:$0xff]
      %v8782 = vld [vmem:[%s584 + $0x6a] sm:$0xff]
      %v8783 = vld [vmem:[%s584 + $0x7a] sm:$0xff]
      %v8784 = vld [vmem:[%s584 + $0x82] sm:$0xff]
      %v8785 = vld [vmem:[%s584 + $0x92] sm:$0xff]
      %v8786 = vld [vmem:[%s584 + $0x9a] sm:$0xff]
      %v8787 = vld [vmem:[%s584 + $0xaa] sm:$0xff]
      %v8788 = vld [vmem:[%s584 + $0xb2] sm:$0xff]
      %v8789 = vld [vmem:[%s584 + $0xc2] sm:$0xff]
      %v8790 = vld [vmem:[%s584 + $0xca] sm:$0xff]
      %v8791 = vld [vmem:[%s584 + $0xda] sm:$0xff]
      %v8792 = vld [vmem:[%s584 + $0xe2] sm:$0xff]
      %v8793 = vld [vmem:[%s584 + $0xf2] sm:$0xff]
      %v8794 = vld [vmem:[%s584 + $0xfa] sm:$0xff]
      %v8795 = vld [vmem:[%s584 + $0x10a] sm:$0xff]
      %v8796 = vld [vmem:[%s584 + $0x112] sm:$0xff]
      %v8797 = vld [vmem:[%s584 + $0x122] sm:$0xff]
      %v8798 = vld [vmem:[%s584 + $0x12a] sm:$0xff]
      %v8799 = vld [vmem:[%s584 + $0x13a] sm:$0xff]
      %v8800 = vld [vmem:[%s584 + $0x142] sm:$0xff]
      %v8801 = vld [vmem:[%s584 + $0x152] sm:$0xff]
      %v8802 = vld [vmem:[%s584 + $0x15a] sm:$0xff]
      %v8803 = vld [vmem:[%s584 + $0x16a] sm:$0xff]
      %v8804 = vld [vmem:[%s584 + $0x172] sm:$0xff]
      %v8805 = vld [vmem:[%s809] sm:$0xff]
      %v8806 = vld [vmem:[%s809 + $0x8] sm:$0xff]
      %v8807 = vld [vmem:[%s809 + $0x18] sm:$0xff]
      %v8808 = vld [vmem:[%s809 + $0x20] sm:$0xff]
      %v8809 = vld [vmem:[%s809 + $0x30] sm:$0xff]
      %v8810 = vld [vmem:[%s809 + $0x38] sm:$0xff]
      %v8811 = vld [vmem:[%s809 + $0x48] sm:$0xff]
      %v8812 = vld [vmem:[%s809 + $0x50] sm:$0xff]
      %v8813 = vld [vmem:[%s809 + $0x60] sm:$0xff]
      %v8814 = vld [vmem:[%s809 + $0x68] sm:$0xff]
      %v8815 = vld [vmem:[%s809 + $0x78] sm:$0xff]
      %v8816 = vld [vmem:[%s809 + $0x80] sm:$0xff]
      %v8817 = vld [vmem:[%s809 + $0x90] sm:$0xff]
      %v8818 = vld [vmem:[%s809 + $0x98] sm:$0xff]
      %v8819 = vld [vmem:[%s809 + $0xa8] sm:$0xff]
      %v8820 = vld [vmem:[%s809 + $0xb0] sm:$0xff]
      %v8821 = vld [vmem:[%s809 + $0xc0] sm:$0xff]
      %v8822 = vld [vmem:[%s809 + $0xc8] sm:$0xff]
      %v8823 = vld [vmem:[%s809 + $0xd8] sm:$0xff]
      %v8824 = vld [vmem:[%s809 + $0xe0] sm:$0xff]
      %v8825 = vld [vmem:[%s809 + $0xf0] sm:$0xff]
      %v8826 = vld [vmem:[%s809 + $0xf8] sm:$0xff]
      %v8827 = vld [vmem:[%s809 + $0x108] sm:$0xff]
      %v8828 = vld [vmem:[%s809 + $0x110] sm:$0xff]
      %v8829 = vld [vmem:[%s809 + $0x120] sm:$0xff]
      %v8830 = vld [vmem:[%s809 + $0x128] sm:$0xff]
      %v8831 = vld [vmem:[%s809 + $0x138] sm:$0xff]
      %v8832 = vld [vmem:[%s809 + $0x140] sm:$0xff]
      %v8833 = vld [vmem:[%s809 + $0x150] sm:$0xff]
      %v8834 = vld [vmem:[%s809 + $0x158] sm:$0xff]
      %v8835 = vld [vmem:[%s809 + $0x168] sm:$0xff]
      %v8836 = vld [vmem:[%s809 + $0x170] sm:$0xff]
      %v8837 = vld [vmem:[%s809 + $0x1] sm:$0xff]
      %v8838 = vld [vmem:[%s809 + $0x9] sm:$0xff]
      %v8839 = vld [vmem:[%s809 + $0x19] sm:$0xff]
      %v8840 = vld [vmem:[%s809 + $0x21] sm:$0xff]
      %v8841 = vld [vmem:[%s809 + $0x31] sm:$0xff]
      %v8842 = vld [vmem:[%s809 + $0x39] sm:$0xff]
      %v8843 = vld [vmem:[%s809 + $0x49] sm:$0xff]
      %v8844 = vld [vmem:[%s809 + $0x51] sm:$0xff]
      %v8845 = vld [vmem:[%s809 + $0x61] sm:$0xff]
      %v8846 = vld [vmem:[%s809 + $0x69] sm:$0xff]
      %v8847 = vld [vmem:[%s809 + $0x79] sm:$0xff]
      %v8848 = vld [vmem:[%s809 + $0x81] sm:$0xff]
      %v8849 = vld [vmem:[%s809 + $0x91] sm:$0xff]
      %v8850 = vld [vmem:[%s809 + $0x99] sm:$0xff]
      %v8851 = vld [vmem:[%s809 + $0xa9] sm:$0xff]
      %v8852 = vld [vmem:[%s809 + $0xb1] sm:$0xff]
      %v8853 = vld [vmem:[%s809 + $0xc1] sm:$0xff]
      %v8854 = vld [vmem:[%s809 + $0xc9] sm:$0xff]
      %v8855 = vld [vmem:[%s809 + $0xd9] sm:$0xff]
      %v8856 = vld [vmem:[%s809 + $0xe1] sm:$0xff]
      %v8857 = vld [vmem:[%s809 + $0xf1] sm:$0xff]
      %v8858 = vld [vmem:[%s809 + $0xf9] sm:$0xff]
      %v8859 = vld [vmem:[%s809 + $0x109] sm:$0xff]
      %v8860 = vld [vmem:[%s809 + $0x111] sm:$0xff]
      %v8861 = vld [vmem:[%s809 + $0x121] sm:$0xff]
      %v8862 = vld [vmem:[%s809 + $0x129] sm:$0xff]
      %v8863 = vld [vmem:[%s809 + $0x139] sm:$0xff]
      %v8864 = vld [vmem:[%s809 + $0x141] sm:$0xff]
      %v8865 = vld [vmem:[%s809 + $0x151] sm:$0xff]
      %v8866 = vld [vmem:[%s809 + $0x159] sm:$0xff]
      %v8867 = vld [vmem:[%s809 + $0x169] sm:$0xff]
      %v8868 = vld [vmem:[%s809 + $0x171] sm:$0xff]
      %v8869 = vld [vmem:[%s809 + $0x2] sm:$0xff]
      %v8870 = vld [vmem:[%s809 + $0xa] sm:$0xff]
      %v8871 = vld [vmem:[%s809 + $0x1a] sm:$0xff]
      %v8872 = vld [vmem:[%s809 + $0x22] sm:$0xff]
      %v8873 = vld [vmem:[%s809 + $0x32] sm:$0xff]
      %v8874 = vld [vmem:[%s809 + $0x3a] sm:$0xff]
      %v8875 = vld [vmem:[%s809 + $0x4a] sm:$0xff]
      %v8876 = vld [vmem:[%s809 + $0x52] sm:$0xff]
      %v8877 = vld [vmem:[%s809 + $0x62] sm:$0xff]
      %v8878 = vld [vmem:[%s809 + $0x6a] sm:$0xff]
      %v8879 = vld [vmem:[%s809 + $0x7a] sm:$0xff]
      %v8880 = vld [vmem:[%s809 + $0x82] sm:$0xff]
      %v8881 = vld [vmem:[%s809 + $0x92] sm:$0xff]
      %v8882 = vld [vmem:[%s809 + $0x9a] sm:$0xff]
      %v8883 = vld [vmem:[%s809 + $0xaa] sm:$0xff]
      %v8884 = vld [vmem:[%s809 + $0xb2] sm:$0xff]
      %v8885 = vld [vmem:[%s809 + $0xc2] sm:$0xff]
      %v8886 = vld [vmem:[%s809 + $0xca] sm:$0xff]
      %v8887 = vld [vmem:[%s809 + $0xda] sm:$0xff]
      %v8888 = vld [vmem:[%s809 + $0xe2] sm:$0xff]
      %v8889 = vld [vmem:[%s809 + $0xf2] sm:$0xff]
      %v8890 = vld [vmem:[%s809 + $0xfa] sm:$0xff]
      %v8891 = vld [vmem:[%s809 + $0x10a] sm:$0xff]
      %v8892 = vld [vmem:[%s809 + $0x112] sm:$0xff]
      %v8893 = vld [vmem:[%s809 + $0x122] sm:$0xff]
      %v8894 = vld [vmem:[%s809 + $0x12a] sm:$0xff]
      %v8895 = vld [vmem:[%s809 + $0x13a] sm:$0xff]
      %v8896 = vld [vmem:[%s809 + $0x142] sm:$0xff]
      %v8897 = vld [vmem:[%s809 + $0x152] sm:$0xff]
      %v8898 = vld [vmem:[%s809 + $0x15a] sm:$0xff]
      %v8899 = vld [vmem:[%s809 + $0x16a] sm:$0xff]
      %v8900 = vld [vmem:[%s809 + $0x172] sm:$0xff]
      %8933 = vrot.lane.b32.xlu0 %v8645, 8
      %v8934 = vpop.permute.xlu0 %8933
      %8935 = vrot.lane.b32.xlu0 %v8646, 8
      %v8936 = vpop.permute.xlu0 %8935
      %8937 = vrot.lane.b32.xlu0 %v8647, 8
      %v8938 = vpop.permute.xlu0 %8937
      %8939 = vrot.lane.b32.xlu0 %v8648, 8
      %v8940 = vpop.permute.xlu0 %8939
      %8941 = vrot.lane.b32.xlu0 %v8649, 8
      %v8942 = vpop.permute.xlu0 %8941
      %8943 = vrot.lane.b32.xlu0 %v8650, 8
      %v8944 = vpop.permute.xlu0 %8943
      %8945 = vrot.lane.b32.xlu0 %v8651, 8
      %v8946 = vpop.permute.xlu0 %8945
      %8947 = vrot.lane.b32.xlu0 %v8652, 8
      %v8948 = vpop.permute.xlu0 %8947
      %8949 = vrot.lane.b32.xlu0 %v8653, 8
      %v8950 = vpop.permute.xlu0 %8949
      %8951 = vrot.lane.b32.xlu0 %v8654, 8
      %v8952 = vpop.permute.xlu0 %8951
      %8953 = vrot.lane.b32.xlu0 %v8655, 8
      %v8954 = vpop.permute.xlu0 %8953
      %8955 = vrot.lane.b32.xlu0 %v8656, 8
      %v8956 = vpop.permute.xlu0 %8955
      %8957 = vrot.lane.b32.xlu0 %v8657, 8
      %v8958 = vpop.permute.xlu0 %8957
      %8959 = vrot.lane.b32.xlu0 %v8658, 8
      %v8960 = vpop.permute.xlu0 %8959
      %8961 = vrot.lane.b32.xlu0 %v8659, 8
      %v8962 = vpop.permute.xlu0 %8961
      %8963 = vrot.lane.b32.xlu0 %v8660, 8
      %v8964 = vpop.permute.xlu0 %8963
      %8965 = vrot.lane.b32.xlu0 %v8661, 8
      %v8966 = vpop.permute.xlu0 %8965
      %8967 = vrot.lane.b32.xlu0 %v8662, 8
      %v8968 = vpop.permute.xlu0 %8967
      %8969 = vrot.lane.b32.xlu0 %v8663, 8
      %v8970 = vpop.permute.xlu0 %8969
      %8971 = vrot.lane.b32.xlu0 %v8664, 8
      %v8972 = vpop.permute.xlu0 %8971
      %8973 = vrot.lane.b32.xlu0 %v8665, 8
      %v8974 = vpop.permute.xlu0 %8973
      %8975 = vrot.lane.b32.xlu0 %v8666, 8
      %v8976 = vpop.permute.xlu0 %8975
      %8977 = vrot.lane.b32.xlu0 %v8667, 8
      %v8978 = vpop.permute.xlu0 %8977
      %8979 = vrot.lane.b32.xlu0 %v8668, 8
      %v8980 = vpop.permute.xlu0 %8979
      %8981 = vrot.lane.b32.xlu0 %v8669, 8
      %v8982 = vpop.permute.xlu0 %8981
      %8983 = vrot.lane.b32.xlu0 %v8670, 8
      %v8984 = vpop.permute.xlu0 %8983
      %8985 = vrot.lane.b32.xlu0 %v8671, 8
      %v8986 = vpop.permute.xlu0 %8985
      %8987 = vrot.lane.b32.xlu0 %v8672, 8
      %v8988 = vpop.permute.xlu0 %8987
      %8989 = vrot.lane.b32.xlu0 %v8673, 8
      %v8990 = vpop.permute.xlu0 %8989
      %8991 = vrot.lane.b32.xlu0 %v8674, 8
      %v8992 = vpop.permute.xlu0 %8991
      %8993 = vrot.lane.b32.xlu0 %v8675, 8
      %v8994 = vpop.permute.xlu0 %8993
      %8995 = vrot.lane.b32.xlu0 %v8676, 8
      %v8996 = vpop.permute.xlu0 %8995
      %9061 = vrot.lane.b32.xlu0 %v8677, 16
      %v9062 = vpop.permute.xlu0 %9061
      %9063 = vrot.lane.b32.xlu0 %v8678, 16
      %v9064 = vpop.permute.xlu0 %9063
      %9065 = vrot.lane.b32.xlu0 %v8679, 16
      %v9066 = vpop.permute.xlu0 %9065
      %9067 = vrot.lane.b32.xlu0 %v8680, 16
      %v9068 = vpop.permute.xlu0 %9067
      %9069 = vrot.lane.b32.xlu0 %v8681, 16
      %v9070 = vpop.permute.xlu0 %9069
      %9071 = vrot.lane.b32.xlu0 %v8682, 16
      %v9072 = vpop.permute.xlu0 %9071
      %9073 = vrot.lane.b32.xlu0 %v8683, 16
      %v9074 = vpop.permute.xlu0 %9073
      %9075 = vrot.lane.b32.xlu0 %v8684, 16
      %v9076 = vpop.permute.xlu0 %9075
      %9077 = vrot.lane.b32.xlu0 %v8685, 16
      %v9078 = vpop.permute.xlu0 %9077
      %9079 = vrot.lane.b32.xlu0 %v8686, 16
      %v9080 = vpop.permute.xlu0 %9079
      %9081 = vrot.lane.b32.xlu0 %v8687, 16
      %v9082 = vpop.permute.xlu0 %9081
      %9083 = vrot.lane.b32.xlu0 %v8688, 16
      %v9084 = vpop.permute.xlu0 %9083
      %9085 = vrot.lane.b32.xlu0 %v8689, 16
      %v9086 = vpop.permute.xlu0 %9085
      %9087 = vrot.lane.b32.xlu0 %v8690, 16
      %v9088 = vpop.permute.xlu0 %9087
      %9089 = vrot.lane.b32.xlu0 %v8691, 16
      %v9090 = vpop.permute.xlu0 %9089
      %9091 = vrot.lane.b32.xlu0 %v8692, 16
      %v9092 = vpop.permute.xlu0 %9091
      %9093 = vrot.lane.b32.xlu0 %v8693, 16
      %v9094 = vpop.permute.xlu0 %9093
      %9095 = vrot.lane.b32.xlu0 %v8694, 16
      %v9096 = vpop.permute.xlu0 %9095
      %9097 = vrot.lane.b32.xlu0 %v8695, 16
      %v9098 = vpop.permute.xlu0 %9097
      %9099 = vrot.lane.b32.xlu0 %v8696, 16
      %v9100 = vpop.permute.xlu0 %9099
      %9101 = vrot.lane.b32.xlu0 %v8697, 16
      %v9102 = vpop.permute.xlu0 %9101
      %9103 = vrot.lane.b32.xlu0 %v8698, 16
      %v9104 = vpop.permute.xlu0 %9103
      %9105 = vrot.lane.b32.xlu0 %v8699, 16
      %v9106 = vpop.permute.xlu0 %9105
      %9107 = vrot.lane.b32.xlu0 %v8700, 16
      %v9108 = vpop.permute.xlu0 %9107
      %9109 = vrot.lane.b32.xlu0 %v8701, 16
      %v9110 = vpop.permute.xlu0 %9109
      %9111 = vrot.lane.b32.xlu0 %v8702, 16
      %v9112 = vpop.permute.xlu0 %9111
      %9113 = vrot.lane.b32.xlu0 %v8703, 16
      %v9114 = vpop.permute.xlu0 %9113
      %9115 = vrot.lane.b32.xlu0 %v8704, 16
      %v9116 = vpop.permute.xlu0 %9115
      %9117 = vrot.lane.b32.xlu0 %v8705, 16
      %v9118 = vpop.permute.xlu0 %9117
      %9119 = vrot.lane.b32.xlu0 %v8706, 16
      %v9120 = vpop.permute.xlu0 %9119
      %9121 = vrot.lane.b32.xlu0 %v8707, 16
      %v9122 = vpop.permute.xlu0 %9121
      %9123 = vrot.lane.b32.xlu0 %v8708, 16
      %v9124 = vpop.permute.xlu0 %9123
      %9189 = vrot.lane.b32.xlu0 %v8709, 24
      %v9190 = vpop.permute.xlu0 %9189
      %9191 = vrot.lane.b32.xlu0 %v8710, 24
      %v9192 = vpop.permute.xlu0 %9191
      %9193 = vrot.lane.b32.xlu0 %v8711, 24
      %v9194 = vpop.permute.xlu0 %9193
      %9195 = vrot.lane.b32.xlu0 %v8712, 24
      %v9196 = vpop.permute.xlu0 %9195
      %9197 = vrot.lane.b32.xlu0 %v8713, 24
      %v9198 = vpop.permute.xlu0 %9197
      %9199 = vrot.lane.b32.xlu0 %v8714, 24
      %v9200 = vpop.permute.xlu0 %9199
      %9201 = vrot.lane.b32.xlu0 %v8715, 24
      %v9202 = vpop.permute.xlu0 %9201
      %9203 = vrot.lane.b32.xlu0 %v8716, 24
      %v9204 = vpop.permute.xlu0 %9203
      %9205 = vrot.lane.b32.xlu0 %v8717, 24
      %v9206 = vpop.permute.xlu0 %9205
      %9207 = vrot.lane.b32.xlu0 %v8718, 24
      %v9208 = vpop.permute.xlu0 %9207
      %9209 = vrot.lane.b32.xlu0 %v8719, 24
      %v9210 = vpop.permute.xlu0 %9209
      %9211 = vrot.lane.b32.xlu0 %v8720, 24
      %v9212 = vpop.permute.xlu0 %9211
      %9213 = vrot.lane.b32.xlu0 %v8721, 24
      %v9214 = vpop.permute.xlu0 %9213
      %9215 = vrot.lane.b32.xlu0 %v8722, 24
      %v9216 = vpop.permute.xlu0 %9215
      %9217 = vrot.lane.b32.xlu0 %v8723, 24
      %v9218 = vpop.permute.xlu0 %9217
      %9219 = vrot.lane.b32.xlu0 %v8724, 24
      %v9220 = vpop.permute.xlu0 %9219
      %9221 = vrot.lane.b32.xlu0 %v8725, 24
      %v9222 = vpop.permute.xlu0 %9221
      %9223 = vrot.lane.b32.xlu0 %v8726, 24
      %v9224 = vpop.permute.xlu0 %9223
      %9225 = vrot.lane.b32.xlu0 %v8727, 24
      %v9226 = vpop.permute.xlu0 %9225
      %9227 = vrot.lane.b32.xlu0 %v8728, 24
      %v9228 = vpop.permute.xlu0 %9227
      %9229 = vrot.lane.b32.xlu0 %v8729, 24
      %v9230 = vpop.permute.xlu0 %9229
      %9231 = vrot.lane.b32.xlu0 %v8730, 24
      %v9232 = vpop.permute.xlu0 %9231
      %9233 = vrot.lane.b32.xlu0 %v8731, 24
      %v9234 = vpop.permute.xlu0 %9233
      %9235 = vrot.lane.b32.xlu0 %v8732, 24
      %v9236 = vpop.permute.xlu0 %9235
      %9237 = vrot.lane.b32.xlu0 %v8733, 24
      %v9238 = vpop.permute.xlu0 %9237
      %9239 = vrot.lane.b32.xlu0 %v8734, 24
      %v9240 = vpop.permute.xlu0 %9239
      %9241 = vrot.lane.b32.xlu0 %v8735, 24
      %v9242 = vpop.permute.xlu0 %9241
      %9243 = vrot.lane.b32.xlu0 %v8736, 24
      %v9244 = vpop.permute.xlu0 %9243
      %9245 = vrot.lane.b32.xlu0 %v8737, 24
      %v9246 = vpop.permute.xlu0 %9245
      %9247 = vrot.lane.b32.xlu0 %v8738, 24
      %v9248 = vpop.permute.xlu0 %9247
      %9249 = vrot.lane.b32.xlu0 %v8739, 24
      %v9250 = vpop.permute.xlu0 %9249
      %9251 = vrot.lane.b32.xlu0 %v8740, 24
      %v9252 = vpop.permute.xlu0 %9251
      %9317 = vrot.lane.b32.xlu0 %v8741, 32
      %v9318 = vpop.permute.xlu0 %9317
      %9319 = vrot.lane.b32.xlu0 %v8742, 32
      %v9320 = vpop.permute.xlu0 %9319
      %9321 = vrot.lane.b32.xlu0 %v8743, 32
      %v9322 = vpop.permute.xlu0 %9321
      %9323 = vrot.lane.b32.xlu0 %v8744, 32
      %v9324 = vpop.permute.xlu0 %9323
      %9325 = vrot.lane.b32.xlu0 %v8745, 32
      %v9326 = vpop.permute.xlu0 %9325
      %9327 = vrot.lane.b32.xlu0 %v8746, 32
      %v9328 = vpop.permute.xlu0 %9327
      %9329 = vrot.lane.b32.xlu0 %v8747, 32
      %v9330 = vpop.permute.xlu0 %9329
      %9331 = vrot.lane.b32.xlu0 %v8748, 32
      %v9332 = vpop.permute.xlu0 %9331
      %9333 = vrot.lane.b32.xlu0 %v8749, 32
      %v9334 = vpop.permute.xlu0 %9333
      %9335 = vrot.lane.b32.xlu0 %v8750, 32
      %v9336 = vpop.permute.xlu0 %9335
      %9337 = vrot.lane.b32.xlu0 %v8751, 32
      %v9338 = vpop.permute.xlu0 %9337
      %9339 = vrot.lane.b32.xlu0 %v8752, 32
      %v9340 = vpop.permute.xlu0 %9339
      %9341 = vrot.lane.b32.xlu0 %v8753, 32
      %v9342 = vpop.permute.xlu0 %9341
      %9343 = vrot.lane.b32.xlu0 %v8754, 32
      %v9344 = vpop.permute.xlu0 %9343
      %9345 = vrot.lane.b32.xlu0 %v8755, 32
      %v9346 = vpop.permute.xlu0 %9345
      %9347 = vrot.lane.b32.xlu0 %v8756, 32
      %v9348 = vpop.permute.xlu0 %9347
      %9349 = vrot.lane.b32.xlu0 %v8757, 32
      %v9350 = vpop.permute.xlu0 %9349
      %9351 = vrot.lane.b32.xlu0 %v8758, 32
      %v9352 = vpop.permute.xlu0 %9351
      %9353 = vrot.lane.b32.xlu0 %v8759, 32
      %v9354 = vpop.permute.xlu0 %9353
      %9355 = vrot.lane.b32.xlu0 %v8760, 32
      %v9356 = vpop.permute.xlu0 %9355
      %9357 = vrot.lane.b32.xlu0 %v8761, 32
      %v9358 = vpop.permute.xlu0 %9357
      %9359 = vrot.lane.b32.xlu0 %v8762, 32
      %v9360 = vpop.permute.xlu0 %9359
      %9361 = vrot.lane.b32.xlu0 %v8763, 32
      %v9362 = vpop.permute.xlu0 %9361
      %9363 = vrot.lane.b32.xlu0 %v8764, 32
      %v9364 = vpop.permute.xlu0 %9363
      %9365 = vrot.lane.b32.xlu0 %v8765, 32
      %v9366 = vpop.permute.xlu0 %9365
      %9367 = vrot.lane.b32.xlu0 %v8766, 32
      %v9368 = vpop.permute.xlu0 %9367
      %9369 = vrot.lane.b32.xlu0 %v8767, 32
      %v9370 = vpop.permute.xlu0 %9369
      %9371 = vrot.lane.b32.xlu0 %v8768, 32
      %v9372 = vpop.permute.xlu0 %9371
      %9373 = vrot.lane.b32.xlu0 %v8769, 32
      %v9374 = vpop.permute.xlu0 %9373
      %9375 = vrot.lane.b32.xlu0 %v8770, 32
      %v9376 = vpop.permute.xlu0 %9375
      %9377 = vrot.lane.b32.xlu0 %v8771, 32
      %v9378 = vpop.permute.xlu0 %9377
      %9379 = vrot.lane.b32.xlu0 %v8772, 32
      %v9380 = vpop.permute.xlu0 %9379
      %9445 = vrot.lane.b32.xlu0 %v8773, 40
      %v9446 = vpop.permute.xlu0 %9445
      %9447 = vrot.lane.b32.xlu0 %v8774, 40
      %v9448 = vpop.permute.xlu0 %9447
      %9449 = vrot.lane.b32.xlu0 %v8775, 40
      %v9450 = vpop.permute.xlu0 %9449
      %9451 = vrot.lane.b32.xlu0 %v8776, 40
      %v9452 = vpop.permute.xlu0 %9451
      %9453 = vrot.lane.b32.xlu0 %v8777, 40
      %v9454 = vpop.permute.xlu0 %9453
      %9455 = vrot.lane.b32.xlu0 %v8778, 40
      %v9456 = vpop.permute.xlu0 %9455
      %9457 = vrot.lane.b32.xlu0 %v8779, 40
      %v9458 = vpop.permute.xlu0 %9457
      %9459 = vrot.lane.b32.xlu0 %v8780, 40
      %v9460 = vpop.permute.xlu0 %9459
      %9461 = vrot.lane.b32.xlu0 %v8781, 40
      %v9462 = vpop.permute.xlu0 %9461
      %9463 = vrot.lane.b32.xlu0 %v8782, 40
      %v9464 = vpop.permute.xlu0 %9463
      %9465 = vrot.lane.b32.xlu0 %v8783, 40
      %v9466 = vpop.permute.xlu0 %9465
      %9467 = vrot.lane.b32.xlu0 %v8784, 40
      %v9468 = vpop.permute.xlu0 %9467
      %9469 = vrot.lane.b32.xlu0 %v8785, 40
      %v9470 = vpop.permute.xlu0 %9469
      %9471 = vrot.lane.b32.xlu0 %v8786, 40
      %v9472 = vpop.permute.xlu0 %9471
      %9473 = vrot.lane.b32.xlu0 %v8787, 40
      %v9474 = vpop.permute.xlu0 %9473
      %9475 = vrot.lane.b32.xlu0 %v8788, 40
      %v9476 = vpop.permute.xlu0 %9475
      %9477 = vrot.lane.b32.xlu0 %v8789, 40
      %v9478 = vpop.permute.xlu0 %9477
      %9479 = vrot.lane.b32.xlu0 %v8790, 40
      %v9480 = vpop.permute.xlu0 %9479
      %9481 = vrot.lane.b32.xlu0 %v8791, 40
      %v9482 = vpop.permute.xlu0 %9481
      %9483 = vrot.lane.b32.xlu0 %v8792, 40
      %v9484 = vpop.permute.xlu0 %9483
      %9485 = vrot.lane.b32.xlu0 %v8793, 40
      %v9486 = vpop.permute.xlu0 %9485
      %9487 = vrot.lane.b32.xlu0 %v8794, 40
      %v9488 = vpop.permute.xlu0 %9487
      %9489 = vrot.lane.b32.xlu0 %v8795, 40
      %v9490 = vpop.permute.xlu0 %9489
      %9491 = vrot.lane.b32.xlu0 %v8796, 40
      %v9492 = vpop.permute.xlu0 %9491
      %9493 = vrot.lane.b32.xlu0 %v8797, 40
      %v9494 = vpop.permute.xlu0 %9493
      %9495 = vrot.lane.b32.xlu0 %v8798, 40
      %v9496 = vpop.permute.xlu0 %9495
      %9497 = vrot.lane.b32.xlu0 %v8799, 40
      %v9498 = vpop.permute.xlu0 %9497
      %9499 = vrot.lane.b32.xlu0 %v8800, 40
      %v9500 = vpop.permute.xlu0 %9499
      %9501 = vrot.lane.b32.xlu0 %v8801, 40
      %v9502 = vpop.permute.xlu0 %9501
      %9503 = vrot.lane.b32.xlu0 %v8802, 40
      %v9504 = vpop.permute.xlu0 %9503
      %9505 = vrot.lane.b32.xlu0 %v8803, 40
      %v9506 = vpop.permute.xlu0 %9505
      %9507 = vrot.lane.b32.xlu0 %v8804, 40
      %v9508 = vpop.permute.xlu0 %9507
      %9573 = vrot.lane.b32.xlu0 %v8805, 48
      %v9574 = vpop.permute.xlu0 %9573
      %9575 = vrot.lane.b32.xlu0 %v8806, 48
      %v9576 = vpop.permute.xlu0 %9575
      %9577 = vrot.lane.b32.xlu0 %v8807, 48
      %v9578 = vpop.permute.xlu0 %9577
      %9579 = vrot.lane.b32.xlu0 %v8808, 48
      %v9580 = vpop.permute.xlu0 %9579
      %9581 = vrot.lane.b32.xlu0 %v8809, 48
      %v9582 = vpop.permute.xlu0 %9581
      %9583 = vrot.lane.b32.xlu0 %v8810, 48
      %v9584 = vpop.permute.xlu0 %9583
      %9585 = vrot.lane.b32.xlu0 %v8811, 48
      %v9586 = vpop.permute.xlu0 %9585
      %9587 = vrot.lane.b32.xlu0 %v8812, 48
      %v9588 = vpop.permute.xlu0 %9587
      %9589 = vrot.lane.b32.xlu0 %v8813, 48
      %v9590 = vpop.permute.xlu0 %9589
      %9591 = vrot.lane.b32.xlu0 %v8814, 48
      %v9592 = vpop.permute.xlu0 %9591
      %9593 = vrot.lane.b32.xlu0 %v8815, 48
      %v9594 = vpop.permute.xlu0 %9593
      %9595 = vrot.lane.b32.xlu0 %v8816, 48
      %v9596 = vpop.permute.xlu0 %9595
      %9597 = vrot.lane.b32.xlu0 %v8817, 48
      %v9598 = vpop.permute.xlu0 %9597
      %9599 = vrot.lane.b32.xlu0 %v8818, 48
      %v9600 = vpop.permute.xlu0 %9599
      %9601 = vrot.lane.b32.xlu0 %v8819, 48
      %v9602 = vpop.permute.xlu0 %9601
      %9603 = vrot.lane.b32.xlu0 %v8820, 48
      %v9604 = vpop.permute.xlu0 %9603
      %9605 = vrot.lane.b32.xlu0 %v8821, 48
      %v9606 = vpop.permute.xlu0 %9605
      %9607 = vrot.lane.b32.xlu0 %v8822, 48
      %v9608 = vpop.permute.xlu0 %9607
      %9609 = vrot.lane.b32.xlu0 %v8823, 48
      %v9610 = vpop.permute.xlu0 %9609
      %9611 = vrot.lane.b32.xlu0 %v8824, 48
      %v9612 = vpop.permute.xlu0 %9611
      %9613 = vrot.lane.b32.xlu0 %v8825, 48
      %v9614 = vpop.permute.xlu0 %9613
      %9615 = vrot.lane.b32.xlu0 %v8826, 48
      %v9616 = vpop.permute.xlu0 %9615
      %9617 = vrot.lane.b32.xlu0 %v8827, 48
      %v9618 = vpop.permute.xlu0 %9617
      %9619 = vrot.lane.b32.xlu0 %v8828, 48
      %v9620 = vpop.permute.xlu0 %9619
      %9621 = vrot.lane.b32.xlu0 %v8829, 48
      %v9622 = vpop.permute.xlu0 %9621
      %9623 = vrot.lane.b32.xlu0 %v8830, 48
      %v9624 = vpop.permute.xlu0 %9623
      %9625 = vrot.lane.b32.xlu0 %v8831, 48
      %v9626 = vpop.permute.xlu0 %9625
      %9627 = vrot.lane.b32.xlu0 %v8832, 48
      %v9628 = vpop.permute.xlu0 %9627
      %9629 = vrot.lane.b32.xlu0 %v8833, 48
      %v9630 = vpop.permute.xlu0 %9629
      %9631 = vrot.lane.b32.xlu0 %v8834, 48
      %v9632 = vpop.permute.xlu0 %9631
      %9633 = vrot.lane.b32.xlu0 %v8835, 48
      %v9634 = vpop.permute.xlu0 %9633
      %9635 = vrot.lane.b32.xlu0 %v8836, 48
      %v9636 = vpop.permute.xlu0 %9635
      %9701 = vrot.lane.b32.xlu0 %v8837, 56
      %v9702 = vpop.permute.xlu0 %9701
      %9703 = vrot.lane.b32.xlu0 %v8838, 56
      %v9704 = vpop.permute.xlu0 %9703
      %9705 = vrot.lane.b32.xlu0 %v8839, 56
      %v9706 = vpop.permute.xlu0 %9705
      %9707 = vrot.lane.b32.xlu0 %v8840, 56
      %v9708 = vpop.permute.xlu0 %9707
      %9709 = vrot.lane.b32.xlu0 %v8841, 56
      %v9710 = vpop.permute.xlu0 %9709
      %9711 = vrot.lane.b32.xlu0 %v8842, 56
      %v9712 = vpop.permute.xlu0 %9711
      %9713 = vrot.lane.b32.xlu0 %v8843, 56
      %v9714 = vpop.permute.xlu0 %9713
      %9715 = vrot.lane.b32.xlu0 %v8844, 56
      %v9716 = vpop.permute.xlu0 %9715
      %9717 = vrot.lane.b32.xlu0 %v8845, 56
      %v9718 = vpop.permute.xlu0 %9717
      %9719 = vrot.lane.b32.xlu0 %v8846, 56
      %v9720 = vpop.permute.xlu0 %9719
      %9721 = vrot.lane.b32.xlu0 %v8847, 56
      %v9722 = vpop.permute.xlu0 %9721
      %9723 = vrot.lane.b32.xlu0 %v8848, 56
      %v9724 = vpop.permute.xlu0 %9723
      %9725 = vrot.lane.b32.xlu0 %v8849, 56
      %v9726 = vpop.permute.xlu0 %9725
      %9727 = vrot.lane.b32.xlu0 %v8850, 56
      %v9728 = vpop.permute.xlu0 %9727
      %9729 = vrot.lane.b32.xlu0 %v8851, 56
      %v9730 = vpop.permute.xlu0 %9729
      %9731 = vrot.lane.b32.xlu0 %v8852, 56
      %v9732 = vpop.permute.xlu0 %9731
      %9733 = vrot.lane.b32.xlu0 %v8853, 56
      %v9734 = vpop.permute.xlu0 %9733
      %9735 = vrot.lane.b32.xlu0 %v8854, 56
      %v9736 = vpop.permute.xlu0 %9735
      %9737 = vrot.lane.b32.xlu0 %v8855, 56
      %v9738 = vpop.permute.xlu0 %9737
      %9739 = vrot.lane.b32.xlu0 %v8856, 56
      %v9740 = vpop.permute.xlu0 %9739
      %9741 = vrot.lane.b32.xlu0 %v8857, 56
      %v9742 = vpop.permute.xlu0 %9741
      %9743 = vrot.lane.b32.xlu0 %v8858, 56
      %v9744 = vpop.permute.xlu0 %9743
      %9745 = vrot.lane.b32.xlu0 %v8859, 56
      %v9746 = vpop.permute.xlu0 %9745
      %9747 = vrot.lane.b32.xlu0 %v8860, 56
      %v9748 = vpop.permute.xlu0 %9747
      %9749 = vrot.lane.b32.xlu0 %v8861, 56
      %v9750 = vpop.permute.xlu0 %9749
      %9751 = vrot.lane.b32.xlu0 %v8862, 56
      %v9752 = vpop.permute.xlu0 %9751
      %9753 = vrot.lane.b32.xlu0 %v8863, 56
      %v9754 = vpop.permute.xlu0 %9753
      %9755 = vrot.lane.b32.xlu0 %v8864, 56
      %v9756 = vpop.permute.xlu0 %9755
      %9757 = vrot.lane.b32.xlu0 %v8865, 56
      %v9758 = vpop.permute.xlu0 %9757
      %9759 = vrot.lane.b32.xlu0 %v8866, 56
      %v9760 = vpop.permute.xlu0 %9759
      %9761 = vrot.lane.b32.xlu0 %v8867, 56
      %v9762 = vpop.permute.xlu0 %9761
      %9763 = vrot.lane.b32.xlu0 %v8868, 56
      %v9764 = vpop.permute.xlu0 %9763
      %9829 = vrot.lane.b32.xlu0 %v8869, 64
      %v9830 = vpop.permute.xlu0 %9829
      %9831 = vrot.lane.b32.xlu0 %v8870, 64
      %v9832 = vpop.permute.xlu0 %9831
      %9833 = vrot.lane.b32.xlu0 %v8871, 64
      %v9834 = vpop.permute.xlu0 %9833
      %9835 = vrot.lane.b32.xlu0 %v8872, 64
      %v9836 = vpop.permute.xlu0 %9835
      %9837 = vrot.lane.b32.xlu0 %v8873, 64
      %v9838 = vpop.permute.xlu0 %9837
      %9839 = vrot.lane.b32.xlu0 %v8874, 64
      %v9840 = vpop.permute.xlu0 %9839
      %9841 = vrot.lane.b32.xlu0 %v8875, 64
      %v9842 = vpop.permute.xlu0 %9841
      %9843 = vrot.lane.b32.xlu0 %v8876, 64
      %v9844 = vpop.permute.xlu0 %9843
      %9845 = vrot.lane.b32.xlu0 %v8877, 64
      %v9846 = vpop.permute.xlu0 %9845
      %9847 = vrot.lane.b32.xlu0 %v8878, 64
      %v9848 = vpop.permute.xlu0 %9847
      %9849 = vrot.lane.b32.xlu0 %v8879, 64
      %v9850 = vpop.permute.xlu0 %9849
      %9851 = vrot.lane.b32.xlu0 %v8880, 64
      %v9852 = vpop.permute.xlu0 %9851
      %9853 = vrot.lane.b32.xlu0 %v8881, 64
      %v9854 = vpop.permute.xlu0 %9853
      %9855 = vrot.lane.b32.xlu0 %v8882, 64
      %v9856 = vpop.permute.xlu0 %9855
      %9857 = vrot.lane.b32.xlu0 %v8883, 64
      %v9858 = vpop.permute.xlu0 %9857
      %9859 = vrot.lane.b32.xlu0 %v8884, 64
      %v9860 = vpop.permute.xlu0 %9859
      %9861 = vrot.lane.b32.xlu0 %v8885, 64
      %v9862 = vpop.permute.xlu0 %9861
      %9863 = vrot.lane.b32.xlu0 %v8886, 64
      %v9864 = vpop.permute.xlu0 %9863
      %9865 = vrot.lane.b32.xlu0 %v8887, 64
      %v9866 = vpop.permute.xlu0 %9865
      %9867 = vrot.lane.b32.xlu0 %v8888, 64
      %v9868 = vpop.permute.xlu0 %9867
      %9869 = vrot.lane.b32.xlu0 %v8889, 64
      %v9870 = vpop.permute.xlu0 %9869
      %9871 = vrot.lane.b32.xlu0 %v8890, 64
      %v9872 = vpop.permute.xlu0 %9871
      %9873 = vrot.lane.b32.xlu0 %v8891, 64
      %v9874 = vpop.permute.xlu0 %9873
      %9875 = vrot.lane.b32.xlu0 %v8892, 64
      %v9876 = vpop.permute.xlu0 %9875
      %9877 = vrot.lane.b32.xlu0 %v8893, 64
      %v9878 = vpop.permute.xlu0 %9877
      %9879 = vrot.lane.b32.xlu0 %v8894, 64
      %v9880 = vpop.permute.xlu0 %9879
      %9881 = vrot.lane.b32.xlu0 %v8895, 64
      %v9882 = vpop.permute.xlu0 %9881
      %9883 = vrot.lane.b32.xlu0 %v8896, 64
      %v9884 = vpop.permute.xlu0 %9883
      %9885 = vrot.lane.b32.xlu0 %v8897, 64
      %v9886 = vpop.permute.xlu0 %9885
      %9887 = vrot.lane.b32.xlu0 %v8898, 64
      %v9888 = vpop.permute.xlu0 %9887
      %9889 = vrot.lane.b32.xlu0 %v8899, 64
      %v9890 = vpop.permute.xlu0 %9889
      %9891 = vrot.lane.b32.xlu0 %v8900, 64
      %v9892 = vpop.permute.xlu0 %9891
      %v9925 = vsel %vm1962, %v8613, %v8934
      %v9926 = vsel %vm1962, %v8614, %v8936
      %v9927 = vsel %vm1962, %v8615, %v8938
      %v9928 = vsel %vm1962, %v8616, %v8940
      %v9929 = vsel %vm1962, %v8617, %v8942
      %v9930 = vsel %vm1962, %v8618, %v8944
      %v9931 = vsel %vm1962, %v8619, %v8946
      %v9932 = vsel %vm1962, %v8620, %v8948
      %v9933 = vsel %vm1962, %v8621, %v8950
      %v9934 = vsel %vm1962, %v8622, %v8952
      %v9935 = vsel %vm1962, %v8623, %v8954
      %v9936 = vsel %vm1962, %v8624, %v8956
      %v9937 = vsel %vm1962, %v8625, %v8958
      %v9938 = vsel %vm1962, %v8626, %v8960
      %v9939 = vsel %vm1962, %v8627, %v8962
      %v9940 = vsel %vm1962, %v8628, %v8964
      %v9941 = vsel %vm1962, %v8629, %v8966
      %v9942 = vsel %vm1962, %v8630, %v8968
      %v9943 = vsel %vm1962, %v8631, %v8970
      %v9944 = vsel %vm1962, %v8632, %v8972
      %v9945 = vsel %vm1962, %v8633, %v8974
      %v9946 = vsel %vm1962, %v8634, %v8976
      %v9947 = vsel %vm1962, %v8635, %v8978
      %v9948 = vsel %vm1962, %v8636, %v8980
      %v9949 = vsel %vm1962, %v8637, %v8982
      %v9950 = vsel %vm1962, %v8638, %v8984
      %v9951 = vsel %vm1962, %v8639, %v8986
      %v9952 = vsel %vm1962, %v8640, %v8988
      %v9953 = vsel %vm1962, %v8641, %v8990
      %v9954 = vsel %vm1962, %v8642, %v8992
      %v9955 = vsel %vm1962, %v8643, %v8994
      %v9956 = vsel %vm1962, %v8644, %v8996
      %v9957 = vsel %vm2028, %v9925, %v9062
      %v9958 = vsel %vm2028, %v9926, %v9064
      %v9959 = vsel %vm2028, %v9927, %v9066
      %v9960 = vsel %vm2028, %v9928, %v9068
      %v9961 = vsel %vm2028, %v9929, %v9070
      %v9962 = vsel %vm2028, %v9930, %v9072
      %v9963 = vsel %vm2028, %v9931, %v9074
      %v9964 = vsel %vm2028, %v9932, %v9076
      %v9965 = vsel %vm2028, %v9933, %v9078
      %v9966 = vsel %vm2028, %v9934, %v9080
      %v9967 = vsel %vm2028, %v9935, %v9082
      %v9968 = vsel %vm2028, %v9936, %v9084
      %v9969 = vsel %vm2028, %v9937, %v9086
      %v9970 = vsel %vm2028, %v9938, %v9088
      %v9971 = vsel %vm2028, %v9939, %v9090
      %v9972 = vsel %vm2028, %v9940, %v9092
      %v9973 = vsel %vm2028, %v9941, %v9094
      %v9974 = vsel %vm2028, %v9942, %v9096
      %v9975 = vsel %vm2028, %v9943, %v9098
      %v9976 = vsel %vm2028, %v9944, %v9100
      %v9977 = vsel %vm2028, %v9945, %v9102
      %v9978 = vsel %vm2028, %v9946, %v9104
      %v9979 = vsel %vm2028, %v9947, %v9106
      %v9980 = vsel %vm2028, %v9948, %v9108
      %v9981 = vsel %vm2028, %v9949, %v9110
      %v9982 = vsel %vm2028, %v9950, %v9112
      %v9983 = vsel %vm2028, %v9951, %v9114
      %v9984 = vsel %vm2028, %v9952, %v9116
      %v9985 = vsel %vm2028, %v9953, %v9118
      %v9986 = vsel %vm2028, %v9954, %v9120
      %v9987 = vsel %vm2028, %v9955, %v9122
      %v9988 = vsel %vm2028, %v9956, %v9124
      %v9989 = vsel %vm2094, %v9957, %v9190
      %v9990 = vsel %vm2094, %v9958, %v9192
      %v9991 = vsel %vm2094, %v9959, %v9194
      %v9992 = vsel %vm2094, %v9960, %v9196
      %v9993 = vsel %vm2094, %v9961, %v9198
      %v9994 = vsel %vm2094, %v9962, %v9200
      %v9995 = vsel %vm2094, %v9963, %v9202
      %v9996 = vsel %vm2094, %v9964, %v9204
      %v9997 = vsel %vm2094, %v9965, %v9206
      %v9998 = vsel %vm2094, %v9966, %v9208
      %v9999 = vsel %vm2094, %v9967, %v9210
      %v10000 = vsel %vm2094, %v9968, %v9212
      %v10001 = vsel %vm2094, %v9969, %v9214
      %v10002 = vsel %vm2094, %v9970, %v9216
      %v10003 = vsel %vm2094, %v9971, %v9218
      %v10004 = vsel %vm2094, %v9972, %v9220
      %v10005 = vsel %vm2094, %v9973, %v9222
      %v10006 = vsel %vm2094, %v9974, %v9224
      %v10007 = vsel %vm2094, %v9975, %v9226
      %v10008 = vsel %vm2094, %v9976, %v9228
      %v10009 = vsel %vm2094, %v9977, %v9230
      %v10010 = vsel %vm2094, %v9978, %v9232
      %v10011 = vsel %vm2094, %v9979, %v9234
      %v10012 = vsel %vm2094, %v9980, %v9236
      %v10013 = vsel %vm2094, %v9981, %v9238
      %v10014 = vsel %vm2094, %v9982, %v9240
      %v10015 = vsel %vm2094, %v9983, %v9242
      %v10016 = vsel %vm2094, %v9984, %v9244
      %v10017 = vsel %vm2094, %v9985, %v9246
      %v10018 = vsel %vm2094, %v9986, %v9248
      %v10019 = vsel %vm2094, %v9987, %v9250
      %v10020 = vsel %vm2094, %v9988, %v9252
      %v10021 = vsel %vm2160, %v9989, %v9318
      %v10022 = vsel %vm2160, %v9990, %v9320
      %v10023 = vsel %vm2160, %v9991, %v9322
      %v10024 = vsel %vm2160, %v9992, %v9324
      %v10025 = vsel %vm2160, %v9993, %v9326
      %v10026 = vsel %vm2160, %v9994, %v9328
      %v10027 = vsel %vm2160, %v9995, %v9330
      %v10028 = vsel %vm2160, %v9996, %v9332
      %v10029 = vsel %vm2160, %v9997, %v9334
      %v10030 = vsel %vm2160, %v9998, %v9336
      %v10031 = vsel %vm2160, %v9999, %v9338
      %v10032 = vsel %vm2160, %v10000, %v9340
      %v10033 = vsel %vm2160, %v10001, %v9342
      %v10034 = vsel %vm2160, %v10002, %v9344
      %v10035 = vsel %vm2160, %v10003, %v9346
      %v10036 = vsel %vm2160, %v10004, %v9348
      %v10037 = vsel %vm2160, %v10005, %v9350
      %v10038 = vsel %vm2160, %v10006, %v9352
      %v10039 = vsel %vm2160, %v10007, %v9354
      %v10040 = vsel %vm2160, %v10008, %v9356
      %v10041 = vsel %vm2160, %v10009, %v9358
      %v10042 = vsel %vm2160, %v10010, %v9360
      %v10043 = vsel %vm2160, %v10011, %v9362
      %v10044 = vsel %vm2160, %v10012, %v9364
      %v10045 = vsel %vm2160, %v10013, %v9366
      %v10046 = vsel %vm2160, %v10014, %v9368
      %v10047 = vsel %vm2160, %v10015, %v9370
      %v10048 = vsel %vm2160, %v10016, %v9372
      %v10049 = vsel %vm2160, %v10017, %v9374
      %v10050 = vsel %vm2160, %v10018, %v9376
      %v10051 = vsel %vm2160, %v10019, %v9378
      %v10052 = vsel %vm2160, %v10020, %v9380
      %v10053 = vsel %vm3886, %v10021, %v9446
      %v10054 = vsel %vm3886, %v10022, %v9448
      %v10055 = vsel %vm3886, %v10023, %v9450
      %v10056 = vsel %vm3886, %v10024, %v9452
      %v10057 = vsel %vm3886, %v10025, %v9454
      %v10058 = vsel %vm3886, %v10026, %v9456
      %v10059 = vsel %vm3886, %v10027, %v9458
      %v10060 = vsel %vm3886, %v10028, %v9460
      %v10061 = vsel %vm3886, %v10029, %v9462
      %v10062 = vsel %vm3886, %v10030, %v9464
      %v10063 = vsel %vm3886, %v10031, %v9466
      %v10064 = vsel %vm3886, %v10032, %v9468
      %v10065 = vsel %vm3886, %v10033, %v9470
      %v10066 = vsel %vm3886, %v10034, %v9472
      %v10067 = vsel %vm3886, %v10035, %v9474
      %v10068 = vsel %vm3886, %v10036, %v9476
      %v10069 = vsel %vm3886, %v10037, %v9478
      %v10070 = vsel %vm3886, %v10038, %v9480
      %v10071 = vsel %vm3886, %v10039, %v9482
      %v10072 = vsel %vm3886, %v10040, %v9484
      %v10073 = vsel %vm3886, %v10041, %v9486
      %v10074 = vsel %vm3886, %v10042, %v9488
      %v10075 = vsel %vm3886, %v10043, %v9490
      %v10076 = vsel %vm3886, %v10044, %v9492
      %v10077 = vsel %vm3886, %v10045, %v9494
      %v10078 = vsel %vm3886, %v10046, %v9496
      %v10079 = vsel %vm3886, %v10047, %v9498
      %v10080 = vsel %vm3886, %v10048, %v9500
      %v10081 = vsel %vm3886, %v10049, %v9502
      %v10082 = vsel %vm3886, %v10050, %v9504
      %v10083 = vsel %vm3886, %v10051, %v9506
      %v10084 = vsel %vm3886, %v10052, %v9508
      %v10085 = vsel %vm3895, %v10053, %v9574
      %v10086 = vsel %vm3895, %v10054, %v9576
      %v10087 = vsel %vm3895, %v10055, %v9578
      %v10088 = vsel %vm3895, %v10056, %v9580
      %v10089 = vsel %vm3895, %v10057, %v9582
      %v10090 = vsel %vm3895, %v10058, %v9584
      %v10091 = vsel %vm3895, %v10059, %v9586
      %v10092 = vsel %vm3895, %v10060, %v9588
      %v10093 = vsel %vm3895, %v10061, %v9590
      %v10094 = vsel %vm3895, %v10062, %v9592
      %v10095 = vsel %vm3895, %v10063, %v9594
      %v10096 = vsel %vm3895, %v10064, %v9596
      %v10097 = vsel %vm3895, %v10065, %v9598
      %v10098 = vsel %vm3895, %v10066, %v9600
      %v10099 = vsel %vm3895, %v10067, %v9602
      %v10100 = vsel %vm3895, %v10068, %v9604
      %v10101 = vsel %vm3895, %v10069, %v9606
      %v10102 = vsel %vm3895, %v10070, %v9608
      %v10103 = vsel %vm3895, %v10071, %v9610
      %v10104 = vsel %vm3895, %v10072, %v9612
      %v10105 = vsel %vm3895, %v10073, %v9614
      %v10106 = vsel %vm3895, %v10074, %v9616
      %v10107 = vsel %vm3895, %v10075, %v9618
      %v10108 = vsel %vm3895, %v10076, %v9620
      %v10109 = vsel %vm3895, %v10077, %v9622
      %v10110 = vsel %vm3895, %v10078, %v9624
      %v10111 = vsel %vm3895, %v10079, %v9626
      %v10112 = vsel %vm3895, %v10080, %v9628
      %v10113 = vsel %vm3895, %v10081, %v9630
      %v10114 = vsel %vm3895, %v10082, %v9632
      %v10115 = vsel %vm3895, %v10083, %v9634
      %v10116 = vsel %vm3895, %v10084, %v9636
      %v10117 = vsel %vm3904, %v10085, %v9702
      %v10118 = vsel %vm3904, %v10086, %v9704
      %v10119 = vsel %vm3904, %v10087, %v9706
      %v10120 = vsel %vm3904, %v10088, %v9708
      %v10121 = vsel %vm3904, %v10089, %v9710
      %v10122 = vsel %vm3904, %v10090, %v9712
      %v10123 = vsel %vm3904, %v10091, %v9714
      %v10124 = vsel %vm3904, %v10092, %v9716
      %v10125 = vsel %vm3904, %v10093, %v9718
      %v10126 = vsel %vm3904, %v10094, %v9720
      %v10127 = vsel %vm3904, %v10095, %v9722
      %v10128 = vsel %vm3904, %v10096, %v9724
      %v10129 = vsel %vm3904, %v10097, %v9726
      %v10130 = vsel %vm3904, %v10098, %v9728
      %v10131 = vsel %vm3904, %v10099, %v9730
      %v10132 = vsel %vm3904, %v10100, %v9732
      %v10133 = vsel %vm3904, %v10101, %v9734
      %v10134 = vsel %vm3904, %v10102, %v9736
      %v10135 = vsel %vm3904, %v10103, %v9738
      %v10136 = vsel %vm3904, %v10104, %v9740
      %v10137 = vsel %vm3904, %v10105, %v9742
      %v10138 = vsel %vm3904, %v10106, %v9744
      %v10139 = vsel %vm3904, %v10107, %v9746
      %v10140 = vsel %vm3904, %v10108, %v9748
      %v10141 = vsel %vm3904, %v10109, %v9750
      %v10142 = vsel %vm3904, %v10110, %v9752
      %v10143 = vsel %vm3904, %v10111, %v9754
      %v10144 = vsel %vm3904, %v10112, %v9756
      %v10145 = vsel %vm3904, %v10113, %v9758
      %v10146 = vsel %vm3904, %v10114, %v9760
      %v10147 = vsel %vm3904, %v10115, %v9762
      %v10148 = vsel %vm3904, %v10116, %v9764
      %v10149 = vsel %vm3913, %v10117, %v9830
      %v10150 = vsel %vm3913, %v10118, %v9832
      %v10151 = vsel %vm3913, %v10119, %v9834
      %v10152 = vsel %vm3913, %v10120, %v9836
      %v10153 = vsel %vm3913, %v10121, %v9838
      %v10154 = vsel %vm3913, %v10122, %v9840
      %v10155 = vsel %vm3913, %v10123, %v9842
      %v10156 = vsel %vm3913, %v10124, %v9844
      %v10157 = vsel %vm3913, %v10125, %v9846
      %v10158 = vsel %vm3913, %v10126, %v9848
      %v10159 = vsel %vm3913, %v10127, %v9850
      %v10160 = vsel %vm3913, %v10128, %v9852
      %v10161 = vsel %vm3913, %v10129, %v9854
      %v10162 = vsel %vm3913, %v10130, %v9856
      %v10163 = vsel %vm3913, %v10131, %v9858
      %v10164 = vsel %vm3913, %v10132, %v9860
      %v10165 = vsel %vm3913, %v10133, %v9862
      %v10166 = vsel %vm3913, %v10134, %v9864
      %v10167 = vsel %vm3913, %v10135, %v9866
      %v10168 = vsel %vm3913, %v10136, %v9868
      %v10169 = vsel %vm3913, %v10137, %v9870
      %v10170 = vsel %vm3913, %v10138, %v9872
      %v10171 = vsel %vm3913, %v10139, %v9874
      %v10172 = vsel %vm3913, %v10140, %v9876
      %v10173 = vsel %vm3913, %v10141, %v9878
      %v10174 = vsel %vm3913, %v10142, %v9880
      %v10175 = vsel %vm3913, %v10143, %v9882
      %v10176 = vsel %vm3913, %v10144, %v9884
      %v10177 = vsel %vm3913, %v10145, %v9886
      %v10178 = vsel %vm3913, %v10146, %v9888
      %v10179 = vsel %vm3913, %v10147, %v9890
      %v10180 = vsel %vm3913, %v10148, %v9892
      %v10181 = vpack.c.bf16 %v10150, %v10149
      %v10182 = vpack.c.bf16 %v10152, %v10151
      %v10183 = vpack.c.bf16 %v10154, %v10153
      %v10184 = vpack.c.bf16 %v10156, %v10155
      %v10185 = vpack.c.bf16 %v10158, %v10157
      %v10186 = vpack.c.bf16 %v10160, %v10159
      %v10187 = vpack.c.bf16 %v10162, %v10161
      %v10188 = vpack.c.bf16 %v10164, %v10163
      %v10189 = vpack.c.bf16 %v10166, %v10165
      %v10190 = vpack.c.bf16 %v10168, %v10167
      %v10191 = vpack.c.bf16 %v10170, %v10169
      %v10192 = vpack.c.bf16 %v10172, %v10171
      %v10193 = vpack.c.bf16 %v10174, %v10173
      %v10194 = vpack.c.bf16 %v10176, %v10175
      %v10195 = vpack.c.bf16 %v10178, %v10177
      %v10196 = vpack.c.bf16 %v10180, %v10179
      %v10197 = vld [vmem:[%s11] sm:$0xf]
      %v10198 = vld [vmem:[%s11 + $0x4] sm:$0xf]
      %v10199 = vld [vmem:[%s11 + $0x8] sm:$0xf]
      %v10200 = vld [vmem:[%s11 + $0xc] sm:$0xf]
      %v10201 = vld [vmem:[%s11 + $0x10] sm:$0xf]
      %v10202 = vld [vmem:[%s11 + $0x14] sm:$0xf]
      %v10203 = vld [vmem:[%s11 + $0x18] sm:$0xf]
      %v10204 = vld [vmem:[%s11 + $0x1c] sm:$0xf]
      %v10205 = vld [vmem:[%s11 + $0x20] sm:$0xf]
      %v10215 = vunpack.c.l.b16 %v10197
      %v10216 = vunpack.c.l.b16 %v10198
      %v10217 = vunpack.c.l.b16 %v10199
      %v10218 = vunpack.c.l.b16 %v10200
      %v10219 = vunpack.c.l.b16 %v10201
      %v10220 = vunpack.c.l.b16 %v10202
      %v10221 = vunpack.c.l.b16 %v10203
      %v10222 = vunpack.c.l.b16 %v10204
      %v10223 = vunpack.c.l.b16 %v10205
      %v10224 = vpack.c.b16 %v10216, %v10215
      %v10225 = vpack.c.b16 %v10218, %v10217
      %v10226 = vpack.c.b16 %v10220, %v10219
      %v10227 = vpack.c.b16 %v10222, %v10221
      %v10228 = vpack.c.b16 %v10223, %v10223
      %v10234 = vsel %vm3969, %v10181, 0
      %v10237 = vsel %vm3969, %v10182, 0
      %v10240 = vsel %vm3969, %v10183, 0
      %v10243 = vsel %vm3969, %v10184, 0
      %v10246 = vsel %vm3969, %v10185, 0
      %v10249 = vsel %vm3969, %v10186, 0
      %v10252 = vsel %vm3969, %v10187, 0
      %v10255 = vsel %vm3969, %v10188, 0
      %v10258 = vsel %vm3969, %v10189, 0
      %v10261 = vsel %vm3969, %v10190, 0
      %v10264 = vsel %vm3969, %v10191, 0
      %v10267 = vsel %vm3969, %v10192, 0
      %v10270 = vsel %vm3969, %v10193, 0
      %v10273 = vsel %vm3969, %v10194, 0
      %v10276 = vsel %vm3969, %v10195, 0
      %v10279 = vsel %vm3969, %v10196, 0
      %v10282 = vsel %vm3982, %v10228, 0
      %10284 = vmatprep.subr.bf16.mxu0 0
      %10285 = vmatpush1.bf16.msra.mxu0 0
      %10286 = vmatprep.subr.bf16.mxu0 0
      %10287 = vmatpush1.bf16.msra.mxu0 0
      %10288 = vmatprep.subr.bf16.mxu0 0
      %10289 = vmatpush1.bf16.msra.mxu0 0
      %10290 = vmatprep.subr.bf16.mxu0 0
      %10291 = vmatpush1.bf16.msra.mxu0 %v10282
      %10292 = vmatprep.subr.bf16.mxu0 0
      %10293 = vmatpush1.bf16.msra.mxu0 %v10227
      %10294 = vmatprep.subr.bf16.mxu0 0
      %10295 = vmatpush1.bf16.msra.mxu0 %v10226
      %10296 = vmatprep.subr.bf16.mxu0 0
      %10297 = vmatpush1.bf16.msra.mxu0 %v10225
      %10298 = vmatprep.subr.bf16.mxu0 0
      %10299 = vmatpush1.bf16.msra.mxu0 %v10224
      %10300 = vmatprep.subr.bf16.mxu0 0
      %10301 = vmatpush2.bf16.msra.mxu0 0
      %10302 = vmatprep.subr.bf16.mxu0 0
      %10303 = vmatpush2.bf16.msra.mxu0 0
      %10304 = vmatprep.subr.bf16.mxu0 0
      %10305 = vmatpush2.bf16.msra.mxu0 0
      %10306 = vmatprep.subr.bf16.mxu0 0
      %10307 = vmatpush2.bf16.msra.mxu0 0
      %10308 = vmatprep.subr.bf16.mxu0 0
      %10309 = vmatpush2.bf16.msra.mxu0 0
      %10310 = vmatprep.subr.bf16.mxu0 0
      %10311 = vmatpush2.bf16.msra.mxu0 0
      %10312 = vmatprep.subr.bf16.mxu0 0
      %10313 = vmatpush2.bf16.msra.mxu0 0
      %10314 = vmatprep.subr.bf16.mxu0 0
      %10315 = vmatpush2.bf16.msra.mxu0 0
      %10316 = vmatprep.mubr.bf16.mxu0 0
      %10317 = vmatmul.mubr.bf16.gmra.mxu0 %v10234
      %v10318 = vpop.f32.mrf.mxu0
      %v10319 = vadd.f32 0.0, %v10318
      %v10320 = vpop.f32.mrf.mxu0
      %v10321 = vpop.f32.mrf.mxu0
      %v10322 = vadd.f32 0.0, %v10321
      %v10323 = vpop.f32.mrf.mxu0
      %10324 = vmatprep.mubr.bf16.mxu0 0
      %10325 = vmatmul.mubr.bf16.gmra.mxu0 %v10237
      %v10326 = vpop.f32.mrf.mxu0
      %v10327 = vadd.f32 0.0, %v10326
      %v10328 = vpop.f32.mrf.mxu0
      %v10329 = vpop.f32.mrf.mxu0
      %v10330 = vadd.f32 0.0, %v10329
      %v10331 = vpop.f32.mrf.mxu0
      %10332 = vmatprep.mubr.bf16.mxu0 0
      %10333 = vmatmul.mubr.bf16.gmra.mxu0 %v10240
      %v10334 = vpop.f32.mrf.mxu0
      %v10335 = vadd.f32 0.0, %v10334
      %v10336 = vpop.f32.mrf.mxu0
      %v10337 = vpop.f32.mrf.mxu0
      %v10338 = vadd.f32 0.0, %v10337
      %v10339 = vpop.f32.mrf.mxu0
      %10340 = vmatprep.mubr.bf16.mxu0 0
      %10341 = vmatmul.mubr.bf16.gmra.mxu0 %v10243
      %v10342 = vpop.f32.mrf.mxu0
      %v10343 = vadd.f32 0.0, %v10342
      %v10344 = vpop.f32.mrf.mxu0
      %v10345 = vpop.f32.mrf.mxu0
      %v10346 = vadd.f32 0.0, %v10345
      %v10347 = vpop.f32.mrf.mxu0
      %10348 = vmatprep.mubr.bf16.mxu0 0
      %10349 = vmatmul.mubr.bf16.gmra.mxu0 %v10246
      %v10350 = vpop.f32.mrf.mxu0
      %v10351 = vadd.f32 0.0, %v10350
      %v10352 = vpop.f32.mrf.mxu0
      %v10353 = vpop.f32.mrf.mxu0
      %v10354 = vadd.f32 0.0, %v10353
      %v10355 = vpop.f32.mrf.mxu0
      %10356 = vmatprep.mubr.bf16.mxu0 0
      %10357 = vmatmul.mubr.bf16.gmra.mxu0 %v10249
      %v10358 = vpop.f32.mrf.mxu0
      %v10359 = vadd.f32 0.0, %v10358
      %v10360 = vpop.f32.mrf.mxu0
      %v10361 = vpop.f32.mrf.mxu0
      %v10362 = vadd.f32 0.0, %v10361
      %v10363 = vpop.f32.mrf.mxu0
      %10364 = vmatprep.mubr.bf16.mxu0 0
      %10365 = vmatmul.mubr.bf16.gmra.mxu0 %v10252
      %v10366 = vpop.f32.mrf.mxu0
      %v10367 = vadd.f32 0.0, %v10366
      %v10368 = vpop.f32.mrf.mxu0
      %v10369 = vpop.f32.mrf.mxu0
      %v10370 = vadd.f32 0.0, %v10369
      %v10371 = vpop.f32.mrf.mxu0
      %10372 = vmatprep.mubr.bf16.mxu0 0
      %10373 = vmatmul.mubr.bf16.gmra.mxu0 %v10255
      %v10374 = vpop.f32.mrf.mxu0
      %v10375 = vadd.f32 0.0, %v10374
      %v10376 = vpop.f32.mrf.mxu0
      %v10377 = vpop.f32.mrf.mxu0
      %v10378 = vadd.f32 0.0, %v10377
      %v10379 = vpop.f32.mrf.mxu0
      %10380 = vmatprep.mubr.bf16.mxu0 0
      %10381 = vmatmul.mubr.bf16.gmra.mxu0 %v10258
      %v10382 = vpop.f32.mrf.mxu0
      %v10383 = vadd.f32 0.0, %v10382
      %v10384 = vpop.f32.mrf.mxu0
      %v10385 = vpop.f32.mrf.mxu0
      %v10386 = vadd.f32 0.0, %v10385
      %v10387 = vpop.f32.mrf.mxu0
      %10388 = vmatprep.mubr.bf16.mxu0 0
      %10389 = vmatmul.mubr.bf16.gmra.mxu0 %v10261
      %v10390 = vpop.f32.mrf.mxu0
      %v10391 = vadd.f32 0.0, %v10390
      %v10392 = vpop.f32.mrf.mxu0
      %v10393 = vpop.f32.mrf.mxu0
      %v10394 = vadd.f32 0.0, %v10393
      %v10395 = vpop.f32.mrf.mxu0
      %10396 = vmatprep.mubr.bf16.mxu0 0
      %10397 = vmatmul.mubr.bf16.gmra.mxu0 %v10264
      %v10398 = vpop.f32.mrf.mxu0
      %v10399 = vadd.f32 0.0, %v10398
      %v10400 = vpop.f32.mrf.mxu0
      %v10401 = vpop.f32.mrf.mxu0
      %v10402 = vadd.f32 0.0, %v10401
      %v10403 = vpop.f32.mrf.mxu0
      %10404 = vmatprep.mubr.bf16.mxu0 0
      %10405 = vmatmul.mubr.bf16.gmra.mxu0 %v10267
      %v10406 = vpop.f32.mrf.mxu0
      %v10407 = vadd.f32 0.0, %v10406
      %v10408 = vpop.f32.mrf.mxu0
      %v10409 = vpop.f32.mrf.mxu0
      %v10410 = vadd.f32 0.0, %v10409
      %v10411 = vpop.f32.mrf.mxu0
      %10412 = vmatprep.mubr.bf16.mxu0 0
      %10413 = vmatmul.mubr.bf16.gmra.mxu0 %v10270
      %v10414 = vpop.f32.mrf.mxu0
      %v10415 = vadd.f32 0.0, %v10414
      %v10416 = vpop.f32.mrf.mxu0
      %v10417 = vpop.f32.mrf.mxu0
      %v10418 = vadd.f32 0.0, %v10417
      %v10419 = vpop.f32.mrf.mxu0
      %10420 = vmatprep.mubr.bf16.mxu0 0
      %10421 = vmatmul.mubr.bf16.gmra.mxu0 %v10273
      %v10422 = vpop.f32.mrf.mxu0
      %v10423 = vadd.f32 0.0, %v10422
      %v10424 = vpop.f32.mrf.mxu0
      %v10425 = vpop.f32.mrf.mxu0
      %v10426 = vadd.f32 0.0, %v10425
      %v10427 = vpop.f32.mrf.mxu0
      %10428 = vmatprep.mubr.bf16.mxu0 0
      %10429 = vmatmul.mubr.bf16.gmra.mxu0 %v10276
      %v10430 = vpop.f32.mrf.mxu0
      %v10431 = vadd.f32 0.0, %v10430
      %v10432 = vpop.f32.mrf.mxu0
      %v10433 = vpop.f32.mrf.mxu0
      %v10434 = vadd.f32 0.0, %v10433
      %v10435 = vpop.f32.mrf.mxu0
      %10436 = vmatprep.mubr.bf16.mxu0 0
      %10437 = vmatmul.mubr.bf16.gmra.mxu0 %v10279
      %v10438 = vpop.f32.mrf.mxu0
      %v10439 = vadd.f32 0.0, %v10438
      %v10440 = vpop.f32.mrf.mxu0
      %v10441 = vpop.f32.mrf.mxu0
      %v10442 = vadd.f32 0.0, %v10441
      %v10443 = vpop.f32.mrf.mxu0
      %10444 = vdwg.mxu0
      %v10463 = vunpack.c.l.b16 %v8509
      %v10464 = vunpack.c.l.b16 %v8510
      %v10465 = vunpack.c.l.b16 %v8511
      %v10466 = vunpack.c.l.b16 %v8512
      %v10467 = vunpack.c.l.b16 %v8513
      %v10468 = vunpack.c.l.b16 %v8514
      %v10469 = vunpack.c.l.b16 %v8515
      %v10470 = vunpack.c.l.b16 %v8516
      %v10471 = vunpack.c.l.b16 %v8517
      %v10472 = vunpack.c.l.b16 %v8518
      %v10473 = vunpack.c.l.b16 %v8519
      %v10474 = vunpack.c.l.b16 %v8520
      %v10475 = vunpack.c.l.b16 %v8521
      %v10476 = vunpack.c.l.b16 %v8522
      %v10477 = vunpack.c.l.b16 %v8523
      %v10478 = vunpack.c.l.b16 %v8524
      %v10479 = vunpack.c.l.b16 %v8525
      %v10480 = vunpack.c.l.b16 %v8526
      %v10481 = vpack.c.b16 %v10464, %v10463
      %v10482 = vpack.c.b16 %v10466, %v10465
      %v10483 = vpack.c.b16 %v10468, %v10467
      %v10484 = vpack.c.b16 %v10470, %v10469
      %v10485 = vpack.c.b16 %v10472, %v10471
      %v10486 = vpack.c.b16 %v10474, %v10473
      %v10487 = vpack.c.b16 %v10476, %v10475
      %v10488 = vpack.c.b16 %v10478, %v10477
      %v10489 = vpack.c.b16 %v10480, %v10479
      %v10500 = vsel %vm2028, %v8478, 0
      %v10503 = vsel %vm2028, %v8480, 0
      %v10506 = vsel %vm2028, %v8482, 0
      %v10509 = vsel %vm2028, %v8484, 0
      %v10512 = vsel %vm2028, %v8486, 0
      %v10515 = vsel %vm2028, %v8488, 0
      %v10518 = vsel %vm2028, %v8490, 0
      %v10521 = vsel %vm2028, %v8492, 0
      %v10524 = vsel %vm2028, %v8494, 0
      %v10527 = vsel %vm2028, %v8496, 0
      %v10530 = vsel %vm2028, %v8498, 0
      %v10533 = vsel %vm2028, %v8500, 0
      %v10536 = vsel %vm2028, %v8502, 0
      %v10539 = vsel %vm2028, %v8504, 0
      %v10542 = vsel %vm2028, %v8506, 0
      %v10545 = vsel %vm2028, %v8508, 0
      %10547 = vmatprep.subr.bf16.mxu0 0
      %10548 = vmatpush1.bf16.msra.mxu0 %v10488
      %10549 = vmatprep.subr.bf16.mxu0 0
      %10550 = vmatpush1.bf16.msra.mxu0 %v10487
      %10551 = vmatprep.subr.bf16.mxu0 0
      %10552 = vmatpush1.bf16.msra.mxu0 %v10486
      %10553 = vmatprep.subr.bf16.mxu0 0
      %10554 = vmatpush1.bf16.msra.mxu0 %v10485
      %10555 = vmatprep.subr.bf16.mxu0 0
      %10556 = vmatpush1.bf16.msra.mxu0 %v10484
      %10557 = vmatprep.subr.bf16.mxu0 0
      %10558 = vmatpush1.bf16.msra.mxu0 %v10483
      %10559 = vmatprep.subr.bf16.mxu0 0
      %10560 = vmatpush1.bf16.msra.mxu0 %v10482
      %10561 = vmatprep.subr.bf16.mxu0 0
      %10562 = vmatpush1.bf16.msra.mxu0 %v10481
      %10563 = vmatprep.subr.bf16.mxu0 0
      %10564 = vmatpush2.bf16.msra.mxu0 0
      %10565 = vmatprep.subr.bf16.mxu0 0
      %10566 = vmatpush2.bf16.msra.mxu0 0
      %10567 = vmatprep.subr.bf16.mxu0 0
      %10568 = vmatpush2.bf16.msra.mxu0 0
      %10569 = vmatprep.subr.bf16.mxu0 0
      %10570 = vmatpush2.bf16.msra.mxu0 0
      %10571 = vmatprep.subr.bf16.mxu0 0
      %10572 = vmatpush2.bf16.msra.mxu0 0
      %10573 = vmatprep.subr.bf16.mxu0 0
      %10574 = vmatpush2.bf16.msra.mxu0 0
      %10575 = vmatprep.subr.bf16.mxu0 0
      %10576 = vmatpush2.bf16.msra.mxu0 0
      %10577 = vmatprep.subr.bf16.mxu0 0
      %10578 = vmatpush2.bf16.msra.mxu0 %v10489
      %10579 = vmatprep.mubr.bf16.mxu0 %v10500
      %10580 = vmatmul.mubr.bf16.gmra.mxu0 %v8477
      %v10581 = vpop.f32.mrf.mxu0
      %v10582 = vadd.f32 %v10319, %v10581
      %v10583 = vpop.f32.mrf.mxu0
      %v10584 = vpop.f32.mrf.mxu0
      %v10585 = vadd.f32 %v10322, %v10584
      %v10586 = vpop.f32.mrf.mxu0
      %10587 = vmatprep.mubr.bf16.mxu0 %v10503
      %10588 = vmatmul.mubr.bf16.gmra.mxu0 %v8479
      %v10589 = vpop.f32.mrf.mxu0
      %v10590 = vadd.f32 %v10327, %v10589
      %v10591 = vpop.f32.mrf.mxu0
      %v10592 = vpop.f32.mrf.mxu0
      %v10593 = vadd.f32 %v10330, %v10592
      %v10594 = vpop.f32.mrf.mxu0
      %10595 = vmatprep.mubr.bf16.mxu0 %v10506
      %10596 = vmatmul.mubr.bf16.gmra.mxu0 %v8481
      %v10597 = vpop.f32.mrf.mxu0
      %v10598 = vadd.f32 %v10335, %v10597
      %v10599 = vpop.f32.mrf.mxu0
      %v10600 = vpop.f32.mrf.mxu0
      %v10601 = vadd.f32 %v10338, %v10600
      %v10602 = vpop.f32.mrf.mxu0
      %10603 = vmatprep.mubr.bf16.mxu0 %v10509
      %10604 = vmatmul.mubr.bf16.gmra.mxu0 %v8483
      %v10605 = vpop.f32.mrf.mxu0
      %v10606 = vadd.f32 %v10343, %v10605
      %v10607 = vpop.f32.mrf.mxu0
      %v10608 = vpop.f32.mrf.mxu0
      %v10609 = vadd.f32 %v10346, %v10608
      %v10610 = vpop.f32.mrf.mxu0
      %10611 = vmatprep.mubr.bf16.mxu0 %v10512
      %10612 = vmatmul.mubr.bf16.gmra.mxu0 %v8485
      %v10613 = vpop.f32.mrf.mxu0
      %v10614 = vadd.f32 %v10351, %v10613
      %v10615 = vpop.f32.mrf.mxu0
      %v10616 = vpop.f32.mrf.mxu0
      %v10617 = vadd.f32 %v10354, %v10616
      %v10618 = vpop.f32.mrf.mxu0
      %10619 = vmatprep.mubr.bf16.mxu0 %v10515
      %10620 = vmatmul.mubr.bf16.gmra.mxu0 %v8487
      %v10621 = vpop.f32.mrf.mxu0
      %v10622 = vadd.f32 %v10359, %v10621
      %v10623 = vpop.f32.mrf.mxu0
      %v10624 = vpop.f32.mrf.mxu0
      %v10625 = vadd.f32 %v10362, %v10624
      %v10626 = vpop.f32.mrf.mxu0
      %10627 = vmatprep.mubr.bf16.mxu0 %v10518
      %10628 = vmatmul.mubr.bf16.gmra.mxu0 %v8489
      %v10629 = vpop.f32.mrf.mxu0
      %v10630 = vadd.f32 %v10367, %v10629
      %v10631 = vpop.f32.mrf.mxu0
      %v10632 = vpop.f32.mrf.mxu0
      %v10633 = vadd.f32 %v10370, %v10632
      %v10634 = vpop.f32.mrf.mxu0
      %10635 = vmatprep.mubr.bf16.mxu0 %v10521
      %10636 = vmatmul.mubr.bf16.gmra.mxu0 %v8491
      %v10637 = vpop.f32.mrf.mxu0
      %v10638 = vadd.f32 %v10375, %v10637
      %v10639 = vpop.f32.mrf.mxu0
      %v10640 = vpop.f32.mrf.mxu0
      %v10641 = vadd.f32 %v10378, %v10640
      %v10642 = vpop.f32.mrf.mxu0
      %10643 = vmatprep.mubr.bf16.mxu0 %v10524
      %10644 = vmatmul.mubr.bf16.gmra.mxu0 %v8493
      %v10645 = vpop.f32.mrf.mxu0
      %v10646 = vadd.f32 %v10383, %v10645
      %v10647 = vpop.f32.mrf.mxu0
      %v10648 = vpop.f32.mrf.mxu0
      %v10649 = vadd.f32 %v10386, %v10648
      %v10650 = vpop.f32.mrf.mxu0
      %10651 = vmatprep.mubr.bf16.mxu0 %v10527
      %10652 = vmatmul.mubr.bf16.gmra.mxu0 %v8495
      %v10653 = vpop.f32.mrf.mxu0
      %v10654 = vadd.f32 %v10391, %v10653
      %v10655 = vpop.f32.mrf.mxu0
      %v10656 = vpop.f32.mrf.mxu0
      %v10657 = vadd.f32 %v10394, %v10656
      %v10658 = vpop.f32.mrf.mxu0
      %10659 = vmatprep.mubr.bf16.mxu0 %v10530
      %10660 = vmatmul.mubr.bf16.gmra.mxu0 %v8497
      %v10661 = vpop.f32.mrf.mxu0
      %v10662 = vadd.f32 %v10399, %v10661
      %v10663 = vpop.f32.mrf.mxu0
      %v10664 = vpop.f32.mrf.mxu0
      %v10665 = vadd.f32 %v10402, %v10664
      %v10666 = vpop.f32.mrf.mxu0
      %10667 = vmatprep.mubr.bf16.mxu0 %v10533
      %10668 = vmatmul.mubr.bf16.gmra.mxu0 %v8499
      %v10669 = vpop.f32.mrf.mxu0
      %v10670 = vadd.f32 %v10407, %v10669
      %v10671 = vpop.f32.mrf.mxu0
      %v10672 = vpop.f32.mrf.mxu0
      %v10673 = vadd.f32 %v10410, %v10672
      %v10674 = vpop.f32.mrf.mxu0
      %10675 = vmatprep.mubr.bf16.mxu0 %v10536
      %10676 = vmatmul.mubr.bf16.gmra.mxu0 %v8501
      %v10677 = vpop.f32.mrf.mxu0
      %v10678 = vadd.f32 %v10415, %v10677
      %v10679 = vpop.f32.mrf.mxu0
      %v10680 = vpop.f32.mrf.mxu0
      %v10681 = vadd.f32 %v10418, %v10680
      %v10682 = vpop.f32.mrf.mxu0
      %10683 = vmatprep.mubr.bf16.mxu0 %v10539
      %10684 = vmatmul.mubr.bf16.gmra.mxu0 %v8503
      %v10685 = vpop.f32.mrf.mxu0
      %v10686 = vadd.f32 %v10423, %v10685
      %v10687 = vpop.f32.mrf.mxu0
      %v10688 = vpop.f32.mrf.mxu0
      %v10689 = vadd.f32 %v10426, %v10688
      %v10690 = vpop.f32.mrf.mxu0
      %10691 = vmatprep.mubr.bf16.mxu0 %v10542
      %10692 = vmatmul.mubr.bf16.gmra.mxu0 %v8505
      %v10693 = vpop.f32.mrf.mxu0
      %v10694 = vadd.f32 %v10431, %v10693
      %v10695 = vpop.f32.mrf.mxu0
      %v10696 = vpop.f32.mrf.mxu0
      %v10697 = vadd.f32 %v10434, %v10696
      %v10698 = vpop.f32.mrf.mxu0
      %10699 = vmatprep.mubr.bf16.mxu0 %v10545
      %10700 = vmatmul.mubr.bf16.gmra.mxu0 %v8507
      %v10701 = vpop.f32.mrf.mxu0
      %v10702 = vadd.f32 %v10439, %v10701
      %v10703 = vpop.f32.mrf.mxu0
      %v10704 = vpop.f32.mrf.mxu0
      %v10705 = vadd.f32 %v10442, %v10704
      %v10706 = vpop.f32.mrf.mxu0
      %10707 = vdwg.mxu0
      %v10708 = vld [vmem:[%s12] sm:$0x1]
      %v10710 = vlaneseq
      %v10711 = vshrl.u32 %v10710, 7
      %v10712 = vsub.s32 0, %v10711
      %v10713 = vrot.slane %v10708, %v10712
      %v10715 = vadd.f32 %v10582, %v10713
      %v10716 = vadd.f32 %v10585, %v10713
      %v10717 = vadd.f32 %v10590, %v10713
      %v10718 = vadd.f32 %v10593, %v10713
      %v10719 = vadd.f32 %v10598, %v10713
      %v10720 = vadd.f32 %v10601, %v10713
      %v10721 = vadd.f32 %v10606, %v10713
      %v10722 = vadd.f32 %v10609, %v10713
      %v10723 = vadd.f32 %v10614, %v10713
      %v10724 = vadd.f32 %v10617, %v10713
      %v10725 = vadd.f32 %v10622, %v10713
      %v10726 = vadd.f32 %v10625, %v10713
      %v10727 = vadd.f32 %v10630, %v10713
      %v10728 = vadd.f32 %v10633, %v10713
      %v10729 = vadd.f32 %v10638, %v10713
      %v10730 = vadd.f32 %v10641, %v10713
      %v10731 = vadd.f32 %v10646, %v10713
      %v10732 = vadd.f32 %v10649, %v10713
      %v10733 = vadd.f32 %v10654, %v10713
      %v10734 = vadd.f32 %v10657, %v10713
      %v10735 = vadd.f32 %v10662, %v10713
      %v10736 = vadd.f32 %v10665, %v10713
      %v10737 = vadd.f32 %v10670, %v10713
      %v10738 = vadd.f32 %v10673, %v10713
      %v10739 = vadd.f32 %v10678, %v10713
      %v10740 = vadd.f32 %v10681, %v10713
      %v10741 = vadd.f32 %v10686, %v10713
      %v10742 = vadd.f32 %v10689, %v10713
      %v10743 = vadd.f32 %v10694, %v10713
      %v10744 = vadd.f32 %v10697, %v10713
      %v10745 = vadd.f32 %v10702, %v10713
      %v10746 = vadd.f32 %v10705, %v10713
      %v10747 = vmax.f32 %v10715, 0.0
      %v10748 = vmax.f32 %v10716, 0.0
      %v10749 = vmax.f32 %v10717, 0.0
      %v10750 = vmax.f32 %v10718, 0.0
      %v10751 = vmax.f32 %v10719, 0.0
      %v10752 = vmax.f32 %v10720, 0.0
      %v10753 = vmax.f32 %v10721, 0.0
      %v10754 = vmax.f32 %v10722, 0.0
      %v10755 = vmax.f32 %v10723, 0.0
      %v10756 = vmax.f32 %v10724, 0.0
      %v10757 = vmax.f32 %v10725, 0.0
      %v10758 = vmax.f32 %v10726, 0.0
      %v10759 = vmax.f32 %v10727, 0.0
      %v10760 = vmax.f32 %v10728, 0.0
      %v10761 = vmax.f32 %v10729, 0.0
      %v10762 = vmax.f32 %v10730, 0.0
      %v10763 = vmax.f32 %v10731, 0.0
      %v10764 = vmax.f32 %v10732, 0.0
      %v10765 = vmax.f32 %v10733, 0.0
      %v10766 = vmax.f32 %v10734, 0.0
      %v10767 = vmax.f32 %v10735, 0.0
      %v10768 = vmax.f32 %v10736, 0.0
      %v10769 = vmax.f32 %v10737, 0.0
      %v10770 = vmax.f32 %v10738, 0.0
      %v10771 = vmax.f32 %v10739, 0.0
      %v10772 = vmax.f32 %v10740, 0.0
      %v10773 = vmax.f32 %v10741, 0.0
      %v10774 = vmax.f32 %v10742, 0.0
      %v10775 = vmax.f32 %v10743, 0.0
      %v10776 = vmax.f32 %v10744, 0.0
      %v10777 = vmax.f32 %v10745, 0.0
      %v10778 = vmax.f32 %v10746, 0.0
      %v10779 = vpack.c.bf16 %v10748, %v10747
      %v10780 = vpack.c.bf16 %v10750, %v10749
      %v10781 = vpack.c.bf16 %v10752, %v10751
      %v10782 = vpack.c.bf16 %v10754, %v10753
      %v10783 = vpack.c.bf16 %v10756, %v10755
      %v10784 = vpack.c.bf16 %v10758, %v10757
      %v10785 = vpack.c.bf16 %v10760, %v10759
      %v10786 = vpack.c.bf16 %v10762, %v10761
      %v10787 = vpack.c.bf16 %v10764, %v10763
      %v10788 = vpack.c.bf16 %v10766, %v10765
      %v10789 = vpack.c.bf16 %v10768, %v10767
      %v10790 = vpack.c.bf16 %v10770, %v10769
      %v10791 = vpack.c.bf16 %v10772, %v10771
      %v10792 = vpack.c.bf16 %v10774, %v10773
      %v10793 = vpack.c.bf16 %v10776, %v10775
      %v10794 = vpack.c.bf16 %v10778, %v10777
      %v10795 = vld [vmem:[%s13] sm:$0xf]
      %v10796 = vld [vmem:[%s14] sm:$0x1]
      %v10798 = vlaneseq
      %v10799 = vshrl.u32 %v10798, 7
      %v10800 = vsub.s32 0, %v10799
      %v10801 = vrot.slane %v10796, %v10800
      %v10804 = vsel %vm1962, %v10779, 0
      %v10807 = vsel %vm1962, %v10780, 0
      %v10810 = vsel %vm1962, %v10781, 0
      %v10813 = vsel %vm1962, %v10782, 0
      %v10816 = vsel %vm1962, %v10783, 0
      %v10819 = vsel %vm1962, %v10784, 0
      %v10822 = vsel %vm1962, %v10785, 0
      %v10825 = vsel %vm1962, %v10786, 0
      %v10828 = vsel %vm1962, %v10787, 0
      %v10831 = vsel %vm1962, %v10788, 0
      %v10834 = vsel %vm1962, %v10789, 0
      %v10837 = vsel %vm1962, %v10790, 0
      %v10840 = vsel %vm1962, %v10791, 0
      %v10843 = vsel %vm1962, %v10792, 0
      %v10846 = vsel %vm1962, %v10793, 0
      %v10849 = vsel %vm1962, %v10794, 0
      %v10852 = vsel %vm3982, %v10795, 0
      %10854 = vmatprep.subr.bf16.mxu0 0
      %10855 = vmatpush1.bf16.msra.mxu0 0
      %10856 = vmatprep.subr.bf16.mxu0 0
      %10857 = vmatpush1.bf16.msra.mxu0 0
      %10858 = vmatprep.subr.bf16.mxu0 0
      %10859 = vmatpush1.bf16.msra.mxu0 0
      %10860 = vmatprep.subr.bf16.mxu0 0
      %10861 = vmatpush1.bf16.msra.mxu0 0
      %10862 = vmatprep.subr.bf16.mxu0 0
      %10863 = vmatpush1.bf16.msra.mxu0 0
      %10864 = vmatprep.subr.bf16.mxu0 0
      %10865 = vmatpush1.bf16.msra.mxu0 0
      %10866 = vmatprep.subr.bf16.mxu0 0
      %10867 = vmatpush1.bf16.msra.mxu0 0
      %10868 = vmatprep.subr.bf16.mxu0 0
      %10869 = vmatpush1.bf16.msra.mxu0 %v10852
      %10870 = vmatprep.subr.bf16.mxu0 0
      %10871 = vmatpush2.bf16.msra.mxu0 0
      %10872 = vmatprep.subr.bf16.mxu0 0
      %10873 = vmatpush2.bf16.msra.mxu0 0
      %10874 = vmatprep.subr.bf16.mxu0 0
      %10875 = vmatpush2.bf16.msra.mxu0 0
      %10876 = vmatprep.subr.bf16.mxu0 0
      %10877 = vmatpush2.bf16.msra.mxu0 0
      %10878 = vmatprep.subr.bf16.mxu0 0
      %10879 = vmatpush2.bf16.msra.mxu0 0
      %10880 = vmatprep.subr.bf16.mxu0 0
      %10881 = vmatpush2.bf16.msra.mxu0 0
      %10882 = vmatprep.subr.bf16.mxu0 0
      %10883 = vmatpush2.bf16.msra.mxu0 0
      %10884 = vmatprep.subr.bf16.mxu0 0
      %10885 = vmatpush2.bf16.msra.mxu0 0
      %10886 = vmatprep.mubr.bf16.mxu0 0
      %10887 = vmatmul.mubr.bf16.gmra.mxu0 %v10804
      %v10888 = vpop.f32.mrf.mxu0
      %v10889 = vadd.f32 %v10801, %v10888
      %v10890 = vpop.f32.mrf.mxu0
      %v10891 = vpop.f32.mrf.mxu0
      %v10892 = vadd.f32 %v10801, %v10891
      %v10893 = vpop.f32.mrf.mxu0
      %10894 = vmatprep.mubr.bf16.mxu0 0
      %10895 = vmatmul.mubr.bf16.gmra.mxu0 %v10807
      %v10896 = vpop.f32.mrf.mxu0
      %v10897 = vadd.f32 %v10801, %v10896
      %v10898 = vpop.f32.mrf.mxu0
      %v10899 = vpop.f32.mrf.mxu0
      %v10900 = vadd.f32 %v10801, %v10899
      %v10901 = vpop.f32.mrf.mxu0
      %10902 = vmatprep.mubr.bf16.mxu0 0
      %10903 = vmatmul.mubr.bf16.gmra.mxu0 %v10810
      %v10904 = vpop.f32.mrf.mxu0
      %v10905 = vadd.f32 %v10801, %v10904
      %v10906 = vpop.f32.mrf.mxu0
      %v10907 = vpop.f32.mrf.mxu0
      %v10908 = vadd.f32 %v10801, %v10907
      %v10909 = vpop.f32.mrf.mxu0
      %10910 = vmatprep.mubr.bf16.mxu0 0
      %10911 = vmatmul.mubr.bf16.gmra.mxu0 %v10813
      %v10912 = vpop.f32.mrf.mxu0
      %v10913 = vadd.f32 %v10801, %v10912
      %v10914 = vpop.f32.mrf.mxu0
      %v10915 = vpop.f32.mrf.mxu0
      %v10916 = vadd.f32 %v10801, %v10915
      %v10917 = vpop.f32.mrf.mxu0
      %10918 = vmatprep.mubr.bf16.mxu0 0
      %10919 = vmatmul.mubr.bf16.gmra.mxu0 %v10816
      %v10920 = vpop.f32.mrf.mxu0
      %v10921 = vadd.f32 %v10801, %v10920
      %v10922 = vpop.f32.mrf.mxu0
      %v10923 = vpop.f32.mrf.mxu0
      %v10924 = vadd.f32 %v10801, %v10923
      %v10925 = vpop.f32.mrf.mxu0
      %10926 = vmatprep.mubr.bf16.mxu0 0
      %10927 = vmatmul.mubr.bf16.gmra.mxu0 %v10819
      %v10928 = vpop.f32.mrf.mxu0
      %v10929 = vadd.f32 %v10801, %v10928
      %v10930 = vpop.f32.mrf.mxu0
      %v10931 = vpop.f32.mrf.mxu0
      %v10932 = vadd.f32 %v10801, %v10931
      %v10933 = vpop.f32.mrf.mxu0
      %10934 = vmatprep.mubr.bf16.mxu0 0
      %10935 = vmatmul.mubr.bf16.gmra.mxu0 %v10822
      %v10936 = vpop.f32.mrf.mxu0
      %v10937 = vadd.f32 %v10801, %v10936
      %v10938 = vpop.f32.mrf.mxu0
      %v10939 = vpop.f32.mrf.mxu0
      %v10940 = vadd.f32 %v10801, %v10939
      %v10941 = vpop.f32.mrf.mxu0
      %10942 = vmatprep.mubr.bf16.mxu0 0
      %10943 = vmatmul.mubr.bf16.gmra.mxu0 %v10825
      %v10944 = vpop.f32.mrf.mxu0
      %v10945 = vadd.f32 %v10801, %v10944
      %v10946 = vpop.f32.mrf.mxu0
      %v10947 = vpop.f32.mrf.mxu0
      %v10948 = vadd.f32 %v10801, %v10947
      %v10949 = vpop.f32.mrf.mxu0
      %10950 = vmatprep.mubr.bf16.mxu0 0
      %10951 = vmatmul.mubr.bf16.gmra.mxu0 %v10828
      %v10952 = vpop.f32.mrf.mxu0
      %v10953 = vadd.f32 %v10801, %v10952
      %v10954 = vpop.f32.mrf.mxu0
      %v10955 = vpop.f32.mrf.mxu0
      %v10956 = vadd.f32 %v10801, %v10955
      %v10957 = vpop.f32.mrf.mxu0
      %10958 = vmatprep.mubr.bf16.mxu0 0
      %10959 = vmatmul.mubr.bf16.gmra.mxu0 %v10831
      %v10960 = vpop.f32.mrf.mxu0
      %v10961 = vadd.f32 %v10801, %v10960
      %v10962 = vpop.f32.mrf.mxu0
      %v10963 = vpop.f32.mrf.mxu0
      %v10964 = vadd.f32 %v10801, %v10963
      %v10965 = vpop.f32.mrf.mxu0
      %10966 = vmatprep.mubr.bf16.mxu0 0
      %10967 = vmatmul.mubr.bf16.gmra.mxu0 %v10834
      %v10968 = vpop.f32.mrf.mxu0
      %v10969 = vadd.f32 %v10801, %v10968
      %v10970 = vpop.f32.mrf.mxu0
      %v10971 = vpop.f32.mrf.mxu0
      %v10972 = vadd.f32 %v10801, %v10971
      %v10973 = vpop.f32.mrf.mxu0
      %10974 = vmatprep.mubr.bf16.mxu0 0
      %10975 = vmatmul.mubr.bf16.gmra.mxu0 %v10837
      %v10976 = vpop.f32.mrf.mxu0
      %v10977 = vadd.f32 %v10801, %v10976
      %v10978 = vpop.f32.mrf.mxu0
      %v10979 = vpop.f32.mrf.mxu0
      %v10980 = vadd.f32 %v10801, %v10979
      %v10981 = vpop.f32.mrf.mxu0
      %10982 = vmatprep.mubr.bf16.mxu0 0
      %10983 = vmatmul.mubr.bf16.gmra.mxu0 %v10840
      %v10984 = vpop.f32.mrf.mxu0
      %v10985 = vadd.f32 %v10801, %v10984
      %v10986 = vpop.f32.mrf.mxu0
      %v10987 = vpop.f32.mrf.mxu0
      %v10988 = vadd.f32 %v10801, %v10987
      %v10989 = vpop.f32.mrf.mxu0
      %10990 = vmatprep.mubr.bf16.mxu0 0
      %10991 = vmatmul.mubr.bf16.gmra.mxu0 %v10843
      %v10992 = vpop.f32.mrf.mxu0
      %v10993 = vadd.f32 %v10801, %v10992
      %v10994 = vpop.f32.mrf.mxu0
      %v10995 = vpop.f32.mrf.mxu0
      %v10996 = vadd.f32 %v10801, %v10995
      %v10997 = vpop.f32.mrf.mxu0
      %10998 = vmatprep.mubr.bf16.mxu0 0
      %10999 = vmatmul.mubr.bf16.gmra.mxu0 %v10846
      %v11000 = vpop.f32.mrf.mxu0
      %v11001 = vadd.f32 %v10801, %v11000
      %v11002 = vpop.f32.mrf.mxu0
      %v11003 = vpop.f32.mrf.mxu0
      %v11004 = vadd.f32 %v10801, %v11003
      %v11005 = vpop.f32.mrf.mxu0
      %11006 = vmatprep.mubr.bf16.mxu0 0
      %11007 = vmatmul.mubr.bf16.gmra.mxu0 %v10849
      %v11008 = vpop.f32.mrf.mxu0
      %v11009 = vadd.f32 %v10801, %v11008
      %v11010 = vpop.f32.mrf.mxu0
      %v11011 = vpop.f32.mrf.mxu0
      %v11012 = vadd.f32 %v10801, %v11011
      %v11013 = vpop.f32.mrf.mxu0
      %11014 = vdwg.mxu0
      %vm11015 = vcmask 23552
      %11016 = vst.msk [vmem:[%s494] sm:$0xff] %vm11015, %v10889
      %11017 = vst.msk [vmem:[%s494 + $0x8] sm:$0xff] %vm11015, %v10892
      %11018 = vst.msk [vmem:[%s494 + $0x10] sm:$0xff] %vm11015, %v10897
      %11019 = vst.msk [vmem:[%s494 + $0x18] sm:$0xff] %vm11015, %v10900
      %11020 = vst.msk [vmem:[%s494 + $0x20] sm:$0xff] %vm11015, %v10905
      %11021 = vst.msk [vmem:[%s494 + $0x28] sm:$0xff] %vm11015, %v10908
      %11022 = vst.msk [vmem:[%s494 + $0x30] sm:$0xff] %vm11015, %v10913
      %11023 = vst.msk [vmem:[%s494 + $0x38] sm:$0xff] %vm11015, %v10916
      %11024 = vst.msk [vmem:[%s494 + $0x40] sm:$0xff] %vm11015, %v10921
      %11025 = vst.msk [vmem:[%s494 + $0x48] sm:$0xff] %vm11015, %v10924
      %11026 = vst.msk [vmem:[%s494 + $0x50] sm:$0xff] %vm11015, %v10929
      %11027 = vst.msk [vmem:[%s494 + $0x58] sm:$0xff] %vm11015, %v10932
      %11028 = vst.msk [vmem:[%s494 + $0x60] sm:$0xff] %vm11015, %v10937
      %11029 = vst.msk [vmem:[%s494 + $0x68] sm:$0xff] %vm11015, %v10940
      %11030 = vst.msk [vmem:[%s494 + $0x70] sm:$0xff] %vm11015, %v10945
      %11031 = vst.msk [vmem:[%s494 + $0x78] sm:$0xff] %vm11015, %v10948
      %11032 = vst.msk [vmem:[%s494 + $0x80] sm:$0xff] %vm11015, %v10953
      %11033 = vst.msk [vmem:[%s494 + $0x88] sm:$0xff] %vm11015, %v10956
      %11034 = vst.msk [vmem:[%s494 + $0x90] sm:$0xff] %vm11015, %v10961
      %11035 = vst.msk [vmem:[%s494 + $0x98] sm:$0xff] %vm11015, %v10964
      %11036 = vst.msk [vmem:[%s494 + $0xa0] sm:$0xff] %vm11015, %v10969
      %11037 = vst.msk [vmem:[%s494 + $0xa8] sm:$0xff] %vm11015, %v10972
      %11038 = vst.msk [vmem:[%s494 + $0xb0] sm:$0xff] %vm11015, %v10977
      %11039 = vst.msk [vmem:[%s494 + $0xb8] sm:$0xff] %vm11015, %v10980
      %11040 = vst.msk [vmem:[%s494 + $0xc0] sm:$0xff] %vm11015, %v10985
      %11041 = vst.msk [vmem:[%s494 + $0xc8] sm:$0xff] %vm11015, %v10988
      %11042 = vst.msk [vmem:[%s494 + $0xd0] sm:$0xff] %vm11015, %v10993
      %11043 = vst.msk [vmem:[%s494 + $0xd8] sm:$0xff] %vm11015, %v10996
      %11044 = vst.msk [vmem:[%s494 + $0xe0] sm:$0xff] %vm11015, %v11001
      %11045 = vst.msk [vmem:[%s494 + $0xe8] sm:$0xff] %vm11015, %v11004
      %11046 = vst.msk [vmem:[%s494 + $0xf0] sm:$0xff] %vm11015, %v11009
      %11047 = vst.msk [vmem:[%s494 + $0xf8] sm:$0xff] %vm11015, %v11012
      %p11048 = scmp.lt.s32.totalorder %s26, 1
      %s11049 = scalar_select %p11048, %s26, 1
      %s11050 = smul.addr %s11049, 32
      %s11051 = smul.addr %s11050, 8
      %s11052 = scalar_lea.vmem %s15, %s11051
      // Predicated region
      $region81: #{_lambda_.1} parent=79 // pred_check
        %p11053 = pneg %p364
      $region82: #{_lambda_.1} parent=79 // pred_check_branch
        %11055 = sbr.rel (%p11053) target = $region84
      $region83: #{_lambda_.1} parent=79 // pred_region
        _
      $region84: #{_lambda_.1} parent=79 // pred_fallthru
        _
    $region80: #{_lambda_.1} parent=5 // pred_fallthru
      _
    %p11056 = scmp.le.s32.totalorder 2, %s21
    // Predicated region
    $region85: #{_lambda_.1} parent=5 // pred_check
      %p11057 = pneg %p11056
    $region86: #{_lambda_.1} parent=5 // pred_check_branch
      %11059 = sbr.rel (%p11057) target = $region88
    $region87: #{_lambda_.1} parent=5 // pred_region
      %s11060 = ssub.s32 %s21, 2
      // Predicated region
      $region89: #{_lambda_.1} parent=87 // pred_check
        %p11061 = pneg %p370
      $region90: #{_lambda_.1} parent=87 // pred_check_branch
        %11063 = sbr.rel (%p11061) target = $region92
      $region91: #{_lambda_.1} parent=87 // pred_region
        %p11064 = scmp.lt.s32.totalorder %s27, 1
        %s11065 = scalar_select %p11064, %s27, 1
        %s11066 = smul.addr %s11065, 32
        %s11067 = smul.addr %s11066, 8
        %s11068 = scalar_lea.vmem %s15, %s11067
      $region92: #{_lambda_.1} parent=87 // pred_fallthru
        _
    $region88: #{_lambda_.1} parent=5 // pred_fallthru
      _
  $region6: #{_lambda_.1} parent=0 // loop_footer
    %s25 = sadd.s32 1, %s21
  $region7: #{_lambda_.1} parent=0 // loop_footer_branch
    %20 = sbr.rel target = $region3
  $region8: #{_lambda_.1} parent=0 // loop_exit
    _

</llo_original>
